<compile_context>
chip_gen: v7x
topology: tpu7x:2x2x1
jax: 0.10.0
libtpu: 0.0.40
codegen_flags: <defaults>
</compile_context>

<pallas_src>
import jax
import jax.numpy as jnp
from jax.experimental import pallas as pl
from jax.experimental.pallas import tpu as pltpu

EPS = 1e-5  # PyTorch BatchNorm2d default eps
LANES = 128


def _round_up(v, m):
    return (v + m - 1) // m * m


# ---------------------------------------------------------------------------
# Fused BasicBlock kernel factory
# ---------------------------------------------------------------------------
def _make_basic_block_kernel(stride, ho, wo, hq, cp_in, cp_out):
    m = ho * wo

    def kernel(x1_ref, w1_ref, b1_ref, w2_ref, b2_ref, id_ref, o_ref, h_ref):
        # ----- conv1 (3x3, stride) + bn1 (scale folded) + relu --------------
        # 9 accumulated bf16 matmuls over shifted parity-plane slices.
        acc = jnp.zeros((m, cp_out), jnp.float32)
        for dy in range(3):
            for dx in range(3):
                plane = (dy % stride) * stride + (dx % stride)
                oy = plane * hq + dy // stride
                ox = dx // stride
                lhs = x1_ref[0, oy:oy + ho, ox:ox + wo, :]
                lhs = lhs.reshape(m, cp_in).astype(jnp.bfloat16)
                acc = acc + jnp.dot(lhs, w1_ref[dy * 3 + dx],
                                    preferred_element_type=jnp.float32)
        hact = jnp.maximum(acc + b1_ref[...], 0.0)

        # Stash the (spatially padded) intermediate entirely in VMEM.
        h_ref[...] = jnp.zeros_like(h_ref)
        h_ref[1:ho + 1, 1:wo + 1, :] = hact.reshape(ho, wo, cp_out)

        # ----- conv2 (3x3, stride 1) + bn2 (scale folded) + identity + relu --
        acc2 = jnp.zeros((m, cp_out), jnp.float32)
        for dy in range(3):
            for dx in range(3):
                lhs = h_ref[dy:dy + ho, dx:dx + wo, :]
                lhs = lhs.reshape(m, cp_out).astype(jnp.bfloat16)
                acc2 = acc2 + jnp.dot(lhs, w2_ref[dy * 3 + dx],
                                      preferred_element_type=jnp.float32)
        out = acc2 + b2_ref[...] + id_ref[0].reshape(m, cp_out)
        o_ref[0] = jnp.maximum(out, 0.0).reshape(ho, wo, cp_out)

    return kernel


# ---------------------------------------------------------------------------
# Parameters (deterministic, synthetic) and BN folding
# ---------------------------------------------------------------------------
def init_params(key, in_planes, out_planes):
    k1, k2, k3, k4 = jax.random.split(key, 4)
    w1 = 0.1 * jax.random.normal(k1, (3, 3, in_planes, out_planes), jnp.float32)
    w2 = 0.1 * jax.random.normal(k2, (3, 3, out_planes, out_planes), jnp.float32)

    def bn(k, c):
        ka, kb, kc, kd = jax.random.split(k, 4)
        gamma = 1.0 + 0.1 * jax.random.normal(ka, (c,), jnp.float32)
        beta = 0.1 * jax.random.normal(kb, (c,), jnp.float32)
        mean = 0.1 * jax.random.normal(kc, (c,), jnp.float32)
        var = jnp.abs(jax.random.normal(kd, (c,), jnp.float32)) + 0.5
        return (gamma, beta, mean, var)

    return dict(w1=w1, bn1=bn(k3, out_planes), w2=w2, bn2=bn(k4, out_planes))


def _fold_bn(bn_params):
    gamma, beta, mean, var = bn_params
    scale = gamma / jnp.sqrt(var + EPS)
    bias = beta - mean * scale
    return scale, bias


# ---------------------------------------------------------------------------
# BasicBlock forward (NCHW in / NCHW out, matching the PyTorch module)
# ---------------------------------------------------------------------------
def basic_block_forward(x_nchw, params, *, stride=1, opt=0):
    n, cin, h, w = x_nchw.shape
    x = jnp.transpose(x_nchw, (0, 2, 3, 1)).astype(jnp.float32)   # NCHW -> NHWC
    w1, w2 = params["w1"], params["w2"]
    cout = w1.shape[-1]
    s1, b1 = _fold_bn(params["bn1"])
    s2, b2 = _fold_bn(params["bn2"])

    cp_in = _round_up(cin, LANES)     # lane-dense K for conv1
    cp_out = _round_up(cout, LANES)   # lane-dense output / K for conv2
    ho = (h - 1) // stride + 1
    wo = (w - 1) // stride + 1
    hq = -(-(h + 2) // stride)        # rows per parity plane
    wq = -(-(w + 2) // stride)

    # conv1 input: spatial pad (+1), channel zero-pad to cp_in, and (for
    # stride>1) parity-decompose into stride*stride planes stacked along H so
    # every in-kernel tap read is a contiguous slice.  No 9x im2col blowup.
    xpad = jnp.pad(x, ((0, 0), (1, 1), (1, 1), (0, cp_in - cin)))
    planes = []
    for py in range(stride):
        for px in range(stride):
            par = xpad[:, py::stride, px::stride, :]
            planes.append(jnp.pad(
                par,
                ((0, 0), (0, hq - par.shape[1]), (0, wq - par.shape[2]), (0, 0))))
    x1 = planes[0] if len(planes) == 1 else jnp.concatenate(planes, axis=1)
    x1 = x1.astype(jnp.float32)       # (n, stride*stride*hq, wq, cp_in)

    # Weights: fold BN scale, zero-pad channels to the lane width, cast bf16.
    w1p = jnp.pad(w1 * s1[None, None, None, :],
                  ((0, 0), (0, 0), (0, cp_in - cin), (0, cp_out - cout)))
    w1p = w1p.reshape(9, cp_in, cp_out).astype(jnp.bfloat16)
    b1p = jnp.pad(b1, (0, cp_out - cout)).reshape(1, cp_out).astype(jnp.float32)
    w2p = jnp.pad(w2 * s2[None, None, None, :],
                  ((0, 0), (0, 0), (0, cp_out - cout), (0, cp_out - cout)))
    w2p = w2p.reshape(9, cp_out, cp_out).astype(jnp.bfloat16)
    b2p = jnp.pad(b2, (0, cp_out - cout)).reshape(1, cp_out).astype(jnp.float32)

    # Identity branch (matches the PyTorch F.pad shortcut), lane-padded.
    if opt != 0:
        ident = x[:, ::2, ::2, :]
        ident = jnp.pad(ident, ((0, 0), (0, 0), (0, 0), (opt // 2, opt // 2)))
    else:
        ident = x
    ident = jnp.pad(ident, ((0, 0), (0, 0), (0, 0), (0, cp_out - ident.shape[-1])))
    ident = ident.astype(jnp.float32)  # (n, ho, wo, cp_out)

    kernel = _make_basic_block_kernel(stride, ho, wo, hq, cp_in, cp_out)
    out = pl.pallas_call(
        kernel,
        out_shape=jax.ShapeDtypeStruct((n, ho, wo, cp_out), jnp.float32),
        grid_spec=pltpu.PrefetchScalarGridSpec(
            num_scalar_prefetch=0,
            grid=(n,),
            in_specs=[
                pl.BlockSpec((1, stride * stride * hq, wq, cp_in),
                             lambda i: (i, 0, 0, 0)),
                pl.BlockSpec((9, cp_in, cp_out), lambda i: (0, 0, 0)),
                pl.BlockSpec((1, cp_out), lambda i: (0, 0)),
                pl.BlockSpec((9, cp_out, cp_out), lambda i: (0, 0, 0)),
                pl.BlockSpec((1, cp_out), lambda i: (0, 0)),
                pl.BlockSpec((1, ho, wo, cp_out), lambda i: (i, 0, 0, 0)),
            ],
            out_specs=pl.BlockSpec((1, ho, wo, cp_out), lambda i: (i, 0, 0, 0)),
            scratch_shapes=[pltpu.VMEM((ho + 2, wo + 2, cp_out), jnp.float32)],
        ),
        compiler_params=pltpu.CompilerParams(
            dimension_semantics=("parallel",)),
    )(x1, w1p, b1p, w2p, b2p, ident)

    out = out[..., :cout]                       # drop lane padding
    return jnp.transpose(out, (0, 3, 1, 2))     # NHWC -> NCHW


# ---------------------------------------------------------------------------
# Pure-JAX reference (for in-script verification)
# ---------------------------------------------------------------------------
def _ref_forward(x_nchw, params, *, stride=1, opt=0):
    x = jnp.transpose(x_nchw, (0, 2, 3, 1)).astype(jnp.float32)

    def conv(y, w, st):
        return jax.lax.conv_general_dilated(
            y, w, (st, st), [(1, 1), (1, 1)],
            dimension_numbers=("NHWC", "HWIO", "NHWC"))

    def bn(y, p):
        gamma, beta, mean, var = p
        return (y - mean) / jnp.sqrt(var + EPS) * gamma + beta

    out = jax.nn.relu(bn(conv(x, params["w1"], stride), params["bn1"]))
    out = bn(conv(out, params["w2"], 1), params["bn2"])
    if opt != 0:
        ident = jnp.pad(x[:, ::2, ::2, :],
                        ((0, 0), (0, 0), (0, 0), (opt // 2, opt // 2)))
    else:
        ident = x
    out = jax.nn.relu(out + ident)
    return jnp.transpose(out, (0, 3, 1, 2))


if __name__ == "__main__":
    key = jax.random.PRNGKey(0)
    kx, kp1, kp2 = jax.random.split(key, 3)

    # bf16 MXU operands + f32 accumulation => loosened tolerance vs f32 ref.
    ATOL = RTOL = 5e-2

    # Case A: default BasicBlock (in=out=8, stride=1, opt=0), x: (2, 8, 16, 16)
    x = jax.random.normal(kx, (2, 8, 16, 16), jnp.float32)
    params_a = init_params(kp1, 8, 8)
    out_a = jax.block_until_ready(basic_block_forward(x, params_a, stride=1, opt=0))
    ref_a = _ref_forward(x, params_a, stride=1, opt=0)
    assert out_a.shape == (2, 8, 16, 16)
    assert jnp.allclose(out_a, ref_a, atol=ATOL, rtol=RTOL), \
        f"case A max err {jnp.max(jnp.abs(out_a - ref_a))}"

    # Case B: downsampling block (in=8, out=16, stride=2, opt=8)
    params_b = init_params(kp2, 8, 16)
    out_b = jax.block_until_ready(basic_block_forward(x, params_b, stride=2, opt=8))
    ref_b = _ref_forward(x, params_b, stride=2, opt=8)
    assert out_b.shape == (2, 16, 8, 8)
    assert jnp.allclose(out_b, ref_b, atol=ATOL, rtol=RTOL), \
        f"case B max err {jnp.max(jnp.abs(out_b - ref_b))}"

    print("KERNEL_OK")
</pallas_src>

<mosaic_0001>
module attributes {stable_mosaic.version = 11 : i64} {
  func.func @kernel(%arg0: i32, %arg1: memref<1x18x18x128xf32, #tpu.memory_space<vmem>>, %arg2: memref<9x128x128xbf16, #tpu.memory_space<vmem>>, %arg3: memref<1x128xf32, #tpu.memory_space<vmem>>, %arg4: memref<9x128x128xbf16, #tpu.memory_space<vmem>>, %arg5: memref<1x128xf32, #tpu.memory_space<vmem>>, %arg6: memref<1x16x16x128xf32, #tpu.memory_space<vmem>>, %arg7: memref<1x16x16x128xf32, #tpu.memory_space<vmem>>, %arg8: memref<18x18x128xf32, #tpu.memory_space<vmem>>) attributes {dimension_semantics = [#tpu.dimension_semantics<parallel>], iteration_bounds = array<i64: 2>, scalar_prefetch = 0 : i64, scratch_operands = 1 : i64, tpu.core_type = #tpu.core_type<tc>, window_params = [{transform_indices = @transform_0, window_bounds = array<i64: 1, 18, 18, 128>}, {pipeline_mode = #tpu.pipeline_mode<synchronous>, transform_indices = @transform_1, window_bounds = array<i64: 9, 128, 128>}, {pipeline_mode = #tpu.pipeline_mode<synchronous>, transform_indices = @transform_2, window_bounds = array<i64: 1, 128>}, {pipeline_mode = #tpu.pipeline_mode<synchronous>, transform_indices = @transform_3, window_bounds = array<i64: 9, 128, 128>}, {pipeline_mode = #tpu.pipeline_mode<synchronous>, transform_indices = @transform_4, window_bounds = array<i64: 1, 128>}, {transform_indices = @transform_5, window_bounds = array<i64: 1, 16, 16, 128>}, {transform_indices = @transform_6, window_bounds = array<i64: 1, 16, 16, 128>}]} {
    %cst = arith.constant 0.000000e+00 : f32
    %0 = vector.broadcast %cst : f32 to vector<256x128xf32>
    %c0 = arith.constant 0 : index
    %c0_0 = arith.constant 0 : index
    %c0_1 = arith.constant 0 : index
    %c0_2 = arith.constant 0 : index
    %1 = vector.load %arg1[%c0, %c0_0, %c0_1, %c0_2] : memref<1x18x18x128xf32, #tpu.memory_space<vmem>>, vector<1x16x16x128xf32>
    %2 = vector.shape_cast %1 : vector<1x16x16x128xf32> to vector<16x16x128xf32>
    %3 = vector.shape_cast %2 : vector<16x16x128xf32> to vector<256x128xf32>
    %4 = arith.truncf %3 : vector<256x128xf32> to vector<256x128xbf16>
    %c0_3 = arith.constant 0 : index
    %c0_4 = arith.constant 0 : index
    %c0_5 = arith.constant 0 : index
    %5 = vector.load %arg2[%c0_3, %c0_4, %c0_5] : memref<9x128x128xbf16, #tpu.memory_space<vmem>>, vector<1x128x128xbf16>
    %6 = vector.shape_cast %5 : vector<1x128x128xbf16> to vector<128x128xbf16>
    %cst_6 = arith.constant dense<0.000000e+00> : vector<256x128xf32>
    %7 = tpu.matmul %4, %6, %cst_6 {dimension_numbers = #tpu.dot_dimension_numbers<[1], [0], [0], [1], [0, 0, 1, 1], [], []>} : vector<256x128xbf16>, vector<128x128xbf16>, vector<256x128xf32> -> vector<256x128xf32>
    %8 = arith.addf %0, %7 : vector<256x128xf32>
    %c0_7 = arith.constant 0 : index
    %c0_8 = arith.constant 0 : index
    %c1 = arith.constant 1 : index
    %c0_9 = arith.constant 0 : index
    %9 = vector.load %arg1[%c0_7, %c0_8, %c1, %c0_9] : memref<1x18x18x128xf32, #tpu.memory_space<vmem>>, vector<1x16x16x128xf32>
    %10 = vector.shape_cast %9 : vector<1x16x16x128xf32> to vector<16x16x128xf32>
    %11 = vector.shape_cast %10 : vector<16x16x128xf32> to vector<256x128xf32>
    %12 = arith.truncf %11 : vector<256x128xf32> to vector<256x128xbf16>
    %c1_10 = arith.constant 1 : index
    %c0_11 = arith.constant 0 : index
    %c0_12 = arith.constant 0 : index
    %13 = vector.load %arg2[%c1_10, %c0_11, %c0_12] : memref<9x128x128xbf16, #tpu.memory_space<vmem>>, vector<1x128x128xbf16>
    %14 = vector.shape_cast %13 : vector<1x128x128xbf16> to vector<128x128xbf16>
    %cst_13 = arith.constant dense<0.000000e+00> : vector<256x128xf32>
    %15 = tpu.matmul %12, %14, %cst_13 {dimension_numbers = #tpu.dot_dimension_numbers<[1], [0], [0], [1], [0, 0, 1, 1], [], []>} : vector<256x128xbf16>, vector<128x128xbf16>, vector<256x128xf32> -> vector<256x128xf32>
    %16 = arith.addf %8, %15 : vector<256x128xf32>
    %c0_14 = arith.constant 0 : index
    %c0_15 = arith.constant 0 : index
    %c2 = arith.constant 2 : index
    %c0_16 = arith.constant 0 : index
    %17 = vector.load %arg1[%c0_14, %c0_15, %c2, %c0_16] : memref<1x18x18x128xf32, #tpu.memory_space<vmem>>, vector<1x16x16x128xf32>
    %18 = vector.shape_cast %17 : vector<1x16x16x128xf32> to vector<16x16x128xf32>
    %19 = vector.shape_cast %18 : vector<16x16x128xf32> to vector<256x128xf32>
    %20 = arith.truncf %19 : vector<256x128xf32> to vector<256x128xbf16>
    %c2_17 = arith.constant 2 : index
    %c0_18 = arith.constant 0 : index
    %c0_19 = arith.constant 0 : index
    %21 = vector.load %arg2[%c2_17, %c0_18, %c0_19] : memref<9x128x128xbf16, #tpu.memory_space<vmem>>, vector<1x128x128xbf16>
    %22 = vector.shape_cast %21 : vector<1x128x128xbf16> to vector<128x128xbf16>
    %cst_20 = arith.constant dense<0.000000e+00> : vector<256x128xf32>
    %23 = tpu.matmul %20, %22, %cst_20 {dimension_numbers = #tpu.dot_dimension_numbers<[1], [0], [0], [1], [0, 0, 1, 1], [], []>} : vector<256x128xbf16>, vector<128x128xbf16>, vector<256x128xf32> -> vector<256x128xf32>
    %24 = arith.addf %16, %23 : vector<256x128xf32>
    %c0_21 = arith.constant 0 : index
    %c1_22 = arith.constant 1 : index
    %c0_23 = arith.constant 0 : index
    %c0_24 = arith.constant 0 : index
    %25 = vector.load %arg1[%c0_21, %c1_22, %c0_23, %c0_24] : memref<1x18x18x128xf32, #tpu.memory_space<vmem>>, vector<1x16x16x128xf32>
    %26 = vector.shape_cast %25 : vector<1x16x16x128xf32> to vector<16x16x128xf32>
    %27 = vector.shape_cast %26 : vector<16x16x128xf32> to vector<256x128xf32>
    %28 = arith.truncf %27 : vector<256x128xf32> to vector<256x128xbf16>
    %c3 = arith.constant 3 : index
    %c0_25 = arith.constant 0 : index
    %c0_26 = arith.constant 0 : index
    %29 = vector.load %arg2[%c3, %c0_25, %c0_26] : memref<9x128x128xbf16, #tpu.memory_space<vmem>>, vector<1x128x128xbf16>
    %30 = vector.shape_cast %29 : vector<1x128x128xbf16> to vector<128x128xbf16>
    %cst_27 = arith.constant dense<0.000000e+00> : vector<256x128xf32>
    %31 = tpu.matmul %28, %30, %cst_27 {dimension_numbers = #tpu.dot_dimension_numbers<[1], [0], [0], [1], [0, 0, 1, 1], [], []>} : vector<256x128xbf16>, vector<128x128xbf16>, vector<256x128xf32> -> vector<256x128xf32>
    %32 = arith.addf %24, %31 : vector<256x128xf32>
    %c0_28 = arith.constant 0 : index
    %c1_29 = arith.constant 1 : index
    %c1_30 = arith.constant 1 : index
    %c0_31 = arith.constant 0 : index
    %33 = vector.load %arg1[%c0_28, %c1_29, %c1_30, %c0_31] : memref<1x18x18x128xf32, #tpu.memory_space<vmem>>, vector<1x16x16x128xf32>
    %34 = vector.shape_cast %33 : vector<1x16x16x128xf32> to vector<16x16x128xf32>
    %35 = vector.shape_cast %34 : vector<16x16x128xf32> to vector<256x128xf32>
    %36 = arith.truncf %35 : vector<256x128xf32> to vector<256x128xbf16>
    %c4 = arith.constant 4 : index
    %c0_32 = arith.constant 0 : index
    %c0_33 = arith.constant 0 : index
    %37 = vector.load %arg2[%c4, %c0_32, %c0_33] : memref<9x128x128xbf16, #tpu.memory_space<vmem>>, vector<1x128x128xbf16>
    %38 = vector.shape_cast %37 : vector<1x128x128xbf16> to vector<128x128xbf16>
    %cst_34 = arith.constant dense<0.000000e+00> : vector<256x128xf32>
    %39 = tpu.matmul %36, %38, %cst_34 {dimension_numbers = #tpu.dot_dimension_numbers<[1], [0], [0], [1], [0, 0, 1, 1], [], []>} : vector<256x128xbf16>, vector<128x128xbf16>, vector<256x128xf32> -> vector<256x128xf32>
    %40 = arith.addf %32, %39 : vector<256x128xf32>
    %c0_35 = arith.constant 0 : index
    %c1_36 = arith.constant 1 : index
    %c2_37 = arith.constant 2 : index
    %c0_38 = arith.constant 0 : index
    %41 = vector.load %arg1[%c0_35, %c1_36, %c2_37, %c0_38] : memref<1x18x18x128xf32, #tpu.memory_space<vmem>>, vector<1x16x16x128xf32>
    %42 = vector.shape_cast %41 : vector<1x16x16x128xf32> to vector<16x16x128xf32>
    %43 = vector.shape_cast %42 : vector<16x16x128xf32> to vector<256x128xf32>
    %44 = arith.truncf %43 : vector<256x128xf32> to vector<256x128xbf16>
    %c5 = arith.constant 5 : index
    %c0_39 = arith.constant 0 : index
    %c0_40 = arith.constant 0 : index
    %45 = vector.load %arg2[%c5, %c0_39, %c0_40] : memref<9x128x128xbf16, #tpu.memory_space<vmem>>, vector<1x128x128xbf16>
    %46 = vector.shape_cast %45 : vector<1x128x128xbf16> to vector<128x128xbf16>
    %cst_41 = arith.constant dense<0.000000e+00> : vector<256x128xf32>
    %47 = tpu.matmul %44, %46, %cst_41 {dimension_numbers = #tpu.dot_dimension_numbers<[1], [0], [0], [1], [0, 0, 1, 1], [], []>} : vector<256x128xbf16>, vector<128x128xbf16>, vector<256x128xf32> -> vector<256x128xf32>
    %48 = arith.addf %40, %47 : vector<256x128xf32>
    %c0_42 = arith.constant 0 : index
    %c2_43 = arith.constant 2 : index
    %c0_44 = arith.constant 0 : index
    %c0_45 = arith.constant 0 : index
    %49 = vector.load %arg1[%c0_42, %c2_43, %c0_44, %c0_45] : memref<1x18x18x128xf32, #tpu.memory_space<vmem>>, vector<1x16x16x128xf32>
    %50 = vector.shape_cast %49 : vector<1x16x16x128xf32> to vector<16x16x128xf32>
    %51 = vector.shape_cast %50 : vector<16x16x128xf32> to vector<256x128xf32>
    %52 = arith.truncf %51 : vector<256x128xf32> to vector<256x128xbf16>
    %c6 = arith.constant 6 : index
    %c0_46 = arith.constant 0 : index
    %c0_47 = arith.constant 0 : index
    %53 = vector.load %arg2[%c6, %c0_46, %c0_47] : memref<9x128x128xbf16, #tpu.memory_space<vmem>>, vector<1x128x128xbf16>
    %54 = vector.shape_cast %53 : vector<1x128x128xbf16> to vector<128x128xbf16>
    %cst_48 = arith.constant dense<0.000000e+00> : vector<256x128xf32>
    %55 = tpu.matmul %52, %54, %cst_48 {dimension_numbers = #tpu.dot_dimension_numbers<[1], [0], [0], [1], [0, 0, 1, 1], [], []>} : vector<256x128xbf16>, vector<128x128xbf16>, vector<256x128xf32> -> vector<256x128xf32>
    %56 = arith.addf %48, %55 : vector<256x128xf32>
    %c0_49 = arith.constant 0 : index
    %c2_50 = arith.constant 2 : index
    %c1_51 = arith.constant 1 : index
    %c0_52 = arith.constant 0 : index
    %57 = vector.load %arg1[%c0_49, %c2_50, %c1_51, %c0_52] : memref<1x18x18x128xf32, #tpu.memory_space<vmem>>, vector<1x16x16x128xf32>
    %58 = vector.shape_cast %57 : vector<1x16x16x128xf32> to vector<16x16x128xf32>
    %59 = vector.shape_cast %58 : vector<16x16x128xf32> to vector<256x128xf32>
    %60 = arith.truncf %59 : vector<256x128xf32> to vector<256x128xbf16>
    %c7 = arith.constant 7 : index
    %c0_53 = arith.constant 0 : index
    %c0_54 = arith.constant 0 : index
    %61 = vector.load %arg2[%c7, %c0_53, %c0_54] : memref<9x128x128xbf16, #tpu.memory_space<vmem>>, vector<1x128x128xbf16>
    %62 = vector.shape_cast %61 : vector<1x128x128xbf16> to vector<128x128xbf16>
    %cst_55 = arith.constant dense<0.000000e+00> : vector<256x128xf32>
    %63 = tpu.matmul %60, %62, %cst_55 {dimension_numbers = #tpu.dot_dimension_numbers<[1], [0], [0], [1], [0, 0, 1, 1], [], []>} : vector<256x128xbf16>, vector<128x128xbf16>, vector<256x128xf32> -> vector<256x128xf32>
    %64 = arith.addf %56, %63 : vector<256x128xf32>
    %c0_56 = arith.constant 0 : index
    %c2_57 = arith.constant 2 : index
    %c2_58 = arith.constant 2 : index
    %c0_59 = arith.constant 0 : index
    %65 = vector.load %arg1[%c0_56, %c2_57, %c2_58, %c0_59] : memref<1x18x18x128xf32, #tpu.memory_space<vmem>>, vector<1x16x16x128xf32>
    %66 = vector.shape_cast %65 : vector<1x16x16x128xf32> to vector<16x16x128xf32>
    %67 = vector.shape_cast %66 : vector<16x16x128xf32> to vector<256x128xf32>
    %68 = arith.truncf %67 : vector<256x128xf32> to vector<256x128xbf16>
    %c8 = arith.constant 8 : index
    %c0_60 = arith.constant 0 : index
    %c0_61 = arith.constant 0 : index
    %69 = vector.load %arg2[%c8, %c0_60, %c0_61] : memref<9x128x128xbf16, #tpu.memory_space<vmem>>, vector<1x128x128xbf16>
    %70 = vector.shape_cast %69 : vector<1x128x128xbf16> to vector<128x128xbf16>
    %cst_62 = arith.constant dense<0.000000e+00> : vector<256x128xf32>
    %71 = tpu.matmul %68, %70, %cst_62 {dimension_numbers = #tpu.dot_dimension_numbers<[1], [0], [0], [1], [0, 0, 1, 1], [], []>} : vector<256x128xbf16>, vector<128x128xbf16>, vector<256x128xf32> -> vector<256x128xf32>
    %72 = arith.addf %64, %71 : vector<256x128xf32>
    %c0_63 = arith.constant 0 : index
    %c0_64 = arith.constant 0 : index
    %73 = vector.load %arg3[%c0_63, %c0_64] : memref<1x128xf32, #tpu.memory_space<vmem>>, vector<1x128xf32>
    %74 = vector.broadcast %73 : vector<1x128xf32> to vector<256x128xf32>
    %75 = arith.addf %72, %74 : vector<256x128xf32>
    %cst_65 = arith.constant 0.000000e+00 : f32
    %76 = vector.broadcast %cst_65 : f32 to vector<256x128xf32>
    %77 = arith.maximumf %75, %76 : vector<256x128xf32>
    %cst_66 = arith.constant 0.000000e+00 : f32
    %78 = vector.broadcast %cst_66 : f32 to vector<18x18x128xf32>
    %c0_67 = arith.constant 0 : index
    %c0_68 = arith.constant 0 : index
    %c0_69 = arith.constant 0 : index
    %79 = vector.load %arg8[%c0_67, %c0_68, %c0_69] : memref<18x18x128xf32, #tpu.memory_space<vmem>>, vector<18x18x128xf32>
    tpu.vector_store %arg8[%c0_67, %c0_68, %c0_69], %78 {strides = array<i32>} : memref<18x18x128xf32, #tpu.memory_space<vmem>>, vector<18x18x128xf32>,
    %80 = vector.shape_cast %77 : vector<256x128xf32> to vector<16x16x128xf32>
    %c1_70 = arith.constant 1 : index
    %c1_71 = arith.constant 1 : index
    %c0_72 = arith.constant 0 : index
    %81 = vector.load %arg8[%c1_70, %c1_71, %c0_72] : memref<18x18x128xf32, #tpu.memory_space<vmem>>, vector<16x16x128xf32>
    tpu.vector_store %arg8[%c1_70, %c1_71, %c0_72], %80 {strides = array<i32>} : memref<18x18x128xf32, #tpu.memory_space<vmem>>, vector<16x16x128xf32>,
    %cst_73 = arith.constant 0.000000e+00 : f32
    %82 = vector.broadcast %cst_73 : f32 to vector<256x128xf32>
    %c0_74 = arith.constant 0 : index
    %c0_75 = arith.constant 0 : index
    %c0_76 = arith.constant 0 : index
    %83 = vector.load %arg8[%c0_74, %c0_75, %c0_76] : memref<18x18x128xf32, #tpu.memory_space<vmem>>, vector<16x16x128xf32>
    %84 = vector.shape_cast %83 : vector<16x16x128xf32> to vector<256x128xf32>
    %85 = arith.truncf %84 : vector<256x128xf32> to vector<256x128xbf16>
    %c0_77 = arith.constant 0 : index
    %c0_78 = arith.constant 0 : index
    %c0_79 = arith.constant 0 : index
    %86 = vector.load %arg4[%c0_77, %c0_78, %c0_79] : memref<9x128x128xbf16, #tpu.memory_space<vmem>>, vector<1x128x128xbf16>
    %87 = vector.shape_cast %86 : vector<1x128x128xbf16> to vector<128x128xbf16>
    %cst_80 = arith.constant dense<0.000000e+00> : vector<256x128xf32>
    %88 = tpu.matmul %85, %87, %cst_80 {dimension_numbers = #tpu.dot_dimension_numbers<[1], [0], [0], [1], [0, 0, 1, 1], [], []>} : vector<256x128xbf16>, vector<128x128xbf16>, vector<256x128xf32> -> vector<256x128xf32>
    %89 = arith.addf %82, %88 : vector<256x128xf32>
    %c0_81 = arith.constant 0 : index
    %c1_82 = arith.constant 1 : index
    %c0_83 = arith.constant 0 : index
    %90 = vector.load %arg8[%c0_81, %c1_82, %c0_83] : memref<18x18x128xf32, #tpu.memory_space<vmem>>, vector<16x16x128xf32>
    %91 = vector.shape_cast %90 : vector<16x16x128xf32> to vector<256x128xf32>
    %92 = arith.truncf %91 : vector<256x128xf32> to vector<256x128xbf16>
    %c1_84 = arith.constant 1 : index
    %c0_85 = arith.constant 0 : index
    %c0_86 = arith.constant 0 : index
    %93 = vector.load %arg4[%c1_84, %c0_85, %c0_86] : memref<9x128x128xbf16, #tpu.memory_space<vmem>>, vector<1x128x128xbf16>
    %94 = vector.shape_cast %93 : vector<1x128x128xbf16> to vector<128x128xbf16>
    %cst_87 = arith.constant dense<0.000000e+00> : vector<256x128xf32>
    %95 = tpu.matmul %92, %94, %cst_87 {dimension_numbers = #tpu.dot_dimension_numbers<[1], [0], [0], [1], [0, 0, 1, 1], [], []>} : vector<256x128xbf16>, vector<128x128xbf16>, vector<256x128xf32> -> vector<256x128xf32>
    %96 = arith.addf %89, %95 : vector<256x128xf32>
    %c0_88 = arith.constant 0 : index
    %c2_89 = arith.constant 2 : index
    %c0_90 = arith.constant 0 : index
    %97 = vector.load %arg8[%c0_88, %c2_89, %c0_90] : memref<18x18x128xf32, #tpu.memory_space<vmem>>, vector<16x16x128xf32>
    %98 = vector.shape_cast %97 : vector<16x16x128xf32> to vector<256x128xf32>
    %99 = arith.truncf %98 : vector<256x128xf32> to vector<256x128xbf16>
    %c2_91 = arith.constant 2 : index
    %c0_92 = arith.constant 0 : index
    %c0_93 = arith.constant 0 : index
    %100 = vector.load %arg4[%c2_91, %c0_92, %c0_93] : memref<9x128x128xbf16, #tpu.memory_space<vmem>>, vector<1x128x128xbf16>
    %101 = vector.shape_cast %100 : vector<1x128x128xbf16> to vector<128x128xbf16>
    %cst_94 = arith.constant dense<0.000000e+00> : vector<256x128xf32>
    %102 = tpu.matmul %99, %101, %cst_94 {dimension_numbers = #tpu.dot_dimension_numbers<[1], [0], [0], [1], [0, 0, 1, 1], [], []>} : vector<256x128xbf16>, vector<128x128xbf16>, vector<256x128xf32> -> vector<256x128xf32>
    %103 = arith.addf %96, %102 : vector<256x128xf32>
    %c1_95 = arith.constant 1 : index
    %c0_96 = arith.constant 0 : index
    %c0_97 = arith.constant 0 : index
    %104 = vector.load %arg8[%c1_95, %c0_96, %c0_97] : memref<18x18x128xf32, #tpu.memory_space<vmem>>, vector<16x16x128xf32>
    %105 = vector.shape_cast %104 : vector<16x16x128xf32> to vector<256x128xf32>
    %106 = arith.truncf %105 : vector<256x128xf32> to vector<256x128xbf16>
    %c3_98 = arith.constant 3 : index
    %c0_99 = arith.constant 0 : index
    %c0_100 = arith.constant 0 : index
    %107 = vector.load %arg4[%c3_98, %c0_99, %c0_100] : memref<9x128x128xbf16, #tpu.memory_space<vmem>>, vector<1x128x128xbf16>
    %108 = vector.shape_cast %107 : vector<1x128x128xbf16> to vector<128x128xbf16>
    %cst_101 = arith.constant dense<0.000000e+00> : vector<256x128xf32>
    %109 = tpu.matmul %106, %108, %cst_101 {dimension_numbers = #tpu.dot_dimension_numbers<[1], [0], [0], [1], [0, 0, 1, 1], [], []>} : vector<256x128xbf16>, vector<128x128xbf16>, vector<256x128xf32> -> vector<256x128xf32>
    %110 = arith.addf %103, %109 : vector<256x128xf32>
    %c1_102 = arith.constant 1 : index
    %c1_103 = arith.constant 1 : index
    %c0_104 = arith.constant 0 : index
    %111 = vector.load %arg8[%c1_102, %c1_103, %c0_104] : memref<18x18x128xf32, #tpu.memory_space<vmem>>, vector<16x16x128xf32>
    %112 = vector.shape_cast %111 : vector<16x16x128xf32> to vector<256x128xf32>
    %113 = arith.truncf %112 : vector<256x128xf32> to vector<256x128xbf16>
    %c4_105 = arith.constant 4 : index
    %c0_106 = arith.constant 0 : index
    %c0_107 = arith.constant 0 : index
    %114 = vector.load %arg4[%c4_105, %c0_106, %c0_107] : memref<9x128x128xbf16, #tpu.memory_space<vmem>>, vector<1x128x128xbf16>
    %115 = vector.shape_cast %114 : vector<1x128x128xbf16> to vector<128x128xbf16>
    %cst_108 = arith.constant dense<0.000000e+00> : vector<256x128xf32>
    %116 = tpu.matmul %113, %115, %cst_108 {dimension_numbers = #tpu.dot_dimension_numbers<[1], [0], [0], [1], [0, 0, 1, 1], [], []>} : vector<256x128xbf16>, vector<128x128xbf16>, vector<256x128xf32> -> vector<256x128xf32>
    %117 = arith.addf %110, %116 : vector<256x128xf32>
    %c1_109 = arith.constant 1 : index
    %c2_110 = arith.constant 2 : index
    %c0_111 = arith.constant 0 : index
    %118 = vector.load %arg8[%c1_109, %c2_110, %c0_111] : memref<18x18x128xf32, #tpu.memory_space<vmem>>, vector<16x16x128xf32>
    %119 = vector.shape_cast %118 : vector<16x16x128xf32> to vector<256x128xf32>
    %120 = arith.truncf %119 : vector<256x128xf32> to vector<256x128xbf16>
    %c5_112 = arith.constant 5 : index
    %c0_113 = arith.constant 0 : index
    %c0_114 = arith.constant 0 : index
    %121 = vector.load %arg4[%c5_112, %c0_113, %c0_114] : memref<9x128x128xbf16, #tpu.memory_space<vmem>>, vector<1x128x128xbf16>
    %122 = vector.shape_cast %121 : vector<1x128x128xbf16> to vector<128x128xbf16>
    %cst_115 = arith.constant dense<0.000000e+00> : vector<256x128xf32>
    %123 = tpu.matmul %120, %122, %cst_115 {dimension_numbers = #tpu.dot_dimension_numbers<[1], [0], [0], [1], [0, 0, 1, 1], [], []>} : vector<256x128xbf16>, vector<128x128xbf16>, vector<256x128xf32> -> vector<256x128xf32>
    %124 = arith.addf %117, %123 : vector<256x128xf32>
    %c2_116 = arith.constant 2 : index
    %c0_117 = arith.constant 0 : index
    %c0_118 = arith.constant 0 : index
    %125 = vector.load %arg8[%c2_116, %c0_117, %c0_118] : memref<18x18x128xf32, #tpu.memory_space<vmem>>, vector<16x16x128xf32>
    %126 = vector.shape_cast %125 : vector<16x16x128xf32> to vector<256x128xf32>
    %127 = arith.truncf %126 : vector<256x128xf32> to vector<256x128xbf16>
    %c6_119 = arith.constant 6 : index
    %c0_120 = arith.constant 0 : index
    %c0_121 = arith.constant 0 : index
    %128 = vector.load %arg4[%c6_119, %c0_120, %c0_121] : memref<9x128x128xbf16, #tpu.memory_space<vmem>>, vector<1x128x128xbf16>
    %129 = vector.shape_cast %128 : vector<1x128x128xbf16> to vector<128x128xbf16>
    %cst_122 = arith.constant dense<0.000000e+00> : vector<256x128xf32>
    %130 = tpu.matmul %127, %129, %cst_122 {dimension_numbers = #tpu.dot_dimension_numbers<[1], [0], [0], [1], [0, 0, 1, 1], [], []>} : vector<256x128xbf16>, vector<128x128xbf16>, vector<256x128xf32> -> vector<256x128xf32>
    %131 = arith.addf %124, %130 : vector<256x128xf32>
    %c2_123 = arith.constant 2 : index
    %c1_124 = arith.constant 1 : index
    %c0_125 = arith.constant 0 : index
    %132 = vector.load %arg8[%c2_123, %c1_124, %c0_125] : memref<18x18x128xf32, #tpu.memory_space<vmem>>, vector<16x16x128xf32>
    %133 = vector.shape_cast %132 : vector<16x16x128xf32> to vector<256x128xf32>
    %134 = arith.truncf %133 : vector<256x128xf32> to vector<256x128xbf16>
    %c7_126 = arith.constant 7 : index
    %c0_127 = arith.constant 0 : index
    %c0_128 = arith.constant 0 : index
    %135 = vector.load %arg4[%c7_126, %c0_127, %c0_128] : memref<9x128x128xbf16, #tpu.memory_space<vmem>>, vector<1x128x128xbf16>
    %136 = vector.shape_cast %135 : vector<1x128x128xbf16> to vector<128x128xbf16>
    %cst_129 = arith.constant dense<0.000000e+00> : vector<256x128xf32>
    %137 = tpu.matmul %134, %136, %cst_129 {dimension_numbers = #tpu.dot_dimension_numbers<[1], [0], [0], [1], [0, 0, 1, 1], [], []>} : vector<256x128xbf16>, vector<128x128xbf16>, vector<256x128xf32> -> vector<256x128xf32>
    %138 = arith.addf %131, %137 : vector<256x128xf32>
    %c2_130 = arith.constant 2 : index
    %c2_131 = arith.constant 2 : index
    %c0_132 = arith.constant 0 : index
    %139 = vector.load %arg8[%c2_130, %c2_131, %c0_132] : memref<18x18x128xf32, #tpu.memory_space<vmem>>, vector<16x16x128xf32>
    %140 = vector.shape_cast %139 : vector<16x16x128xf32> to vector<256x128xf32>
    %141 = arith.truncf %140 : vector<256x128xf32> to vector<256x128xbf16>
    %c8_133 = arith.constant 8 : index
    %c0_134 = arith.constant 0 : index
    %c0_135 = arith.constant 0 : index
    %142 = vector.load %arg4[%c8_133, %c0_134, %c0_135] : memref<9x128x128xbf16, #tpu.memory_space<vmem>>, vector<1x128x128xbf16>
    %143 = vector.shape_cast %142 : vector<1x128x128xbf16> to vector<128x128xbf16>
    %cst_136 = arith.constant dense<0.000000e+00> : vector<256x128xf32>
    %144 = tpu.matmul %141, %143, %cst_136 {dimension_numbers = #tpu.dot_dimension_numbers<[1], [0], [0], [1], [0, 0, 1, 1], [], []>} : vector<256x128xbf16>, vector<128x128xbf16>, vector<256x128xf32> -> vector<256x128xf32>
    %145 = arith.addf %138, %144 : vector<256x128xf32>
    %c0_137 = arith.constant 0 : index
    %c0_138 = arith.constant 0 : index
    %146 = vector.load %arg5[%c0_137, %c0_138] : memref<1x128xf32, #tpu.memory_space<vmem>>, vector<1x128xf32>
    %147 = vector.broadcast %146 : vector<1x128xf32> to vector<256x128xf32>
    %148 = arith.addf %145, %147 : vector<256x128xf32>
    %c0_139 = arith.constant 0 : index
    %c0_140 = arith.constant 0 : index
    %c0_141 = arith.constant 0 : index
    %c0_142 = arith.constant 0 : index
    %149 = vector.load %arg6[%c0_139, %c0_140, %c0_141, %c0_142] : memref<1x16x16x128xf32, #tpu.memory_space<vmem>>, vector<1x16x16x128xf32>
    %150 = vector.shape_cast %149 : vector<1x16x16x128xf32> to vector<16x16x128xf32>
    %151 = vector.shape_cast %150 : vector<16x16x128xf32> to vector<256x128xf32>
    %152 = arith.addf %148, %151 : vector<256x128xf32>
    %cst_143 = arith.constant 0.000000e+00 : f32
    %153 = vector.broadcast %cst_143 : f32 to vector<256x128xf32>
    %154 = arith.maximumf %152, %153 : vector<256x128xf32>
    %155 = vector.shape_cast %154 : vector<256x128xf32> to vector<16x16x128xf32>
    %c0_144 = arith.constant 0 : index
    %c0_145 = arith.constant 0 : index
    %c0_146 = arith.constant 0 : index
    %c0_147 = arith.constant 0 : index
    %156 = vector.load %arg7[%c0_144, %c0_145, %c0_146, %c0_147] : memref<1x16x16x128xf32, #tpu.memory_space<vmem>>, vector<1x16x16x128xf32>
    %157 = vector.shape_cast %156 : vector<1x16x16x128xf32> to vector<16x16x128xf32>
    %158 = vector.shape_cast %155 : vector<16x16x128xf32> to vector<1x16x16x128xf32>
    tpu.vector_store %arg7[%c0_144, %c0_145, %c0_146, %c0_147], %158 {strides = array<i32>} : memref<1x16x16x128xf32, #tpu.memory_space<vmem>>, vector<1x16x16x128xf32>,
    return
  }
  func.func @transform_0(%arg0: i32) -> (i32, i32, i32, i32) {
    %c0_i32 = arith.constant 0 : i32
    %c0_i32_0 = arith.constant 0 : i32
    %c0_i32_1 = arith.constant 0 : i32
    %c0_i32_2 = arith.constant 0 : i32
    return %arg0, %c0_i32, %c0_i32_0, %c0_i32_1 : i32, i32, i32, i32
  }
  func.func @transform_1(%arg0: i32) -> (i32, i32, i32) {
    %c0_i32 = arith.constant 0 : i32
    %c0_i32_0 = arith.constant 0 : i32
    %c0_i32_1 = arith.constant 0 : i32
    %c0_i32_2 = arith.constant 0 : i32
    return %c0_i32, %c0_i32_0, %c0_i32_1 : i32, i32, i32
  }
  func.func @transform_2(%arg0: i32) -> (i32, i32) {
    %c0_i32 = arith.constant 0 : i32
    %c0_i32_0 = arith.constant 0 : i32
    %c0_i32_1 = arith.constant 0 : i32
    return %c0_i32, %c0_i32_0 : i32, i32
  }
  func.func @transform_3(%arg0: i32) -> (i32, i32, i32) {
    %c0_i32 = arith.constant 0 : i32
    %c0_i32_0 = arith.constant 0 : i32
    %c0_i32_1 = arith.constant 0 : i32
    %c0_i32_2 = arith.constant 0 : i32
    return %c0_i32, %c0_i32_0, %c0_i32_1 : i32, i32, i32
  }
  func.func @transform_4(%arg0: i32) -> (i32, i32) {
    %c0_i32 = arith.constant 0 : i32
    %c0_i32_0 = arith.constant 0 : i32
    %c0_i32_1 = arith.constant 0 : i32
    return %c0_i32, %c0_i32_0 : i32, i32
  }
  func.func @transform_5(%arg0: i32) -> (i32, i32, i32, i32) {
    %c0_i32 = arith.constant 0 : i32
    %c0_i32_0 = arith.constant 0 : i32
    %c0_i32_1 = arith.constant 0 : i32
    %c0_i32_2 = arith.constant 0 : i32
    return %arg0, %c0_i32, %c0_i32_0, %c0_i32_1 : i32, i32, i32, i32
  }
  func.func @transform_6(%arg0: i32) -> (i32, i32, i32, i32) {
    %c0_i32 = arith.constant 0 : i32
    %c0_i32_0 = arith.constant 0 : i32
    %c0_i32_1 = arith.constant 0 : i32
    %c0_i32_2 = arith.constant 0 : i32
    return %arg0, %c0_i32, %c0_i32_0, %c0_i32_1 : i32, i32, i32, i32
  }
}

</mosaic_0001>

<llo_original>
// kernel: tpu_custom_call.1
$region0: #{tpu_custom_call.1}
  #allocation0 [shape = 'u32[]', space=smem, size = 0x4, offset = 0x4, fixed_abs, tag = 'smem constant byte address 0x4 - core index']
  #allocation1 [shape = 'u32[144,128]{1,0:T(1,128)}', space=vmem, size = 0x12000, scoped, tag = 'internal scratch']
  #allocation2 [shape = 'f32[18,18,128]{2,1,0:T(8,128)}', space=vmem, size = 0x36000, scoped, tag = 'scratch operand']
  %s0 = inlined_call_operand.vmem [shape: f32[2,18,18,128], index: 0, kind: input, shape index: {}]
  %s1 = inlined_call_operand.vmem [shape: bf16[9,128,128], index: 1, kind: input, shape index: {}]
  %s2 = inlined_call_operand.vmem [shape: f32[1,128], index: 2, kind: input, shape index: {}]
  %s3 = inlined_call_operand.vmem [shape: bf16[9,128,128], index: 3, kind: input, shape index: {}]
  %s4 = inlined_call_operand.vmem [shape: f32[1,128], index: 4, kind: input, shape index: {}]
  %s5 = inlined_call_operand.hbm [shape: f32[2,16,16,128], index: 5, kind: input, shape index: {}]
  %s6 = inlined_call_operand.hbm [shape: f32[2,16,16,128], index: 6, kind: output, shape index: {}]
  %s7 = sld [smem:[#allocation0]]
  $region61: #{tpu_custom_call.1} parent=0
    _
  %s9 = ssub.s32 1, %s7
  %s10 = scalar_select 0, %s9, %s7
  $region1: #{tpu_custom_call.1} parent=0
    #allocation3 [shape = 'u8[262144]{0}', space=vmem, size = 0x40000, scoped, tag = 'input window, operand 5']
    #allocation4 [shape = 's32[2]{0}', space=sflag, size = 0x8, scoped, tag = 'scoped memory for tpu_custom_call.1']
    #allocation5 [shape = 's32[2]{0}', space=sflag, size = 0x8, scoped, tag = 'scoped memory for tpu_custom_call.1']
    #allocation6 [shape = 'u8[262144]{0}', space=vmem, size = 0x40000, scoped, tag = 'output window, operand 0']
    %11 = vsyncpa [#allocation4], 0
    %s12 = scalar_lea.sflag [#allocation4], 1
    %13 = vsyncpa %s12, 0
    %14 = vsyncpa [#allocation5], 0
    %s15 = scalar_lea.sflag [#allocation5], 1
    %16 = vsyncpa %s15, 0
    loop: start=0, step=1, limit=4
    $region2: #{tpu_custom_call.1} parent=1 // loop_pre_header
      _
    $region3: #{tpu_custom_call.1} parent=1 // loop_header
      %s18 = sphi 0, %s22
      %p19 = scmp.ge.s32.totalorder %s18, 4
      %s28 = sphi 0, %s30
      %s31 = sphi 0, %s28
      %s32 = sphi 0, %s31
      %s48 = sphi 0, %s32
      %s52 = sphi 0, %s52
      %s54 = sphi 0, %s52
      %s55 = sphi 0, %s54
      %s69 = sphi 0, %s55
      %s73 = sphi 0, %s73
      %s75 = sphi 0, %s73
      %s76 = sphi 0, %s75
      %s90 = sphi 0, %s76
      %s94 = sphi 0, %s94
      %s96 = sphi 0, %s94
      %s97 = sphi 0, %s96
      %s111 = sphi 0, %s97
      %s115 = sphi 0, %s115
      %s117 = sphi 0, %s115
      %s118 = sphi 0, %s117
      %s132 = sphi 0, %s118
      %s138 = sphi 0, %s140
      %s141 = sphi 0, %s138
      %s142 = sphi 0, %s141
      %s158 = sphi 0, %s142
      %s164 = sphi 0, %s166
      %s167 = sphi 0, %s164
      %s168 = sphi 0, %s167
      %s184 = sphi 0, %s168
    $region4: #{tpu_custom_call.1} parent=1 // loop_header_branch
      %21 = sbr.rel (%p19) target = $region8
    $region5: #{tpu_custom_call.1} parent=1 // loop_body
      %s23 = ssub.s32 %s18, 1
      %s24 = ssub.s32 %s18, 2
      %s25 = sadd.s32 %s18, 1
      %s26 = ssub.s32 %s18, %s25
      %p27 = scmp.eq.s32.totalorder %s26, 0
      %s29 = sadd.s32 %s28, 1
      %s30 = scalar_select %p27, %s28, %s29
      %p33 = pneg %p27
      %p34 = scmp.eq.s32.totalorder %s18, 1
      %p35 = por %p33, %p34
      %p36 = scmp.ne.s32.totalorder %s28, %s31
      %p37 = scmp.eq.s32.totalorder %s18, 0
      %p38 = por %p36, %p37
      %p39 = scmp.ne.s32.totalorder %s28, %s31
      %p40 = scmp.eq.s32.totalorder %s23, 1
      %p41 = por %p39, %p40
      %p42 = scmp.ne.s32.totalorder %s31, %s32
      %p43 = scmp.eq.s32.totalorder %s23, 0
      %p44 = por %p42, %p43
      %p45 = scmp.ne.s32.totalorder %s31, %s32
      %p46 = scmp.eq.s32.totalorder %s24, 1
      %p47 = por %p45, %p46
      %p49 = scmp.ne.s32.totalorder %s32, %s48
      %p50 = scmp.eq.s32.totalorder %s24, 0
      %p51 = por %p49, %p50
      %s53 = sadd.s32 %s52, 1
      %p56 = scmp.eq.s32.totalorder %s18, 1
      %p57 = scmp.ne.s32.totalorder %s52, %s54
      %p58 = scmp.eq.s32.totalorder %s18, 0
      %p59 = por %p57, %p58
      %p60 = scmp.ne.s32.totalorder %s52, %s54
      %p61 = scmp.eq.s32.totalorder %s23, 1
      %p62 = por %p60, %p61
      %p63 = scmp.ne.s32.totalorder %s54, %s55
      %p64 = scmp.eq.s32.totalorder %s23, 0
      %p65 = por %p63, %p64
      %p66 = scmp.ne.s32.totalorder %s54, %s55
      %p67 = scmp.eq.s32.totalorder %s24, 1
      %p68 = por %p66, %p67
      %p70 = scmp.ne.s32.totalorder %s55, %s69
      %p71 = scmp.eq.s32.totalorder %s24, 0
      %p72 = por %p70, %p71
      %s74 = sadd.s32 %s73, 1
      %p77 = scmp.eq.s32.totalorder %s18, 1
      %p78 = scmp.ne.s32.totalorder %s73, %s75
      %p79 = scmp.eq.s32.totalorder %s18, 0
      %p80 = por %p78, %p79
      %p81 = scmp.ne.s32.totalorder %s73, %s75
      %p82 = scmp.eq.s32.totalorder %s23, 1
      %p83 = por %p81, %p82
      %p84 = scmp.ne.s32.totalorder %s75, %s76
      %p85 = scmp.eq.s32.totalorder %s23, 0
      %p86 = por %p84, %p85
      %p87 = scmp.ne.s32.totalorder %s75, %s76
      %p88 = scmp.eq.s32.totalorder %s24, 1
      %p89 = por %p87, %p88
      %p91 = scmp.ne.s32.totalorder %s76, %s90
      %p92 = scmp.eq.s32.totalorder %s24, 0
      %p93 = por %p91, %p92
      %s95 = sadd.s32 %s94, 1
      %p98 = scmp.eq.s32.totalorder %s18, 1
      %p99 = scmp.ne.s32.totalorder %s94, %s96
      %p100 = scmp.eq.s32.totalorder %s18, 0
      %p101 = por %p99, %p100
      %p102 = scmp.ne.s32.totalorder %s94, %s96
      %p103 = scmp.eq.s32.totalorder %s23, 1
      %p104 = por %p102, %p103
      %p105 = scmp.ne.s32.totalorder %s96, %s97
      %p106 = scmp.eq.s32.totalorder %s23, 0
      %p107 = por %p105, %p106
      %p108 = scmp.ne.s32.totalorder %s96, %s97
      %p109 = scmp.eq.s32.totalorder %s24, 1
      %p110 = por %p108, %p109
      %p112 = scmp.ne.s32.totalorder %s97, %s111
      %p113 = scmp.eq.s32.totalorder %s24, 0
      %p114 = por %p112, %p113
      %s116 = sadd.s32 %s115, 1
      %p119 = scmp.eq.s32.totalorder %s18, 1
      %p120 = scmp.ne.s32.totalorder %s115, %s117
      %p121 = scmp.eq.s32.totalorder %s18, 0
      %p122 = por %p120, %p121
      %p123 = scmp.ne.s32.totalorder %s115, %s117
      %p124 = scmp.eq.s32.totalorder %s23, 1
      %p125 = por %p123, %p124
      %p126 = scmp.ne.s32.totalorder %s117, %s118
      %p127 = scmp.eq.s32.totalorder %s23, 0
      %p128 = por %p126, %p127
      %p129 = scmp.ne.s32.totalorder %s117, %s118
      %p130 = scmp.eq.s32.totalorder %s24, 1
      %p131 = por %p129, %p130
      %p133 = scmp.ne.s32.totalorder %s118, %s132
      %p134 = scmp.eq.s32.totalorder %s24, 0
      %p135 = por %p133, %p134
      %s136 = ssub.s32 %s18, %s25
      %p137 = scmp.eq.s32.totalorder %s136, 0
      %s139 = sadd.s32 %s138, 1
      %s140 = scalar_select %p137, %s138, %s139
      %p143 = pneg %p137
      %p144 = scmp.eq.s32.totalorder %s18, 1
      %p145 = por %p143, %p144
      %p146 = scmp.ne.s32.totalorder %s138, %s141
      %p147 = scmp.eq.s32.totalorder %s18, 0
      %p148 = por %p146, %p147
      %p149 = scmp.ne.s32.totalorder %s138, %s141
      %p150 = scmp.eq.s32.totalorder %s23, 1
      %p151 = por %p149, %p150
      %p152 = scmp.ne.s32.totalorder %s141, %s142
      %p153 = scmp.eq.s32.totalorder %s23, 0
      %p154 = por %p152, %p153
      %p155 = scmp.ne.s32.totalorder %s141, %s142
      %p156 = scmp.eq.s32.totalorder %s24, 1
      %p157 = por %p155, %p156
      %p159 = scmp.ne.s32.totalorder %s142, %s158
      %p160 = scmp.eq.s32.totalorder %s24, 0
      %p161 = por %p159, %p160
      %s162 = ssub.s32 %s18, %s25
      %p163 = scmp.eq.s32.totalorder %s162, 0
      %s165 = sadd.s32 %s164, 1
      %s166 = scalar_select %p163, %s164, %s165
      %p169 = pneg %p163
      %p170 = scmp.eq.s32.totalorder %s18, 1
      %p171 = por %p169, %p170
      %p172 = scmp.ne.s32.totalorder %s164, %s167
      %p173 = scmp.eq.s32.totalorder %s18, 0
      %p174 = por %p172, %p173
      %p175 = scmp.ne.s32.totalorder %s164, %s167
      %p176 = scmp.eq.s32.totalorder %s23, 1
      %p177 = por %p175, %p176
      %p178 = scmp.ne.s32.totalorder %s167, %s168
      %p179 = scmp.eq.s32.totalorder %s23, 0
      %p180 = por %p178, %p179
      %p181 = scmp.ne.s32.totalorder %s167, %s168
      %p182 = scmp.eq.s32.totalorder %s24, 1
      %p183 = por %p181, %p182
      %p185 = scmp.ne.s32.totalorder %s168, %s184
      %p186 = scmp.eq.s32.totalorder %s24, 0
      %p187 = por %p185, %p186
      %p188 = scmp.le.s32.totalorder 1, %s18
      %p189 = scmp.lt.s32.totalorder %s18, 3
      %p190 = pnand %p188, %p189
      %p191 = pneg %p190
      // Predicated region
      $region9: #{tpu_custom_call.1} parent=5 // pred_check
        _
      $region10: #{tpu_custom_call.1} parent=5 // pred_check_branch
        %193 = sbr.rel (%p190) target = $region12
      $region11: #{tpu_custom_call.1} parent=5 // pred_region
        %s194 = ssub.s32 %s18, 1
        // Predicated region
        $region13: #{tpu_custom_call.1} parent=11 // pred_check
          %p195 = pneg %p65
        $region14: #{tpu_custom_call.1} parent=11 // pred_check_branch
          %197 = sbr.rel (%p195) target = $region16
        $region15: #{tpu_custom_call.1} parent=11 // pred_region
          _
        $region16: #{tpu_custom_call.1} parent=11 // pred_fallthru
          _
        // Predicated region
        $region17: #{tpu_custom_call.1} parent=11 // pred_check
          %p198 = pneg %p86
        $region18: #{tpu_custom_call.1} parent=11 // pred_check_branch
          %200 = sbr.rel (%p198) target = $region20
        $region19: #{tpu_custom_call.1} parent=11 // pred_region
          _
        $region20: #{tpu_custom_call.1} parent=11 // pred_fallthru
          _
        // Predicated region
        $region21: #{tpu_custom_call.1} parent=11 // pred_check
          %p201 = pneg %p107
        $region22: #{tpu_custom_call.1} parent=11 // pred_check_branch
          %203 = sbr.rel (%p201) target = $region24
        $region23: #{tpu_custom_call.1} parent=11 // pred_region
          _
        $region24: #{tpu_custom_call.1} parent=11 // pred_fallthru
          _
        // Predicated region
        $region25: #{tpu_custom_call.1} parent=11 // pred_check
          %p204 = pneg %p128
        $region26: #{tpu_custom_call.1} parent=11 // pred_check_branch
          %206 = sbr.rel (%p204) target = $region28
        $region27: #{tpu_custom_call.1} parent=11 // pred_region
          _
        $region28: #{tpu_custom_call.1} parent=11 // pred_fallthru
          _
      $region12: #{tpu_custom_call.1} parent=5 // pred_fallthru
        _
      %p207 = scmp.lt.s32.totalorder %s18, 2
      // Predicated region
      $region29: #{tpu_custom_call.1} parent=5 // pred_check
        %p208 = pneg %p207
      $region30: #{tpu_custom_call.1} parent=5 // pred_check_branch
        %210 = sbr.rel (%p208) target = $region32
      $region31: #{tpu_custom_call.1} parent=5 // pred_region
        // Predicated region
        $region33: #{tpu_custom_call.1} parent=31 // pred_check
          %p211 = pneg %p38
        $region34: #{tpu_custom_call.1} parent=31 // pred_check_branch
          %213 = sbr.rel (%p211) target = $region36
        $region35: #{tpu_custom_call.1} parent=31 // pred_region
          %p214 = scmp.lt.s32.totalorder %s18, 1
          %s215 = scalar_select %p214, %s18, 1
          %s216 = smul.addr %s215, 54
          %s217 = smul.addr %s216, 8
          %s218 = scalar_lea.vmem %s0, %s217
        $region36: #{tpu_custom_call.1} parent=31 // pred_fallthru
          _
        // Predicated region
        $region37: #{tpu_custom_call.1} parent=31 // pred_check
          %p219 = pneg %p148
        $region38: #{tpu_custom_call.1} parent=31 // pred_check_branch
          %221 = sbr.rel (%p219) target = $region40
        $region39: #{tpu_custom_call.1} parent=31 // pred_region
          %s222 = sand.u32 %s138, 1
          %s223 = scalar_lea.sflag [#allocation4], %s222
          %s224 = sand.u32 %s138, 1
          %s225 = smul.addr %s224, 256
          %s226 = scalar_lea.vmem [#allocation3], %s225
          %s228 = ssub.s32 4096, 4096
          %229 = vsyncadd %s223, %s228
          %s230 = smul.addr %s18, 32
          %s231 = smul.addr %s230, 128
          %s232 = scalar_lea.hbm %s5, %s231
          %s233 = sshll.u32 %s226, 4
          %s234 = int_to_ptr.vmem [resolvable:$true] %s233
          %239 = dma.hbm_to_vmem [thread:$0]  %s232, 4096, %s234, %s223, 128, 128, 8
        $region40: #{tpu_custom_call.1} parent=31 // pred_fallthru
          _
      $region32: #{tpu_custom_call.1} parent=5 // pred_fallthru
        _
      %p240 = scmp.le.s32.totalorder 1, %s18
      %p241 = scmp.lt.s32.totalorder %s18, 3
      %p242 = pnand %p240, %p241
      %p243 = pneg %p242
      // Predicated region
      $region41: #{tpu_custom_call.1} parent=5 // pred_check
        _
      $region42: #{tpu_custom_call.1} parent=5 // pred_check_branch
        %245 = sbr.rel (%p242) target = $region44
      $region43: #{tpu_custom_call.1} parent=5 // pred_region
        %s246 = ssub.s32 %s18, 1
        %s247 = sand.u32 %s141, 1
        %s248 = scalar_lea.sflag [#allocation4], %s247
        %s249 = sand.u32 %s141, 1
        %s250 = smul.addr %s249, 256
        %s251 = scalar_lea.vmem [#allocation3], %s250
        // Predicated region
        $region45: #{tpu_custom_call.1} parent=43 // pred_check
          %p252 = pneg %p154
        $region46: #{tpu_custom_call.1} parent=43 // pred_check_branch
          %254 = sbr.rel (%p252) target = $region48
        $region47: #{tpu_custom_call.1} parent=43 // pred_region
          %255 = dma.done %s248, 4096
        $region48: #{tpu_custom_call.1} parent=43 // pred_fallthru
          _
        %p256 = scmp.lt.s32.totalorder %s23, 1
        %s257 = scalar_select %p256, %s23, 1
        %s258 = smul.addr %s257, 54
        %s259 = smul.addr %s258, 8
        %s260 = scalar_lea.vmem %s0, %s259
        %p261 = pneg %p44
        %p262 = pneg %p41
        %p263 = pneg %p65
        %p264 = pneg %p62
        %p265 = pneg %p86
        %p266 = pneg %p83
        %p267 = pneg %p107
        %p268 = pneg %p104
        %p269 = pneg %p128
        %p270 = pneg %p125
        %s271 = sand.u32 %s141, 1
        %s272 = scalar_lea.sflag [#allocation4], %s271
        %s273 = sand.u32 %s141, 1
        %s274 = smul.addr %s273, 256
        %s275 = scalar_lea.vmem [#allocation3], %s274
        %p276 = pneg %p154
        %p277 = pneg %p151
        %p278 = pneg %p180
        %p279 = pneg %p177
        %s280 = sand.u32 %s167, 1
        %s281 = scalar_lea.sflag [#allocation5], %s280
        %s282 = sand.u32 %s167, 1
        %s283 = smul.addr %s282, 256
        %s284 = scalar_lea.vmem [#allocation6], %s283
        %p285 = scmp.lt.s32.totalorder %s23, 1
        %s286 = scalar_select %p285, %s23, 1
        %s287 = smul.addr %s286, 54
        %s288 = smul.addr %s287, 8
        %s289 = scalar_lea.vmem %s0, %s288
        %v291 = vld [vmem:[%s289] sm:$0xff]
        %v292 = vld [vmem:[%s289 + $0x8] sm:$0xff]
        %v293 = vld [vmem:[%s289 + $0x18] sm:$0xff]
        %v294 = vld [vmem:[%s289 + $0x20] sm:$0xff]
        %v295 = vld [vmem:[%s289 + $0x30] sm:$0xff]
        %v296 = vld [vmem:[%s289 + $0x38] sm:$0xff]
        %v297 = vld [vmem:[%s289 + $0x48] sm:$0xff]
        %v298 = vld [vmem:[%s289 + $0x50] sm:$0xff]
        %v299 = vld [vmem:[%s289 + $0x60] sm:$0xff]
        %v300 = vld [vmem:[%s289 + $0x68] sm:$0xff]
        %v301 = vld [vmem:[%s289 + $0x78] sm:$0xff]
        %v302 = vld [vmem:[%s289 + $0x80] sm:$0xff]
        %v303 = vld [vmem:[%s289 + $0x90] sm:$0xff]
        %v304 = vld [vmem:[%s289 + $0x98] sm:$0xff]
        %v305 = vld [vmem:[%s289 + $0xa8] sm:$0xff]
        %v306 = vld [vmem:[%s289 + $0xb0] sm:$0xff]
        %v307 = vld [vmem:[%s289 + $0xc0] sm:$0xff]
        %v308 = vld [vmem:[%s289 + $0xc8] sm:$0xff]
        %v309 = vld [vmem:[%s289 + $0xd8] sm:$0xff]
        %v310 = vld [vmem:[%s289 + $0xe0] sm:$0xff]
        %v311 = vld [vmem:[%s289 + $0xf0] sm:$0xff]
        %v312 = vld [vmem:[%s289 + $0xf8] sm:$0xff]
        %v313 = vld [vmem:[%s289 + $0x108] sm:$0xff]
        %v314 = vld [vmem:[%s289 + $0x110] sm:$0xff]
        %v315 = vld [vmem:[%s289 + $0x120] sm:$0xff]
        %v316 = vld [vmem:[%s289 + $0x128] sm:$0xff]
        %v317 = vld [vmem:[%s289 + $0x138] sm:$0xff]
        %v318 = vld [vmem:[%s289 + $0x140] sm:$0xff]
        %v319 = vld [vmem:[%s289 + $0x150] sm:$0xff]
        %v320 = vld [vmem:[%s289 + $0x158] sm:$0xff]
        %v321 = vld [vmem:[%s289 + $0x168] sm:$0xff]
        %v322 = vld [vmem:[%s289 + $0x170] sm:$0xff]
        %v323 = vpack.c.bf16 %v292, %v291
        %v324 = vpack.c.bf16 %v294, %v293
        %v325 = vpack.c.bf16 %v296, %v295
        %v326 = vpack.c.bf16 %v298, %v297
        %v327 = vpack.c.bf16 %v300, %v299
        %v328 = vpack.c.bf16 %v302, %v301
        %v329 = vpack.c.bf16 %v304, %v303
        %v330 = vpack.c.bf16 %v306, %v305
        %v331 = vpack.c.bf16 %v308, %v307
        %v332 = vpack.c.bf16 %v310, %v309
        %v333 = vpack.c.bf16 %v312, %v311
        %v334 = vpack.c.bf16 %v314, %v313
        %v335 = vpack.c.bf16 %v316, %v315
        %v336 = vpack.c.bf16 %v318, %v317
        %v337 = vpack.c.bf16 %v320, %v319
        %v338 = vpack.c.bf16 %v322, %v321
        %v339 = vld [vmem:[%s1] sm:$0xf]
        %v340 = vld [vmem:[%s1 + $0x4] sm:$0xf]
        %v341 = vld [vmem:[%s1 + $0x8] sm:$0xf]
        %v342 = vld [vmem:[%s1 + $0xc] sm:$0xf]
        %v343 = vld [vmem:[%s1 + $0x10] sm:$0xf]
        %v344 = vld [vmem:[%s1 + $0x14] sm:$0xf]
        %v345 = vld [vmem:[%s1 + $0x18] sm:$0xf]
        %v346 = vld [vmem:[%s1 + $0x1c] sm:$0xf]
        %v347 = vld [vmem:[%s1 + $0x20] sm:$0xf]
        %v348 = vld [vmem:[%s1 + $0x24] sm:$0xf]
        %v349 = vld [vmem:[%s1 + $0x28] sm:$0xf]
        %v350 = vld [vmem:[%s1 + $0x2c] sm:$0xf]
        %v351 = vld [vmem:[%s1 + $0x30] sm:$0xf]
        %v352 = vld [vmem:[%s1 + $0x34] sm:$0xf]
        %v353 = vld [vmem:[%s1 + $0x38] sm:$0xf]
        %v354 = vld [vmem:[%s1 + $0x3c] sm:$0xf]
        %v355 = vld [vmem:[%s289 + $0x1] sm:$0xff]
        %v356 = vld [vmem:[%s289 + $0x9] sm:$0xff]
        %v357 = vld [vmem:[%s289 + $0x19] sm:$0xff]
        %v358 = vld [vmem:[%s289 + $0x21] sm:$0xff]
        %v359 = vld [vmem:[%s289 + $0x31] sm:$0xff]
        %v360 = vld [vmem:[%s289 + $0x39] sm:$0xff]
        %v361 = vld [vmem:[%s289 + $0x49] sm:$0xff]
        %v362 = vld [vmem:[%s289 + $0x51] sm:$0xff]
        %v363 = vld [vmem:[%s289 + $0x61] sm:$0xff]
        %v364 = vld [vmem:[%s289 + $0x69] sm:$0xff]
        %v365 = vld [vmem:[%s289 + $0x79] sm:$0xff]
        %v366 = vld [vmem:[%s289 + $0x81] sm:$0xff]
        %v367 = vld [vmem:[%s289 + $0x91] sm:$0xff]
        %v368 = vld [vmem:[%s289 + $0x99] sm:$0xff]
        %v369 = vld [vmem:[%s289 + $0xa9] sm:$0xff]
        %v370 = vld [vmem:[%s289 + $0xb1] sm:$0xff]
        %v371 = vld [vmem:[%s289 + $0xc1] sm:$0xff]
        %v372 = vld [vmem:[%s289 + $0xc9] sm:$0xff]
        %v373 = vld [vmem:[%s289 + $0xd9] sm:$0xff]
        %v374 = vld [vmem:[%s289 + $0xe1] sm:$0xff]
        %v375 = vld [vmem:[%s289 + $0xf1] sm:$0xff]
        %v376 = vld [vmem:[%s289 + $0xf9] sm:$0xff]
        %v377 = vld [vmem:[%s289 + $0x109] sm:$0xff]
        %v378 = vld [vmem:[%s289 + $0x111] sm:$0xff]
        %v379 = vld [vmem:[%s289 + $0x121] sm:$0xff]
        %v380 = vld [vmem:[%s289 + $0x129] sm:$0xff]
        %v381 = vld [vmem:[%s289 + $0x139] sm:$0xff]
        %v382 = vld [vmem:[%s289 + $0x141] sm:$0xff]
        %v383 = vld [vmem:[%s289 + $0x151] sm:$0xff]
        %v384 = vld [vmem:[%s289 + $0x159] sm:$0xff]
        %v385 = vld [vmem:[%s289 + $0x169] sm:$0xff]
        %v386 = vld [vmem:[%s289 + $0x171] sm:$0xff]
        %v387 = vpack.c.bf16 %v356, %v355
        %v388 = vpack.c.bf16 %v358, %v357
        %v389 = vpack.c.bf16 %v360, %v359
        %v390 = vpack.c.bf16 %v362, %v361
        %v391 = vpack.c.bf16 %v364, %v363
        %v392 = vpack.c.bf16 %v366, %v365
        %v393 = vpack.c.bf16 %v368, %v367
        %v394 = vpack.c.bf16 %v370, %v369
        %v395 = vpack.c.bf16 %v372, %v371
        %v396 = vpack.c.bf16 %v374, %v373
        %v397 = vpack.c.bf16 %v376, %v375
        %v398 = vpack.c.bf16 %v378, %v377
        %v399 = vpack.c.bf16 %v380, %v379
        %v400 = vpack.c.bf16 %v382, %v381
        %v401 = vpack.c.bf16 %v384, %v383
        %v402 = vpack.c.bf16 %v386, %v385
        %s403 = scalar_lea.vmem %s1, 64
        %v404 = vld [vmem:[%s403] sm:$0xf]
        %v405 = vld [vmem:[%s403 + $0x4] sm:$0xf]
        %v406 = vld [vmem:[%s403 + $0x8] sm:$0xf]
        %v407 = vld [vmem:[%s403 + $0xc] sm:$0xf]
        %v408 = vld [vmem:[%s403 + $0x10] sm:$0xf]
        %v409 = vld [vmem:[%s403 + $0x14] sm:$0xf]
        %v410 = vld [vmem:[%s403 + $0x18] sm:$0xf]
        %v411 = vld [vmem:[%s403 + $0x1c] sm:$0xf]
        %v412 = vld [vmem:[%s403 + $0x20] sm:$0xf]
        %v413 = vld [vmem:[%s403 + $0x24] sm:$0xf]
        %v414 = vld [vmem:[%s403 + $0x28] sm:$0xf]
        %v415 = vld [vmem:[%s403 + $0x2c] sm:$0xf]
        %v416 = vld [vmem:[%s403 + $0x30] sm:$0xf]
        %v417 = vld [vmem:[%s403 + $0x34] sm:$0xf]
        %v418 = vld [vmem:[%s403 + $0x38] sm:$0xf]
        %v419 = vld [vmem:[%s403 + $0x3c] sm:$0xf]
        %v436 = vunpack.c.l.b16 %v404
        %v437 = vunpack.c.l.b16 %v405
        %v438 = vunpack.c.l.b16 %v406
        %v439 = vunpack.c.l.b16 %v407
        %v440 = vunpack.c.l.b16 %v408
        %v441 = vunpack.c.l.b16 %v409
        %v442 = vunpack.c.l.b16 %v410
        %v443 = vunpack.c.l.b16 %v411
        %v444 = vunpack.c.l.b16 %v412
        %v445 = vunpack.c.l.b16 %v413
        %v446 = vunpack.c.l.b16 %v414
        %v447 = vunpack.c.l.b16 %v415
        %v448 = vunpack.c.l.b16 %v416
        %v449 = vunpack.c.l.b16 %v417
        %v450 = vunpack.c.l.b16 %v418
        %v451 = vunpack.c.l.b16 %v419
        %v452 = vpack.c.b16 %v437, %v436
        %v453 = vpack.c.b16 %v439, %v438
        %v454 = vpack.c.b16 %v441, %v440
        %v455 = vpack.c.b16 %v443, %v442
        %v456 = vpack.c.b16 %v445, %v444
        %v457 = vpack.c.b16 %v447, %v446
        %v458 = vpack.c.b16 %v449, %v448
        %v459 = vpack.c.b16 %v451, %v450
        %468 = vmatprep.subr.bf16.mxu0 0
        %469 = vmatpush1.bf16.msra.mxu0 %v452
        %470 = vmatprep.subr.bf16.mxu0 0
        %471 = vmatpush1.bf16.msra.mxu0 %v453
        %472 = vmatprep.subr.bf16.mxu0 0
        %473 = vmatpush1.bf16.msra.mxu0 %v454
        %474 = vmatprep.subr.bf16.mxu0 0
        %475 = vmatpush1.bf16.msra.mxu0 %v455
        %476 = vmatprep.subr.bf16.mxu0 0
        %477 = vmatpush1.bf16.msra.mxu0 %v456
        %478 = vmatprep.subr.bf16.mxu0 0
        %479 = vmatpush1.bf16.msra.mxu0 %v457
        %480 = vmatprep.subr.bf16.mxu0 0
        %481 = vmatpush1.bf16.msra.mxu0 %v458
        %482 = vmatprep.subr.bf16.mxu0 0
        %483 = vmatpush1.bf16.msra.mxu0 %v459
        %484 = vmatprep.subr.bf16.mxu0 0
        %485 = vmatpush1.bf16.msra.mxu0 0
        %486 = vmatprep.subr.bf16.mxu0 0
        %487 = vmatpush1.bf16.msra.mxu0 0
        %488 = vmatprep.subr.bf16.mxu0 0
        %489 = vmatpush1.bf16.msra.mxu0 0
        %490 = vmatprep.subr.bf16.mxu0 0
        %491 = vmatpush1.bf16.msra.mxu0 0
        %492 = vmatprep.subr.bf16.mxu0 0
        %493 = vmatpush1.bf16.msra.mxu0 0
        %494 = vmatprep.subr.bf16.mxu0 0
        %495 = vmatpush1.bf16.msra.mxu0 0
        %496 = vmatprep.subr.bf16.mxu0 0
        %497 = vmatpush1.bf16.msra.mxu0 0
        %498 = vmatprep.subr.bf16.mxu0 0
        %499 = vmatpush1.bf16.msra.mxu0 0
        %500 = vmatprep.mubr.bf16.mxu0 0
        %501 = vmatmul.mubr.bf16.gmra.mrb[0].mxu0 %v387
        %v502 = vpop.f32.mrb[0].mxu0
        %v503 = vadd.f32 0.0, %v502
        %v504 = vpop.f32.mrb[0].mxu0
        %v505 = vpop.f32.mrb[0].mxu0
        %v506 = vadd.f32 0.0, %v505
        %v507 = vpop.f32.mrb[0].mxu0
        %508 = vmatprep.mubr.bf16.mxu0 0
        %509 = vmatmul.mubr.bf16.gmra.mrb[0].mxu0 %v388
        %v510 = vpop.f32.mrb[0].mxu0
        %v511 = vadd.f32 0.0, %v510
        %v512 = vpop.f32.mrb[0].mxu0
        %v513 = vpop.f32.mrb[0].mxu0
        %v514 = vadd.f32 0.0, %v513
        %v515 = vpop.f32.mrb[0].mxu0
        %516 = vmatprep.mubr.bf16.mxu0 0
        %517 = vmatmul.mubr.bf16.gmra.mrb[0].mxu0 %v389
        %v518 = vpop.f32.mrb[0].mxu0
        %v519 = vadd.f32 0.0, %v518
        %v520 = vpop.f32.mrb[0].mxu0
        %v521 = vpop.f32.mrb[0].mxu0
        %v522 = vadd.f32 0.0, %v521
        %v523 = vpop.f32.mrb[0].mxu0
        %524 = vmatprep.mubr.bf16.mxu0 0
        %525 = vmatmul.mubr.bf16.gmra.mrb[0].mxu0 %v390
        %v526 = vpop.f32.mrb[0].mxu0
        %v527 = vadd.f32 0.0, %v526
        %v528 = vpop.f32.mrb[0].mxu0
        %v529 = vpop.f32.mrb[0].mxu0
        %v530 = vadd.f32 0.0, %v529
        %v531 = vpop.f32.mrb[0].mxu0
        %532 = vmatprep.mubr.bf16.mxu0 0
        %533 = vmatmul.mubr.bf16.gmra.mrb[0].mxu0 %v391
        %v534 = vpop.f32.mrb[0].mxu0
        %v535 = vadd.f32 0.0, %v534
        %v536 = vpop.f32.mrb[0].mxu0
        %v537 = vpop.f32.mrb[0].mxu0
        %v538 = vadd.f32 0.0, %v537
        %v539 = vpop.f32.mrb[0].mxu0
        %540 = vmatprep.mubr.bf16.mxu0 0
        %541 = vmatmul.mubr.bf16.gmra.mrb[0].mxu0 %v392
        %v542 = vpop.f32.mrb[0].mxu0
        %v543 = vadd.f32 0.0, %v542
        %v544 = vpop.f32.mrb[0].mxu0
        %v545 = vpop.f32.mrb[0].mxu0
        %v546 = vadd.f32 0.0, %v545
        %v547 = vpop.f32.mrb[0].mxu0
        %548 = vmatprep.mubr.bf16.mxu0 0
        %549 = vmatmul.mubr.bf16.gmra.mrb[0].mxu0 %v393
        %v550 = vpop.f32.mrb[0].mxu0
        %v551 = vadd.f32 0.0, %v550
        %v552 = vpop.f32.mrb[0].mxu0
        %v553 = vpop.f32.mrb[0].mxu0
        %v554 = vadd.f32 0.0, %v553
        %v555 = vpop.f32.mrb[0].mxu0
        %556 = vmatprep.mubr.bf16.mxu0 0
        %557 = vmatmul.mubr.bf16.gmra.mrb[0].mxu0 %v394
        %v558 = vpop.f32.mrb[0].mxu0
        %v559 = vadd.f32 0.0, %v558
        %v560 = vpop.f32.mrb[0].mxu0
        %v561 = vpop.f32.mrb[0].mxu0
        %v562 = vadd.f32 0.0, %v561
        %v563 = vpop.f32.mrb[0].mxu0
        %564 = vmatprep.mubr.bf16.mxu0 0
        %565 = vmatmul.mubr.bf16.gmra.mrb[0].mxu0 %v395
        %v566 = vpop.f32.mrb[0].mxu0
        %v567 = vadd.f32 0.0, %v566
        %v568 = vpop.f32.mrb[0].mxu0
        %v569 = vpop.f32.mrb[0].mxu0
        %v570 = vadd.f32 0.0, %v569
        %v571 = vpop.f32.mrb[0].mxu0
        %572 = vmatprep.mubr.bf16.mxu0 0
        %573 = vmatmul.mubr.bf16.gmra.mrb[0].mxu0 %v396
        %v574 = vpop.f32.mrb[0].mxu0
        %v575 = vadd.f32 0.0, %v574
        %v576 = vpop.f32.mrb[0].mxu0
        %v577 = vpop.f32.mrb[0].mxu0
        %v578 = vadd.f32 0.0, %v577
        %v579 = vpop.f32.mrb[0].mxu0
        %580 = vmatprep.mubr.bf16.mxu0 0
        %581 = vmatmul.mubr.bf16.gmra.mrb[0].mxu0 %v397
        %v582 = vpop.f32.mrb[0].mxu0
        %v583 = vadd.f32 0.0, %v582
        %v584 = vpop.f32.mrb[0].mxu0
        %v585 = vpop.f32.mrb[0].mxu0
        %v586 = vadd.f32 0.0, %v585
        %v587 = vpop.f32.mrb[0].mxu0
        %588 = vmatprep.mubr.bf16.mxu0 0
        %589 = vmatmul.mubr.bf16.gmra.mrb[0].mxu0 %v398
        %v590 = vpop.f32.mrb[0].mxu0
        %v591 = vadd.f32 0.0, %v590
        %v592 = vpop.f32.mrb[0].mxu0
        %v593 = vpop.f32.mrb[0].mxu0
        %v594 = vadd.f32 0.0, %v593
        %v595 = vpop.f32.mrb[0].mxu0
        %596 = vmatprep.mubr.bf16.mxu0 0
        %597 = vmatmul.mubr.bf16.gmra.mrb[0].mxu0 %v399
        %v598 = vpop.f32.mrb[0].mxu0
        %v599 = vadd.f32 0.0, %v598
        %v600 = vpop.f32.mrb[0].mxu0
        %v601 = vpop.f32.mrb[0].mxu0
        %v602 = vadd.f32 0.0, %v601
        %v603 = vpop.f32.mrb[0].mxu0
        %604 = vmatprep.mubr.bf16.mxu0 0
        %605 = vmatmul.mubr.bf16.gmra.mrb[0].mxu0 %v400
        %v606 = vpop.f32.mrb[0].mxu0
        %v607 = vadd.f32 0.0, %v606
        %v608 = vpop.f32.mrb[0].mxu0
        %v609 = vpop.f32.mrb[0].mxu0
        %v610 = vadd.f32 0.0, %v609
        %v611 = vpop.f32.mrb[0].mxu0
        %612 = vmatprep.mubr.bf16.mxu0 0
        %613 = vmatmul.mubr.bf16.gmra.mrb[0].mxu0 %v401
        %v614 = vpop.f32.mrb[0].mxu0
        %v615 = vadd.f32 0.0, %v614
        %v616 = vpop.f32.mrb[0].mxu0
        %v617 = vpop.f32.mrb[0].mxu0
        %v618 = vadd.f32 0.0, %v617
        %v619 = vpop.f32.mrb[0].mxu0
        %620 = vmatprep.mubr.bf16.mxu0 0
        %621 = vmatmul.mubr.bf16.gmra.mrb[0].mxu0 %v402
        %v622 = vpop.f32.mrb[0].mxu0
        %v623 = vadd.f32 0.0, %v622
        %v624 = vpop.f32.mrb[0].mxu0
        %v625 = vpop.f32.mrb[0].mxu0
        %v626 = vadd.f32 0.0, %v625
        %v627 = vpop.f32.mrb[0].mxu0
        %628 = vdwg.mxu0
        %v645 = vunpack.c.l.b16 %v339
        %v646 = vunpack.c.l.b16 %v340
        %v647 = vunpack.c.l.b16 %v341
        %v648 = vunpack.c.l.b16 %v342
        %v649 = vunpack.c.l.b16 %v343
        %v650 = vunpack.c.l.b16 %v344
        %v651 = vunpack.c.l.b16 %v345
        %v652 = vunpack.c.l.b16 %v346
        %v653 = vunpack.c.l.b16 %v347
        %v654 = vunpack.c.l.b16 %v348
        %v655 = vunpack.c.l.b16 %v349
        %v656 = vunpack.c.l.b16 %v350
        %v657 = vunpack.c.l.b16 %v351
        %v658 = vunpack.c.l.b16 %v352
        %v659 = vunpack.c.l.b16 %v353
        %v660 = vunpack.c.l.b16 %v354
        %v661 = vpack.c.b16 %v646, %v645
        %v662 = vpack.c.b16 %v648, %v647
        %v663 = vpack.c.b16 %v650, %v649
        %v664 = vpack.c.b16 %v652, %v651
        %v665 = vpack.c.b16 %v654, %v653
        %v666 = vpack.c.b16 %v656, %v655
        %v667 = vpack.c.b16 %v658, %v657
        %v668 = vpack.c.b16 %v660, %v659
        %677 = vmatprep.subr.bf16.mxu0 0
        %678 = vmatpush1.bf16.msra.mxu0 %v661
        %679 = vmatprep.subr.bf16.mxu0 0
        %680 = vmatpush1.bf16.msra.mxu0 %v662
        %681 = vmatprep.subr.bf16.mxu0 0
        %682 = vmatpush1.bf16.msra.mxu0 %v663
        %683 = vmatprep.subr.bf16.mxu0 0
        %684 = vmatpush1.bf16.msra.mxu0 %v664
        %685 = vmatprep.subr.bf16.mxu0 0
        %686 = vmatpush1.bf16.msra.mxu0 %v665
        %687 = vmatprep.subr.bf16.mxu0 0
        %688 = vmatpush1.bf16.msra.mxu0 %v666
        %689 = vmatprep.subr.bf16.mxu0 0
        %690 = vmatpush1.bf16.msra.mxu0 %v667
        %691 = vmatprep.subr.bf16.mxu0 0
        %692 = vmatpush1.bf16.msra.mxu0 %v668
        %693 = vmatprep.subr.bf16.mxu0 0
        %694 = vmatpush1.bf16.msra.mxu0 0
        %695 = vmatprep.subr.bf16.mxu0 0
        %696 = vmatpush1.bf16.msra.mxu0 0
        %697 = vmatprep.subr.bf16.mxu0 0
        %698 = vmatpush1.bf16.msra.mxu0 0
        %699 = vmatprep.subr.bf16.mxu0 0
        %700 = vmatpush1.bf16.msra.mxu0 0
        %701 = vmatprep.subr.bf16.mxu0 0
        %702 = vmatpush1.bf16.msra.mxu0 0
        %703 = vmatprep.subr.bf16.mxu0 0
        %704 = vmatpush1.bf16.msra.mxu0 0
        %705 = vmatprep.subr.bf16.mxu0 0
        %706 = vmatpush1.bf16.msra.mxu0 0
        %707 = vmatprep.subr.bf16.mxu0 0
        %708 = vmatpush1.bf16.msra.mxu0 0
        %709 = vmatprep.mubr.bf16.mxu0 0
        %710 = vmatmul.mubr.bf16.gmra.mrb[0].mxu0 %v323
        %v711 = vpop.f32.mrb[0].mxu0
        %v712 = vadd.f32 %v503, %v711
        %v713 = vpop.f32.mrb[0].mxu0
        %v714 = vpop.f32.mrb[0].mxu0
        %v715 = vadd.f32 %v506, %v714
        %v716 = vpop.f32.mrb[0].mxu0
        %717 = vmatprep.mubr.bf16.mxu0 0
        %718 = vmatmul.mubr.bf16.gmra.mrb[0].mxu0 %v324
        %v719 = vpop.f32.mrb[0].mxu0
        %v720 = vadd.f32 %v511, %v719
        %v721 = vpop.f32.mrb[0].mxu0
        %v722 = vpop.f32.mrb[0].mxu0
        %v723 = vadd.f32 %v514, %v722
        %v724 = vpop.f32.mrb[0].mxu0
        %725 = vmatprep.mubr.bf16.mxu0 0
        %726 = vmatmul.mubr.bf16.gmra.mrb[0].mxu0 %v325
        %v727 = vpop.f32.mrb[0].mxu0
        %v728 = vadd.f32 %v519, %v727
        %v729 = vpop.f32.mrb[0].mxu0
        %v730 = vpop.f32.mrb[0].mxu0
        %v731 = vadd.f32 %v522, %v730
        %v732 = vpop.f32.mrb[0].mxu0
        %733 = vmatprep.mubr.bf16.mxu0 0
        %734 = vmatmul.mubr.bf16.gmra.mrb[0].mxu0 %v326
        %v735 = vpop.f32.mrb[0].mxu0
        %v736 = vadd.f32 %v527, %v735
        %v737 = vpop.f32.mrb[0].mxu0
        %v738 = vpop.f32.mrb[0].mxu0
        %v739 = vadd.f32 %v530, %v738
        %v740 = vpop.f32.mrb[0].mxu0
        %741 = vmatprep.mubr.bf16.mxu0 0
        %742 = vmatmul.mubr.bf16.gmra.mrb[0].mxu0 %v327
        %v743 = vpop.f32.mrb[0].mxu0
        %v744 = vadd.f32 %v535, %v743
        %v745 = vpop.f32.mrb[0].mxu0
        %v746 = vpop.f32.mrb[0].mxu0
        %v747 = vadd.f32 %v538, %v746
        %v748 = vpop.f32.mrb[0].mxu0
        %749 = vmatprep.mubr.bf16.mxu0 0
        %750 = vmatmul.mubr.bf16.gmra.mrb[0].mxu0 %v328
        %v751 = vpop.f32.mrb[0].mxu0
        %v752 = vadd.f32 %v543, %v751
        %v753 = vpop.f32.mrb[0].mxu0
        %v754 = vpop.f32.mrb[0].mxu0
        %v755 = vadd.f32 %v546, %v754
        %v756 = vpop.f32.mrb[0].mxu0
        %757 = vmatprep.mubr.bf16.mxu0 0
        %758 = vmatmul.mubr.bf16.gmra.mrb[0].mxu0 %v329
        %v759 = vpop.f32.mrb[0].mxu0
        %v760 = vadd.f32 %v551, %v759
        %v761 = vpop.f32.mrb[0].mxu0
        %v762 = vpop.f32.mrb[0].mxu0
        %v763 = vadd.f32 %v554, %v762
        %v764 = vpop.f32.mrb[0].mxu0
        %765 = vmatprep.mubr.bf16.mxu0 0
        %766 = vmatmul.mubr.bf16.gmra.mrb[0].mxu0 %v330
        %v767 = vpop.f32.mrb[0].mxu0
        %v768 = vadd.f32 %v559, %v767
        %v769 = vpop.f32.mrb[0].mxu0
        %v770 = vpop.f32.mrb[0].mxu0
        %v771 = vadd.f32 %v562, %v770
        %v772 = vpop.f32.mrb[0].mxu0
        %773 = vmatprep.mubr.bf16.mxu0 0
        %774 = vmatmul.mubr.bf16.gmra.mrb[0].mxu0 %v331
        %v775 = vpop.f32.mrb[0].mxu0
        %v776 = vadd.f32 %v567, %v775
        %v777 = vpop.f32.mrb[0].mxu0
        %v778 = vpop.f32.mrb[0].mxu0
        %v779 = vadd.f32 %v570, %v778
        %v780 = vpop.f32.mrb[0].mxu0
        %781 = vmatprep.mubr.bf16.mxu0 0
        %782 = vmatmul.mubr.bf16.gmra.mrb[0].mxu0 %v332
        %v783 = vpop.f32.mrb[0].mxu0
        %v784 = vadd.f32 %v575, %v783
        %v785 = vpop.f32.mrb[0].mxu0
        %v786 = vpop.f32.mrb[0].mxu0
        %v787 = vadd.f32 %v578, %v786
        %v788 = vpop.f32.mrb[0].mxu0
        %789 = vmatprep.mubr.bf16.mxu0 0
        %790 = vmatmul.mubr.bf16.gmra.mrb[0].mxu0 %v333
        %v791 = vpop.f32.mrb[0].mxu0
        %v792 = vadd.f32 %v583, %v791
        %v793 = vpop.f32.mrb[0].mxu0
        %v794 = vpop.f32.mrb[0].mxu0
        %v795 = vadd.f32 %v586, %v794
        %v796 = vpop.f32.mrb[0].mxu0
        %797 = vmatprep.mubr.bf16.mxu0 0
        %798 = vmatmul.mubr.bf16.gmra.mrb[0].mxu0 %v334
        %v799 = vpop.f32.mrb[0].mxu0
        %v800 = vadd.f32 %v591, %v799
        %v801 = vpop.f32.mrb[0].mxu0
        %v802 = vpop.f32.mrb[0].mxu0
        %v803 = vadd.f32 %v594, %v802
        %v804 = vpop.f32.mrb[0].mxu0
        %805 = vmatprep.mubr.bf16.mxu0 0
        %806 = vmatmul.mubr.bf16.gmra.mrb[0].mxu0 %v335
        %v807 = vpop.f32.mrb[0].mxu0
        %v808 = vadd.f32 %v599, %v807
        %v809 = vpop.f32.mrb[0].mxu0
        %v810 = vpop.f32.mrb[0].mxu0
        %v811 = vadd.f32 %v602, %v810
        %v812 = vpop.f32.mrb[0].mxu0
        %813 = vmatprep.mubr.bf16.mxu0 0
        %814 = vmatmul.mubr.bf16.gmra.mrb[0].mxu0 %v336
        %v815 = vpop.f32.mrb[0].mxu0
        %v816 = vadd.f32 %v607, %v815
        %v817 = vpop.f32.mrb[0].mxu0
        %v818 = vpop.f32.mrb[0].mxu0
        %v819 = vadd.f32 %v610, %v818
        %v820 = vpop.f32.mrb[0].mxu0
        %821 = vmatprep.mubr.bf16.mxu0 0
        %822 = vmatmul.mubr.bf16.gmra.mrb[0].mxu0 %v337
        %v823 = vpop.f32.mrb[0].mxu0
        %v824 = vadd.f32 %v615, %v823
        %v825 = vpop.f32.mrb[0].mxu0
        %v826 = vpop.f32.mrb[0].mxu0
        %v827 = vadd.f32 %v618, %v826
        %v828 = vpop.f32.mrb[0].mxu0
        %829 = vmatprep.mubr.bf16.mxu0 0
        %830 = vmatmul.mubr.bf16.gmra.mrb[0].mxu0 %v338
        %v831 = vpop.f32.mrb[0].mxu0
        %v832 = vadd.f32 %v623, %v831
        %v833 = vpop.f32.mrb[0].mxu0
        %v834 = vpop.f32.mrb[0].mxu0
        %v835 = vadd.f32 %v626, %v834
        %v836 = vpop.f32.mrb[0].mxu0
        %837 = vdwg.mxu0
        %v838 = vld [vmem:[%s289 + $0x2] sm:$0xff]
        %v839 = vld [vmem:[%s289 + $0xa] sm:$0xff]
        %v840 = vld [vmem:[%s289 + $0x1a] sm:$0xff]
        %v841 = vld [vmem:[%s289 + $0x22] sm:$0xff]
        %v842 = vld [vmem:[%s289 + $0x32] sm:$0xff]
        %v843 = vld [vmem:[%s289 + $0x3a] sm:$0xff]
        %v844 = vld [vmem:[%s289 + $0x4a] sm:$0xff]
        %v845 = vld [vmem:[%s289 + $0x52] sm:$0xff]
        %v846 = vld [vmem:[%s289 + $0x62] sm:$0xff]
        %v847 = vld [vmem:[%s289 + $0x6a] sm:$0xff]
        %v848 = vld [vmem:[%s289 + $0x7a] sm:$0xff]
        %v849 = vld [vmem:[%s289 + $0x82] sm:$0xff]
        %v850 = vld [vmem:[%s289 + $0x92] sm:$0xff]
        %v851 = vld [vmem:[%s289 + $0x9a] sm:$0xff]
        %v852 = vld [vmem:[%s289 + $0xaa] sm:$0xff]
        %v853 = vld [vmem:[%s289 + $0xb2] sm:$0xff]
        %v854 = vld [vmem:[%s289 + $0xc2] sm:$0xff]
        %v855 = vld [vmem:[%s289 + $0xca] sm:$0xff]
        %v856 = vld [vmem:[%s289 + $0xda] sm:$0xff]
        %v857 = vld [vmem:[%s289 + $0xe2] sm:$0xff]
        %v858 = vld [vmem:[%s289 + $0xf2] sm:$0xff]
        %v859 = vld [vmem:[%s289 + $0xfa] sm:$0xff]
        %v860 = vld [vmem:[%s289 + $0x10a] sm:$0xff]
        %v861 = vld [vmem:[%s289 + $0x112] sm:$0xff]
        %v862 = vld [vmem:[%s289 + $0x122] sm:$0xff]
        %v863 = vld [vmem:[%s289 + $0x12a] sm:$0xff]
        %v864 = vld [vmem:[%s289 + $0x13a] sm:$0xff]
        %v865 = vld [vmem:[%s289 + $0x142] sm:$0xff]
        %v866 = vld [vmem:[%s289 + $0x152] sm:$0xff]
        %v867 = vld [vmem:[%s289 + $0x15a] sm:$0xff]
        %v868 = vld [vmem:[%s289 + $0x16a] sm:$0xff]
        %v869 = vld [vmem:[%s289 + $0x172] sm:$0xff]
        %v870 = vpack.c.bf16 %v839, %v838
        %v871 = vpack.c.bf16 %v841, %v840
        %v872 = vpack.c.bf16 %v843, %v842
        %v873 = vpack.c.bf16 %v845, %v844
        %v874 = vpack.c.bf16 %v847, %v846
        %v875 = vpack.c.bf16 %v849, %v848
        %v876 = vpack.c.bf16 %v851, %v850
        %v877 = vpack.c.bf16 %v853, %v852
        %v878 = vpack.c.bf16 %v855, %v854
        %v879 = vpack.c.bf16 %v857, %v856
        %v880 = vpack.c.bf16 %v859, %v858
        %v881 = vpack.c.bf16 %v861, %v860
        %v882 = vpack.c.bf16 %v863, %v862
        %v883 = vpack.c.bf16 %v865, %v864
        %v884 = vpack.c.bf16 %v867, %v866
        %v885 = vpack.c.bf16 %v869, %v868
        %s886 = scalar_lea.vmem %s1, 128
        %v887 = vld [vmem:[%s886] sm:$0xf]
        %v888 = vld [vmem:[%s886 + $0x4] sm:$0xf]
        %v889 = vld [vmem:[%s886 + $0x8] sm:$0xf]
        %v890 = vld [vmem:[%s886 + $0xc] sm:$0xf]
        %v891 = vld [vmem:[%s886 + $0x10] sm:$0xf]
        %v892 = vld [vmem:[%s886 + $0x14] sm:$0xf]
        %v893 = vld [vmem:[%s886 + $0x18] sm:$0xf]
        %v894 = vld [vmem:[%s886 + $0x1c] sm:$0xf]
        %v895 = vld [vmem:[%s886 + $0x20] sm:$0xf]
        %v896 = vld [vmem:[%s886 + $0x24] sm:$0xf]
        %v897 = vld [vmem:[%s886 + $0x28] sm:$0xf]
        %v898 = vld [vmem:[%s886 + $0x2c] sm:$0xf]
        %v899 = vld [vmem:[%s886 + $0x30] sm:$0xf]
        %v900 = vld [vmem:[%s886 + $0x34] sm:$0xf]
        %v901 = vld [vmem:[%s886 + $0x38] sm:$0xf]
        %v902 = vld [vmem:[%s886 + $0x3c] sm:$0xf]
        %v919 = vunpack.c.l.b16 %v887
        %v920 = vunpack.c.l.b16 %v888
        %v921 = vunpack.c.l.b16 %v889
        %v922 = vunpack.c.l.b16 %v890
        %v923 = vunpack.c.l.b16 %v891
        %v924 = vunpack.c.l.b16 %v892
        %v925 = vunpack.c.l.b16 %v893
        %v926 = vunpack.c.l.b16 %v894
        %v927 = vunpack.c.l.b16 %v895
        %v928 = vunpack.c.l.b16 %v896
        %v929 = vunpack.c.l.b16 %v897
        %v930 = vunpack.c.l.b16 %v898
        %v931 = vunpack.c.l.b16 %v899
        %v932 = vunpack.c.l.b16 %v900
        %v933 = vunpack.c.l.b16 %v901
        %v934 = vunpack.c.l.b16 %v902
        %v935 = vpack.c.b16 %v920, %v919
        %v936 = vpack.c.b16 %v922, %v921
        %v937 = vpack.c.b16 %v924, %v923
        %v938 = vpack.c.b16 %v926, %v925
        %v939 = vpack.c.b16 %v928, %v927
        %v940 = vpack.c.b16 %v930, %v929
        %v941 = vpack.c.b16 %v932, %v931
        %v942 = vpack.c.b16 %v934, %v933
        %951 = vmatprep.subr.bf16.mxu0 0
        %952 = vmatpush1.bf16.msra.mxu0 %v935
        %953 = vmatprep.subr.bf16.mxu0 0
        %954 = vmatpush1.bf16.msra.mxu0 %v936
        %955 = vmatprep.subr.bf16.mxu0 0
        %956 = vmatpush1.bf16.msra.mxu0 %v937
        %957 = vmatprep.subr.bf16.mxu0 0
        %958 = vmatpush1.bf16.msra.mxu0 %v938
        %959 = vmatprep.subr.bf16.mxu0 0
        %960 = vmatpush1.bf16.msra.mxu0 %v939
        %961 = vmatprep.subr.bf16.mxu0 0
        %962 = vmatpush1.bf16.msra.mxu0 %v940
        %963 = vmatprep.subr.bf16.mxu0 0
        %964 = vmatpush1.bf16.msra.mxu0 %v941
        %965 = vmatprep.subr.bf16.mxu0 0
        %966 = vmatpush1.bf16.msra.mxu0 %v942
        %967 = vmatprep.subr.bf16.mxu0 0
        %968 = vmatpush1.bf16.msra.mxu0 0
        %969 = vmatprep.subr.bf16.mxu0 0
        %970 = vmatpush1.bf16.msra.mxu0 0
        %971 = vmatprep.subr.bf16.mxu0 0
        %972 = vmatpush1.bf16.msra.mxu0 0
        %973 = vmatprep.subr.bf16.mxu0 0
        %974 = vmatpush1.bf16.msra.mxu0 0
        %975 = vmatprep.subr.bf16.mxu0 0
        %976 = vmatpush1.bf16.msra.mxu0 0
        %977 = vmatprep.subr.bf16.mxu0 0
        %978 = vmatpush1.bf16.msra.mxu0 0
        %979 = vmatprep.subr.bf16.mxu0 0
        %980 = vmatpush1.bf16.msra.mxu0 0
        %981 = vmatprep.subr.bf16.mxu0 0
        %982 = vmatpush1.bf16.msra.mxu0 0
        %983 = vmatprep.mubr.bf16.mxu0 0
        %984 = vmatmul.mubr.bf16.gmra.mrb[0].mxu0 %v870
        %v985 = vpop.f32.mrb[0].mxu0
        %v986 = vadd.f32 0.0, %v985
        %v987 = vpop.f32.mrb[0].mxu0
        %v988 = vpop.f32.mrb[0].mxu0
        %v989 = vadd.f32 0.0, %v988
        %v990 = vpop.f32.mrb[0].mxu0
        %991 = vmatprep.mubr.bf16.mxu0 0
        %992 = vmatmul.mubr.bf16.gmra.mrb[0].mxu0 %v871
        %v993 = vpop.f32.mrb[0].mxu0
        %v994 = vadd.f32 0.0, %v993
        %v995 = vpop.f32.mrb[0].mxu0
        %v996 = vpop.f32.mrb[0].mxu0
        %v997 = vadd.f32 0.0, %v996
        %v998 = vpop.f32.mrb[0].mxu0
        %999 = vmatprep.mubr.bf16.mxu0 0
        %1000 = vmatmul.mubr.bf16.gmra.mrb[0].mxu0 %v872
        %v1001 = vpop.f32.mrb[0].mxu0
        %v1002 = vadd.f32 0.0, %v1001
        %v1003 = vpop.f32.mrb[0].mxu0
        %v1004 = vpop.f32.mrb[0].mxu0
        %v1005 = vadd.f32 0.0, %v1004
        %v1006 = vpop.f32.mrb[0].mxu0
        %1007 = vmatprep.mubr.bf16.mxu0 0
        %1008 = vmatmul.mubr.bf16.gmra.mrb[0].mxu0 %v873
        %v1009 = vpop.f32.mrb[0].mxu0
        %v1010 = vadd.f32 0.0, %v1009
        %v1011 = vpop.f32.mrb[0].mxu0
        %v1012 = vpop.f32.mrb[0].mxu0
        %v1013 = vadd.f32 0.0, %v1012
        %v1014 = vpop.f32.mrb[0].mxu0
        %1015 = vmatprep.mubr.bf16.mxu0 0
        %1016 = vmatmul.mubr.bf16.gmra.mrb[0].mxu0 %v874
        %v1017 = vpop.f32.mrb[0].mxu0
        %v1018 = vadd.f32 0.0, %v1017
        %v1019 = vpop.f32.mrb[0].mxu0
        %v1020 = vpop.f32.mrb[0].mxu0
        %v1021 = vadd.f32 0.0, %v1020
        %v1022 = vpop.f32.mrb[0].mxu0
        %1023 = vmatprep.mubr.bf16.mxu0 0
        %1024 = vmatmul.mubr.bf16.gmra.mrb[0].mxu0 %v875
        %v1025 = vpop.f32.mrb[0].mxu0
        %v1026 = vadd.f32 0.0, %v1025
        %v1027 = vpop.f32.mrb[0].mxu0
        %v1028 = vpop.f32.mrb[0].mxu0
        %v1029 = vadd.f32 0.0, %v1028
        %v1030 = vpop.f32.mrb[0].mxu0
        %1031 = vmatprep.mubr.bf16.mxu0 0
        %1032 = vmatmul.mubr.bf16.gmra.mrb[0].mxu0 %v876
        %v1033 = vpop.f32.mrb[0].mxu0
        %v1034 = vadd.f32 0.0, %v1033
        %v1035 = vpop.f32.mrb[0].mxu0
        %v1036 = vpop.f32.mrb[0].mxu0
        %v1037 = vadd.f32 0.0, %v1036
        %v1038 = vpop.f32.mrb[0].mxu0
        %1039 = vmatprep.mubr.bf16.mxu0 0
        %1040 = vmatmul.mubr.bf16.gmra.mrb[0].mxu0 %v877
        %v1041 = vpop.f32.mrb[0].mxu0
        %v1042 = vadd.f32 0.0, %v1041
        %v1043 = vpop.f32.mrb[0].mxu0
        %v1044 = vpop.f32.mrb[0].mxu0
        %v1045 = vadd.f32 0.0, %v1044
        %v1046 = vpop.f32.mrb[0].mxu0
        %1047 = vmatprep.mubr.bf16.mxu0 0
        %1048 = vmatmul.mubr.bf16.gmra.mrb[0].mxu0 %v878
        %v1049 = vpop.f32.mrb[0].mxu0
        %v1050 = vadd.f32 0.0, %v1049
        %v1051 = vpop.f32.mrb[0].mxu0
        %v1052 = vpop.f32.mrb[0].mxu0
        %v1053 = vadd.f32 0.0, %v1052
        %v1054 = vpop.f32.mrb[0].mxu0
        %1055 = vmatprep.mubr.bf16.mxu0 0
        %1056 = vmatmul.mubr.bf16.gmra.mrb[0].mxu0 %v879
        %v1057 = vpop.f32.mrb[0].mxu0
        %v1058 = vadd.f32 0.0, %v1057
        %v1059 = vpop.f32.mrb[0].mxu0
        %v1060 = vpop.f32.mrb[0].mxu0
        %v1061 = vadd.f32 0.0, %v1060
        %v1062 = vpop.f32.mrb[0].mxu0
        %1063 = vmatprep.mubr.bf16.mxu0 0
        %1064 = vmatmul.mubr.bf16.gmra.mrb[0].mxu0 %v880
        %v1065 = vpop.f32.mrb[0].mxu0
        %v1066 = vadd.f32 0.0, %v1065
        %v1067 = vpop.f32.mrb[0].mxu0
        %v1068 = vpop.f32.mrb[0].mxu0
        %v1069 = vadd.f32 0.0, %v1068
        %v1070 = vpop.f32.mrb[0].mxu0
        %1071 = vmatprep.mubr.bf16.mxu0 0
        %1072 = vmatmul.mubr.bf16.gmra.mrb[0].mxu0 %v881
        %v1073 = vpop.f32.mrb[0].mxu0
        %v1074 = vadd.f32 0.0, %v1073
        %v1075 = vpop.f32.mrb[0].mxu0
        %v1076 = vpop.f32.mrb[0].mxu0
        %v1077 = vadd.f32 0.0, %v1076
        %v1078 = vpop.f32.mrb[0].mxu0
        %1079 = vmatprep.mubr.bf16.mxu0 0
        %1080 = vmatmul.mubr.bf16.gmra.mrb[0].mxu0 %v882
        %v1081 = vpop.f32.mrb[0].mxu0
        %v1082 = vadd.f32 0.0, %v1081
        %v1083 = vpop.f32.mrb[0].mxu0
        %v1084 = vpop.f32.mrb[0].mxu0
        %v1085 = vadd.f32 0.0, %v1084
        %v1086 = vpop.f32.mrb[0].mxu0
        %1087 = vmatprep.mubr.bf16.mxu0 0
        %1088 = vmatmul.mubr.bf16.gmra.mrb[0].mxu0 %v883
        %v1089 = vpop.f32.mrb[0].mxu0
        %v1090 = vadd.f32 0.0, %v1089
        %v1091 = vpop.f32.mrb[0].mxu0
        %v1092 = vpop.f32.mrb[0].mxu0
        %v1093 = vadd.f32 0.0, %v1092
        %v1094 = vpop.f32.mrb[0].mxu0
        %1095 = vmatprep.mubr.bf16.mxu0 0
        %1096 = vmatmul.mubr.bf16.gmra.mrb[0].mxu0 %v884
        %v1097 = vpop.f32.mrb[0].mxu0
        %v1098 = vadd.f32 0.0, %v1097
        %v1099 = vpop.f32.mrb[0].mxu0
        %v1100 = vpop.f32.mrb[0].mxu0
        %v1101 = vadd.f32 0.0, %v1100
        %v1102 = vpop.f32.mrb[0].mxu0
        %1103 = vmatprep.mubr.bf16.mxu0 0
        %1104 = vmatmul.mubr.bf16.gmra.mrb[0].mxu0 %v885
        %v1105 = vpop.f32.mrb[0].mxu0
        %v1106 = vadd.f32 0.0, %v1105
        %v1107 = vpop.f32.mrb[0].mxu0
        %v1108 = vpop.f32.mrb[0].mxu0
        %v1109 = vadd.f32 0.0, %v1108
        %v1110 = vpop.f32.mrb[0].mxu0
        %1111 = vdwg.mxu0
        %v1112 = vadd.f32 %v712, %v986
        %v1113 = vadd.f32 %v715, %v989
        %v1114 = vadd.f32 %v720, %v994
        %v1115 = vadd.f32 %v723, %v997
        %v1116 = vadd.f32 %v728, %v1002
        %v1117 = vadd.f32 %v731, %v1005
        %v1118 = vadd.f32 %v736, %v1010
        %v1119 = vadd.f32 %v739, %v1013
        %v1120 = vadd.f32 %v744, %v1018
        %v1121 = vadd.f32 %v747, %v1021
        %v1122 = vadd.f32 %v752, %v1026
        %v1123 = vadd.f32 %v755, %v1029
        %v1124 = vadd.f32 %v760, %v1034
        %v1125 = vadd.f32 %v763, %v1037
        %v1126 = vadd.f32 %v768, %v1042
        %v1127 = vadd.f32 %v771, %v1045
        %v1128 = vadd.f32 %v776, %v1050
        %v1129 = vadd.f32 %v779, %v1053
        %v1130 = vadd.f32 %v784, %v1058
        %v1131 = vadd.f32 %v787, %v1061
        %v1132 = vadd.f32 %v792, %v1066
        %v1133 = vadd.f32 %v795, %v1069
        %v1134 = vadd.f32 %v800, %v1074
        %v1135 = vadd.f32 %v803, %v1077
        %v1136 = vadd.f32 %v808, %v1082
        %v1137 = vadd.f32 %v811, %v1085
        %v1138 = vadd.f32 %v816, %v1090
        %v1139 = vadd.f32 %v819, %v1093
        %v1140 = vadd.f32 %v824, %v1098
        %v1141 = vadd.f32 %v827, %v1101
        %v1142 = vadd.f32 %v832, %v1106
        %v1143 = vadd.f32 %v835, %v1109
        %s1144 = scalar_lea.vmem %s289, 24
        %v1145 = vld [vmem:[%s1144] sm:$0xff]
        %v1146 = vld [vmem:[%s1144 + $0x8] sm:$0xff]
        %v1147 = vld [vmem:[%s1144 + $0x18] sm:$0xff]
        %v1148 = vld [vmem:[%s1144 + $0x20] sm:$0xff]
        %v1149 = vld [vmem:[%s1144 + $0x30] sm:$0xff]
        %v1150 = vld [vmem:[%s1144 + $0x38] sm:$0xff]
        %v1151 = vld [vmem:[%s1144 + $0x48] sm:$0xff]
        %v1152 = vld [vmem:[%s1144 + $0x50] sm:$0xff]
        %v1153 = vld [vmem:[%s1144 + $0x60] sm:$0xff]
        %v1154 = vld [vmem:[%s1144 + $0x68] sm:$0xff]
        %v1155 = vld [vmem:[%s1144 + $0x78] sm:$0xff]
        %v1156 = vld [vmem:[%s1144 + $0x80] sm:$0xff]
        %v1157 = vld [vmem:[%s1144 + $0x90] sm:$0xff]
        %v1158 = vld [vmem:[%s1144 + $0x98] sm:$0xff]
        %v1159 = vld [vmem:[%s1144 + $0xa8] sm:$0xff]
        %v1160 = vld [vmem:[%s1144 + $0xb0] sm:$0xff]
        %v1161 = vld [vmem:[%s1144 + $0xc0] sm:$0xff]
        %v1162 = vld [vmem:[%s1144 + $0xc8] sm:$0xff]
        %v1163 = vld [vmem:[%s1144 + $0xd8] sm:$0xff]
        %v1164 = vld [vmem:[%s1144 + $0xe0] sm:$0xff]
        %v1165 = vld [vmem:[%s1144 + $0xf0] sm:$0xff]
        %v1166 = vld [vmem:[%s1144 + $0xf8] sm:$0xff]
        %v1167 = vld [vmem:[%s1144 + $0x108] sm:$0xff]
        %v1168 = vld [vmem:[%s1144 + $0x110] sm:$0xff]
        %v1169 = vld [vmem:[%s1144 + $0x120] sm:$0xff]
        %v1170 = vld [vmem:[%s1144 + $0x128] sm:$0xff]
        %v1171 = vld [vmem:[%s1144 + $0x138] sm:$0xff]
        %v1172 = vld [vmem:[%s1144 + $0x140] sm:$0xff]
        %v1173 = vld [vmem:[%s1144 + $0x150] sm:$0xff]
        %v1174 = vld [vmem:[%s1144 + $0x158] sm:$0xff]
        %v1175 = vld [vmem:[%s1144 + $0x168] sm:$0xff]
        %v1176 = vld [vmem:[%s1144 + $0x170] sm:$0xff]
        %v1177 = vpack.c.bf16 %v1146, %v1145
        %v1178 = vpack.c.bf16 %v1148, %v1147
        %v1179 = vpack.c.bf16 %v1150, %v1149
        %v1180 = vpack.c.bf16 %v1152, %v1151
        %v1181 = vpack.c.bf16 %v1154, %v1153
        %v1182 = vpack.c.bf16 %v1156, %v1155
        %v1183 = vpack.c.bf16 %v1158, %v1157
        %v1184 = vpack.c.bf16 %v1160, %v1159
        %v1185 = vpack.c.bf16 %v1162, %v1161
        %v1186 = vpack.c.bf16 %v1164, %v1163
        %v1187 = vpack.c.bf16 %v1166, %v1165
        %v1188 = vpack.c.bf16 %v1168, %v1167
        %v1189 = vpack.c.bf16 %v1170, %v1169
        %v1190 = vpack.c.bf16 %v1172, %v1171
        %v1191 = vpack.c.bf16 %v1174, %v1173
        %v1192 = vpack.c.bf16 %v1176, %v1175
        %s1193 = scalar_lea.vmem %s1, 192
        %v1194 = vld [vmem:[%s1193] sm:$0xf]
        %v1195 = vld [vmem:[%s1193 + $0x4] sm:$0xf]
        %v1196 = vld [vmem:[%s1193 + $0x8] sm:$0xf]
        %v1197 = vld [vmem:[%s1193 + $0xc] sm:$0xf]
        %v1198 = vld [vmem:[%s1193 + $0x10] sm:$0xf]
        %v1199 = vld [vmem:[%s1193 + $0x14] sm:$0xf]
        %v1200 = vld [vmem:[%s1193 + $0x18] sm:$0xf]
        %v1201 = vld [vmem:[%s1193 + $0x1c] sm:$0xf]
        %v1202 = vld [vmem:[%s1193 + $0x20] sm:$0xf]
        %v1203 = vld [vmem:[%s1193 + $0x24] sm:$0xf]
        %v1204 = vld [vmem:[%s1193 + $0x28] sm:$0xf]
        %v1205 = vld [vmem:[%s1193 + $0x2c] sm:$0xf]
        %v1206 = vld [vmem:[%s1193 + $0x30] sm:$0xf]
        %v1207 = vld [vmem:[%s1193 + $0x34] sm:$0xf]
        %v1208 = vld [vmem:[%s1193 + $0x38] sm:$0xf]
        %v1209 = vld [vmem:[%s1193 + $0x3c] sm:$0xf]
        %v1226 = vunpack.c.l.b16 %v1194
        %v1227 = vunpack.c.l.b16 %v1195
        %v1228 = vunpack.c.l.b16 %v1196
        %v1229 = vunpack.c.l.b16 %v1197
        %v1230 = vunpack.c.l.b16 %v1198
        %v1231 = vunpack.c.l.b16 %v1199
        %v1232 = vunpack.c.l.b16 %v1200
        %v1233 = vunpack.c.l.b16 %v1201
        %v1234 = vunpack.c.l.b16 %v1202
        %v1235 = vunpack.c.l.b16 %v1203
        %v1236 = vunpack.c.l.b16 %v1204
        %v1237 = vunpack.c.l.b16 %v1205
        %v1238 = vunpack.c.l.b16 %v1206
        %v1239 = vunpack.c.l.b16 %v1207
        %v1240 = vunpack.c.l.b16 %v1208
        %v1241 = vunpack.c.l.b16 %v1209
        %v1242 = vpack.c.b16 %v1227, %v1226
        %v1243 = vpack.c.b16 %v1229, %v1228
        %v1244 = vpack.c.b16 %v1231, %v1230
        %v1245 = vpack.c.b16 %v1233, %v1232
        %v1246 = vpack.c.b16 %v1235, %v1234
        %v1247 = vpack.c.b16 %v1237, %v1236
        %v1248 = vpack.c.b16 %v1239, %v1238
        %v1249 = vpack.c.b16 %v1241, %v1240
        %1258 = vmatprep.subr.bf16.mxu0 0
        %1259 = vmatpush1.bf16.msra.mxu0 %v1242
        %1260 = vmatprep.subr.bf16.mxu0 0
        %1261 = vmatpush1.bf16.msra.mxu0 %v1243
        %1262 = vmatprep.subr.bf16.mxu0 0
        %1263 = vmatpush1.bf16.msra.mxu0 %v1244
        %1264 = vmatprep.subr.bf16.mxu0 0
        %1265 = vmatpush1.bf16.msra.mxu0 %v1245
        %1266 = vmatprep.subr.bf16.mxu0 0
        %1267 = vmatpush1.bf16.msra.mxu0 %v1246
        %1268 = vmatprep.subr.bf16.mxu0 0
        %1269 = vmatpush1.bf16.msra.mxu0 %v1247
        %1270 = vmatprep.subr.bf16.mxu0 0
        %1271 = vmatpush1.bf16.msra.mxu0 %v1248
        %1272 = vmatprep.subr.bf16.mxu0 0
        %1273 = vmatpush1.bf16.msra.mxu0 %v1249
        %1274 = vmatprep.subr.bf16.mxu0 0
        %1275 = vmatpush1.bf16.msra.mxu0 0
        %1276 = vmatprep.subr.bf16.mxu0 0
        %1277 = vmatpush1.bf16.msra.mxu0 0
        %1278 = vmatprep.subr.bf16.mxu0 0
        %1279 = vmatpush1.bf16.msra.mxu0 0
        %1280 = vmatprep.subr.bf16.mxu0 0
        %1281 = vmatpush1.bf16.msra.mxu0 0
        %1282 = vmatprep.subr.bf16.mxu0 0
        %1283 = vmatpush1.bf16.msra.mxu0 0
        %1284 = vmatprep.subr.bf16.mxu0 0
        %1285 = vmatpush1.bf16.msra.mxu0 0
        %1286 = vmatprep.subr.bf16.mxu0 0
        %1287 = vmatpush1.bf16.msra.mxu0 0
        %1288 = vmatprep.subr.bf16.mxu0 0
        %1289 = vmatpush1.bf16.msra.mxu0 0
        %1290 = vmatprep.mubr.bf16.mxu0 0
        %1291 = vmatmul.mubr.bf16.gmra.mrb[0].mxu0 %v1177
        %v1292 = vpop.f32.mrb[0].mxu0
        %v1293 = vadd.f32 0.0, %v1292
        %v1294 = vpop.f32.mrb[0].mxu0
        %v1295 = vpop.f32.mrb[0].mxu0
        %v1296 = vadd.f32 0.0, %v1295
        %v1297 = vpop.f32.mrb[0].mxu0
        %1298 = vmatprep.mubr.bf16.mxu0 0
        %1299 = vmatmul.mubr.bf16.gmra.mrb[0].mxu0 %v1178
        %v1300 = vpop.f32.mrb[0].mxu0
        %v1301 = vadd.f32 0.0, %v1300
        %v1302 = vpop.f32.mrb[0].mxu0
        %v1303 = vpop.f32.mrb[0].mxu0
        %v1304 = vadd.f32 0.0, %v1303
        %v1305 = vpop.f32.mrb[0].mxu0
        %1306 = vmatprep.mubr.bf16.mxu0 0
        %1307 = vmatmul.mubr.bf16.gmra.mrb[0].mxu0 %v1179
        %v1308 = vpop.f32.mrb[0].mxu0
        %v1309 = vadd.f32 0.0, %v1308
        %v1310 = vpop.f32.mrb[0].mxu0
        %v1311 = vpop.f32.mrb[0].mxu0
        %v1312 = vadd.f32 0.0, %v1311
        %v1313 = vpop.f32.mrb[0].mxu0
        %1314 = vmatprep.mubr.bf16.mxu0 0
        %1315 = vmatmul.mubr.bf16.gmra.mrb[0].mxu0 %v1180
        %v1316 = vpop.f32.mrb[0].mxu0
        %v1317 = vadd.f32 0.0, %v1316
        %v1318 = vpop.f32.mrb[0].mxu0
        %v1319 = vpop.f32.mrb[0].mxu0
        %v1320 = vadd.f32 0.0, %v1319
        %v1321 = vpop.f32.mrb[0].mxu0
        %1322 = vmatprep.mubr.bf16.mxu0 0
        %1323 = vmatmul.mubr.bf16.gmra.mrb[0].mxu0 %v1181
        %v1324 = vpop.f32.mrb[0].mxu0
        %v1325 = vadd.f32 0.0, %v1324
        %v1326 = vpop.f32.mrb[0].mxu0
        %v1327 = vpop.f32.mrb[0].mxu0
        %v1328 = vadd.f32 0.0, %v1327
        %v1329 = vpop.f32.mrb[0].mxu0
        %1330 = vmatprep.mubr.bf16.mxu0 0
        %1331 = vmatmul.mubr.bf16.gmra.mrb[0].mxu0 %v1182
        %v1332 = vpop.f32.mrb[0].mxu0
        %v1333 = vadd.f32 0.0, %v1332
        %v1334 = vpop.f32.mrb[0].mxu0
        %v1335 = vpop.f32.mrb[0].mxu0
        %v1336 = vadd.f32 0.0, %v1335
        %v1337 = vpop.f32.mrb[0].mxu0
        %1338 = vmatprep.mubr.bf16.mxu0 0
        %1339 = vmatmul.mubr.bf16.gmra.mrb[0].mxu0 %v1183
        %v1340 = vpop.f32.mrb[0].mxu0
        %v1341 = vadd.f32 0.0, %v1340
        %v1342 = vpop.f32.mrb[0].mxu0
        %v1343 = vpop.f32.mrb[0].mxu0
        %v1344 = vadd.f32 0.0, %v1343
        %v1345 = vpop.f32.mrb[0].mxu0
        %1346 = vmatprep.mubr.bf16.mxu0 0
        %1347 = vmatmul.mubr.bf16.gmra.mrb[0].mxu0 %v1184
        %v1348 = vpop.f32.mrb[0].mxu0
        %v1349 = vadd.f32 0.0, %v1348
        %v1350 = vpop.f32.mrb[0].mxu0
        %v1351 = vpop.f32.mrb[0].mxu0
        %v1352 = vadd.f32 0.0, %v1351
        %v1353 = vpop.f32.mrb[0].mxu0
        %1354 = vmatprep.mubr.bf16.mxu0 0
        %1355 = vmatmul.mubr.bf16.gmra.mrb[0].mxu0 %v1185
        %v1356 = vpop.f32.mrb[0].mxu0
        %v1357 = vadd.f32 0.0, %v1356
        %v1358 = vpop.f32.mrb[0].mxu0
        %v1359 = vpop.f32.mrb[0].mxu0
        %v1360 = vadd.f32 0.0, %v1359
        %v1361 = vpop.f32.mrb[0].mxu0
        %1362 = vmatprep.mubr.bf16.mxu0 0
        %1363 = vmatmul.mubr.bf16.gmra.mrb[0].mxu0 %v1186
        %v1364 = vpop.f32.mrb[0].mxu0
        %v1365 = vadd.f32 0.0, %v1364
        %v1366 = vpop.f32.mrb[0].mxu0
        %v1367 = vpop.f32.mrb[0].mxu0
        %v1368 = vadd.f32 0.0, %v1367
        %v1369 = vpop.f32.mrb[0].mxu0
        %1370 = vmatprep.mubr.bf16.mxu0 0
        %1371 = vmatmul.mubr.bf16.gmra.mrb[0].mxu0 %v1187
        %v1372 = vpop.f32.mrb[0].mxu0
        %v1373 = vadd.f32 0.0, %v1372
        %v1374 = vpop.f32.mrb[0].mxu0
        %v1375 = vpop.f32.mrb[0].mxu0
        %v1376 = vadd.f32 0.0, %v1375
        %v1377 = vpop.f32.mrb[0].mxu0
        %1378 = vmatprep.mubr.bf16.mxu0 0
        %1379 = vmatmul.mubr.bf16.gmra.mrb[0].mxu0 %v1188
        %v1380 = vpop.f32.mrb[0].mxu0
        %v1381 = vadd.f32 0.0, %v1380
        %v1382 = vpop.f32.mrb[0].mxu0
        %v1383 = vpop.f32.mrb[0].mxu0
        %v1384 = vadd.f32 0.0, %v1383
        %v1385 = vpop.f32.mrb[0].mxu0
        %1386 = vmatprep.mubr.bf16.mxu0 0
        %1387 = vmatmul.mubr.bf16.gmra.mrb[0].mxu0 %v1189
        %v1388 = vpop.f32.mrb[0].mxu0
        %v1389 = vadd.f32 0.0, %v1388
        %v1390 = vpop.f32.mrb[0].mxu0
        %v1391 = vpop.f32.mrb[0].mxu0
        %v1392 = vadd.f32 0.0, %v1391
        %v1393 = vpop.f32.mrb[0].mxu0
        %1394 = vmatprep.mubr.bf16.mxu0 0
        %1395 = vmatmul.mubr.bf16.gmra.mrb[0].mxu0 %v1190
        %v1396 = vpop.f32.mrb[0].mxu0
        %v1397 = vadd.f32 0.0, %v1396
        %v1398 = vpop.f32.mrb[0].mxu0
        %v1399 = vpop.f32.mrb[0].mxu0
        %v1400 = vadd.f32 0.0, %v1399
        %v1401 = vpop.f32.mrb[0].mxu0
        %1402 = vmatprep.mubr.bf16.mxu0 0
        %1403 = vmatmul.mubr.bf16.gmra.mrb[0].mxu0 %v1191
        %v1404 = vpop.f32.mrb[0].mxu0
        %v1405 = vadd.f32 0.0, %v1404
        %v1406 = vpop.f32.mrb[0].mxu0
        %v1407 = vpop.f32.mrb[0].mxu0
        %v1408 = vadd.f32 0.0, %v1407
        %v1409 = vpop.f32.mrb[0].mxu0
        %1410 = vmatprep.mubr.bf16.mxu0 0
        %1411 = vmatmul.mubr.bf16.gmra.mrb[0].mxu0 %v1192
        %v1412 = vpop.f32.mrb[0].mxu0
        %v1413 = vadd.f32 0.0, %v1412
        %v1414 = vpop.f32.mrb[0].mxu0
        %v1415 = vpop.f32.mrb[0].mxu0
        %v1416 = vadd.f32 0.0, %v1415
        %v1417 = vpop.f32.mrb[0].mxu0
        %1418 = vdwg.mxu0
        %v1419 = vadd.f32 %v1112, %v1293
        %v1420 = vadd.f32 %v1113, %v1296
        %v1421 = vadd.f32 %v1114, %v1301
        %v1422 = vadd.f32 %v1115, %v1304
        %v1423 = vadd.f32 %v1116, %v1309
        %v1424 = vadd.f32 %v1117, %v1312
        %v1425 = vadd.f32 %v1118, %v1317
        %v1426 = vadd.f32 %v1119, %v1320
        %v1427 = vadd.f32 %v1120, %v1325
        %v1428 = vadd.f32 %v1121, %v1328
        %v1429 = vadd.f32 %v1122, %v1333
        %v1430 = vadd.f32 %v1123, %v1336
        %v1431 = vadd.f32 %v1124, %v1341
        %v1432 = vadd.f32 %v1125, %v1344
        %v1433 = vadd.f32 %v1126, %v1349
        %v1434 = vadd.f32 %v1127, %v1352
        %v1435 = vadd.f32 %v1128, %v1357
        %v1436 = vadd.f32 %v1129, %v1360
        %v1437 = vadd.f32 %v1130, %v1365
        %v1438 = vadd.f32 %v1131, %v1368
        %v1439 = vadd.f32 %v1132, %v1373
        %v1440 = vadd.f32 %v1133, %v1376
        %v1441 = vadd.f32 %v1134, %v1381
        %v1442 = vadd.f32 %v1135, %v1384
        %v1443 = vadd.f32 %v1136, %v1389
        %v1444 = vadd.f32 %v1137, %v1392
        %v1445 = vadd.f32 %v1138, %v1397
        %v1446 = vadd.f32 %v1139, %v1400
        %v1447 = vadd.f32 %v1140, %v1405
        %v1448 = vadd.f32 %v1141, %v1408
        %v1449 = vadd.f32 %v1142, %v1413
        %v1450 = vadd.f32 %v1143, %v1416
        %v1451 = vld [vmem:[%s1144 + $0x1] sm:$0xff]
        %v1452 = vld [vmem:[%s1144 + $0x9] sm:$0xff]
        %v1453 = vld [vmem:[%s1144 + $0x19] sm:$0xff]
        %v1454 = vld [vmem:[%s1144 + $0x21] sm:$0xff]
        %v1455 = vld [vmem:[%s1144 + $0x31] sm:$0xff]
        %v1456 = vld [vmem:[%s1144 + $0x39] sm:$0xff]
        %v1457 = vld [vmem:[%s1144 + $0x49] sm:$0xff]
        %v1458 = vld [vmem:[%s1144 + $0x51] sm:$0xff]
        %v1459 = vld [vmem:[%s1144 + $0x61] sm:$0xff]
        %v1460 = vld [vmem:[%s1144 + $0x69] sm:$0xff]
        %v1461 = vld [vmem:[%s1144 + $0x79] sm:$0xff]
        %v1462 = vld [vmem:[%s1144 + $0x81] sm:$0xff]
        %v1463 = vld [vmem:[%s1144 + $0x91] sm:$0xff]
        %v1464 = vld [vmem:[%s1144 + $0x99] sm:$0xff]
        %v1465 = vld [vmem:[%s1144 + $0xa9] sm:$0xff]
        %v1466 = vld [vmem:[%s1144 + $0xb1] sm:$0xff]
        %v1467 = vld [vmem:[%s1144 + $0xc1] sm:$0xff]
        %v1468 = vld [vmem:[%s1144 + $0xc9] sm:$0xff]
        %v1469 = vld [vmem:[%s1144 + $0xd9] sm:$0xff]
        %v1470 = vld [vmem:[%s1144 + $0xe1] sm:$0xff]
        %v1471 = vld [vmem:[%s1144 + $0xf1] sm:$0xff]
        %v1472 = vld [vmem:[%s1144 + $0xf9] sm:$0xff]
        %v1473 = vld [vmem:[%s1144 + $0x109] sm:$0xff]
        %v1474 = vld [vmem:[%s1144 + $0x111] sm:$0xff]
        %v1475 = vld [vmem:[%s1144 + $0x121] sm:$0xff]
        %v1476 = vld [vmem:[%s1144 + $0x129] sm:$0xff]
        %v1477 = vld [vmem:[%s1144 + $0x139] sm:$0xff]
        %v1478 = vld [vmem:[%s1144 + $0x141] sm:$0xff]
        %v1479 = vld [vmem:[%s1144 + $0x151] sm:$0xff]
        %v1480 = vld [vmem:[%s1144 + $0x159] sm:$0xff]
        %v1481 = vld [vmem:[%s1144 + $0x169] sm:$0xff]
        %v1482 = vld [vmem:[%s1144 + $0x171] sm:$0xff]
        %v1483 = vpack.c.bf16 %v1452, %v1451
        %v1484 = vpack.c.bf16 %v1454, %v1453
        %v1485 = vpack.c.bf16 %v1456, %v1455
        %v1486 = vpack.c.bf16 %v1458, %v1457
        %v1487 = vpack.c.bf16 %v1460, %v1459
        %v1488 = vpack.c.bf16 %v1462, %v1461
        %v1489 = vpack.c.bf16 %v1464, %v1463
        %v1490 = vpack.c.bf16 %v1466, %v1465
        %v1491 = vpack.c.bf16 %v1468, %v1467
        %v1492 = vpack.c.bf16 %v1470, %v1469
        %v1493 = vpack.c.bf16 %v1472, %v1471
        %v1494 = vpack.c.bf16 %v1474, %v1473
        %v1495 = vpack.c.bf16 %v1476, %v1475
        %v1496 = vpack.c.bf16 %v1478, %v1477
        %v1497 = vpack.c.bf16 %v1480, %v1479
        %v1498 = vpack.c.bf16 %v1482, %v1481
        %s1499 = scalar_lea.vmem %s1, 256
        %v1500 = vld [vmem:[%s1499] sm:$0xf]
        %v1501 = vld [vmem:[%s1499 + $0x4] sm:$0xf]
        %v1502 = vld [vmem:[%s1499 + $0x8] sm:$0xf]
        %v1503 = vld [vmem:[%s1499 + $0xc] sm:$0xf]
        %v1504 = vld [vmem:[%s1499 + $0x10] sm:$0xf]
        %v1505 = vld [vmem:[%s1499 + $0x14] sm:$0xf]
        %v1506 = vld [vmem:[%s1499 + $0x18] sm:$0xf]
        %v1507 = vld [vmem:[%s1499 + $0x1c] sm:$0xf]
        %v1508 = vld [vmem:[%s1499 + $0x20] sm:$0xf]
        %v1509 = vld [vmem:[%s1499 + $0x24] sm:$0xf]
        %v1510 = vld [vmem:[%s1499 + $0x28] sm:$0xf]
        %v1511 = vld [vmem:[%s1499 + $0x2c] sm:$0xf]
        %v1512 = vld [vmem:[%s1499 + $0x30] sm:$0xf]
        %v1513 = vld [vmem:[%s1499 + $0x34] sm:$0xf]
        %v1514 = vld [vmem:[%s1499 + $0x38] sm:$0xf]
        %v1515 = vld [vmem:[%s1499 + $0x3c] sm:$0xf]
        %v1532 = vunpack.c.l.b16 %v1500
        %v1533 = vunpack.c.l.b16 %v1501
        %v1534 = vunpack.c.l.b16 %v1502
        %v1535 = vunpack.c.l.b16 %v1503
        %v1536 = vunpack.c.l.b16 %v1504
        %v1537 = vunpack.c.l.b16 %v1505
        %v1538 = vunpack.c.l.b16 %v1506
        %v1539 = vunpack.c.l.b16 %v1507
        %v1540 = vunpack.c.l.b16 %v1508
        %v1541 = vunpack.c.l.b16 %v1509
        %v1542 = vunpack.c.l.b16 %v1510
        %v1543 = vunpack.c.l.b16 %v1511
        %v1544 = vunpack.c.l.b16 %v1512
        %v1545 = vunpack.c.l.b16 %v1513
        %v1546 = vunpack.c.l.b16 %v1514
        %v1547 = vunpack.c.l.b16 %v1515
        %v1548 = vpack.c.b16 %v1533, %v1532
        %v1549 = vpack.c.b16 %v1535, %v1534
        %v1550 = vpack.c.b16 %v1537, %v1536
        %v1551 = vpack.c.b16 %v1539, %v1538
        %v1552 = vpack.c.b16 %v1541, %v1540
        %v1553 = vpack.c.b16 %v1543, %v1542
        %v1554 = vpack.c.b16 %v1545, %v1544
        %v1555 = vpack.c.b16 %v1547, %v1546
        %1564 = vmatprep.subr.bf16.mxu0 0
        %1565 = vmatpush1.bf16.msra.mxu0 %v1548
        %1566 = vmatprep.subr.bf16.mxu0 0
        %1567 = vmatpush1.bf16.msra.mxu0 %v1549
        %1568 = vmatprep.subr.bf16.mxu0 0
        %1569 = vmatpush1.bf16.msra.mxu0 %v1550
        %1570 = vmatprep.subr.bf16.mxu0 0
        %1571 = vmatpush1.bf16.msra.mxu0 %v1551
        %1572 = vmatprep.subr.bf16.mxu0 0
        %1573 = vmatpush1.bf16.msra.mxu0 %v1552
        %1574 = vmatprep.subr.bf16.mxu0 0
        %1575 = vmatpush1.bf16.msra.mxu0 %v1553
        %1576 = vmatprep.subr.bf16.mxu0 0
        %1577 = vmatpush1.bf16.msra.mxu0 %v1554
        %1578 = vmatprep.subr.bf16.mxu0 0
        %1579 = vmatpush1.bf16.msra.mxu0 %v1555
        %1580 = vmatprep.subr.bf16.mxu0 0
        %1581 = vmatpush1.bf16.msra.mxu0 0
        %1582 = vmatprep.subr.bf16.mxu0 0
        %1583 = vmatpush1.bf16.msra.mxu0 0
        %1584 = vmatprep.subr.bf16.mxu0 0
        %1585 = vmatpush1.bf16.msra.mxu0 0
        %1586 = vmatprep.subr.bf16.mxu0 0
        %1587 = vmatpush1.bf16.msra.mxu0 0
        %1588 = vmatprep.subr.bf16.mxu0 0
        %1589 = vmatpush1.bf16.msra.mxu0 0
        %1590 = vmatprep.subr.bf16.mxu0 0
        %1591 = vmatpush1.bf16.msra.mxu0 0
        %1592 = vmatprep.subr.bf16.mxu0 0
        %1593 = vmatpush1.bf16.msra.mxu0 0
        %1594 = vmatprep.subr.bf16.mxu0 0
        %1595 = vmatpush1.bf16.msra.mxu0 0
        %1596 = vmatprep.mubr.bf16.mxu0 0
        %1597 = vmatmul.mubr.bf16.gmra.mrb[0].mxu0 %v1483
        %v1598 = vpop.f32.mrb[0].mxu0
        %v1599 = vadd.f32 0.0, %v1598
        %v1600 = vpop.f32.mrb[0].mxu0
        %v1601 = vpop.f32.mrb[0].mxu0
        %v1602 = vadd.f32 0.0, %v1601
        %v1603 = vpop.f32.mrb[0].mxu0
        %1604 = vmatprep.mubr.bf16.mxu0 0
        %1605 = vmatmul.mubr.bf16.gmra.mrb[0].mxu0 %v1484
        %v1606 = vpop.f32.mrb[0].mxu0
        %v1607 = vadd.f32 0.0, %v1606
        %v1608 = vpop.f32.mrb[0].mxu0
        %v1609 = vpop.f32.mrb[0].mxu0
        %v1610 = vadd.f32 0.0, %v1609
        %v1611 = vpop.f32.mrb[0].mxu0
        %1612 = vmatprep.mubr.bf16.mxu0 0
        %1613 = vmatmul.mubr.bf16.gmra.mrb[0].mxu0 %v1485
        %v1614 = vpop.f32.mrb[0].mxu0
        %v1615 = vadd.f32 0.0, %v1614
        %v1616 = vpop.f32.mrb[0].mxu0
        %v1617 = vpop.f32.mrb[0].mxu0
        %v1618 = vadd.f32 0.0, %v1617
        %v1619 = vpop.f32.mrb[0].mxu0
        %1620 = vmatprep.mubr.bf16.mxu0 0
        %1621 = vmatmul.mubr.bf16.gmra.mrb[0].mxu0 %v1486
        %v1622 = vpop.f32.mrb[0].mxu0
        %v1623 = vadd.f32 0.0, %v1622
        %v1624 = vpop.f32.mrb[0].mxu0
        %v1625 = vpop.f32.mrb[0].mxu0
        %v1626 = vadd.f32 0.0, %v1625
        %v1627 = vpop.f32.mrb[0].mxu0
        %1628 = vmatprep.mubr.bf16.mxu0 0
        %1629 = vmatmul.mubr.bf16.gmra.mrb[0].mxu0 %v1487
        %v1630 = vpop.f32.mrb[0].mxu0
        %v1631 = vadd.f32 0.0, %v1630
        %v1632 = vpop.f32.mrb[0].mxu0
        %v1633 = vpop.f32.mrb[0].mxu0
        %v1634 = vadd.f32 0.0, %v1633
        %v1635 = vpop.f32.mrb[0].mxu0
        %1636 = vmatprep.mubr.bf16.mxu0 0
        %1637 = vmatmul.mubr.bf16.gmra.mrb[0].mxu0 %v1488
        %v1638 = vpop.f32.mrb[0].mxu0
        %v1639 = vadd.f32 0.0, %v1638
        %v1640 = vpop.f32.mrb[0].mxu0
        %v1641 = vpop.f32.mrb[0].mxu0
        %v1642 = vadd.f32 0.0, %v1641
        %v1643 = vpop.f32.mrb[0].mxu0
        %1644 = vmatprep.mubr.bf16.mxu0 0
        %1645 = vmatmul.mubr.bf16.gmra.mrb[0].mxu0 %v1489
        %v1646 = vpop.f32.mrb[0].mxu0
        %v1647 = vadd.f32 0.0, %v1646
        %v1648 = vpop.f32.mrb[0].mxu0
        %v1649 = vpop.f32.mrb[0].mxu0
        %v1650 = vadd.f32 0.0, %v1649
        %v1651 = vpop.f32.mrb[0].mxu0
        %1652 = vmatprep.mubr.bf16.mxu0 0
        %1653 = vmatmul.mubr.bf16.gmra.mrb[0].mxu0 %v1490
        %v1654 = vpop.f32.mrb[0].mxu0
        %v1655 = vadd.f32 0.0, %v1654
        %v1656 = vpop.f32.mrb[0].mxu0
        %v1657 = vpop.f32.mrb[0].mxu0
        %v1658 = vadd.f32 0.0, %v1657
        %v1659 = vpop.f32.mrb[0].mxu0
        %1660 = vmatprep.mubr.bf16.mxu0 0
        %1661 = vmatmul.mubr.bf16.gmra.mrb[0].mxu0 %v1491
        %v1662 = vpop.f32.mrb[0].mxu0
        %v1663 = vadd.f32 0.0, %v1662
        %v1664 = vpop.f32.mrb[0].mxu0
        %v1665 = vpop.f32.mrb[0].mxu0
        %v1666 = vadd.f32 0.0, %v1665
        %v1667 = vpop.f32.mrb[0].mxu0
        %1668 = vmatprep.mubr.bf16.mxu0 0
        %1669 = vmatmul.mubr.bf16.gmra.mrb[0].mxu0 %v1492
        %v1670 = vpop.f32.mrb[0].mxu0
        %v1671 = vadd.f32 0.0, %v1670
        %v1672 = vpop.f32.mrb[0].mxu0
        %v1673 = vpop.f32.mrb[0].mxu0
        %v1674 = vadd.f32 0.0, %v1673
        %v1675 = vpop.f32.mrb[0].mxu0
        %1676 = vmatprep.mubr.bf16.mxu0 0
        %1677 = vmatmul.mubr.bf16.gmra.mrb[0].mxu0 %v1493
        %v1678 = vpop.f32.mrb[0].mxu0
        %v1679 = vadd.f32 0.0, %v1678
        %v1680 = vpop.f32.mrb[0].mxu0
        %v1681 = vpop.f32.mrb[0].mxu0
        %v1682 = vadd.f32 0.0, %v1681
        %v1683 = vpop.f32.mrb[0].mxu0
        %1684 = vmatprep.mubr.bf16.mxu0 0
        %1685 = vmatmul.mubr.bf16.gmra.mrb[0].mxu0 %v1494
        %v1686 = vpop.f32.mrb[0].mxu0
        %v1687 = vadd.f32 0.0, %v1686
        %v1688 = vpop.f32.mrb[0].mxu0
        %v1689 = vpop.f32.mrb[0].mxu0
        %v1690 = vadd.f32 0.0, %v1689
        %v1691 = vpop.f32.mrb[0].mxu0
        %1692 = vmatprep.mubr.bf16.mxu0 0
        %1693 = vmatmul.mubr.bf16.gmra.mrb[0].mxu0 %v1495
        %v1694 = vpop.f32.mrb[0].mxu0
        %v1695 = vadd.f32 0.0, %v1694
        %v1696 = vpop.f32.mrb[0].mxu0
        %v1697 = vpop.f32.mrb[0].mxu0
        %v1698 = vadd.f32 0.0, %v1697
        %v1699 = vpop.f32.mrb[0].mxu0
        %1700 = vmatprep.mubr.bf16.mxu0 0
        %1701 = vmatmul.mubr.bf16.gmra.mrb[0].mxu0 %v1496
        %v1702 = vpop.f32.mrb[0].mxu0
        %v1703 = vadd.f32 0.0, %v1702
        %v1704 = vpop.f32.mrb[0].mxu0
        %v1705 = vpop.f32.mrb[0].mxu0
        %v1706 = vadd.f32 0.0, %v1705
        %v1707 = vpop.f32.mrb[0].mxu0
        %1708 = vmatprep.mubr.bf16.mxu0 0
        %1709 = vmatmul.mubr.bf16.gmra.mrb[0].mxu0 %v1497
        %v1710 = vpop.f32.mrb[0].mxu0
        %v1711 = vadd.f32 0.0, %v1710
        %v1712 = vpop.f32.mrb[0].mxu0
        %v1713 = vpop.f32.mrb[0].mxu0
        %v1714 = vadd.f32 0.0, %v1713
        %v1715 = vpop.f32.mrb[0].mxu0
        %1716 = vmatprep.mubr.bf16.mxu0 0
        %1717 = vmatmul.mubr.bf16.gmra.mrb[0].mxu0 %v1498
        %v1718 = vpop.f32.mrb[0].mxu0
        %v1719 = vadd.f32 0.0, %v1718
        %v1720 = vpop.f32.mrb[0].mxu0
        %v1721 = vpop.f32.mrb[0].mxu0
        %v1722 = vadd.f32 0.0, %v1721
        %v1723 = vpop.f32.mrb[0].mxu0
        %1724 = vdwg.mxu0
        %v1725 = vadd.f32 %v1419, %v1599
        %v1726 = vadd.f32 %v1420, %v1602
        %v1727 = vadd.f32 %v1421, %v1607
        %v1728 = vadd.f32 %v1422, %v1610
        %v1729 = vadd.f32 %v1423, %v1615
        %v1730 = vadd.f32 %v1424, %v1618
        %v1731 = vadd.f32 %v1425, %v1623
        %v1732 = vadd.f32 %v1426, %v1626
        %v1733 = vadd.f32 %v1427, %v1631
        %v1734 = vadd.f32 %v1428, %v1634
        %v1735 = vadd.f32 %v1429, %v1639
        %v1736 = vadd.f32 %v1430, %v1642
        %v1737 = vadd.f32 %v1431, %v1647
        %v1738 = vadd.f32 %v1432, %v1650
        %v1739 = vadd.f32 %v1433, %v1655
        %v1740 = vadd.f32 %v1434, %v1658
        %v1741 = vadd.f32 %v1435, %v1663
        %v1742 = vadd.f32 %v1436, %v1666
        %v1743 = vadd.f32 %v1437, %v1671
        %v1744 = vadd.f32 %v1438, %v1674
        %v1745 = vadd.f32 %v1439, %v1679
        %v1746 = vadd.f32 %v1440, %v1682
        %v1747 = vadd.f32 %v1441, %v1687
        %v1748 = vadd.f32 %v1442, %v1690
        %v1749 = vadd.f32 %v1443, %v1695
        %v1750 = vadd.f32 %v1444, %v1698
        %v1751 = vadd.f32 %v1445, %v1703
        %v1752 = vadd.f32 %v1446, %v1706
        %v1753 = vadd.f32 %v1447, %v1711
        %v1754 = vadd.f32 %v1448, %v1714
        %v1755 = vadd.f32 %v1449, %v1719
        %v1756 = vadd.f32 %v1450, %v1722
        %v1757 = vld [vmem:[%s1144 + $0x2] sm:$0xff]
        %v1758 = vld [vmem:[%s1144 + $0xa] sm:$0xff]
        %v1759 = vld [vmem:[%s1144 + $0x1a] sm:$0xff]
        %v1760 = vld [vmem:[%s1144 + $0x22] sm:$0xff]
        %v1761 = vld [vmem:[%s1144 + $0x32] sm:$0xff]
        %v1762 = vld [vmem:[%s1144 + $0x3a] sm:$0xff]
        %v1763 = vld [vmem:[%s1144 + $0x4a] sm:$0xff]
        %v1764 = vld [vmem:[%s1144 + $0x52] sm:$0xff]
        %v1765 = vld [vmem:[%s1144 + $0x62] sm:$0xff]
        %v1766 = vld [vmem:[%s1144 + $0x6a] sm:$0xff]
        %v1767 = vld [vmem:[%s1144 + $0x7a] sm:$0xff]
        %v1768 = vld [vmem:[%s1144 + $0x82] sm:$0xff]
        %v1769 = vld [vmem:[%s1144 + $0x92] sm:$0xff]
        %v1770 = vld [vmem:[%s1144 + $0x9a] sm:$0xff]
        %v1771 = vld [vmem:[%s1144 + $0xaa] sm:$0xff]
        %v1772 = vld [vmem:[%s1144 + $0xb2] sm:$0xff]
        %v1773 = vld [vmem:[%s1144 + $0xc2] sm:$0xff]
        %v1774 = vld [vmem:[%s1144 + $0xca] sm:$0xff]
        %v1775 = vld [vmem:[%s1144 + $0xda] sm:$0xff]
        %v1776 = vld [vmem:[%s1144 + $0xe2] sm:$0xff]
        %v1777 = vld [vmem:[%s1144 + $0xf2] sm:$0xff]
        %v1778 = vld [vmem:[%s1144 + $0xfa] sm:$0xff]
        %v1779 = vld [vmem:[%s1144 + $0x10a] sm:$0xff]
        %v1780 = vld [vmem:[%s1144 + $0x112] sm:$0xff]
        %v1781 = vld [vmem:[%s1144 + $0x122] sm:$0xff]
        %v1782 = vld [vmem:[%s1144 + $0x12a] sm:$0xff]
        %v1783 = vld [vmem:[%s1144 + $0x13a] sm:$0xff]
        %v1784 = vld [vmem:[%s1144 + $0x142] sm:$0xff]
        %v1785 = vld [vmem:[%s1144 + $0x152] sm:$0xff]
        %v1786 = vld [vmem:[%s1144 + $0x15a] sm:$0xff]
        %v1787 = vld [vmem:[%s1144 + $0x16a] sm:$0xff]
        %v1788 = vld [vmem:[%s1144 + $0x172] sm:$0xff]
        %v1789 = vpack.c.bf16 %v1758, %v1757
        %v1790 = vpack.c.bf16 %v1760, %v1759
        %v1791 = vpack.c.bf16 %v1762, %v1761
        %v1792 = vpack.c.bf16 %v1764, %v1763
        %v1793 = vpack.c.bf16 %v1766, %v1765
        %v1794 = vpack.c.bf16 %v1768, %v1767
        %v1795 = vpack.c.bf16 %v1770, %v1769
        %v1796 = vpack.c.bf16 %v1772, %v1771
        %v1797 = vpack.c.bf16 %v1774, %v1773
        %v1798 = vpack.c.bf16 %v1776, %v1775
        %v1799 = vpack.c.bf16 %v1778, %v1777
        %v1800 = vpack.c.bf16 %v1780, %v1779
        %v1801 = vpack.c.bf16 %v1782, %v1781
        %v1802 = vpack.c.bf16 %v1784, %v1783
        %v1803 = vpack.c.bf16 %v1786, %v1785
        %v1804 = vpack.c.bf16 %v1788, %v1787
        %s1805 = scalar_lea.vmem %s1, 320
        %v1806 = vld [vmem:[%s1805] sm:$0xf]
        %v1807 = vld [vmem:[%s1805 + $0x4] sm:$0xf]
        %v1808 = vld [vmem:[%s1805 + $0x8] sm:$0xf]
        %v1809 = vld [vmem:[%s1805 + $0xc] sm:$0xf]
        %v1810 = vld [vmem:[%s1805 + $0x10] sm:$0xf]
        %v1811 = vld [vmem:[%s1805 + $0x14] sm:$0xf]
        %v1812 = vld [vmem:[%s1805 + $0x18] sm:$0xf]
        %v1813 = vld [vmem:[%s1805 + $0x1c] sm:$0xf]
        %v1814 = vld [vmem:[%s1805 + $0x20] sm:$0xf]
        %v1815 = vld [vmem:[%s1805 + $0x24] sm:$0xf]
        %v1816 = vld [vmem:[%s1805 + $0x28] sm:$0xf]
        %v1817 = vld [vmem:[%s1805 + $0x2c] sm:$0xf]
        %v1818 = vld [vmem:[%s1805 + $0x30] sm:$0xf]
        %v1819 = vld [vmem:[%s1805 + $0x34] sm:$0xf]
        %v1820 = vld [vmem:[%s1805 + $0x38] sm:$0xf]
        %v1821 = vld [vmem:[%s1805 + $0x3c] sm:$0xf]
        %v1838 = vunpack.c.l.b16 %v1806
        %v1839 = vunpack.c.l.b16 %v1807
        %v1840 = vunpack.c.l.b16 %v1808
        %v1841 = vunpack.c.l.b16 %v1809
        %v1842 = vunpack.c.l.b16 %v1810
        %v1843 = vunpack.c.l.b16 %v1811
        %v1844 = vunpack.c.l.b16 %v1812
        %v1845 = vunpack.c.l.b16 %v1813
        %v1846 = vunpack.c.l.b16 %v1814
        %v1847 = vunpack.c.l.b16 %v1815
        %v1848 = vunpack.c.l.b16 %v1816
        %v1849 = vunpack.c.l.b16 %v1817
        %v1850 = vunpack.c.l.b16 %v1818
        %v1851 = vunpack.c.l.b16 %v1819
        %v1852 = vunpack.c.l.b16 %v1820
        %v1853 = vunpack.c.l.b16 %v1821
        %v1854 = vpack.c.b16 %v1839, %v1838
        %v1855 = vpack.c.b16 %v1841, %v1840
        %v1856 = vpack.c.b16 %v1843, %v1842
        %v1857 = vpack.c.b16 %v1845, %v1844
        %v1858 = vpack.c.b16 %v1847, %v1846
        %v1859 = vpack.c.b16 %v1849, %v1848
        %v1860 = vpack.c.b16 %v1851, %v1850
        %v1861 = vpack.c.b16 %v1853, %v1852
        %1870 = vmatprep.subr.bf16.mxu0 0
        %1871 = vmatpush1.bf16.msra.mxu0 %v1854
        %1872 = vmatprep.subr.bf16.mxu0 0
        %1873 = vmatpush1.bf16.msra.mxu0 %v1855
        %1874 = vmatprep.subr.bf16.mxu0 0
        %1875 = vmatpush1.bf16.msra.mxu0 %v1856
        %1876 = vmatprep.subr.bf16.mxu0 0
        %1877 = vmatpush1.bf16.msra.mxu0 %v1857
        %1878 = vmatprep.subr.bf16.mxu0 0
        %1879 = vmatpush1.bf16.msra.mxu0 %v1858
        %1880 = vmatprep.subr.bf16.mxu0 0
        %1881 = vmatpush1.bf16.msra.mxu0 %v1859
        %1882 = vmatprep.subr.bf16.mxu0 0
        %1883 = vmatpush1.bf16.msra.mxu0 %v1860
        %1884 = vmatprep.subr.bf16.mxu0 0
        %1885 = vmatpush1.bf16.msra.mxu0 %v1861
        %1886 = vmatprep.subr.bf16.mxu0 0
        %1887 = vmatpush1.bf16.msra.mxu0 0
        %1888 = vmatprep.subr.bf16.mxu0 0
        %1889 = vmatpush1.bf16.msra.mxu0 0
        %1890 = vmatprep.subr.bf16.mxu0 0
        %1891 = vmatpush1.bf16.msra.mxu0 0
        %1892 = vmatprep.subr.bf16.mxu0 0
        %1893 = vmatpush1.bf16.msra.mxu0 0
        %1894 = vmatprep.subr.bf16.mxu0 0
        %1895 = vmatpush1.bf16.msra.mxu0 0
        %1896 = vmatprep.subr.bf16.mxu0 0
        %1897 = vmatpush1.bf16.msra.mxu0 0
        %1898 = vmatprep.subr.bf16.mxu0 0
        %1899 = vmatpush1.bf16.msra.mxu0 0
        %1900 = vmatprep.subr.bf16.mxu0 0
        %1901 = vmatpush1.bf16.msra.mxu0 0
        %1902 = vmatprep.mubr.bf16.mxu0 0
        %1903 = vmatmul.mubr.bf16.gmra.mrb[0].mxu0 %v1789
        %v1904 = vpop.f32.mrb[0].mxu0
        %v1905 = vadd.f32 0.0, %v1904
        %v1906 = vpop.f32.mrb[0].mxu0
        %v1907 = vpop.f32.mrb[0].mxu0
        %v1908 = vadd.f32 0.0, %v1907
        %v1909 = vpop.f32.mrb[0].mxu0
        %1910 = vmatprep.mubr.bf16.mxu0 0
        %1911 = vmatmul.mubr.bf16.gmra.mrb[0].mxu0 %v1790
        %v1912 = vpop.f32.mrb[0].mxu0
        %v1913 = vadd.f32 0.0, %v1912
        %v1914 = vpop.f32.mrb[0].mxu0
        %v1915 = vpop.f32.mrb[0].mxu0
        %v1916 = vadd.f32 0.0, %v1915
        %v1917 = vpop.f32.mrb[0].mxu0
        %1918 = vmatprep.mubr.bf16.mxu0 0
        %1919 = vmatmul.mubr.bf16.gmra.mrb[0].mxu0 %v1791
        %v1920 = vpop.f32.mrb[0].mxu0
        %v1921 = vadd.f32 0.0, %v1920
        %v1922 = vpop.f32.mrb[0].mxu0
        %v1923 = vpop.f32.mrb[0].mxu0
        %v1924 = vadd.f32 0.0, %v1923
        %v1925 = vpop.f32.mrb[0].mxu0
        %1926 = vmatprep.mubr.bf16.mxu0 0
        %1927 = vmatmul.mubr.bf16.gmra.mrb[0].mxu0 %v1792
        %v1928 = vpop.f32.mrb[0].mxu0
        %v1929 = vadd.f32 0.0, %v1928
        %v1930 = vpop.f32.mrb[0].mxu0
        %v1931 = vpop.f32.mrb[0].mxu0
        %v1932 = vadd.f32 0.0, %v1931
        %v1933 = vpop.f32.mrb[0].mxu0
        %1934 = vmatprep.mubr.bf16.mxu0 0
        %1935 = vmatmul.mubr.bf16.gmra.mrb[0].mxu0 %v1793
        %v1936 = vpop.f32.mrb[0].mxu0
        %v1937 = vadd.f32 0.0, %v1936
        %v1938 = vpop.f32.mrb[0].mxu0
        %v1939 = vpop.f32.mrb[0].mxu0
        %v1940 = vadd.f32 0.0, %v1939
        %v1941 = vpop.f32.mrb[0].mxu0
        %1942 = vmatprep.mubr.bf16.mxu0 0
        %1943 = vmatmul.mubr.bf16.gmra.mrb[0].mxu0 %v1794
        %v1944 = vpop.f32.mrb[0].mxu0
        %v1945 = vadd.f32 0.0, %v1944
        %v1946 = vpop.f32.mrb[0].mxu0
        %v1947 = vpop.f32.mrb[0].mxu0
        %v1948 = vadd.f32 0.0, %v1947
        %v1949 = vpop.f32.mrb[0].mxu0
        %1950 = vmatprep.mubr.bf16.mxu0 0
        %1951 = vmatmul.mubr.bf16.gmra.mrb[0].mxu0 %v1795
        %v1952 = vpop.f32.mrb[0].mxu0
        %v1953 = vadd.f32 0.0, %v1952
        %v1954 = vpop.f32.mrb[0].mxu0
        %v1955 = vpop.f32.mrb[0].mxu0
        %v1956 = vadd.f32 0.0, %v1955
        %v1957 = vpop.f32.mrb[0].mxu0
        %1958 = vmatprep.mubr.bf16.mxu0 0
        %1959 = vmatmul.mubr.bf16.gmra.mrb[0].mxu0 %v1796
        %v1960 = vpop.f32.mrb[0].mxu0
        %v1961 = vadd.f32 0.0, %v1960
        %v1962 = vpop.f32.mrb[0].mxu0
        %v1963 = vpop.f32.mrb[0].mxu0
        %v1964 = vadd.f32 0.0, %v1963
        %v1965 = vpop.f32.mrb[0].mxu0
        %1966 = vmatprep.mubr.bf16.mxu0 0
        %1967 = vmatmul.mubr.bf16.gmra.mrb[0].mxu0 %v1797
        %v1968 = vpop.f32.mrb[0].mxu0
        %v1969 = vadd.f32 0.0, %v1968
        %v1970 = vpop.f32.mrb[0].mxu0
        %v1971 = vpop.f32.mrb[0].mxu0
        %v1972 = vadd.f32 0.0, %v1971
        %v1973 = vpop.f32.mrb[0].mxu0
        %1974 = vmatprep.mubr.bf16.mxu0 0
        %1975 = vmatmul.mubr.bf16.gmra.mrb[0].mxu0 %v1798
        %v1976 = vpop.f32.mrb[0].mxu0
        %v1977 = vadd.f32 0.0, %v1976
        %v1978 = vpop.f32.mrb[0].mxu0
        %v1979 = vpop.f32.mrb[0].mxu0
        %v1980 = vadd.f32 0.0, %v1979
        %v1981 = vpop.f32.mrb[0].mxu0
        %1982 = vmatprep.mubr.bf16.mxu0 0
        %1983 = vmatmul.mubr.bf16.gmra.mrb[0].mxu0 %v1799
        %v1984 = vpop.f32.mrb[0].mxu0
        %v1985 = vadd.f32 0.0, %v1984
        %v1986 = vpop.f32.mrb[0].mxu0
        %v1987 = vpop.f32.mrb[0].mxu0
        %v1988 = vadd.f32 0.0, %v1987
        %v1989 = vpop.f32.mrb[0].mxu0
        %1990 = vmatprep.mubr.bf16.mxu0 0
        %1991 = vmatmul.mubr.bf16.gmra.mrb[0].mxu0 %v1800
        %v1992 = vpop.f32.mrb[0].mxu0
        %v1993 = vadd.f32 0.0, %v1992
        %v1994 = vpop.f32.mrb[0].mxu0
        %v1995 = vpop.f32.mrb[0].mxu0
        %v1996 = vadd.f32 0.0, %v1995
        %v1997 = vpop.f32.mrb[0].mxu0
        %1998 = vmatprep.mubr.bf16.mxu0 0
        %1999 = vmatmul.mubr.bf16.gmra.mrb[0].mxu0 %v1801
        %v2000 = vpop.f32.mrb[0].mxu0
        %v2001 = vadd.f32 0.0, %v2000
        %v2002 = vpop.f32.mrb[0].mxu0
        %v2003 = vpop.f32.mrb[0].mxu0
        %v2004 = vadd.f32 0.0, %v2003
        %v2005 = vpop.f32.mrb[0].mxu0
        %2006 = vmatprep.mubr.bf16.mxu0 0
        %2007 = vmatmul.mubr.bf16.gmra.mrb[0].mxu0 %v1802
        %v2008 = vpop.f32.mrb[0].mxu0
        %v2009 = vadd.f32 0.0, %v2008
        %v2010 = vpop.f32.mrb[0].mxu0
        %v2011 = vpop.f32.mrb[0].mxu0
        %v2012 = vadd.f32 0.0, %v2011
        %v2013 = vpop.f32.mrb[0].mxu0
        %2014 = vmatprep.mubr.bf16.mxu0 0
        %2015 = vmatmul.mubr.bf16.gmra.mrb[0].mxu0 %v1803
        %v2016 = vpop.f32.mrb[0].mxu0
        %v2017 = vadd.f32 0.0, %v2016
        %v2018 = vpop.f32.mrb[0].mxu0
        %v2019 = vpop.f32.mrb[0].mxu0
        %v2020 = vadd.f32 0.0, %v2019
        %v2021 = vpop.f32.mrb[0].mxu0
        %2022 = vmatprep.mubr.bf16.mxu0 0
        %2023 = vmatmul.mubr.bf16.gmra.mrb[0].mxu0 %v1804
        %v2024 = vpop.f32.mrb[0].mxu0
        %v2025 = vadd.f32 0.0, %v2024
        %v2026 = vpop.f32.mrb[0].mxu0
        %v2027 = vpop.f32.mrb[0].mxu0
        %v2028 = vadd.f32 0.0, %v2027
        %v2029 = vpop.f32.mrb[0].mxu0
        %2030 = vdwg.mxu0
        %v2031 = vadd.f32 %v1725, %v1905
        %v2032 = vadd.f32 %v1726, %v1908
        %v2033 = vadd.f32 %v1727, %v1913
        %v2034 = vadd.f32 %v1728, %v1916
        %v2035 = vadd.f32 %v1729, %v1921
        %v2036 = vadd.f32 %v1730, %v1924
        %v2037 = vadd.f32 %v1731, %v1929
        %v2038 = vadd.f32 %v1732, %v1932
        %v2039 = vadd.f32 %v1733, %v1937
        %v2040 = vadd.f32 %v1734, %v1940
        %v2041 = vadd.f32 %v1735, %v1945
        %v2042 = vadd.f32 %v1736, %v1948
        %v2043 = vadd.f32 %v1737, %v1953
        %v2044 = vadd.f32 %v1738, %v1956
        %v2045 = vadd.f32 %v1739, %v1961
        %v2046 = vadd.f32 %v1740, %v1964
        %v2047 = vadd.f32 %v1741, %v1969
        %v2048 = vadd.f32 %v1742, %v1972
        %v2049 = vadd.f32 %v1743, %v1977
        %v2050 = vadd.f32 %v1744, %v1980
        %v2051 = vadd.f32 %v1745, %v1985
        %v2052 = vadd.f32 %v1746, %v1988
        %v2053 = vadd.f32 %v1747, %v1993
        %v2054 = vadd.f32 %v1748, %v1996
        %v2055 = vadd.f32 %v1749, %v2001
        %v2056 = vadd.f32 %v1750, %v2004
        %v2057 = vadd.f32 %v1751, %v2009
        %v2058 = vadd.f32 %v1752, %v2012
        %v2059 = vadd.f32 %v1753, %v2017
        %v2060 = vadd.f32 %v1754, %v2020
        %v2061 = vadd.f32 %v1755, %v2025
        %v2062 = vadd.f32 %v1756, %v2028
        %s2063 = scalar_lea.vmem %s289, 48
        %v2064 = vld [vmem:[%s2063] sm:$0xff]
        %v2065 = vld [vmem:[%s2063 + $0x8] sm:$0xff]
        %v2066 = vld [vmem:[%s2063 + $0x18] sm:$0xff]
        %v2067 = vld [vmem:[%s2063 + $0x20] sm:$0xff]
        %v2068 = vld [vmem:[%s2063 + $0x30] sm:$0xff]
        %v2069 = vld [vmem:[%s2063 + $0x38] sm:$0xff]
        %v2070 = vld [vmem:[%s2063 + $0x48] sm:$0xff]
        %v2071 = vld [vmem:[%s2063 + $0x50] sm:$0xff]
        %v2072 = vld [vmem:[%s2063 + $0x60] sm:$0xff]
        %v2073 = vld [vmem:[%s2063 + $0x68] sm:$0xff]
        %v2074 = vld [vmem:[%s2063 + $0x78] sm:$0xff]
        %v2075 = vld [vmem:[%s2063 + $0x80] sm:$0xff]
        %v2076 = vld [vmem:[%s2063 + $0x90] sm:$0xff]
        %v2077 = vld [vmem:[%s2063 + $0x98] sm:$0xff]
        %v2078 = vld [vmem:[%s2063 + $0xa8] sm:$0xff]
        %v2079 = vld [vmem:[%s2063 + $0xb0] sm:$0xff]
        %v2080 = vld [vmem:[%s2063 + $0xc0] sm:$0xff]
        %v2081 = vld [vmem:[%s2063 + $0xc8] sm:$0xff]
        %v2082 = vld [vmem:[%s2063 + $0xd8] sm:$0xff]
        %v2083 = vld [vmem:[%s2063 + $0xe0] sm:$0xff]
        %v2084 = vld [vmem:[%s2063 + $0xf0] sm:$0xff]
        %v2085 = vld [vmem:[%s2063 + $0xf8] sm:$0xff]
        %v2086 = vld [vmem:[%s2063 + $0x108] sm:$0xff]
        %v2087 = vld [vmem:[%s2063 + $0x110] sm:$0xff]
        %v2088 = vld [vmem:[%s2063 + $0x120] sm:$0xff]
        %v2089 = vld [vmem:[%s2063 + $0x128] sm:$0xff]
        %v2090 = vld [vmem:[%s2063 + $0x138] sm:$0xff]
        %v2091 = vld [vmem:[%s2063 + $0x140] sm:$0xff]
        %v2092 = vld [vmem:[%s2063 + $0x150] sm:$0xff]
        %v2093 = vld [vmem:[%s2063 + $0x158] sm:$0xff]
        %v2094 = vld [vmem:[%s2063 + $0x168] sm:$0xff]
        %v2095 = vld [vmem:[%s2063 + $0x170] sm:$0xff]
        %v2096 = vpack.c.bf16 %v2065, %v2064
        %v2097 = vpack.c.bf16 %v2067, %v2066
        %v2098 = vpack.c.bf16 %v2069, %v2068
        %v2099 = vpack.c.bf16 %v2071, %v2070
        %v2100 = vpack.c.bf16 %v2073, %v2072
        %v2101 = vpack.c.bf16 %v2075, %v2074
        %v2102 = vpack.c.bf16 %v2077, %v2076
        %v2103 = vpack.c.bf16 %v2079, %v2078
        %v2104 = vpack.c.bf16 %v2081, %v2080
        %v2105 = vpack.c.bf16 %v2083, %v2082
        %v2106 = vpack.c.bf16 %v2085, %v2084
        %v2107 = vpack.c.bf16 %v2087, %v2086
        %v2108 = vpack.c.bf16 %v2089, %v2088
        %v2109 = vpack.c.bf16 %v2091, %v2090
        %v2110 = vpack.c.bf16 %v2093, %v2092
        %v2111 = vpack.c.bf16 %v2095, %v2094
        %s2112 = scalar_lea.vmem %s1, 384
        %v2113 = vld [vmem:[%s2112] sm:$0xf]
        %v2114 = vld [vmem:[%s2112 + $0x4] sm:$0xf]
        %v2115 = vld [vmem:[%s2112 + $0x8] sm:$0xf]
        %v2116 = vld [vmem:[%s2112 + $0xc] sm:$0xf]
        %v2117 = vld [vmem:[%s2112 + $0x10] sm:$0xf]
        %v2118 = vld [vmem:[%s2112 + $0x14] sm:$0xf]
        %v2119 = vld [vmem:[%s2112 + $0x18] sm:$0xf]
        %v2120 = vld [vmem:[%s2112 + $0x1c] sm:$0xf]
        %v2121 = vld [vmem:[%s2112 + $0x20] sm:$0xf]
        %v2122 = vld [vmem:[%s2112 + $0x24] sm:$0xf]
        %v2123 = vld [vmem:[%s2112 + $0x28] sm:$0xf]
        %v2124 = vld [vmem:[%s2112 + $0x2c] sm:$0xf]
        %v2125 = vld [vmem:[%s2112 + $0x30] sm:$0xf]
        %v2126 = vld [vmem:[%s2112 + $0x34] sm:$0xf]
        %v2127 = vld [vmem:[%s2112 + $0x38] sm:$0xf]
        %v2128 = vld [vmem:[%s2112 + $0x3c] sm:$0xf]
        %v2145 = vunpack.c.l.b16 %v2113
        %v2146 = vunpack.c.l.b16 %v2114
        %v2147 = vunpack.c.l.b16 %v2115
        %v2148 = vunpack.c.l.b16 %v2116
        %v2149 = vunpack.c.l.b16 %v2117
        %v2150 = vunpack.c.l.b16 %v2118
        %v2151 = vunpack.c.l.b16 %v2119
        %v2152 = vunpack.c.l.b16 %v2120
        %v2153 = vunpack.c.l.b16 %v2121
        %v2154 = vunpack.c.l.b16 %v2122
        %v2155 = vunpack.c.l.b16 %v2123
        %v2156 = vunpack.c.l.b16 %v2124
        %v2157 = vunpack.c.l.b16 %v2125
        %v2158 = vunpack.c.l.b16 %v2126
        %v2159 = vunpack.c.l.b16 %v2127
        %v2160 = vunpack.c.l.b16 %v2128
        %v2161 = vpack.c.b16 %v2146, %v2145
        %v2162 = vpack.c.b16 %v2148, %v2147
        %v2163 = vpack.c.b16 %v2150, %v2149
        %v2164 = vpack.c.b16 %v2152, %v2151
        %v2165 = vpack.c.b16 %v2154, %v2153
        %v2166 = vpack.c.b16 %v2156, %v2155
        %v2167 = vpack.c.b16 %v2158, %v2157
        %v2168 = vpack.c.b16 %v2160, %v2159
        %2177 = vmatprep.subr.bf16.mxu0 0
        %2178 = vmatpush1.bf16.msra.mxu0 %v2161
        %2179 = vmatprep.subr.bf16.mxu0 0
        %2180 = vmatpush1.bf16.msra.mxu0 %v2162
        %2181 = vmatprep.subr.bf16.mxu0 0
        %2182 = vmatpush1.bf16.msra.mxu0 %v2163
        %2183 = vmatprep.subr.bf16.mxu0 0
        %2184 = vmatpush1.bf16.msra.mxu0 %v2164
        %2185 = vmatprep.subr.bf16.mxu0 0
        %2186 = vmatpush1.bf16.msra.mxu0 %v2165
        %2187 = vmatprep.subr.bf16.mxu0 0
        %2188 = vmatpush1.bf16.msra.mxu0 %v2166
        %2189 = vmatprep.subr.bf16.mxu0 0
        %2190 = vmatpush1.bf16.msra.mxu0 %v2167
        %2191 = vmatprep.subr.bf16.mxu0 0
        %2192 = vmatpush1.bf16.msra.mxu0 %v2168
        %2193 = vmatprep.subr.bf16.mxu0 0
        %2194 = vmatpush1.bf16.msra.mxu0 0
        %2195 = vmatprep.subr.bf16.mxu0 0
        %2196 = vmatpush1.bf16.msra.mxu0 0
        %2197 = vmatprep.subr.bf16.mxu0 0
        %2198 = vmatpush1.bf16.msra.mxu0 0
        %2199 = vmatprep.subr.bf16.mxu0 0
        %2200 = vmatpush1.bf16.msra.mxu0 0
        %2201 = vmatprep.subr.bf16.mxu0 0
        %2202 = vmatpush1.bf16.msra.mxu0 0
        %2203 = vmatprep.subr.bf16.mxu0 0
        %2204 = vmatpush1.bf16.msra.mxu0 0
        %2205 = vmatprep.subr.bf16.mxu0 0
        %2206 = vmatpush1.bf16.msra.mxu0 0
        %2207 = vmatprep.subr.bf16.mxu0 0
        %2208 = vmatpush1.bf16.msra.mxu0 0
        %2209 = vmatprep.mubr.bf16.mxu0 0
        %2210 = vmatmul.mubr.bf16.gmra.mrb[0].mxu0 %v2096
        %v2211 = vpop.f32.mrb[0].mxu0
        %v2212 = vadd.f32 0.0, %v2211
        %v2213 = vpop.f32.mrb[0].mxu0
        %v2214 = vpop.f32.mrb[0].mxu0
        %v2215 = vadd.f32 0.0, %v2214
        %v2216 = vpop.f32.mrb[0].mxu0
        %2217 = vmatprep.mubr.bf16.mxu0 0
        %2218 = vmatmul.mubr.bf16.gmra.mrb[0].mxu0 %v2097
        %v2219 = vpop.f32.mrb[0].mxu0
        %v2220 = vadd.f32 0.0, %v2219
        %v2221 = vpop.f32.mrb[0].mxu0
        %v2222 = vpop.f32.mrb[0].mxu0
        %v2223 = vadd.f32 0.0, %v2222
        %v2224 = vpop.f32.mrb[0].mxu0
        %2225 = vmatprep.mubr.bf16.mxu0 0
        %2226 = vmatmul.mubr.bf16.gmra.mrb[0].mxu0 %v2098
        %v2227 = vpop.f32.mrb[0].mxu0
        %v2228 = vadd.f32 0.0, %v2227
        %v2229 = vpop.f32.mrb[0].mxu0
        %v2230 = vpop.f32.mrb[0].mxu0
        %v2231 = vadd.f32 0.0, %v2230
        %v2232 = vpop.f32.mrb[0].mxu0
        %2233 = vmatprep.mubr.bf16.mxu0 0
        %2234 = vmatmul.mubr.bf16.gmra.mrb[0].mxu0 %v2099
        %v2235 = vpop.f32.mrb[0].mxu0
        %v2236 = vadd.f32 0.0, %v2235
        %v2237 = vpop.f32.mrb[0].mxu0
        %v2238 = vpop.f32.mrb[0].mxu0
        %v2239 = vadd.f32 0.0, %v2238
        %v2240 = vpop.f32.mrb[0].mxu0
        %2241 = vmatprep.mubr.bf16.mxu0 0
        %2242 = vmatmul.mubr.bf16.gmra.mrb[0].mxu0 %v2100
        %v2243 = vpop.f32.mrb[0].mxu0
        %v2244 = vadd.f32 0.0, %v2243
        %v2245 = vpop.f32.mrb[0].mxu0
        %v2246 = vpop.f32.mrb[0].mxu0
        %v2247 = vadd.f32 0.0, %v2246
        %v2248 = vpop.f32.mrb[0].mxu0
        %2249 = vmatprep.mubr.bf16.mxu0 0
        %2250 = vmatmul.mubr.bf16.gmra.mrb[0].mxu0 %v2101
        %v2251 = vpop.f32.mrb[0].mxu0
        %v2252 = vadd.f32 0.0, %v2251
        %v2253 = vpop.f32.mrb[0].mxu0
        %v2254 = vpop.f32.mrb[0].mxu0
        %v2255 = vadd.f32 0.0, %v2254
        %v2256 = vpop.f32.mrb[0].mxu0
        %2257 = vmatprep.mubr.bf16.mxu0 0
        %2258 = vmatmul.mubr.bf16.gmra.mrb[0].mxu0 %v2102
        %v2259 = vpop.f32.mrb[0].mxu0
        %v2260 = vadd.f32 0.0, %v2259
        %v2261 = vpop.f32.mrb[0].mxu0
        %v2262 = vpop.f32.mrb[0].mxu0
        %v2263 = vadd.f32 0.0, %v2262
        %v2264 = vpop.f32.mrb[0].mxu0
        %2265 = vmatprep.mubr.bf16.mxu0 0
        %2266 = vmatmul.mubr.bf16.gmra.mrb[0].mxu0 %v2103
        %v2267 = vpop.f32.mrb[0].mxu0
        %v2268 = vadd.f32 0.0, %v2267
        %v2269 = vpop.f32.mrb[0].mxu0
        %v2270 = vpop.f32.mrb[0].mxu0
        %v2271 = vadd.f32 0.0, %v2270
        %v2272 = vpop.f32.mrb[0].mxu0
        %2273 = vmatprep.mubr.bf16.mxu0 0
        %2274 = vmatmul.mubr.bf16.gmra.mrb[0].mxu0 %v2104
        %v2275 = vpop.f32.mrb[0].mxu0
        %v2276 = vadd.f32 0.0, %v2275
        %v2277 = vpop.f32.mrb[0].mxu0
        %v2278 = vpop.f32.mrb[0].mxu0
        %v2279 = vadd.f32 0.0, %v2278
        %v2280 = vpop.f32.mrb[0].mxu0
        %2281 = vmatprep.mubr.bf16.mxu0 0
        %2282 = vmatmul.mubr.bf16.gmra.mrb[0].mxu0 %v2105
        %v2283 = vpop.f32.mrb[0].mxu0
        %v2284 = vadd.f32 0.0, %v2283
        %v2285 = vpop.f32.mrb[0].mxu0
        %v2286 = vpop.f32.mrb[0].mxu0
        %v2287 = vadd.f32 0.0, %v2286
        %v2288 = vpop.f32.mrb[0].mxu0
        %2289 = vmatprep.mubr.bf16.mxu0 0
        %2290 = vmatmul.mubr.bf16.gmra.mrb[0].mxu0 %v2106
        %v2291 = vpop.f32.mrb[0].mxu0
        %v2292 = vadd.f32 0.0, %v2291
        %v2293 = vpop.f32.mrb[0].mxu0
        %v2294 = vpop.f32.mrb[0].mxu0
        %v2295 = vadd.f32 0.0, %v2294
        %v2296 = vpop.f32.mrb[0].mxu0
        %2297 = vmatprep.mubr.bf16.mxu0 0
        %2298 = vmatmul.mubr.bf16.gmra.mrb[0].mxu0 %v2107
        %v2299 = vpop.f32.mrb[0].mxu0
        %v2300 = vadd.f32 0.0, %v2299
        %v2301 = vpop.f32.mrb[0].mxu0
        %v2302 = vpop.f32.mrb[0].mxu0
        %v2303 = vadd.f32 0.0, %v2302
        %v2304 = vpop.f32.mrb[0].mxu0
        %2305 = vmatprep.mubr.bf16.mxu0 0
        %2306 = vmatmul.mubr.bf16.gmra.mrb[0].mxu0 %v2108
        %v2307 = vpop.f32.mrb[0].mxu0
        %v2308 = vadd.f32 0.0, %v2307
        %v2309 = vpop.f32.mrb[0].mxu0
        %v2310 = vpop.f32.mrb[0].mxu0
        %v2311 = vadd.f32 0.0, %v2310
        %v2312 = vpop.f32.mrb[0].mxu0
        %2313 = vmatprep.mubr.bf16.mxu0 0
        %2314 = vmatmul.mubr.bf16.gmra.mrb[0].mxu0 %v2109
        %v2315 = vpop.f32.mrb[0].mxu0
        %v2316 = vadd.f32 0.0, %v2315
        %v2317 = vpop.f32.mrb[0].mxu0
        %v2318 = vpop.f32.mrb[0].mxu0
        %v2319 = vadd.f32 0.0, %v2318
        %v2320 = vpop.f32.mrb[0].mxu0
        %2321 = vmatprep.mubr.bf16.mxu0 0
        %2322 = vmatmul.mubr.bf16.gmra.mrb[0].mxu0 %v2110
        %v2323 = vpop.f32.mrb[0].mxu0
        %v2324 = vadd.f32 0.0, %v2323
        %v2325 = vpop.f32.mrb[0].mxu0
        %v2326 = vpop.f32.mrb[0].mxu0
        %v2327 = vadd.f32 0.0, %v2326
        %v2328 = vpop.f32.mrb[0].mxu0
        %2329 = vmatprep.mubr.bf16.mxu0 0
        %2330 = vmatmul.mubr.bf16.gmra.mrb[0].mxu0 %v2111
        %v2331 = vpop.f32.mrb[0].mxu0
        %v2332 = vadd.f32 0.0, %v2331
        %v2333 = vpop.f32.mrb[0].mxu0
        %v2334 = vpop.f32.mrb[0].mxu0
        %v2335 = vadd.f32 0.0, %v2334
        %v2336 = vpop.f32.mrb[0].mxu0
        %2337 = vdwg.mxu0
        %v2338 = vadd.f32 %v2031, %v2212
        %v2339 = vadd.f32 %v2032, %v2215
        %v2340 = vadd.f32 %v2033, %v2220
        %v2341 = vadd.f32 %v2034, %v2223
        %v2342 = vadd.f32 %v2035, %v2228
        %v2343 = vadd.f32 %v2036, %v2231
        %v2344 = vadd.f32 %v2037, %v2236
        %v2345 = vadd.f32 %v2038, %v2239
        %v2346 = vadd.f32 %v2039, %v2244
        %v2347 = vadd.f32 %v2040, %v2247
        %v2348 = vadd.f32 %v2041, %v2252
        %v2349 = vadd.f32 %v2042, %v2255
        %v2350 = vadd.f32 %v2043, %v2260
        %v2351 = vadd.f32 %v2044, %v2263
        %v2352 = vadd.f32 %v2045, %v2268
        %v2353 = vadd.f32 %v2046, %v2271
        %v2354 = vadd.f32 %v2047, %v2276
        %v2355 = vadd.f32 %v2048, %v2279
        %v2356 = vadd.f32 %v2049, %v2284
        %v2357 = vadd.f32 %v2050, %v2287
        %v2358 = vadd.f32 %v2051, %v2292
        %v2359 = vadd.f32 %v2052, %v2295
        %v2360 = vadd.f32 %v2053, %v2300
        %v2361 = vadd.f32 %v2054, %v2303
        %v2362 = vadd.f32 %v2055, %v2308
        %v2363 = vadd.f32 %v2056, %v2311
        %v2364 = vadd.f32 %v2057, %v2316
        %v2365 = vadd.f32 %v2058, %v2319
        %v2366 = vadd.f32 %v2059, %v2324
        %v2367 = vadd.f32 %v2060, %v2327
        %v2368 = vadd.f32 %v2061, %v2332
        %v2369 = vadd.f32 %v2062, %v2335
        %v2370 = vld [vmem:[%s2063 + $0x1] sm:$0xff]
        %v2371 = vld [vmem:[%s2063 + $0x9] sm:$0xff]
        %v2372 = vld [vmem:[%s2063 + $0x19] sm:$0xff]
        %v2373 = vld [vmem:[%s2063 + $0x21] sm:$0xff]
        %v2374 = vld [vmem:[%s2063 + $0x31] sm:$0xff]
        %v2375 = vld [vmem:[%s2063 + $0x39] sm:$0xff]
        %v2376 = vld [vmem:[%s2063 + $0x49] sm:$0xff]
        %v2377 = vld [vmem:[%s2063 + $0x51] sm:$0xff]
        %v2378 = vld [vmem:[%s2063 + $0x61] sm:$0xff]
        %v2379 = vld [vmem:[%s2063 + $0x69] sm:$0xff]
        %v2380 = vld [vmem:[%s2063 + $0x79] sm:$0xff]
        %v2381 = vld [vmem:[%s2063 + $0x81] sm:$0xff]
        %v2382 = vld [vmem:[%s2063 + $0x91] sm:$0xff]
        %v2383 = vld [vmem:[%s2063 + $0x99] sm:$0xff]
        %v2384 = vld [vmem:[%s2063 + $0xa9] sm:$0xff]
        %v2385 = vld [vmem:[%s2063 + $0xb1] sm:$0xff]
        %v2386 = vld [vmem:[%s2063 + $0xc1] sm:$0xff]
        %v2387 = vld [vmem:[%s2063 + $0xc9] sm:$0xff]
        %v2388 = vld [vmem:[%s2063 + $0xd9] sm:$0xff]
        %v2389 = vld [vmem:[%s2063 + $0xe1] sm:$0xff]
        %v2390 = vld [vmem:[%s2063 + $0xf1] sm:$0xff]
        %v2391 = vld [vmem:[%s2063 + $0xf9] sm:$0xff]
        %v2392 = vld [vmem:[%s2063 + $0x109] sm:$0xff]
        %v2393 = vld [vmem:[%s2063 + $0x111] sm:$0xff]
        %v2394 = vld [vmem:[%s2063 + $0x121] sm:$0xff]
        %v2395 = vld [vmem:[%s2063 + $0x129] sm:$0xff]
        %v2396 = vld [vmem:[%s2063 + $0x139] sm:$0xff]
        %v2397 = vld [vmem:[%s2063 + $0x141] sm:$0xff]
        %v2398 = vld [vmem:[%s2063 + $0x151] sm:$0xff]
        %v2399 = vld [vmem:[%s2063 + $0x159] sm:$0xff]
        %v2400 = vld [vmem:[%s2063 + $0x169] sm:$0xff]
        %v2401 = vld [vmem:[%s2063 + $0x171] sm:$0xff]
        %v2402 = vpack.c.bf16 %v2371, %v2370
        %v2403 = vpack.c.bf16 %v2373, %v2372
        %v2404 = vpack.c.bf16 %v2375, %v2374
        %v2405 = vpack.c.bf16 %v2377, %v2376
        %v2406 = vpack.c.bf16 %v2379, %v2378
        %v2407 = vpack.c.bf16 %v2381, %v2380
        %v2408 = vpack.c.bf16 %v2383, %v2382
        %v2409 = vpack.c.bf16 %v2385, %v2384
        %v2410 = vpack.c.bf16 %v2387, %v2386
        %v2411 = vpack.c.bf16 %v2389, %v2388
        %v2412 = vpack.c.bf16 %v2391, %v2390
        %v2413 = vpack.c.bf16 %v2393, %v2392
        %v2414 = vpack.c.bf16 %v2395, %v2394
        %v2415 = vpack.c.bf16 %v2397, %v2396
        %v2416 = vpack.c.bf16 %v2399, %v2398
        %v2417 = vpack.c.bf16 %v2401, %v2400
        %s2418 = scalar_lea.vmem %s1, 448
        %v2419 = vld [vmem:[%s2418] sm:$0xf]
        %v2420 = vld [vmem:[%s2418 + $0x4] sm:$0xf]
        %v2421 = vld [vmem:[%s2418 + $0x8] sm:$0xf]
        %v2422 = vld [vmem:[%s2418 + $0xc] sm:$0xf]
        %v2423 = vld [vmem:[%s2418 + $0x10] sm:$0xf]
        %v2424 = vld [vmem:[%s2418 + $0x14] sm:$0xf]
        %v2425 = vld [vmem:[%s2418 + $0x18] sm:$0xf]
        %v2426 = vld [vmem:[%s2418 + $0x1c] sm:$0xf]
        %v2427 = vld [vmem:[%s2418 + $0x20] sm:$0xf]
        %v2428 = vld [vmem:[%s2418 + $0x24] sm:$0xf]
        %v2429 = vld [vmem:[%s2418 + $0x28] sm:$0xf]
        %v2430 = vld [vmem:[%s2418 + $0x2c] sm:$0xf]
        %v2431 = vld [vmem:[%s2418 + $0x30] sm:$0xf]
        %v2432 = vld [vmem:[%s2418 + $0x34] sm:$0xf]
        %v2433 = vld [vmem:[%s2418 + $0x38] sm:$0xf]
        %v2434 = vld [vmem:[%s2418 + $0x3c] sm:$0xf]
        %v2451 = vunpack.c.l.b16 %v2419
        %v2452 = vunpack.c.l.b16 %v2420
        %v2453 = vunpack.c.l.b16 %v2421
        %v2454 = vunpack.c.l.b16 %v2422
        %v2455 = vunpack.c.l.b16 %v2423
        %v2456 = vunpack.c.l.b16 %v2424
        %v2457 = vunpack.c.l.b16 %v2425
        %v2458 = vunpack.c.l.b16 %v2426
        %v2459 = vunpack.c.l.b16 %v2427
        %v2460 = vunpack.c.l.b16 %v2428
        %v2461 = vunpack.c.l.b16 %v2429
        %v2462 = vunpack.c.l.b16 %v2430
        %v2463 = vunpack.c.l.b16 %v2431
        %v2464 = vunpack.c.l.b16 %v2432
        %v2465 = vunpack.c.l.b16 %v2433
        %v2466 = vunpack.c.l.b16 %v2434
        %v2467 = vpack.c.b16 %v2452, %v2451
        %v2468 = vpack.c.b16 %v2454, %v2453
        %v2469 = vpack.c.b16 %v2456, %v2455
        %v2470 = vpack.c.b16 %v2458, %v2457
        %v2471 = vpack.c.b16 %v2460, %v2459
        %v2472 = vpack.c.b16 %v2462, %v2461
        %v2473 = vpack.c.b16 %v2464, %v2463
        %v2474 = vpack.c.b16 %v2466, %v2465
        %2483 = vmatprep.subr.bf16.mxu0 0
        %2484 = vmatpush1.bf16.msra.mxu0 %v2467
        %2485 = vmatprep.subr.bf16.mxu0 0
        %2486 = vmatpush1.bf16.msra.mxu0 %v2468
        %2487 = vmatprep.subr.bf16.mxu0 0
        %2488 = vmatpush1.bf16.msra.mxu0 %v2469
        %2489 = vmatprep.subr.bf16.mxu0 0
        %2490 = vmatpush1.bf16.msra.mxu0 %v2470
        %2491 = vmatprep.subr.bf16.mxu0 0
        %2492 = vmatpush1.bf16.msra.mxu0 %v2471
        %2493 = vmatprep.subr.bf16.mxu0 0
        %2494 = vmatpush1.bf16.msra.mxu0 %v2472
        %2495 = vmatprep.subr.bf16.mxu0 0
        %2496 = vmatpush1.bf16.msra.mxu0 %v2473
        %2497 = vmatprep.subr.bf16.mxu0 0
        %2498 = vmatpush1.bf16.msra.mxu0 %v2474
        %2499 = vmatprep.subr.bf16.mxu0 0
        %2500 = vmatpush1.bf16.msra.mxu0 0
        %2501 = vmatprep.subr.bf16.mxu0 0
        %2502 = vmatpush1.bf16.msra.mxu0 0
        %2503 = vmatprep.subr.bf16.mxu0 0
        %2504 = vmatpush1.bf16.msra.mxu0 0
        %2505 = vmatprep.subr.bf16.mxu0 0
        %2506 = vmatpush1.bf16.msra.mxu0 0
        %2507 = vmatprep.subr.bf16.mxu0 0
        %2508 = vmatpush1.bf16.msra.mxu0 0
        %2509 = vmatprep.subr.bf16.mxu0 0
        %2510 = vmatpush1.bf16.msra.mxu0 0
        %2511 = vmatprep.subr.bf16.mxu0 0
        %2512 = vmatpush1.bf16.msra.mxu0 0
        %2513 = vmatprep.subr.bf16.mxu0 0
        %2514 = vmatpush1.bf16.msra.mxu0 0
        %2515 = vmatprep.mubr.bf16.mxu0 0
        %2516 = vmatmul.mubr.bf16.gmra.mrb[0].mxu0 %v2402
        %v2517 = vpop.f32.mrb[0].mxu0
        %v2518 = vadd.f32 0.0, %v2517
        %v2519 = vpop.f32.mrb[0].mxu0
        %v2520 = vpop.f32.mrb[0].mxu0
        %v2521 = vadd.f32 0.0, %v2520
        %v2522 = vpop.f32.mrb[0].mxu0
        %2523 = vmatprep.mubr.bf16.mxu0 0
        %2524 = vmatmul.mubr.bf16.gmra.mrb[0].mxu0 %v2403
        %v2525 = vpop.f32.mrb[0].mxu0
        %v2526 = vadd.f32 0.0, %v2525
        %v2527 = vpop.f32.mrb[0].mxu0
        %v2528 = vpop.f32.mrb[0].mxu0
        %v2529 = vadd.f32 0.0, %v2528
        %v2530 = vpop.f32.mrb[0].mxu0
        %2531 = vmatprep.mubr.bf16.mxu0 0
        %2532 = vmatmul.mubr.bf16.gmra.mrb[0].mxu0 %v2404
        %v2533 = vpop.f32.mrb[0].mxu0
        %v2534 = vadd.f32 0.0, %v2533
        %v2535 = vpop.f32.mrb[0].mxu0
        %v2536 = vpop.f32.mrb[0].mxu0
        %v2537 = vadd.f32 0.0, %v2536
        %v2538 = vpop.f32.mrb[0].mxu0
        %2539 = vmatprep.mubr.bf16.mxu0 0
        %2540 = vmatmul.mubr.bf16.gmra.mrb[0].mxu0 %v2405
        %v2541 = vpop.f32.mrb[0].mxu0
        %v2542 = vadd.f32 0.0, %v2541
        %v2543 = vpop.f32.mrb[0].mxu0
        %v2544 = vpop.f32.mrb[0].mxu0
        %v2545 = vadd.f32 0.0, %v2544
        %v2546 = vpop.f32.mrb[0].mxu0
        %2547 = vmatprep.mubr.bf16.mxu0 0
        %2548 = vmatmul.mubr.bf16.gmra.mrb[0].mxu0 %v2406
        %v2549 = vpop.f32.mrb[0].mxu0
        %v2550 = vadd.f32 0.0, %v2549
        %v2551 = vpop.f32.mrb[0].mxu0
        %v2552 = vpop.f32.mrb[0].mxu0
        %v2553 = vadd.f32 0.0, %v2552
        %v2554 = vpop.f32.mrb[0].mxu0
        %2555 = vmatprep.mubr.bf16.mxu0 0
        %2556 = vmatmul.mubr.bf16.gmra.mrb[0].mxu0 %v2407
        %v2557 = vpop.f32.mrb[0].mxu0
        %v2558 = vadd.f32 0.0, %v2557
        %v2559 = vpop.f32.mrb[0].mxu0
        %v2560 = vpop.f32.mrb[0].mxu0
        %v2561 = vadd.f32 0.0, %v2560
        %v2562 = vpop.f32.mrb[0].mxu0
        %2563 = vmatprep.mubr.bf16.mxu0 0
        %2564 = vmatmul.mubr.bf16.gmra.mrb[0].mxu0 %v2408
        %v2565 = vpop.f32.mrb[0].mxu0
        %v2566 = vadd.f32 0.0, %v2565
        %v2567 = vpop.f32.mrb[0].mxu0
        %v2568 = vpop.f32.mrb[0].mxu0
        %v2569 = vadd.f32 0.0, %v2568
        %v2570 = vpop.f32.mrb[0].mxu0
        %2571 = vmatprep.mubr.bf16.mxu0 0
        %2572 = vmatmul.mubr.bf16.gmra.mrb[0].mxu0 %v2409
        %v2573 = vpop.f32.mrb[0].mxu0
        %v2574 = vadd.f32 0.0, %v2573
        %v2575 = vpop.f32.mrb[0].mxu0
        %v2576 = vpop.f32.mrb[0].mxu0
        %v2577 = vadd.f32 0.0, %v2576
        %v2578 = vpop.f32.mrb[0].mxu0
        %2579 = vmatprep.mubr.bf16.mxu0 0
        %2580 = vmatmul.mubr.bf16.gmra.mrb[0].mxu0 %v2410
        %v2581 = vpop.f32.mrb[0].mxu0
        %v2582 = vadd.f32 0.0, %v2581
        %v2583 = vpop.f32.mrb[0].mxu0
        %v2584 = vpop.f32.mrb[0].mxu0
        %v2585 = vadd.f32 0.0, %v2584
        %v2586 = vpop.f32.mrb[0].mxu0
        %2587 = vmatprep.mubr.bf16.mxu0 0
        %2588 = vmatmul.mubr.bf16.gmra.mrb[0].mxu0 %v2411
        %v2589 = vpop.f32.mrb[0].mxu0
        %v2590 = vadd.f32 0.0, %v2589
        %v2591 = vpop.f32.mrb[0].mxu0
        %v2592 = vpop.f32.mrb[0].mxu0
        %v2593 = vadd.f32 0.0, %v2592
        %v2594 = vpop.f32.mrb[0].mxu0
        %2595 = vmatprep.mubr.bf16.mxu0 0
        %2596 = vmatmul.mubr.bf16.gmra.mrb[0].mxu0 %v2412
        %v2597 = vpop.f32.mrb[0].mxu0
        %v2598 = vadd.f32 0.0, %v2597
        %v2599 = vpop.f32.mrb[0].mxu0
        %v2600 = vpop.f32.mrb[0].mxu0
        %v2601 = vadd.f32 0.0, %v2600
        %v2602 = vpop.f32.mrb[0].mxu0
        %2603 = vmatprep.mubr.bf16.mxu0 0
        %2604 = vmatmul.mubr.bf16.gmra.mrb[0].mxu0 %v2413
        %v2605 = vpop.f32.mrb[0].mxu0
        %v2606 = vadd.f32 0.0, %v2605
        %v2607 = vpop.f32.mrb[0].mxu0
        %v2608 = vpop.f32.mrb[0].mxu0
        %v2609 = vadd.f32 0.0, %v2608
        %v2610 = vpop.f32.mrb[0].mxu0
        %2611 = vmatprep.mubr.bf16.mxu0 0
        %2612 = vmatmul.mubr.bf16.gmra.mrb[0].mxu0 %v2414
        %v2613 = vpop.f32.mrb[0].mxu0
        %v2614 = vadd.f32 0.0, %v2613
        %v2615 = vpop.f32.mrb[0].mxu0
        %v2616 = vpop.f32.mrb[0].mxu0
        %v2617 = vadd.f32 0.0, %v2616
        %v2618 = vpop.f32.mrb[0].mxu0
        %2619 = vmatprep.mubr.bf16.mxu0 0
        %2620 = vmatmul.mubr.bf16.gmra.mrb[0].mxu0 %v2415
        %v2621 = vpop.f32.mrb[0].mxu0
        %v2622 = vadd.f32 0.0, %v2621
        %v2623 = vpop.f32.mrb[0].mxu0
        %v2624 = vpop.f32.mrb[0].mxu0
        %v2625 = vadd.f32 0.0, %v2624
        %v2626 = vpop.f32.mrb[0].mxu0
        %2627 = vmatprep.mubr.bf16.mxu0 0
        %2628 = vmatmul.mubr.bf16.gmra.mrb[0].mxu0 %v2416
        %v2629 = vpop.f32.mrb[0].mxu0
        %v2630 = vadd.f32 0.0, %v2629
        %v2631 = vpop.f32.mrb[0].mxu0
        %v2632 = vpop.f32.mrb[0].mxu0
        %v2633 = vadd.f32 0.0, %v2632
        %v2634 = vpop.f32.mrb[0].mxu0
        %2635 = vmatprep.mubr.bf16.mxu0 0
        %2636 = vmatmul.mubr.bf16.gmra.mrb[0].mxu0 %v2417
        %v2637 = vpop.f32.mrb[0].mxu0
        %v2638 = vadd.f32 0.0, %v2637
        %v2639 = vpop.f32.mrb[0].mxu0
        %v2640 = vpop.f32.mrb[0].mxu0
        %v2641 = vadd.f32 0.0, %v2640
        %v2642 = vpop.f32.mrb[0].mxu0
        %2643 = vdwg.mxu0
        %v2644 = vadd.f32 %v2338, %v2518
        %v2645 = vadd.f32 %v2339, %v2521
        %v2646 = vadd.f32 %v2340, %v2526
        %v2647 = vadd.f32 %v2341, %v2529
        %v2648 = vadd.f32 %v2342, %v2534
        %v2649 = vadd.f32 %v2343, %v2537
        %v2650 = vadd.f32 %v2344, %v2542
        %v2651 = vadd.f32 %v2345, %v2545
        %v2652 = vadd.f32 %v2346, %v2550
        %v2653 = vadd.f32 %v2347, %v2553
        %v2654 = vadd.f32 %v2348, %v2558
        %v2655 = vadd.f32 %v2349, %v2561
        %v2656 = vadd.f32 %v2350, %v2566
        %v2657 = vadd.f32 %v2351, %v2569
        %v2658 = vadd.f32 %v2352, %v2574
        %v2659 = vadd.f32 %v2353, %v2577
        %v2660 = vadd.f32 %v2354, %v2582
        %v2661 = vadd.f32 %v2355, %v2585
        %v2662 = vadd.f32 %v2356, %v2590
        %v2663 = vadd.f32 %v2357, %v2593
        %v2664 = vadd.f32 %v2358, %v2598
        %v2665 = vadd.f32 %v2359, %v2601
        %v2666 = vadd.f32 %v2360, %v2606
        %v2667 = vadd.f32 %v2361, %v2609
        %v2668 = vadd.f32 %v2362, %v2614
        %v2669 = vadd.f32 %v2363, %v2617
        %v2670 = vadd.f32 %v2364, %v2622
        %v2671 = vadd.f32 %v2365, %v2625
        %v2672 = vadd.f32 %v2366, %v2630
        %v2673 = vadd.f32 %v2367, %v2633
        %v2674 = vadd.f32 %v2368, %v2638
        %v2675 = vadd.f32 %v2369, %v2641
        %v2676 = vld [vmem:[%s2063 + $0x2] sm:$0xff]
        %v2677 = vld [vmem:[%s2063 + $0xa] sm:$0xff]
        %v2678 = vld [vmem:[%s2063 + $0x1a] sm:$0xff]
        %v2679 = vld [vmem:[%s2063 + $0x22] sm:$0xff]
        %v2680 = vld [vmem:[%s2063 + $0x32] sm:$0xff]
        %v2681 = vld [vmem:[%s2063 + $0x3a] sm:$0xff]
        %v2682 = vld [vmem:[%s2063 + $0x4a] sm:$0xff]
        %v2683 = vld [vmem:[%s2063 + $0x52] sm:$0xff]
        %v2684 = vld [vmem:[%s2063 + $0x62] sm:$0xff]
        %v2685 = vld [vmem:[%s2063 + $0x6a] sm:$0xff]
        %v2686 = vld [vmem:[%s2063 + $0x7a] sm:$0xff]
        %v2687 = vld [vmem:[%s2063 + $0x82] sm:$0xff]
        %v2688 = vld [vmem:[%s2063 + $0x92] sm:$0xff]
        %v2689 = vld [vmem:[%s2063 + $0x9a] sm:$0xff]
        %v2690 = vld [vmem:[%s2063 + $0xaa] sm:$0xff]
        %v2691 = vld [vmem:[%s2063 + $0xb2] sm:$0xff]
        %v2692 = vld [vmem:[%s2063 + $0xc2] sm:$0xff]
        %v2693 = vld [vmem:[%s2063 + $0xca] sm:$0xff]
        %v2694 = vld [vmem:[%s2063 + $0xda] sm:$0xff]
        %v2695 = vld [vmem:[%s2063 + $0xe2] sm:$0xff]
        %v2696 = vld [vmem:[%s2063 + $0xf2] sm:$0xff]
        %v2697 = vld [vmem:[%s2063 + $0xfa] sm:$0xff]
        %v2698 = vld [vmem:[%s2063 + $0x10a] sm:$0xff]
        %v2699 = vld [vmem:[%s2063 + $0x112] sm:$0xff]
        %v2700 = vld [vmem:[%s2063 + $0x122] sm:$0xff]
        %v2701 = vld [vmem:[%s2063 + $0x12a] sm:$0xff]
        %v2702 = vld [vmem:[%s2063 + $0x13a] sm:$0xff]
        %v2703 = vld [vmem:[%s2063 + $0x142] sm:$0xff]
        %v2704 = vld [vmem:[%s2063 + $0x152] sm:$0xff]
        %v2705 = vld [vmem:[%s2063 + $0x15a] sm:$0xff]
        %v2706 = vld [vmem:[%s2063 + $0x16a] sm:$0xff]
        %v2707 = vld [vmem:[%s2063 + $0x172] sm:$0xff]
        %v2708 = vpack.c.bf16 %v2677, %v2676
        %v2709 = vpack.c.bf16 %v2679, %v2678
        %v2710 = vpack.c.bf16 %v2681, %v2680
        %v2711 = vpack.c.bf16 %v2683, %v2682
        %v2712 = vpack.c.bf16 %v2685, %v2684
        %v2713 = vpack.c.bf16 %v2687, %v2686
        %v2714 = vpack.c.bf16 %v2689, %v2688
        %v2715 = vpack.c.bf16 %v2691, %v2690
        %v2716 = vpack.c.bf16 %v2693, %v2692
        %v2717 = vpack.c.bf16 %v2695, %v2694
        %v2718 = vpack.c.bf16 %v2697, %v2696
        %v2719 = vpack.c.bf16 %v2699, %v2698
        %v2720 = vpack.c.bf16 %v2701, %v2700
        %v2721 = vpack.c.bf16 %v2703, %v2702
        %v2722 = vpack.c.bf16 %v2705, %v2704
        %v2723 = vpack.c.bf16 %v2707, %v2706
        %s2724 = scalar_lea.vmem %s1, 512
        %v2725 = vld [vmem:[%s2724] sm:$0xf]
        %v2726 = vld [vmem:[%s2724 + $0x4] sm:$0xf]
        %v2727 = vld [vmem:[%s2724 + $0x8] sm:$0xf]
        %v2728 = vld [vmem:[%s2724 + $0xc] sm:$0xf]
        %v2729 = vld [vmem:[%s2724 + $0x10] sm:$0xf]
        %v2730 = vld [vmem:[%s2724 + $0x14] sm:$0xf]
        %v2731 = vld [vmem:[%s2724 + $0x18] sm:$0xf]
        %v2732 = vld [vmem:[%s2724 + $0x1c] sm:$0xf]
        %v2733 = vld [vmem:[%s2724 + $0x20] sm:$0xf]
        %v2734 = vld [vmem:[%s2724 + $0x24] sm:$0xf]
        %v2735 = vld [vmem:[%s2724 + $0x28] sm:$0xf]
        %v2736 = vld [vmem:[%s2724 + $0x2c] sm:$0xf]
        %v2737 = vld [vmem:[%s2724 + $0x30] sm:$0xf]
        %v2738 = vld [vmem:[%s2724 + $0x34] sm:$0xf]
        %v2739 = vld [vmem:[%s2724 + $0x38] sm:$0xf]
        %v2740 = vld [vmem:[%s2724 + $0x3c] sm:$0xf]
        %v2757 = vunpack.c.l.b16 %v2725
        %v2758 = vunpack.c.l.b16 %v2726
        %v2759 = vunpack.c.l.b16 %v2727
        %v2760 = vunpack.c.l.b16 %v2728
        %v2761 = vunpack.c.l.b16 %v2729
        %v2762 = vunpack.c.l.b16 %v2730
        %v2763 = vunpack.c.l.b16 %v2731
        %v2764 = vunpack.c.l.b16 %v2732
        %v2765 = vunpack.c.l.b16 %v2733
        %v2766 = vunpack.c.l.b16 %v2734
        %v2767 = vunpack.c.l.b16 %v2735
        %v2768 = vunpack.c.l.b16 %v2736
        %v2769 = vunpack.c.l.b16 %v2737
        %v2770 = vunpack.c.l.b16 %v2738
        %v2771 = vunpack.c.l.b16 %v2739
        %v2772 = vunpack.c.l.b16 %v2740
        %v2773 = vpack.c.b16 %v2758, %v2757
        %v2774 = vpack.c.b16 %v2760, %v2759
        %v2775 = vpack.c.b16 %v2762, %v2761
        %v2776 = vpack.c.b16 %v2764, %v2763
        %v2777 = vpack.c.b16 %v2766, %v2765
        %v2778 = vpack.c.b16 %v2768, %v2767
        %v2779 = vpack.c.b16 %v2770, %v2769
        %v2780 = vpack.c.b16 %v2772, %v2771
        %2789 = vmatprep.subr.bf16.mxu0 0
        %2790 = vmatpush1.bf16.msra.mxu0 %v2773
        %2791 = vmatprep.subr.bf16.mxu0 0
        %2792 = vmatpush1.bf16.msra.mxu0 %v2774
        %2793 = vmatprep.subr.bf16.mxu0 0
        %2794 = vmatpush1.bf16.msra.mxu0 %v2775
        %2795 = vmatprep.subr.bf16.mxu0 0
        %2796 = vmatpush1.bf16.msra.mxu0 %v2776
        %2797 = vmatprep.subr.bf16.mxu0 0
        %2798 = vmatpush1.bf16.msra.mxu0 %v2777
        %2799 = vmatprep.subr.bf16.mxu0 0
        %2800 = vmatpush1.bf16.msra.mxu0 %v2778
        %2801 = vmatprep.subr.bf16.mxu0 0
        %2802 = vmatpush1.bf16.msra.mxu0 %v2779
        %2803 = vmatprep.subr.bf16.mxu0 0
        %2804 = vmatpush1.bf16.msra.mxu0 %v2780
        %2805 = vmatprep.subr.bf16.mxu0 0
        %2806 = vmatpush1.bf16.msra.mxu0 0
        %2807 = vmatprep.subr.bf16.mxu0 0
        %2808 = vmatpush1.bf16.msra.mxu0 0
        %2809 = vmatprep.subr.bf16.mxu0 0
        %2810 = vmatpush1.bf16.msra.mxu0 0
        %2811 = vmatprep.subr.bf16.mxu0 0
        %2812 = vmatpush1.bf16.msra.mxu0 0
        %2813 = vmatprep.subr.bf16.mxu0 0
        %2814 = vmatpush1.bf16.msra.mxu0 0
        %2815 = vmatprep.subr.bf16.mxu0 0
        %2816 = vmatpush1.bf16.msra.mxu0 0
        %2817 = vmatprep.subr.bf16.mxu0 0
        %2818 = vmatpush1.bf16.msra.mxu0 0
        %2819 = vmatprep.subr.bf16.mxu0 0
        %2820 = vmatpush1.bf16.msra.mxu0 0
        %2821 = vmatprep.mubr.bf16.mxu0 0
        %2822 = vmatmul.mubr.bf16.gmra.mrb[0].mxu0 %v2708
        %v2823 = vpop.f32.mrb[0].mxu0
        %v2824 = vadd.f32 0.0, %v2823
        %v2825 = vpop.f32.mrb[0].mxu0
        %v2826 = vpop.f32.mrb[0].mxu0
        %v2827 = vadd.f32 0.0, %v2826
        %v2828 = vpop.f32.mrb[0].mxu0
        %2829 = vmatprep.mubr.bf16.mxu0 0
        %2830 = vmatmul.mubr.bf16.gmra.mrb[0].mxu0 %v2709
        %v2831 = vpop.f32.mrb[0].mxu0
        %v2832 = vadd.f32 0.0, %v2831
        %v2833 = vpop.f32.mrb[0].mxu0
        %v2834 = vpop.f32.mrb[0].mxu0
        %v2835 = vadd.f32 0.0, %v2834
        %v2836 = vpop.f32.mrb[0].mxu0
        %2837 = vmatprep.mubr.bf16.mxu0 0
        %2838 = vmatmul.mubr.bf16.gmra.mrb[0].mxu0 %v2710
        %v2839 = vpop.f32.mrb[0].mxu0
        %v2840 = vadd.f32 0.0, %v2839
        %v2841 = vpop.f32.mrb[0].mxu0
        %v2842 = vpop.f32.mrb[0].mxu0
        %v2843 = vadd.f32 0.0, %v2842
        %v2844 = vpop.f32.mrb[0].mxu0
        %2845 = vmatprep.mubr.bf16.mxu0 0
        %2846 = vmatmul.mubr.bf16.gmra.mrb[0].mxu0 %v2711
        %v2847 = vpop.f32.mrb[0].mxu0
        %v2848 = vadd.f32 0.0, %v2847
        %v2849 = vpop.f32.mrb[0].mxu0
        %v2850 = vpop.f32.mrb[0].mxu0
        %v2851 = vadd.f32 0.0, %v2850
        %v2852 = vpop.f32.mrb[0].mxu0
        %2853 = vmatprep.mubr.bf16.mxu0 0
        %2854 = vmatmul.mubr.bf16.gmra.mrb[0].mxu0 %v2712
        %v2855 = vpop.f32.mrb[0].mxu0
        %v2856 = vadd.f32 0.0, %v2855
        %v2857 = vpop.f32.mrb[0].mxu0
        %v2858 = vpop.f32.mrb[0].mxu0
        %v2859 = vadd.f32 0.0, %v2858
        %v2860 = vpop.f32.mrb[0].mxu0
        %2861 = vmatprep.mubr.bf16.mxu0 0
        %2862 = vmatmul.mubr.bf16.gmra.mrb[0].mxu0 %v2713
        %v2863 = vpop.f32.mrb[0].mxu0
        %v2864 = vadd.f32 0.0, %v2863
        %v2865 = vpop.f32.mrb[0].mxu0
        %v2866 = vpop.f32.mrb[0].mxu0
        %v2867 = vadd.f32 0.0, %v2866
        %v2868 = vpop.f32.mrb[0].mxu0
        %2869 = vmatprep.mubr.bf16.mxu0 0
        %2870 = vmatmul.mubr.bf16.gmra.mrb[0].mxu0 %v2714
        %v2871 = vpop.f32.mrb[0].mxu0
        %v2872 = vadd.f32 0.0, %v2871
        %v2873 = vpop.f32.mrb[0].mxu0
        %v2874 = vpop.f32.mrb[0].mxu0
        %v2875 = vadd.f32 0.0, %v2874
        %v2876 = vpop.f32.mrb[0].mxu0
        %2877 = vmatprep.mubr.bf16.mxu0 0
        %2878 = vmatmul.mubr.bf16.gmra.mrb[0].mxu0 %v2715
        %v2879 = vpop.f32.mrb[0].mxu0
        %v2880 = vadd.f32 0.0, %v2879
        %v2881 = vpop.f32.mrb[0].mxu0
        %v2882 = vpop.f32.mrb[0].mxu0
        %v2883 = vadd.f32 0.0, %v2882
        %v2884 = vpop.f32.mrb[0].mxu0
        %2885 = vmatprep.mubr.bf16.mxu0 0
        %2886 = vmatmul.mubr.bf16.gmra.mrb[0].mxu0 %v2716
        %v2887 = vpop.f32.mrb[0].mxu0
        %v2888 = vadd.f32 0.0, %v2887
        %v2889 = vpop.f32.mrb[0].mxu0
        %v2890 = vpop.f32.mrb[0].mxu0
        %v2891 = vadd.f32 0.0, %v2890
        %v2892 = vpop.f32.mrb[0].mxu0
        %2893 = vmatprep.mubr.bf16.mxu0 0
        %2894 = vmatmul.mubr.bf16.gmra.mrb[0].mxu0 %v2717
        %v2895 = vpop.f32.mrb[0].mxu0
        %v2896 = vadd.f32 0.0, %v2895
        %v2897 = vpop.f32.mrb[0].mxu0
        %v2898 = vpop.f32.mrb[0].mxu0
        %v2899 = vadd.f32 0.0, %v2898
        %v2900 = vpop.f32.mrb[0].mxu0
        %2901 = vmatprep.mubr.bf16.mxu0 0
        %2902 = vmatmul.mubr.bf16.gmra.mrb[0].mxu0 %v2718
        %v2903 = vpop.f32.mrb[0].mxu0
        %v2904 = vadd.f32 0.0, %v2903
        %v2905 = vpop.f32.mrb[0].mxu0
        %v2906 = vpop.f32.mrb[0].mxu0
        %v2907 = vadd.f32 0.0, %v2906
        %v2908 = vpop.f32.mrb[0].mxu0
        %2909 = vmatprep.mubr.bf16.mxu0 0
        %2910 = vmatmul.mubr.bf16.gmra.mrb[0].mxu0 %v2719
        %v2911 = vpop.f32.mrb[0].mxu0
        %v2912 = vadd.f32 0.0, %v2911
        %v2913 = vpop.f32.mrb[0].mxu0
        %v2914 = vpop.f32.mrb[0].mxu0
        %v2915 = vadd.f32 0.0, %v2914
        %v2916 = vpop.f32.mrb[0].mxu0
        %2917 = vmatprep.mubr.bf16.mxu0 0
        %2918 = vmatmul.mubr.bf16.gmra.mrb[0].mxu0 %v2720
        %v2919 = vpop.f32.mrb[0].mxu0
        %v2920 = vadd.f32 0.0, %v2919
        %v2921 = vpop.f32.mrb[0].mxu0
        %v2922 = vpop.f32.mrb[0].mxu0
        %v2923 = vadd.f32 0.0, %v2922
        %v2924 = vpop.f32.mrb[0].mxu0
        %2925 = vmatprep.mubr.bf16.mxu0 0
        %2926 = vmatmul.mubr.bf16.gmra.mrb[0].mxu0 %v2721
        %v2927 = vpop.f32.mrb[0].mxu0
        %v2928 = vadd.f32 0.0, %v2927
        %v2929 = vpop.f32.mrb[0].mxu0
        %v2930 = vpop.f32.mrb[0].mxu0
        %v2931 = vadd.f32 0.0, %v2930
        %v2932 = vpop.f32.mrb[0].mxu0
        %2933 = vmatprep.mubr.bf16.mxu0 0
        %2934 = vmatmul.mubr.bf16.gmra.mrb[0].mxu0 %v2722
        %v2935 = vpop.f32.mrb[0].mxu0
        %v2936 = vadd.f32 0.0, %v2935
        %v2937 = vpop.f32.mrb[0].mxu0
        %v2938 = vpop.f32.mrb[0].mxu0
        %v2939 = vadd.f32 0.0, %v2938
        %v2940 = vpop.f32.mrb[0].mxu0
        %2941 = vmatprep.mubr.bf16.mxu0 0
        %2942 = vmatmul.mubr.bf16.gmra.mrb[0].mxu0 %v2723
        %v2943 = vpop.f32.mrb[0].mxu0
        %v2944 = vadd.f32 0.0, %v2943
        %v2945 = vpop.f32.mrb[0].mxu0
        %v2946 = vpop.f32.mrb[0].mxu0
        %v2947 = vadd.f32 0.0, %v2946
        %v2948 = vpop.f32.mrb[0].mxu0
        %2949 = vdwg.mxu0
        %v2950 = vadd.f32 %v2644, %v2824
        %v2951 = vadd.f32 %v2645, %v2827
        %v2952 = vadd.f32 %v2646, %v2832
        %v2953 = vadd.f32 %v2647, %v2835
        %v2954 = vadd.f32 %v2648, %v2840
        %v2955 = vadd.f32 %v2649, %v2843
        %v2956 = vadd.f32 %v2650, %v2848
        %v2957 = vadd.f32 %v2651, %v2851
        %v2958 = vadd.f32 %v2652, %v2856
        %v2959 = vadd.f32 %v2653, %v2859
        %v2960 = vadd.f32 %v2654, %v2864
        %v2961 = vadd.f32 %v2655, %v2867
        %v2962 = vadd.f32 %v2656, %v2872
        %v2963 = vadd.f32 %v2657, %v2875
        %v2964 = vadd.f32 %v2658, %v2880
        %v2965 = vadd.f32 %v2659, %v2883
        %v2966 = vadd.f32 %v2660, %v2888
        %v2967 = vadd.f32 %v2661, %v2891
        %v2968 = vadd.f32 %v2662, %v2896
        %v2969 = vadd.f32 %v2663, %v2899
        %v2970 = vadd.f32 %v2664, %v2904
        %v2971 = vadd.f32 %v2665, %v2907
        %v2972 = vadd.f32 %v2666, %v2912
        %v2973 = vadd.f32 %v2667, %v2915
        %v2974 = vadd.f32 %v2668, %v2920
        %v2975 = vadd.f32 %v2669, %v2923
        %v2976 = vadd.f32 %v2670, %v2928
        %v2977 = vadd.f32 %v2671, %v2931
        %v2978 = vadd.f32 %v2672, %v2936
        %v2979 = vadd.f32 %v2673, %v2939
        %v2980 = vadd.f32 %v2674, %v2944
        %v2981 = vadd.f32 %v2675, %v2947
        %v2982 = vld [vmem:[%s2] sm:$0x1]
        %v2984 = vlaneseq
        %v2985 = vshrl.u32 %v2984, 7
        %v2986 = vsub.s32 0, %v2985
        %v2987 = vrot.slane %v2982, %v2986
        %v2989 = vadd.f32 %v2950, %v2987
        %v2990 = vadd.f32 %v2951, %v2987
        %v2991 = vadd.f32 %v2952, %v2987
        %v2992 = vadd.f32 %v2953, %v2987
        %v2993 = vadd.f32 %v2954, %v2987
        %v2994 = vadd.f32 %v2955, %v2987
        %v2995 = vadd.f32 %v2956, %v2987
        %v2996 = vadd.f32 %v2957, %v2987
        %v2997 = vadd.f32 %v2958, %v2987
        %v2998 = vadd.f32 %v2959, %v2987
        %v2999 = vadd.f32 %v2960, %v2987
        %v3000 = vadd.f32 %v2961, %v2987
        %v3001 = vadd.f32 %v2962, %v2987
        %v3002 = vadd.f32 %v2963, %v2987
        %v3003 = vadd.f32 %v2964, %v2987
        %v3004 = vadd.f32 %v2965, %v2987
        %v3005 = vadd.f32 %v2966, %v2987
        %v3006 = vadd.f32 %v2967, %v2987
        %v3007 = vadd.f32 %v2968, %v2987
        %v3008 = vadd.f32 %v2969, %v2987
        %v3009 = vadd.f32 %v2970, %v2987
        %v3010 = vadd.f32 %v2971, %v2987
        %v3011 = vadd.f32 %v2972, %v2987
        %v3012 = vadd.f32 %v2973, %v2987
        %v3013 = vadd.f32 %v2974, %v2987
        %v3014 = vadd.f32 %v2975, %v2987
        %v3015 = vadd.f32 %v2976, %v2987
        %v3016 = vadd.f32 %v2977, %v2987
        %v3017 = vadd.f32 %v2978, %v2987
        %v3018 = vadd.f32 %v2979, %v2987
        %v3019 = vadd.f32 %v2980, %v2987
        %v3020 = vadd.f32 %v2981, %v2987
        %v3021 = vmax.f32 %v2989, 0.0
        %v3022 = vmax.f32 %v2990, 0.0
        %v3023 = vmax.f32 %v2991, 0.0
        %v3024 = vmax.f32 %v2992, 0.0
        %v3025 = vmax.f32 %v2993, 0.0
        %v3026 = vmax.f32 %v2994, 0.0
        %v3027 = vmax.f32 %v2995, 0.0
        %v3028 = vmax.f32 %v2996, 0.0
        %v3029 = vmax.f32 %v2997, 0.0
        %v3030 = vmax.f32 %v2998, 0.0
        %v3031 = vmax.f32 %v2999, 0.0
        %v3032 = vmax.f32 %v3000, 0.0
        %v3033 = vmax.f32 %v3001, 0.0
        %v3034 = vmax.f32 %v3002, 0.0
        %v3035 = vmax.f32 %v3003, 0.0
        %v3036 = vmax.f32 %v3004, 0.0
        %v3037 = vmax.f32 %v3005, 0.0
        %v3038 = vmax.f32 %v3006, 0.0
        %v3039 = vmax.f32 %v3007, 0.0
        %v3040 = vmax.f32 %v3008, 0.0
        %v3041 = vmax.f32 %v3009, 0.0
        %v3042 = vmax.f32 %v3010, 0.0
        %v3043 = vmax.f32 %v3011, 0.0
        %v3044 = vmax.f32 %v3012, 0.0
        %v3045 = vmax.f32 %v3013, 0.0
        %v3046 = vmax.f32 %v3014, 0.0
        %v3047 = vmax.f32 %v3015, 0.0
        %v3048 = vmax.f32 %v3016, 0.0
        %v3049 = vmax.f32 %v3017, 0.0
        %v3050 = vmax.f32 %v3018, 0.0
        %v3051 = vmax.f32 %v3019, 0.0
        %v3052 = vmax.f32 %v3020, 0.0
        %3053 = vst [vmem:[#allocation2] sm:$0xff] 0.0
        %3054 = vst [vmem:[#allocation2 + $0x8] sm:$0xff] 0.0
        %3055 = vst [vmem:[#allocation2 + $0x10] sm:$0x3] 0.0
        %3056 = vst [vmem:[#allocation2 + $0x18] sm:$0xff] 0.0
        %3057 = vst [vmem:[#allocation2 + $0x20] sm:$0xff] 0.0
        %3058 = vst [vmem:[#allocation2 + $0x28] sm:$0x3] 0.0
        %3059 = vst [vmem:[#allocation2 + $0x30] sm:$0xff] 0.0
        %3060 = vst [vmem:[#allocation2 + $0x38] sm:$0xff] 0.0
        %3061 = vst [vmem:[#allocation2 + $0x40] sm:$0x3] 0.0
        %3062 = vst [vmem:[#allocation2 + $0x48] sm:$0xff] 0.0
        %3063 = vst [vmem:[#allocation2 + $0x50] sm:$0xff] 0.0
        %3064 = vst [vmem:[#allocation2 + $0x58] sm:$0x3] 0.0
        %3065 = vst [vmem:[#allocation2 + $0x60] sm:$0xff] 0.0
        %3066 = vst [vmem:[#allocation2 + $0x68] sm:$0xff] 0.0
        %3067 = vst [vmem:[#allocation2 + $0x70] sm:$0x3] 0.0
        %3068 = vst [vmem:[#allocation2 + $0x78] sm:$0xff] 0.0
        %3069 = vst [vmem:[#allocation2 + $0x80] sm:$0xff] 0.0
        %3070 = vst [vmem:[#allocation2 + $0x88] sm:$0x3] 0.0
        %3071 = vst [vmem:[#allocation2 + $0x90] sm:$0xff] 0.0
        %3072 = vst [vmem:[#allocation2 + $0x98] sm:$0xff] 0.0
        %3073 = vst [vmem:[#allocation2 + $0xa0] sm:$0x3] 0.0
        %3074 = vst [vmem:[#allocation2 + $0xa8] sm:$0xff] 0.0
        %3075 = vst [vmem:[#allocation2 + $0xb0] sm:$0xff] 0.0
        %3076 = vst [vmem:[#allocation2 + $0xb8] sm:$0x3] 0.0
        %3077 = vst [vmem:[#allocation2 + $0xc0] sm:$0xff] 0.0
        %3078 = vst [vmem:[#allocation2 + $0xc8] sm:$0xff] 0.0
        %3079 = vst [vmem:[#allocation2 + $0xd0] sm:$0x3] 0.0
        %3080 = vst [vmem:[#allocation2 + $0xd8] sm:$0xff] 0.0
        %3081 = vst [vmem:[#allocation2 + $0xe0] sm:$0xff] 0.0
        %3082 = vst [vmem:[#allocation2 + $0xe8] sm:$0x3] 0.0
        %3083 = vst [vmem:[#allocation2 + $0xf0] sm:$0xff] 0.0
        %3084 = vst [vmem:[#allocation2 + $0xf8] sm:$0xff] 0.0
        %3085 = vst [vmem:[#allocation2 + $0x100] sm:$0x3] 0.0
        %3086 = vst [vmem:[#allocation2 + $0x108] sm:$0xff] 0.0
        %3087 = vst [vmem:[#allocation2 + $0x110] sm:$0xff] 0.0
        %3088 = vst [vmem:[#allocation2 + $0x118] sm:$0x3] 0.0
        %3089 = vst [vmem:[#allocation2 + $0x120] sm:$0xff] 0.0
        %3090 = vst [vmem:[#allocation2 + $0x128] sm:$0xff] 0.0
        %3091 = vst [vmem:[#allocation2 + $0x130] sm:$0x3] 0.0
        %3092 = vst [vmem:[#allocation2 + $0x138] sm:$0xff] 0.0
        %3093 = vst [vmem:[#allocation2 + $0x140] sm:$0xff] 0.0
        %3094 = vst [vmem:[#allocation2 + $0x148] sm:$0x3] 0.0
        %3095 = vst [vmem:[#allocation2 + $0x150] sm:$0xff] 0.0
        %3096 = vst [vmem:[#allocation2 + $0x158] sm:$0xff] 0.0
        %3097 = vst [vmem:[#allocation2 + $0x160] sm:$0x3] 0.0
        %3098 = vst [vmem:[#allocation2 + $0x168] sm:$0xff] 0.0
        %3099 = vst [vmem:[#allocation2 + $0x170] sm:$0xff] 0.0
        %3100 = vst [vmem:[#allocation2 + $0x178] sm:$0x3] 0.0
        %3101 = vst [vmem:[#allocation2 + $0x180] sm:$0xff] 0.0
        %3102 = vst [vmem:[#allocation2 + $0x188] sm:$0xff] 0.0
        %3103 = vst [vmem:[#allocation2 + $0x190] sm:$0x3] 0.0
        %3104 = vst [vmem:[#allocation2 + $0x198] sm:$0xff] 0.0
        %3105 = vst [vmem:[#allocation2 + $0x1a0] sm:$0xff] 0.0
        %3106 = vst [vmem:[#allocation2 + $0x1a8] sm:$0x3] 0.0
        %s3107 = scalar_lea.vmem [#allocation2], 24
        %3108 = vst [vmem:[%s3107 + $0x1] sm:$0xff] %v3021
        %3109 = vst [vmem:[%s3107 + $0x9] sm:$0xff] %v3022
        %3110 = vst [vmem:[%s3107 + $0x19] sm:$0xff] %v3023
        %3111 = vst [vmem:[%s3107 + $0x21] sm:$0xff] %v3024
        %3112 = vst [vmem:[%s3107 + $0x31] sm:$0xff] %v3025
        %3113 = vst [vmem:[%s3107 + $0x39] sm:$0xff] %v3026
        %3114 = vst [vmem:[%s3107 + $0x49] sm:$0xff] %v3027
        %3115 = vst [vmem:[%s3107 + $0x51] sm:$0xff] %v3028
        %3116 = vst [vmem:[%s3107 + $0x61] sm:$0xff] %v3029
        %3117 = vst [vmem:[%s3107 + $0x69] sm:$0xff] %v3030
        %3118 = vst [vmem:[%s3107 + $0x79] sm:$0xff] %v3031
        %3119 = vst [vmem:[%s3107 + $0x81] sm:$0xff] %v3032
        %3120 = vst [vmem:[%s3107 + $0x91] sm:$0xff] %v3033
        %3121 = vst [vmem:[%s3107 + $0x99] sm:$0xff] %v3034
        %3122 = vst [vmem:[%s3107 + $0xa9] sm:$0xff] %v3035
        %3123 = vst [vmem:[%s3107 + $0xb1] sm:$0xff] %v3036
        %3124 = vst [vmem:[%s3107 + $0xc1] sm:$0xff] %v3037
        %3125 = vst [vmem:[%s3107 + $0xc9] sm:$0xff] %v3038
        %3126 = vst [vmem:[%s3107 + $0xd9] sm:$0xff] %v3039
        %3127 = vst [vmem:[%s3107 + $0xe1] sm:$0xff] %v3040
        %3128 = vst [vmem:[%s3107 + $0xf1] sm:$0xff] %v3041
        %3129 = vst [vmem:[%s3107 + $0xf9] sm:$0xff] %v3042
        %3130 = vst [vmem:[%s3107 + $0x109] sm:$0xff] %v3043
        %3131 = vst [vmem:[%s3107 + $0x111] sm:$0xff] %v3044
        %3132 = vst [vmem:[%s3107 + $0x121] sm:$0xff] %v3045
        %3133 = vst [vmem:[%s3107 + $0x129] sm:$0xff] %v3046
        %3134 = vst [vmem:[%s3107 + $0x139] sm:$0xff] %v3047
        %3135 = vst [vmem:[%s3107 + $0x141] sm:$0xff] %v3048
        %3136 = vst [vmem:[%s3107 + $0x151] sm:$0xff] %v3049
        %3137 = vst [vmem:[%s3107 + $0x159] sm:$0xff] %v3050
        %3138 = vst [vmem:[%s3107 + $0x169] sm:$0xff] %v3051
        %3139 = vst [vmem:[%s3107 + $0x171] sm:$0xff] %v3052
        %v3140 = vld [vmem:[#allocation2] sm:$0xff]
        %v3141 = vld [vmem:[#allocation2 + $0x8] sm:$0xff]
        %v3142 = vld [vmem:[#allocation2 + $0x18] sm:$0xff]
        %v3143 = vld [vmem:[#allocation2 + $0x20] sm:$0xff]
        %v3144 = vld [vmem:[#allocation2 + $0x30] sm:$0xff]
        %v3145 = vld [vmem:[#allocation2 + $0x38] sm:$0xff]
        %v3146 = vld [vmem:[#allocation2 + $0x48] sm:$0xff]
        %v3147 = vld [vmem:[#allocation2 + $0x50] sm:$0xff]
        %v3148 = vld [vmem:[#allocation2 + $0x60] sm:$0xff]
        %v3149 = vld [vmem:[#allocation2 + $0x68] sm:$0xff]
        %v3150 = vld [vmem:[#allocation2 + $0x78] sm:$0xff]
        %v3151 = vld [vmem:[#allocation2 + $0x80] sm:$0xff]
        %v3152 = vld [vmem:[#allocation2 + $0x90] sm:$0xff]
        %v3153 = vld [vmem:[#allocation2 + $0x98] sm:$0xff]
        %v3154 = vld [vmem:[#allocation2 + $0xa8] sm:$0xff]
        %v3155 = vld [vmem:[#allocation2 + $0xb0] sm:$0xff]
        %v3156 = vld [vmem:[#allocation2 + $0xc0] sm:$0xff]
        %v3157 = vld [vmem:[#allocation2 + $0xc8] sm:$0xff]
        %v3158 = vld [vmem:[#allocation2 + $0xd8] sm:$0xff]
        %v3159 = vld [vmem:[#allocation2 + $0xe0] sm:$0xff]
        %v3160 = vld [vmem:[#allocation2 + $0xf0] sm:$0xff]
        %v3161 = vld [vmem:[#allocation2 + $0xf8] sm:$0xff]
        %v3162 = vld [vmem:[#allocation2 + $0x108] sm:$0xff]
        %v3163 = vld [vmem:[#allocation2 + $0x110] sm:$0xff]
        %v3164 = vld [vmem:[#allocation2 + $0x120] sm:$0xff]
        %v3165 = vld [vmem:[#allocation2 + $0x128] sm:$0xff]
        %v3166 = vld [vmem:[#allocation2 + $0x138] sm:$0xff]
        %v3167 = vld [vmem:[#allocation2 + $0x140] sm:$0xff]
        %v3168 = vld [vmem:[#allocation2 + $0x150] sm:$0xff]
        %v3169 = vld [vmem:[#allocation2 + $0x158] sm:$0xff]
        %v3170 = vld [vmem:[#allocation2 + $0x168] sm:$0xff]
        %v3171 = vld [vmem:[#allocation2 + $0x170] sm:$0xff]
        %v3172 = vpack.c.bf16 %v3141, %v3140
        %v3173 = vpack.c.bf16 %v3143, %v3142
        %v3174 = vpack.c.bf16 %v3145, %v3144
        %v3175 = vpack.c.bf16 %v3147, %v3146
        %v3176 = vpack.c.bf16 %v3149, %v3148
        %v3177 = vpack.c.bf16 %v3151, %v3150
        %v3178 = vpack.c.bf16 %v3153, %v3152
        %v3179 = vpack.c.bf16 %v3155, %v3154
        %v3180 = vpack.c.bf16 %v3157, %v3156
        %v3181 = vpack.c.bf16 %v3159, %v3158
        %v3182 = vpack.c.bf16 %v3161, %v3160
        %v3183 = vpack.c.bf16 %v3163, %v3162
        %v3184 = vpack.c.bf16 %v3165, %v3164
        %v3185 = vpack.c.bf16 %v3167, %v3166
        %v3186 = vpack.c.bf16 %v3169, %v3168
        %v3187 = vpack.c.bf16 %v3171, %v3170
        %v3188 = vld [vmem:[%s3] sm:$0xf]
        %v3189 = vld [vmem:[%s3 + $0x4] sm:$0xf]
        %v3190 = vld [vmem:[%s3 + $0x8] sm:$0xf]
        %v3191 = vld [vmem:[%s3 + $0xc] sm:$0xf]
        %v3192 = vld [vmem:[%s3 + $0x10] sm:$0xf]
        %v3193 = vld [vmem:[%s3 + $0x14] sm:$0xf]
        %v3194 = vld [vmem:[%s3 + $0x18] sm:$0xf]
        %v3195 = vld [vmem:[%s3 + $0x1c] sm:$0xf]
        %v3196 = vld [vmem:[%s3 + $0x20] sm:$0xf]
        %v3197 = vld [vmem:[%s3 + $0x24] sm:$0xf]
        %v3198 = vld [vmem:[%s3 + $0x28] sm:$0xf]
        %v3199 = vld [vmem:[%s3 + $0x2c] sm:$0xf]
        %v3200 = vld [vmem:[%s3 + $0x30] sm:$0xf]
        %v3201 = vld [vmem:[%s3 + $0x34] sm:$0xf]
        %v3202 = vld [vmem:[%s3 + $0x38] sm:$0xf]
        %v3203 = vld [vmem:[%s3 + $0x3c] sm:$0xf]
        %v3204 = vld [vmem:[#allocation2 + $0x1] sm:$0xff]
        %v3205 = vld [vmem:[#allocation2 + $0x9] sm:$0xff]
        %v3206 = vld [vmem:[#allocation2 + $0x19] sm:$0xff]
        %v3207 = vld [vmem:[#allocation2 + $0x21] sm:$0xff]
        %v3208 = vld [vmem:[#allocation2 + $0x31] sm:$0xff]
        %v3209 = vld [vmem:[#allocation2 + $0x39] sm:$0xff]
        %v3210 = vld [vmem:[#allocation2 + $0x49] sm:$0xff]
        %v3211 = vld [vmem:[#allocation2 + $0x51] sm:$0xff]
        %v3212 = vld [vmem:[#allocation2 + $0x61] sm:$0xff]
        %v3213 = vld [vmem:[#allocation2 + $0x69] sm:$0xff]
        %v3214 = vld [vmem:[#allocation2 + $0x79] sm:$0xff]
        %v3215 = vld [vmem:[#allocation2 + $0x81] sm:$0xff]
        %v3216 = vld [vmem:[#allocation2 + $0x91] sm:$0xff]
        %v3217 = vld [vmem:[#allocation2 + $0x99] sm:$0xff]
        %v3218 = vld [vmem:[#allocation2 + $0xa9] sm:$0xff]
        %v3219 = vld [vmem:[#allocation2 + $0xb1] sm:$0xff]
        %v3220 = vld [vmem:[#allocation2 + $0xc1] sm:$0xff]
        %v3221 = vld [vmem:[#allocation2 + $0xc9] sm:$0xff]
        %v3222 = vld [vmem:[#allocation2 + $0xd9] sm:$0xff]
        %v3223 = vld [vmem:[#allocation2 + $0xe1] sm:$0xff]
        %v3224 = vld [vmem:[#allocation2 + $0xf1] sm:$0xff]
        %v3225 = vld [vmem:[#allocation2 + $0xf9] sm:$0xff]
        %v3226 = vld [vmem:[#allocation2 + $0x109] sm:$0xff]
        %v3227 = vld [vmem:[#allocation2 + $0x111] sm:$0xff]
        %v3228 = vld [vmem:[#allocation2 + $0x121] sm:$0xff]
        %v3229 = vld [vmem:[#allocation2 + $0x129] sm:$0xff]
        %v3230 = vld [vmem:[#allocation2 + $0x139] sm:$0xff]
        %v3231 = vld [vmem:[#allocation2 + $0x141] sm:$0xff]
        %v3232 = vld [vmem:[#allocation2 + $0x151] sm:$0xff]
        %v3233 = vld [vmem:[#allocation2 + $0x159] sm:$0xff]
        %v3234 = vld [vmem:[#allocation2 + $0x169] sm:$0xff]
        %v3235 = vld [vmem:[#allocation2 + $0x171] sm:$0xff]
        %v3236 = vpack.c.bf16 %v3205, %v3204
        %v3237 = vpack.c.bf16 %v3207, %v3206
        %v3238 = vpack.c.bf16 %v3209, %v3208
        %v3239 = vpack.c.bf16 %v3211, %v3210
        %v3240 = vpack.c.bf16 %v3213, %v3212
        %v3241 = vpack.c.bf16 %v3215, %v3214
        %v3242 = vpack.c.bf16 %v3217, %v3216
        %v3243 = vpack.c.bf16 %v3219, %v3218
        %v3244 = vpack.c.bf16 %v3221, %v3220
        %v3245 = vpack.c.bf16 %v3223, %v3222
        %v3246 = vpack.c.bf16 %v3225, %v3224
        %v3247 = vpack.c.bf16 %v3227, %v3226
        %v3248 = vpack.c.bf16 %v3229, %v3228
        %v3249 = vpack.c.bf16 %v3231, %v3230
        %v3250 = vpack.c.bf16 %v3233, %v3232
        %v3251 = vpack.c.bf16 %v3235, %v3234
        %s3252 = scalar_lea.vmem %s3, 64
        %v3253 = vld [vmem:[%s3252] sm:$0xf]
        %v3254 = vld [vmem:[%s3252 + $0x4] sm:$0xf]
        %v3255 = vld [vmem:[%s3252 + $0x8] sm:$0xf]
        %v3256 = vld [vmem:[%s3252 + $0xc] sm:$0xf]
        %v3257 = vld [vmem:[%s3252 + $0x10] sm:$0xf]
        %v3258 = vld [vmem:[%s3252 + $0x14] sm:$0xf]
        %v3259 = vld [vmem:[%s3252 + $0x18] sm:$0xf]
        %v3260 = vld [vmem:[%s3252 + $0x1c] sm:$0xf]
        %v3261 = vld [vmem:[%s3252 + $0x20] sm:$0xf]
        %v3262 = vld [vmem:[%s3252 + $0x24] sm:$0xf]
        %v3263 = vld [vmem:[%s3252 + $0x28] sm:$0xf]
        %v3264 = vld [vmem:[%s3252 + $0x2c] sm:$0xf]
        %v3265 = vld [vmem:[%s3252 + $0x30] sm:$0xf]
        %v3266 = vld [vmem:[%s3252 + $0x34] sm:$0xf]
        %v3267 = vld [vmem:[%s3252 + $0x38] sm:$0xf]
        %v3268 = vld [vmem:[%s3252 + $0x3c] sm:$0xf]
        %v3285 = vunpack.c.l.b16 %v3253
        %v3286 = vunpack.c.l.b16 %v3254
        %v3287 = vunpack.c.l.b16 %v3255
        %v3288 = vunpack.c.l.b16 %v3256
        %v3289 = vunpack.c.l.b16 %v3257
        %v3290 = vunpack.c.l.b16 %v3258
        %v3291 = vunpack.c.l.b16 %v3259
        %v3292 = vunpack.c.l.b16 %v3260
        %v3293 = vunpack.c.l.b16 %v3261
        %v3294 = vunpack.c.l.b16 %v3262
        %v3295 = vunpack.c.l.b16 %v3263
        %v3296 = vunpack.c.l.b16 %v3264
        %v3297 = vunpack.c.l.b16 %v3265
        %v3298 = vunpack.c.l.b16 %v3266
        %v3299 = vunpack.c.l.b16 %v3267
        %v3300 = vunpack.c.l.b16 %v3268
        %v3301 = vpack.c.b16 %v3286, %v3285
        %v3302 = vpack.c.b16 %v3288, %v3287
        %v3303 = vpack.c.b16 %v3290, %v3289
        %v3304 = vpack.c.b16 %v3292, %v3291
        %v3305 = vpack.c.b16 %v3294, %v3293
        %v3306 = vpack.c.b16 %v3296, %v3295
        %v3307 = vpack.c.b16 %v3298, %v3297
        %v3308 = vpack.c.b16 %v3300, %v3299
        %3317 = vmatprep.subr.bf16.mxu0 0
        %3318 = vmatpush1.bf16.msra.mxu0 %v3301
        %3319 = vmatprep.subr.bf16.mxu0 0
        %3320 = vmatpush1.bf16.msra.mxu0 %v3302
        %3321 = vmatprep.subr.bf16.mxu0 0
        %3322 = vmatpush1.bf16.msra.mxu0 %v3303
        %3323 = vmatprep.subr.bf16.mxu0 0
        %3324 = vmatpush1.bf16.msra.mxu0 %v3304
        %3325 = vmatprep.subr.bf16.mxu0 0
        %3326 = vmatpush1.bf16.msra.mxu0 %v3305
        %3327 = vmatprep.subr.bf16.mxu0 0
        %3328 = vmatpush1.bf16.msra.mxu0 %v3306
        %3329 = vmatprep.subr.bf16.mxu0 0
        %3330 = vmatpush1.bf16.msra.mxu0 %v3307
        %3331 = vmatprep.subr.bf16.mxu0 0
        %3332 = vmatpush1.bf16.msra.mxu0 %v3308
        %3333 = vmatprep.subr.bf16.mxu0 0
        %3334 = vmatpush1.bf16.msra.mxu0 0
        %3335 = vmatprep.subr.bf16.mxu0 0
        %3336 = vmatpush1.bf16.msra.mxu0 0
        %3337 = vmatprep.subr.bf16.mxu0 0
        %3338 = vmatpush1.bf16.msra.mxu0 0
        %3339 = vmatprep.subr.bf16.mxu0 0
        %3340 = vmatpush1.bf16.msra.mxu0 0
        %3341 = vmatprep.subr.bf16.mxu0 0
        %3342 = vmatpush1.bf16.msra.mxu0 0
        %3343 = vmatprep.subr.bf16.mxu0 0
        %3344 = vmatpush1.bf16.msra.mxu0 0
        %3345 = vmatprep.subr.bf16.mxu0 0
        %3346 = vmatpush1.bf16.msra.mxu0 0
        %3347 = vmatprep.subr.bf16.mxu0 0
        %3348 = vmatpush1.bf16.msra.mxu0 0
        %3349 = vmatprep.mubr.bf16.mxu0 0
        %3350 = vmatmul.mubr.bf16.gmra.mrb[0].mxu0 %v3236
        %v3351 = vpop.f32.mrb[0].mxu0
        %v3352 = vadd.f32 0.0, %v3351
        %v3353 = vpop.f32.mrb[0].mxu0
        %v3354 = vpop.f32.mrb[0].mxu0
        %v3355 = vadd.f32 0.0, %v3354
        %v3356 = vpop.f32.mrb[0].mxu0
        %3357 = vmatprep.mubr.bf16.mxu0 0
        %3358 = vmatmul.mubr.bf16.gmra.mrb[0].mxu0 %v3237
        %v3359 = vpop.f32.mrb[0].mxu0
        %v3360 = vadd.f32 0.0, %v3359
        %v3361 = vpop.f32.mrb[0].mxu0
        %v3362 = vpop.f32.mrb[0].mxu0
        %v3363 = vadd.f32 0.0, %v3362
        %v3364 = vpop.f32.mrb[0].mxu0
        %3365 = vmatprep.mubr.bf16.mxu0 0
        %3366 = vmatmul.mubr.bf16.gmra.mrb[0].mxu0 %v3238
        %v3367 = vpop.f32.mrb[0].mxu0
        %v3368 = vadd.f32 0.0, %v3367
        %v3369 = vpop.f32.mrb[0].mxu0
        %v3370 = vpop.f32.mrb[0].mxu0
        %v3371 = vadd.f32 0.0, %v3370
        %v3372 = vpop.f32.mrb[0].mxu0
        %3373 = vmatprep.mubr.bf16.mxu0 0
        %3374 = vmatmul.mubr.bf16.gmra.mrb[0].mxu0 %v3239
        %v3375 = vpop.f32.mrb[0].mxu0
        %v3376 = vadd.f32 0.0, %v3375
        %v3377 = vpop.f32.mrb[0].mxu0
        %v3378 = vpop.f32.mrb[0].mxu0
        %v3379 = vadd.f32 0.0, %v3378
        %v3380 = vpop.f32.mrb[0].mxu0
        %3381 = vmatprep.mubr.bf16.mxu0 0
        %3382 = vmatmul.mubr.bf16.gmra.mrb[0].mxu0 %v3240
        %v3383 = vpop.f32.mrb[0].mxu0
        %v3384 = vadd.f32 0.0, %v3383
        %v3385 = vpop.f32.mrb[0].mxu0
        %v3386 = vpop.f32.mrb[0].mxu0
        %v3387 = vadd.f32 0.0, %v3386
        %v3388 = vpop.f32.mrb[0].mxu0
        %3389 = vmatprep.mubr.bf16.mxu0 0
        %3390 = vmatmul.mubr.bf16.gmra.mrb[0].mxu0 %v3241
        %v3391 = vpop.f32.mrb[0].mxu0
        %v3392 = vadd.f32 0.0, %v3391
        %v3393 = vpop.f32.mrb[0].mxu0
        %v3394 = vpop.f32.mrb[0].mxu0
        %v3395 = vadd.f32 0.0, %v3394
        %v3396 = vpop.f32.mrb[0].mxu0
        %3397 = vmatprep.mubr.bf16.mxu0 0
        %3398 = vmatmul.mubr.bf16.gmra.mrb[0].mxu0 %v3242
        %v3399 = vpop.f32.mrb[0].mxu0
        %v3400 = vadd.f32 0.0, %v3399
        %v3401 = vpop.f32.mrb[0].mxu0
        %v3402 = vpop.f32.mrb[0].mxu0
        %v3403 = vadd.f32 0.0, %v3402
        %v3404 = vpop.f32.mrb[0].mxu0
        %3405 = vmatprep.mubr.bf16.mxu0 0
        %3406 = vmatmul.mubr.bf16.gmra.mrb[0].mxu0 %v3243
        %v3407 = vpop.f32.mrb[0].mxu0
        %v3408 = vadd.f32 0.0, %v3407
        %v3409 = vpop.f32.mrb[0].mxu0
        %v3410 = vpop.f32.mrb[0].mxu0
        %v3411 = vadd.f32 0.0, %v3410
        %v3412 = vpop.f32.mrb[0].mxu0
        %3413 = vmatprep.mubr.bf16.mxu0 0
        %3414 = vmatmul.mubr.bf16.gmra.mrb[0].mxu0 %v3244
        %v3415 = vpop.f32.mrb[0].mxu0
        %v3416 = vadd.f32 0.0, %v3415
        %v3417 = vpop.f32.mrb[0].mxu0
        %v3418 = vpop.f32.mrb[0].mxu0
        %v3419 = vadd.f32 0.0, %v3418
        %v3420 = vpop.f32.mrb[0].mxu0
        %3421 = vmatprep.mubr.bf16.mxu0 0
        %3422 = vmatmul.mubr.bf16.gmra.mrb[0].mxu0 %v3245
        %v3423 = vpop.f32.mrb[0].mxu0
        %v3424 = vadd.f32 0.0, %v3423
        %v3425 = vpop.f32.mrb[0].mxu0
        %v3426 = vpop.f32.mrb[0].mxu0
        %v3427 = vadd.f32 0.0, %v3426
        %v3428 = vpop.f32.mrb[0].mxu0
        %3429 = vmatprep.mubr.bf16.mxu0 0
        %3430 = vmatmul.mubr.bf16.gmra.mrb[0].mxu0 %v3246
        %v3431 = vpop.f32.mrb[0].mxu0
        %v3432 = vadd.f32 0.0, %v3431
        %v3433 = vpop.f32.mrb[0].mxu0
        %v3434 = vpop.f32.mrb[0].mxu0
        %v3435 = vadd.f32 0.0, %v3434
        %v3436 = vpop.f32.mrb[0].mxu0
        %3437 = vmatprep.mubr.bf16.mxu0 0
        %3438 = vmatmul.mubr.bf16.gmra.mrb[0].mxu0 %v3247
        %v3439 = vpop.f32.mrb[0].mxu0
        %v3440 = vadd.f32 0.0, %v3439
        %v3441 = vpop.f32.mrb[0].mxu0
        %v3442 = vpop.f32.mrb[0].mxu0
        %v3443 = vadd.f32 0.0, %v3442
        %v3444 = vpop.f32.mrb[0].mxu0
        %3445 = vmatprep.mubr.bf16.mxu0 0
        %3446 = vmatmul.mubr.bf16.gmra.mrb[0].mxu0 %v3248
        %v3447 = vpop.f32.mrb[0].mxu0
        %v3448 = vadd.f32 0.0, %v3447
        %v3449 = vpop.f32.mrb[0].mxu0
        %v3450 = vpop.f32.mrb[0].mxu0
        %v3451 = vadd.f32 0.0, %v3450
        %v3452 = vpop.f32.mrb[0].mxu0
        %3453 = vmatprep.mubr.bf16.mxu0 0
        %3454 = vmatmul.mubr.bf16.gmra.mrb[0].mxu0 %v3249
        %v3455 = vpop.f32.mrb[0].mxu0
        %v3456 = vadd.f32 0.0, %v3455
        %v3457 = vpop.f32.mrb[0].mxu0
        %v3458 = vpop.f32.mrb[0].mxu0
        %v3459 = vadd.f32 0.0, %v3458
        %v3460 = vpop.f32.mrb[0].mxu0
        %3461 = vmatprep.mubr.bf16.mxu0 0
        %3462 = vmatmul.mubr.bf16.gmra.mrb[0].mxu0 %v3250
        %v3463 = vpop.f32.mrb[0].mxu0
        %v3464 = vadd.f32 0.0, %v3463
        %v3465 = vpop.f32.mrb[0].mxu0
        %v3466 = vpop.f32.mrb[0].mxu0
        %v3467 = vadd.f32 0.0, %v3466
        %v3468 = vpop.f32.mrb[0].mxu0
        %3469 = vmatprep.mubr.bf16.mxu0 0
        %3470 = vmatmul.mubr.bf16.gmra.mrb[0].mxu0 %v3251
        %v3471 = vpop.f32.mrb[0].mxu0
        %v3472 = vadd.f32 0.0, %v3471
        %v3473 = vpop.f32.mrb[0].mxu0
        %v3474 = vpop.f32.mrb[0].mxu0
        %v3475 = vadd.f32 0.0, %v3474
        %v3476 = vpop.f32.mrb[0].mxu0
        %3477 = vdwg.mxu0
        %v3494 = vunpack.c.l.b16 %v3188
        %v3495 = vunpack.c.l.b16 %v3189
        %v3496 = vunpack.c.l.b16 %v3190
        %v3497 = vunpack.c.l.b16 %v3191
        %v3498 = vunpack.c.l.b16 %v3192
        %v3499 = vunpack.c.l.b16 %v3193
        %v3500 = vunpack.c.l.b16 %v3194
        %v3501 = vunpack.c.l.b16 %v3195
        %v3502 = vunpack.c.l.b16 %v3196
        %v3503 = vunpack.c.l.b16 %v3197
        %v3504 = vunpack.c.l.b16 %v3198
        %v3505 = vunpack.c.l.b16 %v3199
        %v3506 = vunpack.c.l.b16 %v3200
        %v3507 = vunpack.c.l.b16 %v3201
        %v3508 = vunpack.c.l.b16 %v3202
        %v3509 = vunpack.c.l.b16 %v3203
        %v3510 = vpack.c.b16 %v3495, %v3494
        %v3511 = vpack.c.b16 %v3497, %v3496
        %v3512 = vpack.c.b16 %v3499, %v3498
        %v3513 = vpack.c.b16 %v3501, %v3500
        %v3514 = vpack.c.b16 %v3503, %v3502
        %v3515 = vpack.c.b16 %v3505, %v3504
        %v3516 = vpack.c.b16 %v3507, %v3506
        %v3517 = vpack.c.b16 %v3509, %v3508
        %3526 = vmatprep.subr.bf16.mxu0 0
        %3527 = vmatpush1.bf16.msra.mxu0 %v3510
        %3528 = vmatprep.subr.bf16.mxu0 0
        %3529 = vmatpush1.bf16.msra.mxu0 %v3511
        %3530 = vmatprep.subr.bf16.mxu0 0
        %3531 = vmatpush1.bf16.msra.mxu0 %v3512
        %3532 = vmatprep.subr.bf16.mxu0 0
        %3533 = vmatpush1.bf16.msra.mxu0 %v3513
        %3534 = vmatprep.subr.bf16.mxu0 0
        %3535 = vmatpush1.bf16.msra.mxu0 %v3514
        %3536 = vmatprep.subr.bf16.mxu0 0
        %3537 = vmatpush1.bf16.msra.mxu0 %v3515
        %3538 = vmatprep.subr.bf16.mxu0 0
        %3539 = vmatpush1.bf16.msra.mxu0 %v3516
        %3540 = vmatprep.subr.bf16.mxu0 0
        %3541 = vmatpush1.bf16.msra.mxu0 %v3517
        %3542 = vmatprep.subr.bf16.mxu0 0
        %3543 = vmatpush1.bf16.msra.mxu0 0
        %3544 = vmatprep.subr.bf16.mxu0 0
        %3545 = vmatpush1.bf16.msra.mxu0 0
        %3546 = vmatprep.subr.bf16.mxu0 0
        %3547 = vmatpush1.bf16.msra.mxu0 0
        %3548 = vmatprep.subr.bf16.mxu0 0
        %3549 = vmatpush1.bf16.msra.mxu0 0
        %3550 = vmatprep.subr.bf16.mxu0 0
        %3551 = vmatpush1.bf16.msra.mxu0 0
        %3552 = vmatprep.subr.bf16.mxu0 0
        %3553 = vmatpush1.bf16.msra.mxu0 0
        %3554 = vmatprep.subr.bf16.mxu0 0
        %3555 = vmatpush1.bf16.msra.mxu0 0
        %3556 = vmatprep.subr.bf16.mxu0 0
        %3557 = vmatpush1.bf16.msra.mxu0 0
        %3558 = vmatprep.mubr.bf16.mxu0 0
        %3559 = vmatmul.mubr.bf16.gmra.mrb[0].mxu0 %v3172
        %v3560 = vpop.f32.mrb[0].mxu0
        %v3561 = vadd.f32 %v3352, %v3560
        %v3562 = vpop.f32.mrb[0].mxu0
        %v3563 = vpop.f32.mrb[0].mxu0
        %v3564 = vadd.f32 %v3355, %v3563
        %v3565 = vpop.f32.mrb[0].mxu0
        %3566 = vmatprep.mubr.bf16.mxu0 0
        %3567 = vmatmul.mubr.bf16.gmra.mrb[0].mxu0 %v3173
        %v3568 = vpop.f32.mrb[0].mxu0
        %v3569 = vadd.f32 %v3360, %v3568
        %v3570 = vpop.f32.mrb[0].mxu0
        %v3571 = vpop.f32.mrb[0].mxu0
        %v3572 = vadd.f32 %v3363, %v3571
        %v3573 = vpop.f32.mrb[0].mxu0
        %3574 = vmatprep.mubr.bf16.mxu0 0
        %3575 = vmatmul.mubr.bf16.gmra.mrb[0].mxu0 %v3174
        %v3576 = vpop.f32.mrb[0].mxu0
        %v3577 = vadd.f32 %v3368, %v3576
        %v3578 = vpop.f32.mrb[0].mxu0
        %v3579 = vpop.f32.mrb[0].mxu0
        %v3580 = vadd.f32 %v3371, %v3579
        %v3581 = vpop.f32.mrb[0].mxu0
        %3582 = vmatprep.mubr.bf16.mxu0 0
        %3583 = vmatmul.mubr.bf16.gmra.mrb[0].mxu0 %v3175
        %v3584 = vpop.f32.mrb[0].mxu0
        %v3585 = vadd.f32 %v3376, %v3584
        %v3586 = vpop.f32.mrb[0].mxu0
        %v3587 = vpop.f32.mrb[0].mxu0
        %v3588 = vadd.f32 %v3379, %v3587
        %v3589 = vpop.f32.mrb[0].mxu0
        %3590 = vmatprep.mubr.bf16.mxu0 0
        %3591 = vmatmul.mubr.bf16.gmra.mrb[0].mxu0 %v3176
        %v3592 = vpop.f32.mrb[0].mxu0
        %v3593 = vadd.f32 %v3384, %v3592
        %v3594 = vpop.f32.mrb[0].mxu0
        %v3595 = vpop.f32.mrb[0].mxu0
        %v3596 = vadd.f32 %v3387, %v3595
        %v3597 = vpop.f32.mrb[0].mxu0
        %3598 = vmatprep.mubr.bf16.mxu0 0
        %3599 = vmatmul.mubr.bf16.gmra.mrb[0].mxu0 %v3177
        %v3600 = vpop.f32.mrb[0].mxu0
        %v3601 = vadd.f32 %v3392, %v3600
        %v3602 = vpop.f32.mrb[0].mxu0
        %v3603 = vpop.f32.mrb[0].mxu0
        %v3604 = vadd.f32 %v3395, %v3603
        %v3605 = vpop.f32.mrb[0].mxu0
        %3606 = vmatprep.mubr.bf16.mxu0 0
        %3607 = vmatmul.mubr.bf16.gmra.mrb[0].mxu0 %v3178
        %v3608 = vpop.f32.mrb[0].mxu0
        %v3609 = vadd.f32 %v3400, %v3608
        %v3610 = vpop.f32.mrb[0].mxu0
        %v3611 = vpop.f32.mrb[0].mxu0
        %v3612 = vadd.f32 %v3403, %v3611
        %v3613 = vpop.f32.mrb[0].mxu0
        %3614 = vmatprep.mubr.bf16.mxu0 0
        %3615 = vmatmul.mubr.bf16.gmra.mrb[0].mxu0 %v3179
        %v3616 = vpop.f32.mrb[0].mxu0
        %v3617 = vadd.f32 %v3408, %v3616
        %v3618 = vpop.f32.mrb[0].mxu0
        %v3619 = vpop.f32.mrb[0].mxu0
        %v3620 = vadd.f32 %v3411, %v3619
        %v3621 = vpop.f32.mrb[0].mxu0
        %3622 = vmatprep.mubr.bf16.mxu0 0
        %3623 = vmatmul.mubr.bf16.gmra.mrb[0].mxu0 %v3180
        %v3624 = vpop.f32.mrb[0].mxu0
        %v3625 = vadd.f32 %v3416, %v3624
        %v3626 = vpop.f32.mrb[0].mxu0
        %v3627 = vpop.f32.mrb[0].mxu0
        %v3628 = vadd.f32 %v3419, %v3627
        %v3629 = vpop.f32.mrb[0].mxu0
        %3630 = vmatprep.mubr.bf16.mxu0 0
        %3631 = vmatmul.mubr.bf16.gmra.mrb[0].mxu0 %v3181
        %v3632 = vpop.f32.mrb[0].mxu0
        %v3633 = vadd.f32 %v3424, %v3632
        %v3634 = vpop.f32.mrb[0].mxu0
        %v3635 = vpop.f32.mrb[0].mxu0
        %v3636 = vadd.f32 %v3427, %v3635
        %v3637 = vpop.f32.mrb[0].mxu0
        %3638 = vmatprep.mubr.bf16.mxu0 0
        %3639 = vmatmul.mubr.bf16.gmra.mrb[0].mxu0 %v3182
        %v3640 = vpop.f32.mrb[0].mxu0
        %v3641 = vadd.f32 %v3432, %v3640
        %v3642 = vpop.f32.mrb[0].mxu0
        %v3643 = vpop.f32.mrb[0].mxu0
        %v3644 = vadd.f32 %v3435, %v3643
        %v3645 = vpop.f32.mrb[0].mxu0
        %3646 = vmatprep.mubr.bf16.mxu0 0
        %3647 = vmatmul.mubr.bf16.gmra.mrb[0].mxu0 %v3183
        %v3648 = vpop.f32.mrb[0].mxu0
        %v3649 = vadd.f32 %v3440, %v3648
        %v3650 = vpop.f32.mrb[0].mxu0
        %v3651 = vpop.f32.mrb[0].mxu0
        %v3652 = vadd.f32 %v3443, %v3651
        %v3653 = vpop.f32.mrb[0].mxu0
        %3654 = vmatprep.mubr.bf16.mxu0 0
        %3655 = vmatmul.mubr.bf16.gmra.mrb[0].mxu0 %v3184
        %v3656 = vpop.f32.mrb[0].mxu0
        %v3657 = vadd.f32 %v3448, %v3656
        %v3658 = vpop.f32.mrb[0].mxu0
        %v3659 = vpop.f32.mrb[0].mxu0
        %v3660 = vadd.f32 %v3451, %v3659
        %v3661 = vpop.f32.mrb[0].mxu0
        %3662 = vmatprep.mubr.bf16.mxu0 0
        %3663 = vmatmul.mubr.bf16.gmra.mrb[0].mxu0 %v3185
        %v3664 = vpop.f32.mrb[0].mxu0
        %v3665 = vadd.f32 %v3456, %v3664
        %v3666 = vpop.f32.mrb[0].mxu0
        %v3667 = vpop.f32.mrb[0].mxu0
        %v3668 = vadd.f32 %v3459, %v3667
        %v3669 = vpop.f32.mrb[0].mxu0
        %3670 = vmatprep.mubr.bf16.mxu0 0
        %3671 = vmatmul.mubr.bf16.gmra.mrb[0].mxu0 %v3186
        %v3672 = vpop.f32.mrb[0].mxu0
        %v3673 = vadd.f32 %v3464, %v3672
        %v3674 = vpop.f32.mrb[0].mxu0
        %v3675 = vpop.f32.mrb[0].mxu0
        %v3676 = vadd.f32 %v3467, %v3675
        %v3677 = vpop.f32.mrb[0].mxu0
        %3678 = vmatprep.mubr.bf16.mxu0 0
        %3679 = vmatmul.mubr.bf16.gmra.mrb[0].mxu0 %v3187
        %v3680 = vpop.f32.mrb[0].mxu0
        %v3681 = vadd.f32 %v3472, %v3680
        %v3682 = vpop.f32.mrb[0].mxu0
        %v3683 = vpop.f32.mrb[0].mxu0
        %v3684 = vadd.f32 %v3475, %v3683
        %v3685 = vpop.f32.mrb[0].mxu0
        %3686 = vdwg.mxu0
        %v3687 = vld [vmem:[#allocation2 + $0x2] sm:$0xff]
        %v3688 = vld [vmem:[#allocation2 + $0xa] sm:$0xff]
        %v3689 = vld [vmem:[#allocation2 + $0x1a] sm:$0xff]
        %v3690 = vld [vmem:[#allocation2 + $0x22] sm:$0xff]
        %v3691 = vld [vmem:[#allocation2 + $0x32] sm:$0xff]
        %v3692 = vld [vmem:[#allocation2 + $0x3a] sm:$0xff]
        %v3693 = vld [vmem:[#allocation2 + $0x4a] sm:$0xff]
        %v3694 = vld [vmem:[#allocation2 + $0x52] sm:$0xff]
        %v3695 = vld [vmem:[#allocation2 + $0x62] sm:$0xff]
        %v3696 = vld [vmem:[#allocation2 + $0x6a] sm:$0xff]
        %v3697 = vld [vmem:[#allocation2 + $0x7a] sm:$0xff]
        %v3698 = vld [vmem:[#allocation2 + $0x82] sm:$0xff]
        %v3699 = vld [vmem:[#allocation2 + $0x92] sm:$0xff]
        %v3700 = vld [vmem:[#allocation2 + $0x9a] sm:$0xff]
        %v3701 = vld [vmem:[#allocation2 + $0xaa] sm:$0xff]
        %v3702 = vld [vmem:[#allocation2 + $0xb2] sm:$0xff]
        %v3703 = vld [vmem:[#allocation2 + $0xc2] sm:$0xff]
        %v3704 = vld [vmem:[#allocation2 + $0xca] sm:$0xff]
        %v3705 = vld [vmem:[#allocation2 + $0xda] sm:$0xff]
        %v3706 = vld [vmem:[#allocation2 + $0xe2] sm:$0xff]
        %v3707 = vld [vmem:[#allocation2 + $0xf2] sm:$0xff]
        %v3708 = vld [vmem:[#allocation2 + $0xfa] sm:$0xff]
        %v3709 = vld [vmem:[#allocation2 + $0x10a] sm:$0xff]
        %v3710 = vld [vmem:[#allocation2 + $0x112] sm:$0xff]
        %v3711 = vld [vmem:[#allocation2 + $0x122] sm:$0xff]
        %v3712 = vld [vmem:[#allocation2 + $0x12a] sm:$0xff]
        %v3713 = vld [vmem:[#allocation2 + $0x13a] sm:$0xff]
        %v3714 = vld [vmem:[#allocation2 + $0x142] sm:$0xff]
        %v3715 = vld [vmem:[#allocation2 + $0x152] sm:$0xff]
        %v3716 = vld [vmem:[#allocation2 + $0x15a] sm:$0xff]
        %v3717 = vld [vmem:[#allocation2 + $0x16a] sm:$0xff]
        %v3718 = vld [vmem:[#allocation2 + $0x172] sm:$0xff]
        %v3719 = vpack.c.bf16 %v3688, %v3687
        %v3720 = vpack.c.bf16 %v3690, %v3689
        %v3721 = vpack.c.bf16 %v3692, %v3691
        %v3722 = vpack.c.bf16 %v3694, %v3693
        %v3723 = vpack.c.bf16 %v3696, %v3695
        %v3724 = vpack.c.bf16 %v3698, %v3697
        %v3725 = vpack.c.bf16 %v3700, %v3699
        %v3726 = vpack.c.bf16 %v3702, %v3701
        %v3727 = vpack.c.bf16 %v3704, %v3703
        %v3728 = vpack.c.bf16 %v3706, %v3705
        %v3729 = vpack.c.bf16 %v3708, %v3707
        %v3730 = vpack.c.bf16 %v3710, %v3709
        %v3731 = vpack.c.bf16 %v3712, %v3711
        %v3732 = vpack.c.bf16 %v3714, %v3713
        %v3733 = vpack.c.bf16 %v3716, %v3715
        %v3734 = vpack.c.bf16 %v3718, %v3717
        %s3735 = scalar_lea.vmem %s3, 128
        %v3736 = vld [vmem:[%s3735] sm:$0xf]
        %v3737 = vld [vmem:[%s3735 + $0x4] sm:$0xf]
        %v3738 = vld [vmem:[%s3735 + $0x8] sm:$0xf]
        %v3739 = vld [vmem:[%s3735 + $0xc] sm:$0xf]
        %v3740 = vld [vmem:[%s3735 + $0x10] sm:$0xf]
        %v3741 = vld [vmem:[%s3735 + $0x14] sm:$0xf]
        %v3742 = vld [vmem:[%s3735 + $0x18] sm:$0xf]
        %v3743 = vld [vmem:[%s3735 + $0x1c] sm:$0xf]
        %v3744 = vld [vmem:[%s3735 + $0x20] sm:$0xf]
        %v3745 = vld [vmem:[%s3735 + $0x24] sm:$0xf]
        %v3746 = vld [vmem:[%s3735 + $0x28] sm:$0xf]
        %v3747 = vld [vmem:[%s3735 + $0x2c] sm:$0xf]
        %v3748 = vld [vmem:[%s3735 + $0x30] sm:$0xf]
        %v3749 = vld [vmem:[%s3735 + $0x34] sm:$0xf]
        %v3750 = vld [vmem:[%s3735 + $0x38] sm:$0xf]
        %v3751 = vld [vmem:[%s3735 + $0x3c] sm:$0xf]
        %v3768 = vunpack.c.l.b16 %v3736
        %v3769 = vunpack.c.l.b16 %v3737
        %v3770 = vunpack.c.l.b16 %v3738
        %v3771 = vunpack.c.l.b16 %v3739
        %v3772 = vunpack.c.l.b16 %v3740
        %v3773 = vunpack.c.l.b16 %v3741
        %v3774 = vunpack.c.l.b16 %v3742
        %v3775 = vunpack.c.l.b16 %v3743
        %v3776 = vunpack.c.l.b16 %v3744
        %v3777 = vunpack.c.l.b16 %v3745
        %v3778 = vunpack.c.l.b16 %v3746
        %v3779 = vunpack.c.l.b16 %v3747
        %v3780 = vunpack.c.l.b16 %v3748
        %v3781 = vunpack.c.l.b16 %v3749
        %v3782 = vunpack.c.l.b16 %v3750
        %v3783 = vunpack.c.l.b16 %v3751
        %v3784 = vpack.c.b16 %v3769, %v3768
        %v3785 = vpack.c.b16 %v3771, %v3770
        %v3786 = vpack.c.b16 %v3773, %v3772
        %v3787 = vpack.c.b16 %v3775, %v3774
        %v3788 = vpack.c.b16 %v3777, %v3776
        %v3789 = vpack.c.b16 %v3779, %v3778
        %v3790 = vpack.c.b16 %v3781, %v3780
        %v3791 = vpack.c.b16 %v3783, %v3782
        %3800 = vmatprep.subr.bf16.mxu0 0
        %3801 = vmatpush1.bf16.msra.mxu0 %v3784
        %3802 = vmatprep.subr.bf16.mxu0 0
        %3803 = vmatpush1.bf16.msra.mxu0 %v3785
        %3804 = vmatprep.subr.bf16.mxu0 0
        %3805 = vmatpush1.bf16.msra.mxu0 %v3786
        %3806 = vmatprep.subr.bf16.mxu0 0
        %3807 = vmatpush1.bf16.msra.mxu0 %v3787
        %3808 = vmatprep.subr.bf16.mxu0 0
        %3809 = vmatpush1.bf16.msra.mxu0 %v3788
        %3810 = vmatprep.subr.bf16.mxu0 0
        %3811 = vmatpush1.bf16.msra.mxu0 %v3789
        %3812 = vmatprep.subr.bf16.mxu0 0
        %3813 = vmatpush1.bf16.msra.mxu0 %v3790
        %3814 = vmatprep.subr.bf16.mxu0 0
        %3815 = vmatpush1.bf16.msra.mxu0 %v3791
        %3816 = vmatprep.subr.bf16.mxu0 0
        %3817 = vmatpush1.bf16.msra.mxu0 0
        %3818 = vmatprep.subr.bf16.mxu0 0
        %3819 = vmatpush1.bf16.msra.mxu0 0
        %3820 = vmatprep.subr.bf16.mxu0 0
        %3821 = vmatpush1.bf16.msra.mxu0 0
        %3822 = vmatprep.subr.bf16.mxu0 0
        %3823 = vmatpush1.bf16.msra.mxu0 0
        %3824 = vmatprep.subr.bf16.mxu0 0
        %3825 = vmatpush1.bf16.msra.mxu0 0
        %3826 = vmatprep.subr.bf16.mxu0 0
        %3827 = vmatpush1.bf16.msra.mxu0 0
        %3828 = vmatprep.subr.bf16.mxu0 0
        %3829 = vmatpush1.bf16.msra.mxu0 0
        %3830 = vmatprep.subr.bf16.mxu0 0
        %3831 = vmatpush1.bf16.msra.mxu0 0
        %3832 = vmatprep.mubr.bf16.mxu0 0
        %3833 = vmatmul.mubr.bf16.gmra.mrb[0].mxu0 %v3719
        %v3834 = vpop.f32.mrb[0].mxu0
        %v3835 = vadd.f32 0.0, %v3834
        %v3836 = vpop.f32.mrb[0].mxu0
        %v3837 = vpop.f32.mrb[0].mxu0
        %v3838 = vadd.f32 0.0, %v3837
        %v3839 = vpop.f32.mrb[0].mxu0
        %3840 = vmatprep.mubr.bf16.mxu0 0
        %3841 = vmatmul.mubr.bf16.gmra.mrb[0].mxu0 %v3720
        %v3842 = vpop.f32.mrb[0].mxu0
        %v3843 = vadd.f32 0.0, %v3842
        %v3844 = vpop.f32.mrb[0].mxu0
        %v3845 = vpop.f32.mrb[0].mxu0
        %v3846 = vadd.f32 0.0, %v3845
        %v3847 = vpop.f32.mrb[0].mxu0
        %3848 = vmatprep.mubr.bf16.mxu0 0
        %3849 = vmatmul.mubr.bf16.gmra.mrb[0].mxu0 %v3721
        %v3850 = vpop.f32.mrb[0].mxu0
        %v3851 = vadd.f32 0.0, %v3850
        %v3852 = vpop.f32.mrb[0].mxu0
        %v3853 = vpop.f32.mrb[0].mxu0
        %v3854 = vadd.f32 0.0, %v3853
        %v3855 = vpop.f32.mrb[0].mxu0
        %3856 = vmatprep.mubr.bf16.mxu0 0
        %3857 = vmatmul.mubr.bf16.gmra.mrb[0].mxu0 %v3722
        %v3858 = vpop.f32.mrb[0].mxu0
        %v3859 = vadd.f32 0.0, %v3858
        %v3860 = vpop.f32.mrb[0].mxu0
        %v3861 = vpop.f32.mrb[0].mxu0
        %v3862 = vadd.f32 0.0, %v3861
        %v3863 = vpop.f32.mrb[0].mxu0
        %3864 = vmatprep.mubr.bf16.mxu0 0
        %3865 = vmatmul.mubr.bf16.gmra.mrb[0].mxu0 %v3723
        %v3866 = vpop.f32.mrb[0].mxu0
        %v3867 = vadd.f32 0.0, %v3866
        %v3868 = vpop.f32.mrb[0].mxu0
        %v3869 = vpop.f32.mrb[0].mxu0
        %v3870 = vadd.f32 0.0, %v3869
        %v3871 = vpop.f32.mrb[0].mxu0
        %3872 = vmatprep.mubr.bf16.mxu0 0
        %3873 = vmatmul.mubr.bf16.gmra.mrb[0].mxu0 %v3724
        %v3874 = vpop.f32.mrb[0].mxu0
        %v3875 = vadd.f32 0.0, %v3874
        %v3876 = vpop.f32.mrb[0].mxu0
        %v3877 = vpop.f32.mrb[0].mxu0
        %v3878 = vadd.f32 0.0, %v3877
        %v3879 = vpop.f32.mrb[0].mxu0
        %3880 = vmatprep.mubr.bf16.mxu0 0
        %3881 = vmatmul.mubr.bf16.gmra.mrb[0].mxu0 %v3725
        %v3882 = vpop.f32.mrb[0].mxu0
        %v3883 = vadd.f32 0.0, %v3882
        %v3884 = vpop.f32.mrb[0].mxu0
        %v3885 = vpop.f32.mrb[0].mxu0
        %v3886 = vadd.f32 0.0, %v3885
        %v3887 = vpop.f32.mrb[0].mxu0
        %3888 = vmatprep.mubr.bf16.mxu0 0
        %3889 = vmatmul.mubr.bf16.gmra.mrb[0].mxu0 %v3726
        %v3890 = vpop.f32.mrb[0].mxu0
        %v3891 = vadd.f32 0.0, %v3890
        %v3892 = vpop.f32.mrb[0].mxu0
        %v3893 = vpop.f32.mrb[0].mxu0
        %v3894 = vadd.f32 0.0, %v3893
        %v3895 = vpop.f32.mrb[0].mxu0
        %3896 = vmatprep.mubr.bf16.mxu0 0
        %3897 = vmatmul.mubr.bf16.gmra.mrb[0].mxu0 %v3727
        %v3898 = vpop.f32.mrb[0].mxu0
        %v3899 = vadd.f32 0.0, %v3898
        %v3900 = vpop.f32.mrb[0].mxu0
        %v3901 = vpop.f32.mrb[0].mxu0
        %v3902 = vadd.f32 0.0, %v3901
        %v3903 = vpop.f32.mrb[0].mxu0
        %3904 = vmatprep.mubr.bf16.mxu0 0
        %3905 = vmatmul.mubr.bf16.gmra.mrb[0].mxu0 %v3728
        %v3906 = vpop.f32.mrb[0].mxu0
        %v3907 = vadd.f32 0.0, %v3906
        %v3908 = vpop.f32.mrb[0].mxu0
        %v3909 = vpop.f32.mrb[0].mxu0
        %v3910 = vadd.f32 0.0, %v3909
        %v3911 = vpop.f32.mrb[0].mxu0
        %3912 = vmatprep.mubr.bf16.mxu0 0
        %3913 = vmatmul.mubr.bf16.gmra.mrb[0].mxu0 %v3729
        %v3914 = vpop.f32.mrb[0].mxu0
        %v3915 = vadd.f32 0.0, %v3914
        %v3916 = vpop.f32.mrb[0].mxu0
        %v3917 = vpop.f32.mrb[0].mxu0
        %v3918 = vadd.f32 0.0, %v3917
        %v3919 = vpop.f32.mrb[0].mxu0
        %3920 = vmatprep.mubr.bf16.mxu0 0
        %3921 = vmatmul.mubr.bf16.gmra.mrb[0].mxu0 %v3730
        %v3922 = vpop.f32.mrb[0].mxu0
        %v3923 = vadd.f32 0.0, %v3922
        %v3924 = vpop.f32.mrb[0].mxu0
        %v3925 = vpop.f32.mrb[0].mxu0
        %v3926 = vadd.f32 0.0, %v3925
        %v3927 = vpop.f32.mrb[0].mxu0
        %3928 = vmatprep.mubr.bf16.mxu0 0
        %3929 = vmatmul.mubr.bf16.gmra.mrb[0].mxu0 %v3731
        %v3930 = vpop.f32.mrb[0].mxu0
        %v3931 = vadd.f32 0.0, %v3930
        %v3932 = vpop.f32.mrb[0].mxu0
        %v3933 = vpop.f32.mrb[0].mxu0
        %v3934 = vadd.f32 0.0, %v3933
        %v3935 = vpop.f32.mrb[0].mxu0
        %3936 = vmatprep.mubr.bf16.mxu0 0
        %3937 = vmatmul.mubr.bf16.gmra.mrb[0].mxu0 %v3732
        %v3938 = vpop.f32.mrb[0].mxu0
        %v3939 = vadd.f32 0.0, %v3938
        %v3940 = vpop.f32.mrb[0].mxu0
        %v3941 = vpop.f32.mrb[0].mxu0
        %v3942 = vadd.f32 0.0, %v3941
        %v3943 = vpop.f32.mrb[0].mxu0
        %3944 = vmatprep.mubr.bf16.mxu0 0
        %3945 = vmatmul.mubr.bf16.gmra.mrb[0].mxu0 %v3733
        %v3946 = vpop.f32.mrb[0].mxu0
        %v3947 = vadd.f32 0.0, %v3946
        %v3948 = vpop.f32.mrb[0].mxu0
        %v3949 = vpop.f32.mrb[0].mxu0
        %v3950 = vadd.f32 0.0, %v3949
        %v3951 = vpop.f32.mrb[0].mxu0
        %3952 = vmatprep.mubr.bf16.mxu0 0
        %3953 = vmatmul.mubr.bf16.gmra.mrb[0].mxu0 %v3734
        %v3954 = vpop.f32.mrb[0].mxu0
        %v3955 = vadd.f32 0.0, %v3954
        %v3956 = vpop.f32.mrb[0].mxu0
        %v3957 = vpop.f32.mrb[0].mxu0
        %v3958 = vadd.f32 0.0, %v3957
        %v3959 = vpop.f32.mrb[0].mxu0
        %3960 = vdwg.mxu0
        %v3961 = vadd.f32 %v3561, %v3835
        %v3962 = vadd.f32 %v3564, %v3838
        %v3963 = vadd.f32 %v3569, %v3843
        %v3964 = vadd.f32 %v3572, %v3846
        %v3965 = vadd.f32 %v3577, %v3851
        %v3966 = vadd.f32 %v3580, %v3854
        %v3967 = vadd.f32 %v3585, %v3859
        %v3968 = vadd.f32 %v3588, %v3862
        %v3969 = vadd.f32 %v3593, %v3867
        %v3970 = vadd.f32 %v3596, %v3870
        %v3971 = vadd.f32 %v3601, %v3875
        %v3972 = vadd.f32 %v3604, %v3878
        %v3973 = vadd.f32 %v3609, %v3883
        %v3974 = vadd.f32 %v3612, %v3886
        %v3975 = vadd.f32 %v3617, %v3891
        %v3976 = vadd.f32 %v3620, %v3894
        %v3977 = vadd.f32 %v3625, %v3899
        %v3978 = vadd.f32 %v3628, %v3902
        %v3979 = vadd.f32 %v3633, %v3907
        %v3980 = vadd.f32 %v3636, %v3910
        %v3981 = vadd.f32 %v3641, %v3915
        %v3982 = vadd.f32 %v3644, %v3918
        %v3983 = vadd.f32 %v3649, %v3923
        %v3984 = vadd.f32 %v3652, %v3926
        %v3985 = vadd.f32 %v3657, %v3931
        %v3986 = vadd.f32 %v3660, %v3934
        %v3987 = vadd.f32 %v3665, %v3939
        %v3988 = vadd.f32 %v3668, %v3942
        %v3989 = vadd.f32 %v3673, %v3947
        %v3990 = vadd.f32 %v3676, %v3950
        %v3991 = vadd.f32 %v3681, %v3955
        %v3992 = vadd.f32 %v3684, %v3958
        %v3993 = vld [vmem:[%s3107] sm:$0xff]
        %v3994 = vld [vmem:[%s3107 + $0x8] sm:$0xff]
        %v3995 = vld [vmem:[%s3107 + $0x18] sm:$0xff]
        %v3996 = vld [vmem:[%s3107 + $0x20] sm:$0xff]
        %v3997 = vld [vmem:[%s3107 + $0x30] sm:$0xff]
        %v3998 = vld [vmem:[%s3107 + $0x38] sm:$0xff]
        %v3999 = vld [vmem:[%s3107 + $0x48] sm:$0xff]
        %v4000 = vld [vmem:[%s3107 + $0x50] sm:$0xff]
        %v4001 = vld [vmem:[%s3107 + $0x60] sm:$0xff]
        %v4002 = vld [vmem:[%s3107 + $0x68] sm:$0xff]
        %v4003 = vld [vmem:[%s3107 + $0x78] sm:$0xff]
        %v4004 = vld [vmem:[%s3107 + $0x80] sm:$0xff]
        %v4005 = vld [vmem:[%s3107 + $0x90] sm:$0xff]
        %v4006 = vld [vmem:[%s3107 + $0x98] sm:$0xff]
        %v4007 = vld [vmem:[%s3107 + $0xa8] sm:$0xff]
        %v4008 = vld [vmem:[%s3107 + $0xb0] sm:$0xff]
        %v4009 = vld [vmem:[%s3107 + $0xc0] sm:$0xff]
        %v4010 = vld [vmem:[%s3107 + $0xc8] sm:$0xff]
        %v4011 = vld [vmem:[%s3107 + $0xd8] sm:$0xff]
        %v4012 = vld [vmem:[%s3107 + $0xe0] sm:$0xff]
        %v4013 = vld [vmem:[%s3107 + $0xf0] sm:$0xff]
        %v4014 = vld [vmem:[%s3107 + $0xf8] sm:$0xff]
        %v4015 = vld [vmem:[%s3107 + $0x108] sm:$0xff]
        %v4016 = vld [vmem:[%s3107 + $0x110] sm:$0xff]
        %v4017 = vld [vmem:[%s3107 + $0x120] sm:$0xff]
        %v4018 = vld [vmem:[%s3107 + $0x128] sm:$0xff]
        %v4019 = vld [vmem:[%s3107 + $0x138] sm:$0xff]
        %v4020 = vld [vmem:[%s3107 + $0x140] sm:$0xff]
        %v4021 = vld [vmem:[%s3107 + $0x150] sm:$0xff]
        %v4022 = vld [vmem:[%s3107 + $0x158] sm:$0xff]
        %v4023 = vld [vmem:[%s3107 + $0x168] sm:$0xff]
        %v4024 = vld [vmem:[%s3107 + $0x170] sm:$0xff]
        %v4025 = vpack.c.bf16 %v3994, %v3993
        %v4026 = vpack.c.bf16 %v3996, %v3995
        %v4027 = vpack.c.bf16 %v3998, %v3997
        %v4028 = vpack.c.bf16 %v4000, %v3999
        %v4029 = vpack.c.bf16 %v4002, %v4001
        %v4030 = vpack.c.bf16 %v4004, %v4003
        %v4031 = vpack.c.bf16 %v4006, %v4005
        %v4032 = vpack.c.bf16 %v4008, %v4007
        %v4033 = vpack.c.bf16 %v4010, %v4009
        %v4034 = vpack.c.bf16 %v4012, %v4011
        %v4035 = vpack.c.bf16 %v4014, %v4013
        %v4036 = vpack.c.bf16 %v4016, %v4015
        %v4037 = vpack.c.bf16 %v4018, %v4017
        %v4038 = vpack.c.bf16 %v4020, %v4019
        %v4039 = vpack.c.bf16 %v4022, %v4021
        %v4040 = vpack.c.bf16 %v4024, %v4023
        %s4041 = scalar_lea.vmem %s3, 192
        %v4042 = vld [vmem:[%s4041] sm:$0xf]
        %v4043 = vld [vmem:[%s4041 + $0x4] sm:$0xf]
        %v4044 = vld [vmem:[%s4041 + $0x8] sm:$0xf]
        %v4045 = vld [vmem:[%s4041 + $0xc] sm:$0xf]
        %v4046 = vld [vmem:[%s4041 + $0x10] sm:$0xf]
        %v4047 = vld [vmem:[%s4041 + $0x14] sm:$0xf]
        %v4048 = vld [vmem:[%s4041 + $0x18] sm:$0xf]
        %v4049 = vld [vmem:[%s4041 + $0x1c] sm:$0xf]
        %v4050 = vld [vmem:[%s4041 + $0x20] sm:$0xf]
        %v4051 = vld [vmem:[%s4041 + $0x24] sm:$0xf]
        %v4052 = vld [vmem:[%s4041 + $0x28] sm:$0xf]
        %v4053 = vld [vmem:[%s4041 + $0x2c] sm:$0xf]
        %v4054 = vld [vmem:[%s4041 + $0x30] sm:$0xf]
        %v4055 = vld [vmem:[%s4041 + $0x34] sm:$0xf]
        %v4056 = vld [vmem:[%s4041 + $0x38] sm:$0xf]
        %v4057 = vld [vmem:[%s4041 + $0x3c] sm:$0xf]
        %v4074 = vunpack.c.l.b16 %v4042
        %v4075 = vunpack.c.l.b16 %v4043
        %v4076 = vunpack.c.l.b16 %v4044
        %v4077 = vunpack.c.l.b16 %v4045
        %v4078 = vunpack.c.l.b16 %v4046
        %v4079 = vunpack.c.l.b16 %v4047
        %v4080 = vunpack.c.l.b16 %v4048
        %v4081 = vunpack.c.l.b16 %v4049
        %v4082 = vunpack.c.l.b16 %v4050
        %v4083 = vunpack.c.l.b16 %v4051
        %v4084 = vunpack.c.l.b16 %v4052
        %v4085 = vunpack.c.l.b16 %v4053
        %v4086 = vunpack.c.l.b16 %v4054
        %v4087 = vunpack.c.l.b16 %v4055
        %v4088 = vunpack.c.l.b16 %v4056
        %v4089 = vunpack.c.l.b16 %v4057
        %v4090 = vpack.c.b16 %v4075, %v4074
        %v4091 = vpack.c.b16 %v4077, %v4076
        %v4092 = vpack.c.b16 %v4079, %v4078
        %v4093 = vpack.c.b16 %v4081, %v4080
        %v4094 = vpack.c.b16 %v4083, %v4082
        %v4095 = vpack.c.b16 %v4085, %v4084
        %v4096 = vpack.c.b16 %v4087, %v4086
        %v4097 = vpack.c.b16 %v4089, %v4088
        %4106 = vmatprep.subr.bf16.mxu0 0
        %4107 = vmatpush1.bf16.msra.mxu0 %v4090
        %4108 = vmatprep.subr.bf16.mxu0 0
        %4109 = vmatpush1.bf16.msra.mxu0 %v4091
        %4110 = vmatprep.subr.bf16.mxu0 0
        %4111 = vmatpush1.bf16.msra.mxu0 %v4092
        %4112 = vmatprep.subr.bf16.mxu0 0
        %4113 = vmatpush1.bf16.msra.mxu0 %v4093
        %4114 = vmatprep.subr.bf16.mxu0 0
        %4115 = vmatpush1.bf16.msra.mxu0 %v4094
        %4116 = vmatprep.subr.bf16.mxu0 0
        %4117 = vmatpush1.bf16.msra.mxu0 %v4095
        %4118 = vmatprep.subr.bf16.mxu0 0
        %4119 = vmatpush1.bf16.msra.mxu0 %v4096
        %4120 = vmatprep.subr.bf16.mxu0 0
        %4121 = vmatpush1.bf16.msra.mxu0 %v4097
        %4122 = vmatprep.subr.bf16.mxu0 0
        %4123 = vmatpush1.bf16.msra.mxu0 0
        %4124 = vmatprep.subr.bf16.mxu0 0
        %4125 = vmatpush1.bf16.msra.mxu0 0
        %4126 = vmatprep.subr.bf16.mxu0 0
        %4127 = vmatpush1.bf16.msra.mxu0 0
        %4128 = vmatprep.subr.bf16.mxu0 0
        %4129 = vmatpush1.bf16.msra.mxu0 0
        %4130 = vmatprep.subr.bf16.mxu0 0
        %4131 = vmatpush1.bf16.msra.mxu0 0
        %4132 = vmatprep.subr.bf16.mxu0 0
        %4133 = vmatpush1.bf16.msra.mxu0 0
        %4134 = vmatprep.subr.bf16.mxu0 0
        %4135 = vmatpush1.bf16.msra.mxu0 0
        %4136 = vmatprep.subr.bf16.mxu0 0
        %4137 = vmatpush1.bf16.msra.mxu0 0
        %4138 = vmatprep.mubr.bf16.mxu0 0
        %4139 = vmatmul.mubr.bf16.gmra.mrb[0].mxu0 %v4025
        %v4140 = vpop.f32.mrb[0].mxu0
        %v4141 = vadd.f32 0.0, %v4140
        %v4142 = vpop.f32.mrb[0].mxu0
        %v4143 = vpop.f32.mrb[0].mxu0
        %v4144 = vadd.f32 0.0, %v4143
        %v4145 = vpop.f32.mrb[0].mxu0
        %4146 = vmatprep.mubr.bf16.mxu0 0
        %4147 = vmatmul.mubr.bf16.gmra.mrb[0].mxu0 %v4026
        %v4148 = vpop.f32.mrb[0].mxu0
        %v4149 = vadd.f32 0.0, %v4148
        %v4150 = vpop.f32.mrb[0].mxu0
        %v4151 = vpop.f32.mrb[0].mxu0
        %v4152 = vadd.f32 0.0, %v4151
        %v4153 = vpop.f32.mrb[0].mxu0
        %4154 = vmatprep.mubr.bf16.mxu0 0
        %4155 = vmatmul.mubr.bf16.gmra.mrb[0].mxu0 %v4027
        %v4156 = vpop.f32.mrb[0].mxu0
        %v4157 = vadd.f32 0.0, %v4156
        %v4158 = vpop.f32.mrb[0].mxu0
        %v4159 = vpop.f32.mrb[0].mxu0
        %v4160 = vadd.f32 0.0, %v4159
        %v4161 = vpop.f32.mrb[0].mxu0
        %4162 = vmatprep.mubr.bf16.mxu0 0
        %4163 = vmatmul.mubr.bf16.gmra.mrb[0].mxu0 %v4028
        %v4164 = vpop.f32.mrb[0].mxu0
        %v4165 = vadd.f32 0.0, %v4164
        %v4166 = vpop.f32.mrb[0].mxu0
        %v4167 = vpop.f32.mrb[0].mxu0
        %v4168 = vadd.f32 0.0, %v4167
        %v4169 = vpop.f32.mrb[0].mxu0
        %4170 = vmatprep.mubr.bf16.mxu0 0
        %4171 = vmatmul.mubr.bf16.gmra.mrb[0].mxu0 %v4029
        %v4172 = vpop.f32.mrb[0].mxu0
        %v4173 = vadd.f32 0.0, %v4172
        %v4174 = vpop.f32.mrb[0].mxu0
        %v4175 = vpop.f32.mrb[0].mxu0
        %v4176 = vadd.f32 0.0, %v4175
        %v4177 = vpop.f32.mrb[0].mxu0
        %4178 = vmatprep.mubr.bf16.mxu0 0
        %4179 = vmatmul.mubr.bf16.gmra.mrb[0].mxu0 %v4030
        %v4180 = vpop.f32.mrb[0].mxu0
        %v4181 = vadd.f32 0.0, %v4180
        %v4182 = vpop.f32.mrb[0].mxu0
        %v4183 = vpop.f32.mrb[0].mxu0
        %v4184 = vadd.f32 0.0, %v4183
        %v4185 = vpop.f32.mrb[0].mxu0
        %4186 = vmatprep.mubr.bf16.mxu0 0
        %4187 = vmatmul.mubr.bf16.gmra.mrb[0].mxu0 %v4031
        %v4188 = vpop.f32.mrb[0].mxu0
        %v4189 = vadd.f32 0.0, %v4188
        %v4190 = vpop.f32.mrb[0].mxu0
        %v4191 = vpop.f32.mrb[0].mxu0
        %v4192 = vadd.f32 0.0, %v4191
        %v4193 = vpop.f32.mrb[0].mxu0
        %4194 = vmatprep.mubr.bf16.mxu0 0
        %4195 = vmatmul.mubr.bf16.gmra.mrb[0].mxu0 %v4032
        %v4196 = vpop.f32.mrb[0].mxu0
        %v4197 = vadd.f32 0.0, %v4196
        %v4198 = vpop.f32.mrb[0].mxu0
        %v4199 = vpop.f32.mrb[0].mxu0
        %v4200 = vadd.f32 0.0, %v4199
        %v4201 = vpop.f32.mrb[0].mxu0
        %4202 = vmatprep.mubr.bf16.mxu0 0
        %4203 = vmatmul.mubr.bf16.gmra.mrb[0].mxu0 %v4033
        %v4204 = vpop.f32.mrb[0].mxu0
        %v4205 = vadd.f32 0.0, %v4204
        %v4206 = vpop.f32.mrb[0].mxu0
        %v4207 = vpop.f32.mrb[0].mxu0
        %v4208 = vadd.f32 0.0, %v4207
        %v4209 = vpop.f32.mrb[0].mxu0
        %4210 = vmatprep.mubr.bf16.mxu0 0
        %4211 = vmatmul.mubr.bf16.gmra.mrb[0].mxu0 %v4034
        %v4212 = vpop.f32.mrb[0].mxu0
        %v4213 = vadd.f32 0.0, %v4212
        %v4214 = vpop.f32.mrb[0].mxu0
        %v4215 = vpop.f32.mrb[0].mxu0
        %v4216 = vadd.f32 0.0, %v4215
        %v4217 = vpop.f32.mrb[0].mxu0
        %4218 = vmatprep.mubr.bf16.mxu0 0
        %4219 = vmatmul.mubr.bf16.gmra.mrb[0].mxu0 %v4035
        %v4220 = vpop.f32.mrb[0].mxu0
        %v4221 = vadd.f32 0.0, %v4220
        %v4222 = vpop.f32.mrb[0].mxu0
        %v4223 = vpop.f32.mrb[0].mxu0
        %v4224 = vadd.f32 0.0, %v4223
        %v4225 = vpop.f32.mrb[0].mxu0
        %4226 = vmatprep.mubr.bf16.mxu0 0
        %4227 = vmatmul.mubr.bf16.gmra.mrb[0].mxu0 %v4036
        %v4228 = vpop.f32.mrb[0].mxu0
        %v4229 = vadd.f32 0.0, %v4228
        %v4230 = vpop.f32.mrb[0].mxu0
        %v4231 = vpop.f32.mrb[0].mxu0
        %v4232 = vadd.f32 0.0, %v4231
        %v4233 = vpop.f32.mrb[0].mxu0
        %4234 = vmatprep.mubr.bf16.mxu0 0
        %4235 = vmatmul.mubr.bf16.gmra.mrb[0].mxu0 %v4037
        %v4236 = vpop.f32.mrb[0].mxu0
        %v4237 = vadd.f32 0.0, %v4236
        %v4238 = vpop.f32.mrb[0].mxu0
        %v4239 = vpop.f32.mrb[0].mxu0
        %v4240 = vadd.f32 0.0, %v4239
        %v4241 = vpop.f32.mrb[0].mxu0
        %4242 = vmatprep.mubr.bf16.mxu0 0
        %4243 = vmatmul.mubr.bf16.gmra.mrb[0].mxu0 %v4038
        %v4244 = vpop.f32.mrb[0].mxu0
        %v4245 = vadd.f32 0.0, %v4244
        %v4246 = vpop.f32.mrb[0].mxu0
        %v4247 = vpop.f32.mrb[0].mxu0
        %v4248 = vadd.f32 0.0, %v4247
        %v4249 = vpop.f32.mrb[0].mxu0
        %4250 = vmatprep.mubr.bf16.mxu0 0
        %4251 = vmatmul.mubr.bf16.gmra.mrb[0].mxu0 %v4039
        %v4252 = vpop.f32.mrb[0].mxu0
        %v4253 = vadd.f32 0.0, %v4252
        %v4254 = vpop.f32.mrb[0].mxu0
        %v4255 = vpop.f32.mrb[0].mxu0
        %v4256 = vadd.f32 0.0, %v4255
        %v4257 = vpop.f32.mrb[0].mxu0
        %4258 = vmatprep.mubr.bf16.mxu0 0
        %4259 = vmatmul.mubr.bf16.gmra.mrb[0].mxu0 %v4040
        %v4260 = vpop.f32.mrb[0].mxu0
        %v4261 = vadd.f32 0.0, %v4260
        %v4262 = vpop.f32.mrb[0].mxu0
        %v4263 = vpop.f32.mrb[0].mxu0
        %v4264 = vadd.f32 0.0, %v4263
        %v4265 = vpop.f32.mrb[0].mxu0
        %4266 = vdwg.mxu0
        %v4267 = vadd.f32 %v3961, %v4141
        %v4268 = vadd.f32 %v3962, %v4144
        %v4269 = vadd.f32 %v3963, %v4149
        %v4270 = vadd.f32 %v3964, %v4152
        %v4271 = vadd.f32 %v3965, %v4157
        %v4272 = vadd.f32 %v3966, %v4160
        %v4273 = vadd.f32 %v3967, %v4165
        %v4274 = vadd.f32 %v3968, %v4168
        %v4275 = vadd.f32 %v3969, %v4173
        %v4276 = vadd.f32 %v3970, %v4176
        %v4277 = vadd.f32 %v3971, %v4181
        %v4278 = vadd.f32 %v3972, %v4184
        %v4279 = vadd.f32 %v3973, %v4189
        %v4280 = vadd.f32 %v3974, %v4192
        %v4281 = vadd.f32 %v3975, %v4197
        %v4282 = vadd.f32 %v3976, %v4200
        %v4283 = vadd.f32 %v3977, %v4205
        %v4284 = vadd.f32 %v3978, %v4208
        %v4285 = vadd.f32 %v3979, %v4213
        %v4286 = vadd.f32 %v3980, %v4216
        %v4287 = vadd.f32 %v3981, %v4221
        %v4288 = vadd.f32 %v3982, %v4224
        %v4289 = vadd.f32 %v3983, %v4229
        %v4290 = vadd.f32 %v3984, %v4232
        %v4291 = vadd.f32 %v3985, %v4237
        %v4292 = vadd.f32 %v3986, %v4240
        %v4293 = vadd.f32 %v3987, %v4245
        %v4294 = vadd.f32 %v3988, %v4248
        %v4295 = vadd.f32 %v3989, %v4253
        %v4296 = vadd.f32 %v3990, %v4256
        %v4297 = vadd.f32 %v3991, %v4261
        %v4298 = vadd.f32 %v3992, %v4264
        %v4299 = vld [vmem:[%s3107 + $0x1] sm:$0xff]
        %v4300 = vld [vmem:[%s3107 + $0x9] sm:$0xff]
        %v4301 = vld [vmem:[%s3107 + $0x19] sm:$0xff]
        %v4302 = vld [vmem:[%s3107 + $0x21] sm:$0xff]
        %v4303 = vld [vmem:[%s3107 + $0x31] sm:$0xff]
        %v4304 = vld [vmem:[%s3107 + $0x39] sm:$0xff]
        %v4305 = vld [vmem:[%s3107 + $0x49] sm:$0xff]
        %v4306 = vld [vmem:[%s3107 + $0x51] sm:$0xff]
        %v4307 = vld [vmem:[%s3107 + $0x61] sm:$0xff]
        %v4308 = vld [vmem:[%s3107 + $0x69] sm:$0xff]
        %v4309 = vld [vmem:[%s3107 + $0x79] sm:$0xff]
        %v4310 = vld [vmem:[%s3107 + $0x81] sm:$0xff]
        %v4311 = vld [vmem:[%s3107 + $0x91] sm:$0xff]
        %v4312 = vld [vmem:[%s3107 + $0x99] sm:$0xff]
        %v4313 = vld [vmem:[%s3107 + $0xa9] sm:$0xff]
        %v4314 = vld [vmem:[%s3107 + $0xb1] sm:$0xff]
        %v4315 = vld [vmem:[%s3107 + $0xc1] sm:$0xff]
        %v4316 = vld [vmem:[%s3107 + $0xc9] sm:$0xff]
        %v4317 = vld [vmem:[%s3107 + $0xd9] sm:$0xff]
        %v4318 = vld [vmem:[%s3107 + $0xe1] sm:$0xff]
        %v4319 = vld [vmem:[%s3107 + $0xf1] sm:$0xff]
        %v4320 = vld [vmem:[%s3107 + $0xf9] sm:$0xff]
        %v4321 = vld [vmem:[%s3107 + $0x109] sm:$0xff]
        %v4322 = vld [vmem:[%s3107 + $0x111] sm:$0xff]
        %v4323 = vld [vmem:[%s3107 + $0x121] sm:$0xff]
        %v4324 = vld [vmem:[%s3107 + $0x129] sm:$0xff]
        %v4325 = vld [vmem:[%s3107 + $0x139] sm:$0xff]
        %v4326 = vld [vmem:[%s3107 + $0x141] sm:$0xff]
        %v4327 = vld [vmem:[%s3107 + $0x151] sm:$0xff]
        %v4328 = vld [vmem:[%s3107 + $0x159] sm:$0xff]
        %v4329 = vld [vmem:[%s3107 + $0x169] sm:$0xff]
        %v4330 = vld [vmem:[%s3107 + $0x171] sm:$0xff]
        %v4331 = vpack.c.bf16 %v4300, %v4299
        %v4332 = vpack.c.bf16 %v4302, %v4301
        %v4333 = vpack.c.bf16 %v4304, %v4303
        %v4334 = vpack.c.bf16 %v4306, %v4305
        %v4335 = vpack.c.bf16 %v4308, %v4307
        %v4336 = vpack.c.bf16 %v4310, %v4309
        %v4337 = vpack.c.bf16 %v4312, %v4311
        %v4338 = vpack.c.bf16 %v4314, %v4313
        %v4339 = vpack.c.bf16 %v4316, %v4315
        %v4340 = vpack.c.bf16 %v4318, %v4317
        %v4341 = vpack.c.bf16 %v4320, %v4319
        %v4342 = vpack.c.bf16 %v4322, %v4321
        %v4343 = vpack.c.bf16 %v4324, %v4323
        %v4344 = vpack.c.bf16 %v4326, %v4325
        %v4345 = vpack.c.bf16 %v4328, %v4327
        %v4346 = vpack.c.bf16 %v4330, %v4329
        %s4347 = scalar_lea.vmem %s3, 256
        %v4348 = vld [vmem:[%s4347] sm:$0xf]
        %v4349 = vld [vmem:[%s4347 + $0x4] sm:$0xf]
        %v4350 = vld [vmem:[%s4347 + $0x8] sm:$0xf]
        %v4351 = vld [vmem:[%s4347 + $0xc] sm:$0xf]
        %v4352 = vld [vmem:[%s4347 + $0x10] sm:$0xf]
        %v4353 = vld [vmem:[%s4347 + $0x14] sm:$0xf]
        %v4354 = vld [vmem:[%s4347 + $0x18] sm:$0xf]
        %v4355 = vld [vmem:[%s4347 + $0x1c] sm:$0xf]
        %v4356 = vld [vmem:[%s4347 + $0x20] sm:$0xf]
        %v4357 = vld [vmem:[%s4347 + $0x24] sm:$0xf]
        %v4358 = vld [vmem:[%s4347 + $0x28] sm:$0xf]
        %v4359 = vld [vmem:[%s4347 + $0x2c] sm:$0xf]
        %v4360 = vld [vmem:[%s4347 + $0x30] sm:$0xf]
        %v4361 = vld [vmem:[%s4347 + $0x34] sm:$0xf]
        %v4362 = vld [vmem:[%s4347 + $0x38] sm:$0xf]
        %v4363 = vld [vmem:[%s4347 + $0x3c] sm:$0xf]
        %v4380 = vunpack.c.l.b16 %v4348
        %v4381 = vunpack.c.l.b16 %v4349
        %v4382 = vunpack.c.l.b16 %v4350
        %v4383 = vunpack.c.l.b16 %v4351
        %v4384 = vunpack.c.l.b16 %v4352
        %v4385 = vunpack.c.l.b16 %v4353
        %v4386 = vunpack.c.l.b16 %v4354
        %v4387 = vunpack.c.l.b16 %v4355
        %v4388 = vunpack.c.l.b16 %v4356
        %v4389 = vunpack.c.l.b16 %v4357
        %v4390 = vunpack.c.l.b16 %v4358
        %v4391 = vunpack.c.l.b16 %v4359
        %v4392 = vunpack.c.l.b16 %v4360
        %v4393 = vunpack.c.l.b16 %v4361
        %v4394 = vunpack.c.l.b16 %v4362
        %v4395 = vunpack.c.l.b16 %v4363
        %v4396 = vpack.c.b16 %v4381, %v4380
        %v4397 = vpack.c.b16 %v4383, %v4382
        %v4398 = vpack.c.b16 %v4385, %v4384
        %v4399 = vpack.c.b16 %v4387, %v4386
        %v4400 = vpack.c.b16 %v4389, %v4388
        %v4401 = vpack.c.b16 %v4391, %v4390
        %v4402 = vpack.c.b16 %v4393, %v4392
        %v4403 = vpack.c.b16 %v4395, %v4394
        %4412 = vmatprep.subr.bf16.mxu0 0
        %4413 = vmatpush1.bf16.msra.mxu0 %v4396
        %4414 = vmatprep.subr.bf16.mxu0 0
        %4415 = vmatpush1.bf16.msra.mxu0 %v4397
        %4416 = vmatprep.subr.bf16.mxu0 0
        %4417 = vmatpush1.bf16.msra.mxu0 %v4398
        %4418 = vmatprep.subr.bf16.mxu0 0
        %4419 = vmatpush1.bf16.msra.mxu0 %v4399
        %4420 = vmatprep.subr.bf16.mxu0 0
        %4421 = vmatpush1.bf16.msra.mxu0 %v4400
        %4422 = vmatprep.subr.bf16.mxu0 0
        %4423 = vmatpush1.bf16.msra.mxu0 %v4401
        %4424 = vmatprep.subr.bf16.mxu0 0
        %4425 = vmatpush1.bf16.msra.mxu0 %v4402
        %4426 = vmatprep.subr.bf16.mxu0 0
        %4427 = vmatpush1.bf16.msra.mxu0 %v4403
        %4428 = vmatprep.subr.bf16.mxu0 0
        %4429 = vmatpush1.bf16.msra.mxu0 0
        %4430 = vmatprep.subr.bf16.mxu0 0
        %4431 = vmatpush1.bf16.msra.mxu0 0
        %4432 = vmatprep.subr.bf16.mxu0 0
        %4433 = vmatpush1.bf16.msra.mxu0 0
        %4434 = vmatprep.subr.bf16.mxu0 0
        %4435 = vmatpush1.bf16.msra.mxu0 0
        %4436 = vmatprep.subr.bf16.mxu0 0
        %4437 = vmatpush1.bf16.msra.mxu0 0
        %4438 = vmatprep.subr.bf16.mxu0 0
        %4439 = vmatpush1.bf16.msra.mxu0 0
        %4440 = vmatprep.subr.bf16.mxu0 0
        %4441 = vmatpush1.bf16.msra.mxu0 0
        %4442 = vmatprep.subr.bf16.mxu0 0
        %4443 = vmatpush1.bf16.msra.mxu0 0
        %4444 = vmatprep.mubr.bf16.mxu0 0
        %4445 = vmatmul.mubr.bf16.gmra.mrb[0].mxu0 %v4331
        %v4446 = vpop.f32.mrb[0].mxu0
        %v4447 = vadd.f32 0.0, %v4446
        %v4448 = vpop.f32.mrb[0].mxu0
        %v4449 = vpop.f32.mrb[0].mxu0
        %v4450 = vadd.f32 0.0, %v4449
        %v4451 = vpop.f32.mrb[0].mxu0
        %4452 = vmatprep.mubr.bf16.mxu0 0
        %4453 = vmatmul.mubr.bf16.gmra.mrb[0].mxu0 %v4332
        %v4454 = vpop.f32.mrb[0].mxu0
        %v4455 = vadd.f32 0.0, %v4454
        %v4456 = vpop.f32.mrb[0].mxu0
        %v4457 = vpop.f32.mrb[0].mxu0
        %v4458 = vadd.f32 0.0, %v4457
        %v4459 = vpop.f32.mrb[0].mxu0
        %4460 = vmatprep.mubr.bf16.mxu0 0
        %4461 = vmatmul.mubr.bf16.gmra.mrb[0].mxu0 %v4333
        %v4462 = vpop.f32.mrb[0].mxu0
        %v4463 = vadd.f32 0.0, %v4462
        %v4464 = vpop.f32.mrb[0].mxu0
        %v4465 = vpop.f32.mrb[0].mxu0
        %v4466 = vadd.f32 0.0, %v4465
        %v4467 = vpop.f32.mrb[0].mxu0
        %4468 = vmatprep.mubr.bf16.mxu0 0
        %4469 = vmatmul.mubr.bf16.gmra.mrb[0].mxu0 %v4334
        %v4470 = vpop.f32.mrb[0].mxu0
        %v4471 = vadd.f32 0.0, %v4470
        %v4472 = vpop.f32.mrb[0].mxu0
        %v4473 = vpop.f32.mrb[0].mxu0
        %v4474 = vadd.f32 0.0, %v4473
        %v4475 = vpop.f32.mrb[0].mxu0
        %4476 = vmatprep.mubr.bf16.mxu0 0
        %4477 = vmatmul.mubr.bf16.gmra.mrb[0].mxu0 %v4335
        %v4478 = vpop.f32.mrb[0].mxu0
        %v4479 = vadd.f32 0.0, %v4478
        %v4480 = vpop.f32.mrb[0].mxu0
        %v4481 = vpop.f32.mrb[0].mxu0
        %v4482 = vadd.f32 0.0, %v4481
        %v4483 = vpop.f32.mrb[0].mxu0
        %4484 = vmatprep.mubr.bf16.mxu0 0
        %4485 = vmatmul.mubr.bf16.gmra.mrb[0].mxu0 %v4336
        %v4486 = vpop.f32.mrb[0].mxu0
        %v4487 = vadd.f32 0.0, %v4486
        %v4488 = vpop.f32.mrb[0].mxu0
        %v4489 = vpop.f32.mrb[0].mxu0
        %v4490 = vadd.f32 0.0, %v4489
        %v4491 = vpop.f32.mrb[0].mxu0
        %4492 = vmatprep.mubr.bf16.mxu0 0
        %4493 = vmatmul.mubr.bf16.gmra.mrb[0].mxu0 %v4337
        %v4494 = vpop.f32.mrb[0].mxu0
        %v4495 = vadd.f32 0.0, %v4494
        %v4496 = vpop.f32.mrb[0].mxu0
        %v4497 = vpop.f32.mrb[0].mxu0
        %v4498 = vadd.f32 0.0, %v4497
        %v4499 = vpop.f32.mrb[0].mxu0
        %4500 = vmatprep.mubr.bf16.mxu0 0
        %4501 = vmatmul.mubr.bf16.gmra.mrb[0].mxu0 %v4338
        %v4502 = vpop.f32.mrb[0].mxu0
        %v4503 = vadd.f32 0.0, %v4502
        %v4504 = vpop.f32.mrb[0].mxu0
        %v4505 = vpop.f32.mrb[0].mxu0
        %v4506 = vadd.f32 0.0, %v4505
        %v4507 = vpop.f32.mrb[0].mxu0
        %4508 = vmatprep.mubr.bf16.mxu0 0
        %4509 = vmatmul.mubr.bf16.gmra.mrb[0].mxu0 %v4339
        %v4510 = vpop.f32.mrb[0].mxu0
        %v4511 = vadd.f32 0.0, %v4510
        %v4512 = vpop.f32.mrb[0].mxu0
        %v4513 = vpop.f32.mrb[0].mxu0
        %v4514 = vadd.f32 0.0, %v4513
        %v4515 = vpop.f32.mrb[0].mxu0
        %4516 = vmatprep.mubr.bf16.mxu0 0
        %4517 = vmatmul.mubr.bf16.gmra.mrb[0].mxu0 %v4340
        %v4518 = vpop.f32.mrb[0].mxu0
        %v4519 = vadd.f32 0.0, %v4518
        %v4520 = vpop.f32.mrb[0].mxu0
        %v4521 = vpop.f32.mrb[0].mxu0
        %v4522 = vadd.f32 0.0, %v4521
        %v4523 = vpop.f32.mrb[0].mxu0
        %4524 = vmatprep.mubr.bf16.mxu0 0
        %4525 = vmatmul.mubr.bf16.gmra.mrb[0].mxu0 %v4341
        %v4526 = vpop.f32.mrb[0].mxu0
        %v4527 = vadd.f32 0.0, %v4526
        %v4528 = vpop.f32.mrb[0].mxu0
        %v4529 = vpop.f32.mrb[0].mxu0
        %v4530 = vadd.f32 0.0, %v4529
        %v4531 = vpop.f32.mrb[0].mxu0
        %4532 = vmatprep.mubr.bf16.mxu0 0
        %4533 = vmatmul.mubr.bf16.gmra.mrb[0].mxu0 %v4342
        %v4534 = vpop.f32.mrb[0].mxu0
        %v4535 = vadd.f32 0.0, %v4534
        %v4536 = vpop.f32.mrb[0].mxu0
        %v4537 = vpop.f32.mrb[0].mxu0
        %v4538 = vadd.f32 0.0, %v4537
        %v4539 = vpop.f32.mrb[0].mxu0
        %4540 = vmatprep.mubr.bf16.mxu0 0
        %4541 = vmatmul.mubr.bf16.gmra.mrb[0].mxu0 %v4343
        %v4542 = vpop.f32.mrb[0].mxu0
        %v4543 = vadd.f32 0.0, %v4542
        %v4544 = vpop.f32.mrb[0].mxu0
        %v4545 = vpop.f32.mrb[0].mxu0
        %v4546 = vadd.f32 0.0, %v4545
        %v4547 = vpop.f32.mrb[0].mxu0
        %4548 = vmatprep.mubr.bf16.mxu0 0
        %4549 = vmatmul.mubr.bf16.gmra.mrb[0].mxu0 %v4344
        %v4550 = vpop.f32.mrb[0].mxu0
        %v4551 = vadd.f32 0.0, %v4550
        %v4552 = vpop.f32.mrb[0].mxu0
        %v4553 = vpop.f32.mrb[0].mxu0
        %v4554 = vadd.f32 0.0, %v4553
        %v4555 = vpop.f32.mrb[0].mxu0
        %4556 = vmatprep.mubr.bf16.mxu0 0
        %4557 = vmatmul.mubr.bf16.gmra.mrb[0].mxu0 %v4345
        %v4558 = vpop.f32.mrb[0].mxu0
        %v4559 = vadd.f32 0.0, %v4558
        %v4560 = vpop.f32.mrb[0].mxu0
        %v4561 = vpop.f32.mrb[0].mxu0
        %v4562 = vadd.f32 0.0, %v4561
        %v4563 = vpop.f32.mrb[0].mxu0
        %4564 = vmatprep.mubr.bf16.mxu0 0
        %4565 = vmatmul.mubr.bf16.gmra.mrb[0].mxu0 %v4346
        %v4566 = vpop.f32.mrb[0].mxu0
        %v4567 = vadd.f32 0.0, %v4566
        %v4568 = vpop.f32.mrb[0].mxu0
        %v4569 = vpop.f32.mrb[0].mxu0
        %v4570 = vadd.f32 0.0, %v4569
        %v4571 = vpop.f32.mrb[0].mxu0
        %4572 = vdwg.mxu0
        %v4573 = vadd.f32 %v4267, %v4447
        %v4574 = vadd.f32 %v4268, %v4450
        %v4575 = vadd.f32 %v4269, %v4455
        %v4576 = vadd.f32 %v4270, %v4458
        %v4577 = vadd.f32 %v4271, %v4463
        %v4578 = vadd.f32 %v4272, %v4466
        %v4579 = vadd.f32 %v4273, %v4471
        %v4580 = vadd.f32 %v4274, %v4474
        %v4581 = vadd.f32 %v4275, %v4479
        %v4582 = vadd.f32 %v4276, %v4482
        %v4583 = vadd.f32 %v4277, %v4487
        %v4584 = vadd.f32 %v4278, %v4490
        %v4585 = vadd.f32 %v4279, %v4495
        %v4586 = vadd.f32 %v4280, %v4498
        %v4587 = vadd.f32 %v4281, %v4503
        %v4588 = vadd.f32 %v4282, %v4506
        %v4589 = vadd.f32 %v4283, %v4511
        %v4590 = vadd.f32 %v4284, %v4514
        %v4591 = vadd.f32 %v4285, %v4519
        %v4592 = vadd.f32 %v4286, %v4522
        %v4593 = vadd.f32 %v4287, %v4527
        %v4594 = vadd.f32 %v4288, %v4530
        %v4595 = vadd.f32 %v4289, %v4535
        %v4596 = vadd.f32 %v4290, %v4538
        %v4597 = vadd.f32 %v4291, %v4543
        %v4598 = vadd.f32 %v4292, %v4546
        %v4599 = vadd.f32 %v4293, %v4551
        %v4600 = vadd.f32 %v4294, %v4554
        %v4601 = vadd.f32 %v4295, %v4559
        %v4602 = vadd.f32 %v4296, %v4562
        %v4603 = vadd.f32 %v4297, %v4567
        %v4604 = vadd.f32 %v4298, %v4570
        %v4605 = vld [vmem:[%s3107 + $0x2] sm:$0xff]
        %v4606 = vld [vmem:[%s3107 + $0xa] sm:$0xff]
        %v4607 = vld [vmem:[%s3107 + $0x1a] sm:$0xff]
        %v4608 = vld [vmem:[%s3107 + $0x22] sm:$0xff]
        %v4609 = vld [vmem:[%s3107 + $0x32] sm:$0xff]
        %v4610 = vld [vmem:[%s3107 + $0x3a] sm:$0xff]
        %v4611 = vld [vmem:[%s3107 + $0x4a] sm:$0xff]
        %v4612 = vld [vmem:[%s3107 + $0x52] sm:$0xff]
        %v4613 = vld [vmem:[%s3107 + $0x62] sm:$0xff]
        %v4614 = vld [vmem:[%s3107 + $0x6a] sm:$0xff]
        %v4615 = vld [vmem:[%s3107 + $0x7a] sm:$0xff]
        %v4616 = vld [vmem:[%s3107 + $0x82] sm:$0xff]
        %v4617 = vld [vmem:[%s3107 + $0x92] sm:$0xff]
        %v4618 = vld [vmem:[%s3107 + $0x9a] sm:$0xff]
        %v4619 = vld [vmem:[%s3107 + $0xaa] sm:$0xff]
        %v4620 = vld [vmem:[%s3107 + $0xb2] sm:$0xff]
        %v4621 = vld [vmem:[%s3107 + $0xc2] sm:$0xff]
        %v4622 = vld [vmem:[%s3107 + $0xca] sm:$0xff]
        %v4623 = vld [vmem:[%s3107 + $0xda] sm:$0xff]
        %v4624 = vld [vmem:[%s3107 + $0xe2] sm:$0xff]
        %v4625 = vld [vmem:[%s3107 + $0xf2] sm:$0xff]
        %v4626 = vld [vmem:[%s3107 + $0xfa] sm:$0xff]
        %v4627 = vld [vmem:[%s3107 + $0x10a] sm:$0xff]
        %v4628 = vld [vmem:[%s3107 + $0x112] sm:$0xff]
        %v4629 = vld [vmem:[%s3107 + $0x122] sm:$0xff]
        %v4630 = vld [vmem:[%s3107 + $0x12a] sm:$0xff]
        %v4631 = vld [vmem:[%s3107 + $0x13a] sm:$0xff]
        %v4632 = vld [vmem:[%s3107 + $0x142] sm:$0xff]
        %v4633 = vld [vmem:[%s3107 + $0x152] sm:$0xff]
        %v4634 = vld [vmem:[%s3107 + $0x15a] sm:$0xff]
        %v4635 = vld [vmem:[%s3107 + $0x16a] sm:$0xff]
        %v4636 = vld [vmem:[%s3107 + $0x172] sm:$0xff]
        %v4637 = vpack.c.bf16 %v4606, %v4605
        %v4638 = vpack.c.bf16 %v4608, %v4607
        %v4639 = vpack.c.bf16 %v4610, %v4609
        %v4640 = vpack.c.bf16 %v4612, %v4611
        %v4641 = vpack.c.bf16 %v4614, %v4613
        %v4642 = vpack.c.bf16 %v4616, %v4615
        %v4643 = vpack.c.bf16 %v4618, %v4617
        %v4644 = vpack.c.bf16 %v4620, %v4619
        %v4645 = vpack.c.bf16 %v4622, %v4621
        %v4646 = vpack.c.bf16 %v4624, %v4623
        %v4647 = vpack.c.bf16 %v4626, %v4625
        %v4648 = vpack.c.bf16 %v4628, %v4627
        %v4649 = vpack.c.bf16 %v4630, %v4629
        %v4650 = vpack.c.bf16 %v4632, %v4631
        %v4651 = vpack.c.bf16 %v4634, %v4633
        %v4652 = vpack.c.bf16 %v4636, %v4635
        %s4653 = scalar_lea.vmem %s3, 320
        %v4654 = vld [vmem:[%s4653] sm:$0xf]
        %v4655 = vld [vmem:[%s4653 + $0x4] sm:$0xf]
        %v4656 = vld [vmem:[%s4653 + $0x8] sm:$0xf]
        %v4657 = vld [vmem:[%s4653 + $0xc] sm:$0xf]
        %v4658 = vld [vmem:[%s4653 + $0x10] sm:$0xf]
        %v4659 = vld [vmem:[%s4653 + $0x14] sm:$0xf]
        %v4660 = vld [vmem:[%s4653 + $0x18] sm:$0xf]
        %v4661 = vld [vmem:[%s4653 + $0x1c] sm:$0xf]
        %v4662 = vld [vmem:[%s4653 + $0x20] sm:$0xf]
        %v4663 = vld [vmem:[%s4653 + $0x24] sm:$0xf]
        %v4664 = vld [vmem:[%s4653 + $0x28] sm:$0xf]
        %v4665 = vld [vmem:[%s4653 + $0x2c] sm:$0xf]
        %v4666 = vld [vmem:[%s4653 + $0x30] sm:$0xf]
        %v4667 = vld [vmem:[%s4653 + $0x34] sm:$0xf]
        %v4668 = vld [vmem:[%s4653 + $0x38] sm:$0xf]
        %v4669 = vld [vmem:[%s4653 + $0x3c] sm:$0xf]
        %v4686 = vunpack.c.l.b16 %v4654
        %v4687 = vunpack.c.l.b16 %v4655
        %v4688 = vunpack.c.l.b16 %v4656
        %v4689 = vunpack.c.l.b16 %v4657
        %v4690 = vunpack.c.l.b16 %v4658
        %v4691 = vunpack.c.l.b16 %v4659
        %v4692 = vunpack.c.l.b16 %v4660
        %v4693 = vunpack.c.l.b16 %v4661
        %v4694 = vunpack.c.l.b16 %v4662
        %v4695 = vunpack.c.l.b16 %v4663
        %v4696 = vunpack.c.l.b16 %v4664
        %v4697 = vunpack.c.l.b16 %v4665
        %v4698 = vunpack.c.l.b16 %v4666
        %v4699 = vunpack.c.l.b16 %v4667
        %v4700 = vunpack.c.l.b16 %v4668
        %v4701 = vunpack.c.l.b16 %v4669
        %v4702 = vpack.c.b16 %v4687, %v4686
        %v4703 = vpack.c.b16 %v4689, %v4688
        %v4704 = vpack.c.b16 %v4691, %v4690
        %v4705 = vpack.c.b16 %v4693, %v4692
        %v4706 = vpack.c.b16 %v4695, %v4694
        %v4707 = vpack.c.b16 %v4697, %v4696
        %v4708 = vpack.c.b16 %v4699, %v4698
        %v4709 = vpack.c.b16 %v4701, %v4700
        %4718 = vmatprep.subr.bf16.mxu0 0
        %4719 = vmatpush1.bf16.msra.mxu0 %v4702
        %4720 = vmatprep.subr.bf16.mxu0 0
        %4721 = vmatpush1.bf16.msra.mxu0 %v4703
        %4722 = vmatprep.subr.bf16.mxu0 0
        %4723 = vmatpush1.bf16.msra.mxu0 %v4704
        %4724 = vmatprep.subr.bf16.mxu0 0
        %4725 = vmatpush1.bf16.msra.mxu0 %v4705
        %4726 = vmatprep.subr.bf16.mxu0 0
        %4727 = vmatpush1.bf16.msra.mxu0 %v4706
        %4728 = vmatprep.subr.bf16.mxu0 0
        %4729 = vmatpush1.bf16.msra.mxu0 %v4707
        %4730 = vmatprep.subr.bf16.mxu0 0
        %4731 = vmatpush1.bf16.msra.mxu0 %v4708
        %4732 = vmatprep.subr.bf16.mxu0 0
        %4733 = vmatpush1.bf16.msra.mxu0 %v4709
        %4734 = vmatprep.subr.bf16.mxu0 0
        %4735 = vmatpush1.bf16.msra.mxu0 0
        %4736 = vmatprep.subr.bf16.mxu0 0
        %4737 = vmatpush1.bf16.msra.mxu0 0
        %4738 = vmatprep.subr.bf16.mxu0 0
        %4739 = vmatpush1.bf16.msra.mxu0 0
        %4740 = vmatprep.subr.bf16.mxu0 0
        %4741 = vmatpush1.bf16.msra.mxu0 0
        %4742 = vmatprep.subr.bf16.mxu0 0
        %4743 = vmatpush1.bf16.msra.mxu0 0
        %4744 = vmatprep.subr.bf16.mxu0 0
        %4745 = vmatpush1.bf16.msra.mxu0 0
        %4746 = vmatprep.subr.bf16.mxu0 0
        %4747 = vmatpush1.bf16.msra.mxu0 0
        %4748 = vmatprep.subr.bf16.mxu0 0
        %4749 = vmatpush1.bf16.msra.mxu0 0
        %4750 = vmatprep.mubr.bf16.mxu0 0
        %4751 = vmatmul.mubr.bf16.gmra.mrb[0].mxu0 %v4637
        %v4752 = vpop.f32.mrb[0].mxu0
        %v4753 = vadd.f32 0.0, %v4752
        %v4754 = vpop.f32.mrb[0].mxu0
        %v4755 = vpop.f32.mrb[0].mxu0
        %v4756 = vadd.f32 0.0, %v4755
        %v4757 = vpop.f32.mrb[0].mxu0
        %4758 = vmatprep.mubr.bf16.mxu0 0
        %4759 = vmatmul.mubr.bf16.gmra.mrb[0].mxu0 %v4638
        %v4760 = vpop.f32.mrb[0].mxu0
        %v4761 = vadd.f32 0.0, %v4760
        %v4762 = vpop.f32.mrb[0].mxu0
        %v4763 = vpop.f32.mrb[0].mxu0
        %v4764 = vadd.f32 0.0, %v4763
        %v4765 = vpop.f32.mrb[0].mxu0
        %4766 = vmatprep.mubr.bf16.mxu0 0
        %4767 = vmatmul.mubr.bf16.gmra.mrb[0].mxu0 %v4639
        %v4768 = vpop.f32.mrb[0].mxu0
        %v4769 = vadd.f32 0.0, %v4768
        %v4770 = vpop.f32.mrb[0].mxu0
        %v4771 = vpop.f32.mrb[0].mxu0
        %v4772 = vadd.f32 0.0, %v4771
        %v4773 = vpop.f32.mrb[0].mxu0
        %4774 = vmatprep.mubr.bf16.mxu0 0
        %4775 = vmatmul.mubr.bf16.gmra.mrb[0].mxu0 %v4640
        %v4776 = vpop.f32.mrb[0].mxu0
        %v4777 = vadd.f32 0.0, %v4776
        %v4778 = vpop.f32.mrb[0].mxu0
        %v4779 = vpop.f32.mrb[0].mxu0
        %v4780 = vadd.f32 0.0, %v4779
        %v4781 = vpop.f32.mrb[0].mxu0
        %4782 = vmatprep.mubr.bf16.mxu0 0
        %4783 = vmatmul.mubr.bf16.gmra.mrb[0].mxu0 %v4641
        %v4784 = vpop.f32.mrb[0].mxu0
        %v4785 = vadd.f32 0.0, %v4784
        %v4786 = vpop.f32.mrb[0].mxu0
        %v4787 = vpop.f32.mrb[0].mxu0
        %v4788 = vadd.f32 0.0, %v4787
        %v4789 = vpop.f32.mrb[0].mxu0
        %4790 = vmatprep.mubr.bf16.mxu0 0
        %4791 = vmatmul.mubr.bf16.gmra.mrb[0].mxu0 %v4642
        %v4792 = vpop.f32.mrb[0].mxu0
        %v4793 = vadd.f32 0.0, %v4792
        %v4794 = vpop.f32.mrb[0].mxu0
        %v4795 = vpop.f32.mrb[0].mxu0
        %v4796 = vadd.f32 0.0, %v4795
        %v4797 = vpop.f32.mrb[0].mxu0
        %4798 = vmatprep.mubr.bf16.mxu0 0
        %4799 = vmatmul.mubr.bf16.gmra.mrb[0].mxu0 %v4643
        %v4800 = vpop.f32.mrb[0].mxu0
        %v4801 = vadd.f32 0.0, %v4800
        %v4802 = vpop.f32.mrb[0].mxu0
        %v4803 = vpop.f32.mrb[0].mxu0
        %v4804 = vadd.f32 0.0, %v4803
        %v4805 = vpop.f32.mrb[0].mxu0
        %4806 = vmatprep.mubr.bf16.mxu0 0
        %4807 = vmatmul.mubr.bf16.gmra.mrb[0].mxu0 %v4644
        %v4808 = vpop.f32.mrb[0].mxu0
        %v4809 = vadd.f32 0.0, %v4808
        %v4810 = vpop.f32.mrb[0].mxu0
        %v4811 = vpop.f32.mrb[0].mxu0
        %v4812 = vadd.f32 0.0, %v4811
        %v4813 = vpop.f32.mrb[0].mxu0
        %4814 = vmatprep.mubr.bf16.mxu0 0
        %4815 = vmatmul.mubr.bf16.gmra.mrb[0].mxu0 %v4645
        %v4816 = vpop.f32.mrb[0].mxu0
        %v4817 = vadd.f32 0.0, %v4816
        %v4818 = vpop.f32.mrb[0].mxu0
        %v4819 = vpop.f32.mrb[0].mxu0
        %v4820 = vadd.f32 0.0, %v4819
        %v4821 = vpop.f32.mrb[0].mxu0
        %4822 = vmatprep.mubr.bf16.mxu0 0
        %4823 = vmatmul.mubr.bf16.gmra.mrb[0].mxu0 %v4646
        %v4824 = vpop.f32.mrb[0].mxu0
        %v4825 = vadd.f32 0.0, %v4824
        %v4826 = vpop.f32.mrb[0].mxu0
        %v4827 = vpop.f32.mrb[0].mxu0
        %v4828 = vadd.f32 0.0, %v4827
        %v4829 = vpop.f32.mrb[0].mxu0
        %4830 = vmatprep.mubr.bf16.mxu0 0
        %4831 = vmatmul.mubr.bf16.gmra.mrb[0].mxu0 %v4647
        %v4832 = vpop.f32.mrb[0].mxu0
        %v4833 = vadd.f32 0.0, %v4832
        %v4834 = vpop.f32.mrb[0].mxu0
        %v4835 = vpop.f32.mrb[0].mxu0
        %v4836 = vadd.f32 0.0, %v4835
        %v4837 = vpop.f32.mrb[0].mxu0
        %4838 = vmatprep.mubr.bf16.mxu0 0
        %4839 = vmatmul.mubr.bf16.gmra.mrb[0].mxu0 %v4648
        %v4840 = vpop.f32.mrb[0].mxu0
        %v4841 = vadd.f32 0.0, %v4840
        %v4842 = vpop.f32.mrb[0].mxu0
        %v4843 = vpop.f32.mrb[0].mxu0
        %v4844 = vadd.f32 0.0, %v4843
        %v4845 = vpop.f32.mrb[0].mxu0
        %4846 = vmatprep.mubr.bf16.mxu0 0
        %4847 = vmatmul.mubr.bf16.gmra.mrb[0].mxu0 %v4649
        %v4848 = vpop.f32.mrb[0].mxu0
        %v4849 = vadd.f32 0.0, %v4848
        %v4850 = vpop.f32.mrb[0].mxu0
        %v4851 = vpop.f32.mrb[0].mxu0
        %v4852 = vadd.f32 0.0, %v4851
        %v4853 = vpop.f32.mrb[0].mxu0
        %4854 = vmatprep.mubr.bf16.mxu0 0
        %4855 = vmatmul.mubr.bf16.gmra.mrb[0].mxu0 %v4650
        %v4856 = vpop.f32.mrb[0].mxu0
        %v4857 = vadd.f32 0.0, %v4856
        %v4858 = vpop.f32.mrb[0].mxu0
        %v4859 = vpop.f32.mrb[0].mxu0
        %v4860 = vadd.f32 0.0, %v4859
        %v4861 = vpop.f32.mrb[0].mxu0
        %4862 = vmatprep.mubr.bf16.mxu0 0
        %4863 = vmatmul.mubr.bf16.gmra.mrb[0].mxu0 %v4651
        %v4864 = vpop.f32.mrb[0].mxu0
        %v4865 = vadd.f32 0.0, %v4864
        %v4866 = vpop.f32.mrb[0].mxu0
        %v4867 = vpop.f32.mrb[0].mxu0
        %v4868 = vadd.f32 0.0, %v4867
        %v4869 = vpop.f32.mrb[0].mxu0
        %4870 = vmatprep.mubr.bf16.mxu0 0
        %4871 = vmatmul.mubr.bf16.gmra.mrb[0].mxu0 %v4652
        %v4872 = vpop.f32.mrb[0].mxu0
        %v4873 = vadd.f32 0.0, %v4872
        %v4874 = vpop.f32.mrb[0].mxu0
        %v4875 = vpop.f32.mrb[0].mxu0
        %v4876 = vadd.f32 0.0, %v4875
        %v4877 = vpop.f32.mrb[0].mxu0
        %4878 = vdwg.mxu0
        %v4879 = vadd.f32 %v4573, %v4753
        %v4880 = vadd.f32 %v4574, %v4756
        %v4881 = vadd.f32 %v4575, %v4761
        %v4882 = vadd.f32 %v4576, %v4764
        %v4883 = vadd.f32 %v4577, %v4769
        %v4884 = vadd.f32 %v4578, %v4772
        %v4885 = vadd.f32 %v4579, %v4777
        %v4886 = vadd.f32 %v4580, %v4780
        %v4887 = vadd.f32 %v4581, %v4785
        %v4888 = vadd.f32 %v4582, %v4788
        %v4889 = vadd.f32 %v4583, %v4793
        %v4890 = vadd.f32 %v4584, %v4796
        %v4891 = vadd.f32 %v4585, %v4801
        %v4892 = vadd.f32 %v4586, %v4804
        %v4893 = vadd.f32 %v4587, %v4809
        %v4894 = vadd.f32 %v4588, %v4812
        %v4895 = vadd.f32 %v4589, %v4817
        %v4896 = vadd.f32 %v4590, %v4820
        %v4897 = vadd.f32 %v4591, %v4825
        %v4898 = vadd.f32 %v4592, %v4828
        %v4899 = vadd.f32 %v4593, %v4833
        %v4900 = vadd.f32 %v4594, %v4836
        %v4901 = vadd.f32 %v4595, %v4841
        %v4902 = vadd.f32 %v4596, %v4844
        %v4903 = vadd.f32 %v4597, %v4849
        %v4904 = vadd.f32 %v4598, %v4852
        %v4905 = vadd.f32 %v4599, %v4857
        %v4906 = vadd.f32 %v4600, %v4860
        %v4907 = vadd.f32 %v4601, %v4865
        %v4908 = vadd.f32 %v4602, %v4868
        %v4909 = vadd.f32 %v4603, %v4873
        %v4910 = vadd.f32 %v4604, %v4876
        %s4911 = scalar_lea.vmem [#allocation2], 48
        %v4912 = vld [vmem:[%s4911] sm:$0xff]
        %v4913 = vld [vmem:[%s4911 + $0x8] sm:$0xff]
        %v4914 = vld [vmem:[%s4911 + $0x18] sm:$0xff]
        %v4915 = vld [vmem:[%s4911 + $0x20] sm:$0xff]
        %v4916 = vld [vmem:[%s4911 + $0x30] sm:$0xff]
        %v4917 = vld [vmem:[%s4911 + $0x38] sm:$0xff]
        %v4918 = vld [vmem:[%s4911 + $0x48] sm:$0xff]
        %v4919 = vld [vmem:[%s4911 + $0x50] sm:$0xff]
        %v4920 = vld [vmem:[%s4911 + $0x60] sm:$0xff]
        %v4921 = vld [vmem:[%s4911 + $0x68] sm:$0xff]
        %v4922 = vld [vmem:[%s4911 + $0x78] sm:$0xff]
        %v4923 = vld [vmem:[%s4911 + $0x80] sm:$0xff]
        %v4924 = vld [vmem:[%s4911 + $0x90] sm:$0xff]
        %v4925 = vld [vmem:[%s4911 + $0x98] sm:$0xff]
        %v4926 = vld [vmem:[%s4911 + $0xa8] sm:$0xff]
        %v4927 = vld [vmem:[%s4911 + $0xb0] sm:$0xff]
        %v4928 = vld [vmem:[%s4911 + $0xc0] sm:$0xff]
        %v4929 = vld [vmem:[%s4911 + $0xc8] sm:$0xff]
        %v4930 = vld [vmem:[%s4911 + $0xd8] sm:$0xff]
        %v4931 = vld [vmem:[%s4911 + $0xe0] sm:$0xff]
        %v4932 = vld [vmem:[%s4911 + $0xf0] sm:$0xff]
        %v4933 = vld [vmem:[%s4911 + $0xf8] sm:$0xff]
        %v4934 = vld [vmem:[%s4911 + $0x108] sm:$0xff]
        %v4935 = vld [vmem:[%s4911 + $0x110] sm:$0xff]
        %v4936 = vld [vmem:[%s4911 + $0x120] sm:$0xff]
        %v4937 = vld [vmem:[%s4911 + $0x128] sm:$0xff]
        %v4938 = vld [vmem:[%s4911 + $0x138] sm:$0xff]
        %v4939 = vld [vmem:[%s4911 + $0x140] sm:$0xff]
        %v4940 = vld [vmem:[%s4911 + $0x150] sm:$0xff]
        %v4941 = vld [vmem:[%s4911 + $0x158] sm:$0xff]
        %v4942 = vld [vmem:[%s4911 + $0x168] sm:$0xff]
        %v4943 = vld [vmem:[%s4911 + $0x170] sm:$0xff]
        %v4944 = vpack.c.bf16 %v4913, %v4912
        %v4945 = vpack.c.bf16 %v4915, %v4914
        %v4946 = vpack.c.bf16 %v4917, %v4916
        %v4947 = vpack.c.bf16 %v4919, %v4918
        %v4948 = vpack.c.bf16 %v4921, %v4920
        %v4949 = vpack.c.bf16 %v4923, %v4922
        %v4950 = vpack.c.bf16 %v4925, %v4924
        %v4951 = vpack.c.bf16 %v4927, %v4926
        %v4952 = vpack.c.bf16 %v4929, %v4928
        %v4953 = vpack.c.bf16 %v4931, %v4930
        %v4954 = vpack.c.bf16 %v4933, %v4932
        %v4955 = vpack.c.bf16 %v4935, %v4934
        %v4956 = vpack.c.bf16 %v4937, %v4936
        %v4957 = vpack.c.bf16 %v4939, %v4938
        %v4958 = vpack.c.bf16 %v4941, %v4940
        %v4959 = vpack.c.bf16 %v4943, %v4942
        %s4960 = scalar_lea.vmem %s3, 384
        %v4961 = vld [vmem:[%s4960] sm:$0xf]
        %v4962 = vld [vmem:[%s4960 + $0x4] sm:$0xf]
        %v4963 = vld [vmem:[%s4960 + $0x8] sm:$0xf]
        %v4964 = vld [vmem:[%s4960 + $0xc] sm:$0xf]
        %v4965 = vld [vmem:[%s4960 + $0x10] sm:$0xf]
        %v4966 = vld [vmem:[%s4960 + $0x14] sm:$0xf]
        %v4967 = vld [vmem:[%s4960 + $0x18] sm:$0xf]
        %v4968 = vld [vmem:[%s4960 + $0x1c] sm:$0xf]
        %v4969 = vld [vmem:[%s4960 + $0x20] sm:$0xf]
        %v4970 = vld [vmem:[%s4960 + $0x24] sm:$0xf]
        %v4971 = vld [vmem:[%s4960 + $0x28] sm:$0xf]
        %v4972 = vld [vmem:[%s4960 + $0x2c] sm:$0xf]
        %v4973 = vld [vmem:[%s4960 + $0x30] sm:$0xf]
        %v4974 = vld [vmem:[%s4960 + $0x34] sm:$0xf]
        %v4975 = vld [vmem:[%s4960 + $0x38] sm:$0xf]
        %v4976 = vld [vmem:[%s4960 + $0x3c] sm:$0xf]
        %v4993 = vunpack.c.l.b16 %v4961
        %v4994 = vunpack.c.l.b16 %v4962
        %v4995 = vunpack.c.l.b16 %v4963
        %v4996 = vunpack.c.l.b16 %v4964
        %v4997 = vunpack.c.l.b16 %v4965
        %v4998 = vunpack.c.l.b16 %v4966
        %v4999 = vunpack.c.l.b16 %v4967
        %v5000 = vunpack.c.l.b16 %v4968
        %v5001 = vunpack.c.l.b16 %v4969
        %v5002 = vunpack.c.l.b16 %v4970
        %v5003 = vunpack.c.l.b16 %v4971
        %v5004 = vunpack.c.l.b16 %v4972
        %v5005 = vunpack.c.l.b16 %v4973
        %v5006 = vunpack.c.l.b16 %v4974
        %v5007 = vunpack.c.l.b16 %v4975
        %v5008 = vunpack.c.l.b16 %v4976
        %v5009 = vpack.c.b16 %v4994, %v4993
        %v5010 = vpack.c.b16 %v4996, %v4995
        %v5011 = vpack.c.b16 %v4998, %v4997
        %v5012 = vpack.c.b16 %v5000, %v4999
        %v5013 = vpack.c.b16 %v5002, %v5001
        %v5014 = vpack.c.b16 %v5004, %v5003
        %v5015 = vpack.c.b16 %v5006, %v5005
        %v5016 = vpack.c.b16 %v5008, %v5007
        %5025 = vmatprep.subr.bf16.mxu0 0
        %5026 = vmatpush1.bf16.msra.mxu0 %v5009
        %5027 = vmatprep.subr.bf16.mxu0 0
        %5028 = vmatpush1.bf16.msra.mxu0 %v5010
        %5029 = vmatprep.subr.bf16.mxu0 0
        %5030 = vmatpush1.bf16.msra.mxu0 %v5011
        %5031 = vmatprep.subr.bf16.mxu0 0
        %5032 = vmatpush1.bf16.msra.mxu0 %v5012
        %5033 = vmatprep.subr.bf16.mxu0 0
        %5034 = vmatpush1.bf16.msra.mxu0 %v5013
        %5035 = vmatprep.subr.bf16.mxu0 0
        %5036 = vmatpush1.bf16.msra.mxu0 %v5014
        %5037 = vmatprep.subr.bf16.mxu0 0
        %5038 = vmatpush1.bf16.msra.mxu0 %v5015
        %5039 = vmatprep.subr.bf16.mxu0 0
        %5040 = vmatpush1.bf16.msra.mxu0 %v5016
        %5041 = vmatprep.subr.bf16.mxu0 0
        %5042 = vmatpush1.bf16.msra.mxu0 0
        %5043 = vmatprep.subr.bf16.mxu0 0
        %5044 = vmatpush1.bf16.msra.mxu0 0
        %5045 = vmatprep.subr.bf16.mxu0 0
        %5046 = vmatpush1.bf16.msra.mxu0 0
        %5047 = vmatprep.subr.bf16.mxu0 0
        %5048 = vmatpush1.bf16.msra.mxu0 0
        %5049 = vmatprep.subr.bf16.mxu0 0
        %5050 = vmatpush1.bf16.msra.mxu0 0
        %5051 = vmatprep.subr.bf16.mxu0 0
        %5052 = vmatpush1.bf16.msra.mxu0 0
        %5053 = vmatprep.subr.bf16.mxu0 0
        %5054 = vmatpush1.bf16.msra.mxu0 0
        %5055 = vmatprep.subr.bf16.mxu0 0
        %5056 = vmatpush1.bf16.msra.mxu0 0
        %5057 = vmatprep.mubr.bf16.mxu0 0
        %5058 = vmatmul.mubr.bf16.gmra.mrb[0].mxu0 %v4944
        %v5059 = vpop.f32.mrb[0].mxu0
        %v5060 = vadd.f32 0.0, %v5059
        %v5061 = vpop.f32.mrb[0].mxu0
        %v5062 = vpop.f32.mrb[0].mxu0
        %v5063 = vadd.f32 0.0, %v5062
        %v5064 = vpop.f32.mrb[0].mxu0
        %5065 = vmatprep.mubr.bf16.mxu0 0
        %5066 = vmatmul.mubr.bf16.gmra.mrb[0].mxu0 %v4945
        %v5067 = vpop.f32.mrb[0].mxu0
        %v5068 = vadd.f32 0.0, %v5067
        %v5069 = vpop.f32.mrb[0].mxu0
        %v5070 = vpop.f32.mrb[0].mxu0
        %v5071 = vadd.f32 0.0, %v5070
        %v5072 = vpop.f32.mrb[0].mxu0
        %5073 = vmatprep.mubr.bf16.mxu0 0
        %5074 = vmatmul.mubr.bf16.gmra.mrb[0].mxu0 %v4946
        %v5075 = vpop.f32.mrb[0].mxu0
        %v5076 = vadd.f32 0.0, %v5075
        %v5077 = vpop.f32.mrb[0].mxu0
        %v5078 = vpop.f32.mrb[0].mxu0
        %v5079 = vadd.f32 0.0, %v5078
        %v5080 = vpop.f32.mrb[0].mxu0
        %5081 = vmatprep.mubr.bf16.mxu0 0
        %5082 = vmatmul.mubr.bf16.gmra.mrb[0].mxu0 %v4947
        %v5083 = vpop.f32.mrb[0].mxu0
        %v5084 = vadd.f32 0.0, %v5083
        %v5085 = vpop.f32.mrb[0].mxu0
        %v5086 = vpop.f32.mrb[0].mxu0
        %v5087 = vadd.f32 0.0, %v5086
        %v5088 = vpop.f32.mrb[0].mxu0
        %5089 = vmatprep.mubr.bf16.mxu0 0
        %5090 = vmatmul.mubr.bf16.gmra.mrb[0].mxu0 %v4948
        %v5091 = vpop.f32.mrb[0].mxu0
        %v5092 = vadd.f32 0.0, %v5091
        %v5093 = vpop.f32.mrb[0].mxu0
        %v5094 = vpop.f32.mrb[0].mxu0
        %v5095 = vadd.f32 0.0, %v5094
        %v5096 = vpop.f32.mrb[0].mxu0
        %5097 = vmatprep.mubr.bf16.mxu0 0
        %5098 = vmatmul.mubr.bf16.gmra.mrb[0].mxu0 %v4949
        %v5099 = vpop.f32.mrb[0].mxu0
        %v5100 = vadd.f32 0.0, %v5099
        %v5101 = vpop.f32.mrb[0].mxu0
        %v5102 = vpop.f32.mrb[0].mxu0
        %v5103 = vadd.f32 0.0, %v5102
        %v5104 = vpop.f32.mrb[0].mxu0
        %5105 = vmatprep.mubr.bf16.mxu0 0
        %5106 = vmatmul.mubr.bf16.gmra.mrb[0].mxu0 %v4950
        %v5107 = vpop.f32.mrb[0].mxu0
        %v5108 = vadd.f32 0.0, %v5107
        %v5109 = vpop.f32.mrb[0].mxu0
        %v5110 = vpop.f32.mrb[0].mxu0
        %v5111 = vadd.f32 0.0, %v5110
        %v5112 = vpop.f32.mrb[0].mxu0
        %5113 = vmatprep.mubr.bf16.mxu0 0
        %5114 = vmatmul.mubr.bf16.gmra.mrb[0].mxu0 %v4951
        %v5115 = vpop.f32.mrb[0].mxu0
        %v5116 = vadd.f32 0.0, %v5115
        %v5117 = vpop.f32.mrb[0].mxu0
        %v5118 = vpop.f32.mrb[0].mxu0
        %v5119 = vadd.f32 0.0, %v5118
        %v5120 = vpop.f32.mrb[0].mxu0
        %5121 = vmatprep.mubr.bf16.mxu0 0
        %5122 = vmatmul.mubr.bf16.gmra.mrb[0].mxu0 %v4952
        %v5123 = vpop.f32.mrb[0].mxu0
        %v5124 = vadd.f32 0.0, %v5123
        %v5125 = vpop.f32.mrb[0].mxu0
        %v5126 = vpop.f32.mrb[0].mxu0
        %v5127 = vadd.f32 0.0, %v5126
        %v5128 = vpop.f32.mrb[0].mxu0
        %5129 = vmatprep.mubr.bf16.mxu0 0
        %5130 = vmatmul.mubr.bf16.gmra.mrb[0].mxu0 %v4953
        %v5131 = vpop.f32.mrb[0].mxu0
        %v5132 = vadd.f32 0.0, %v5131
        %v5133 = vpop.f32.mrb[0].mxu0
        %v5134 = vpop.f32.mrb[0].mxu0
        %v5135 = vadd.f32 0.0, %v5134
        %v5136 = vpop.f32.mrb[0].mxu0
        %5137 = vmatprep.mubr.bf16.mxu0 0
        %5138 = vmatmul.mubr.bf16.gmra.mrb[0].mxu0 %v4954
        %v5139 = vpop.f32.mrb[0].mxu0
        %v5140 = vadd.f32 0.0, %v5139
        %v5141 = vpop.f32.mrb[0].mxu0
        %v5142 = vpop.f32.mrb[0].mxu0
        %v5143 = vadd.f32 0.0, %v5142
        %v5144 = vpop.f32.mrb[0].mxu0
        %5145 = vmatprep.mubr.bf16.mxu0 0
        %5146 = vmatmul.mubr.bf16.gmra.mrb[0].mxu0 %v4955
        %v5147 = vpop.f32.mrb[0].mxu0
        %v5148 = vadd.f32 0.0, %v5147
        %v5149 = vpop.f32.mrb[0].mxu0
        %v5150 = vpop.f32.mrb[0].mxu0
        %v5151 = vadd.f32 0.0, %v5150
        %v5152 = vpop.f32.mrb[0].mxu0
        %5153 = vmatprep.mubr.bf16.mxu0 0
        %5154 = vmatmul.mubr.bf16.gmra.mrb[0].mxu0 %v4956
        %v5155 = vpop.f32.mrb[0].mxu0
        %v5156 = vadd.f32 0.0, %v5155
        %v5157 = vpop.f32.mrb[0].mxu0
        %v5158 = vpop.f32.mrb[0].mxu0
        %v5159 = vadd.f32 0.0, %v5158
        %v5160 = vpop.f32.mrb[0].mxu0
        %5161 = vmatprep.mubr.bf16.mxu0 0
        %5162 = vmatmul.mubr.bf16.gmra.mrb[0].mxu0 %v4957
        %v5163 = vpop.f32.mrb[0].mxu0
        %v5164 = vadd.f32 0.0, %v5163
        %v5165 = vpop.f32.mrb[0].mxu0
        %v5166 = vpop.f32.mrb[0].mxu0
        %v5167 = vadd.f32 0.0, %v5166
        %v5168 = vpop.f32.mrb[0].mxu0
        %5169 = vmatprep.mubr.bf16.mxu0 0
        %5170 = vmatmul.mubr.bf16.gmra.mrb[0].mxu0 %v4958
        %v5171 = vpop.f32.mrb[0].mxu0
        %v5172 = vadd.f32 0.0, %v5171
        %v5173 = vpop.f32.mrb[0].mxu0
        %v5174 = vpop.f32.mrb[0].mxu0
        %v5175 = vadd.f32 0.0, %v5174
        %v5176 = vpop.f32.mrb[0].mxu0
        %5177 = vmatprep.mubr.bf16.mxu0 0
        %5178 = vmatmul.mubr.bf16.gmra.mrb[0].mxu0 %v4959
        %v5179 = vpop.f32.mrb[0].mxu0
        %v5180 = vadd.f32 0.0, %v5179
        %v5181 = vpop.f32.mrb[0].mxu0
        %v5182 = vpop.f32.mrb[0].mxu0
        %v5183 = vadd.f32 0.0, %v5182
        %v5184 = vpop.f32.mrb[0].mxu0
        %5185 = vdwg.mxu0
        %v5186 = vadd.f32 %v4879, %v5060
        %v5187 = vadd.f32 %v4880, %v5063
        %v5188 = vadd.f32 %v4881, %v5068
        %v5189 = vadd.f32 %v4882, %v5071
        %v5190 = vadd.f32 %v4883, %v5076
        %v5191 = vadd.f32 %v4884, %v5079
        %v5192 = vadd.f32 %v4885, %v5084
        %v5193 = vadd.f32 %v4886, %v5087
        %v5194 = vadd.f32 %v4887, %v5092
        %v5195 = vadd.f32 %v4888, %v5095
        %v5196 = vadd.f32 %v4889, %v5100
        %v5197 = vadd.f32 %v4890, %v5103
        %v5198 = vadd.f32 %v4891, %v5108
        %v5199 = vadd.f32 %v4892, %v5111
        %v5200 = vadd.f32 %v4893, %v5116
        %v5201 = vadd.f32 %v4894, %v5119
        %v5202 = vadd.f32 %v4895, %v5124
        %v5203 = vadd.f32 %v4896, %v5127
        %v5204 = vadd.f32 %v4897, %v5132
        %v5205 = vadd.f32 %v4898, %v5135
        %v5206 = vadd.f32 %v4899, %v5140
        %v5207 = vadd.f32 %v4900, %v5143
        %v5208 = vadd.f32 %v4901, %v5148
        %v5209 = vadd.f32 %v4902, %v5151
        %v5210 = vadd.f32 %v4903, %v5156
        %v5211 = vadd.f32 %v4904, %v5159
        %v5212 = vadd.f32 %v4905, %v5164
        %v5213 = vadd.f32 %v4906, %v5167
        %v5214 = vadd.f32 %v4907, %v5172
        %v5215 = vadd.f32 %v4908, %v5175
        %v5216 = vadd.f32 %v4909, %v5180
        %v5217 = vadd.f32 %v4910, %v5183
        %v5218 = vld [vmem:[%s4911 + $0x1] sm:$0xff]
        %v5219 = vld [vmem:[%s4911 + $0x9] sm:$0xff]
        %v5220 = vld [vmem:[%s4911 + $0x19] sm:$0xff]
        %v5221 = vld [vmem:[%s4911 + $0x21] sm:$0xff]
        %v5222 = vld [vmem:[%s4911 + $0x31] sm:$0xff]
        %v5223 = vld [vmem:[%s4911 + $0x39] sm:$0xff]
        %v5224 = vld [vmem:[%s4911 + $0x49] sm:$0xff]
        %v5225 = vld [vmem:[%s4911 + $0x51] sm:$0xff]
        %v5226 = vld [vmem:[%s4911 + $0x61] sm:$0xff]
        %v5227 = vld [vmem:[%s4911 + $0x69] sm:$0xff]
        %v5228 = vld [vmem:[%s4911 + $0x79] sm:$0xff]
        %v5229 = vld [vmem:[%s4911 + $0x81] sm:$0xff]
        %v5230 = vld [vmem:[%s4911 + $0x91] sm:$0xff]
        %v5231 = vld [vmem:[%s4911 + $0x99] sm:$0xff]
        %v5232 = vld [vmem:[%s4911 + $0xa9] sm:$0xff]
        %v5233 = vld [vmem:[%s4911 + $0xb1] sm:$0xff]
        %v5234 = vld [vmem:[%s4911 + $0xc1] sm:$0xff]
        %v5235 = vld [vmem:[%s4911 + $0xc9] sm:$0xff]
        %v5236 = vld [vmem:[%s4911 + $0xd9] sm:$0xff]
        %v5237 = vld [vmem:[%s4911 + $0xe1] sm:$0xff]
        %v5238 = vld [vmem:[%s4911 + $0xf1] sm:$0xff]
        %v5239 = vld [vmem:[%s4911 + $0xf9] sm:$0xff]
        %v5240 = vld [vmem:[%s4911 + $0x109] sm:$0xff]
        %v5241 = vld [vmem:[%s4911 + $0x111] sm:$0xff]
        %v5242 = vld [vmem:[%s4911 + $0x121] sm:$0xff]
        %v5243 = vld [vmem:[%s4911 + $0x129] sm:$0xff]
        %v5244 = vld [vmem:[%s4911 + $0x139] sm:$0xff]
        %v5245 = vld [vmem:[%s4911 + $0x141] sm:$0xff]
        %v5246 = vld [vmem:[%s4911 + $0x151] sm:$0xff]
        %v5247 = vld [vmem:[%s4911 + $0x159] sm:$0xff]
        %v5248 = vld [vmem:[%s4911 + $0x169] sm:$0xff]
        %v5249 = vld [vmem:[%s4911 + $0x171] sm:$0xff]
        %v5250 = vpack.c.bf16 %v5219, %v5218
        %v5251 = vpack.c.bf16 %v5221, %v5220
        %v5252 = vpack.c.bf16 %v5223, %v5222
        %v5253 = vpack.c.bf16 %v5225, %v5224
        %v5254 = vpack.c.bf16 %v5227, %v5226
        %v5255 = vpack.c.bf16 %v5229, %v5228
        %v5256 = vpack.c.bf16 %v5231, %v5230
        %v5257 = vpack.c.bf16 %v5233, %v5232
        %v5258 = vpack.c.bf16 %v5235, %v5234
        %v5259 = vpack.c.bf16 %v5237, %v5236
        %v5260 = vpack.c.bf16 %v5239, %v5238
        %v5261 = vpack.c.bf16 %v5241, %v5240
        %v5262 = vpack.c.bf16 %v5243, %v5242
        %v5263 = vpack.c.bf16 %v5245, %v5244
        %v5264 = vpack.c.bf16 %v5247, %v5246
        %v5265 = vpack.c.bf16 %v5249, %v5248
        %s5266 = scalar_lea.vmem %s3, 448
        %v5267 = vld [vmem:[%s5266] sm:$0xf]
        %v5268 = vld [vmem:[%s5266 + $0x4] sm:$0xf]
        %v5269 = vld [vmem:[%s5266 + $0x8] sm:$0xf]
        %v5270 = vld [vmem:[%s5266 + $0xc] sm:$0xf]
        %v5271 = vld [vmem:[%s5266 + $0x10] sm:$0xf]
        %v5272 = vld [vmem:[%s5266 + $0x14] sm:$0xf]
        %v5273 = vld [vmem:[%s5266 + $0x18] sm:$0xf]
        %v5274 = vld [vmem:[%s5266 + $0x1c] sm:$0xf]
        %v5275 = vld [vmem:[%s5266 + $0x20] sm:$0xf]
        %v5276 = vld [vmem:[%s5266 + $0x24] sm:$0xf]
        %v5277 = vld [vmem:[%s5266 + $0x28] sm:$0xf]
        %v5278 = vld [vmem:[%s5266 + $0x2c] sm:$0xf]
        %v5279 = vld [vmem:[%s5266 + $0x30] sm:$0xf]
        %v5280 = vld [vmem:[%s5266 + $0x34] sm:$0xf]
        %v5281 = vld [vmem:[%s5266 + $0x38] sm:$0xf]
        %v5282 = vld [vmem:[%s5266 + $0x3c] sm:$0xf]
        %v5299 = vunpack.c.l.b16 %v5267
        %v5300 = vunpack.c.l.b16 %v5268
        %v5301 = vunpack.c.l.b16 %v5269
        %v5302 = vunpack.c.l.b16 %v5270
        %v5303 = vunpack.c.l.b16 %v5271
        %v5304 = vunpack.c.l.b16 %v5272
        %v5305 = vunpack.c.l.b16 %v5273
        %v5306 = vunpack.c.l.b16 %v5274
        %v5307 = vunpack.c.l.b16 %v5275
        %v5308 = vunpack.c.l.b16 %v5276
        %v5309 = vunpack.c.l.b16 %v5277
        %v5310 = vunpack.c.l.b16 %v5278
        %v5311 = vunpack.c.l.b16 %v5279
        %v5312 = vunpack.c.l.b16 %v5280
        %v5313 = vunpack.c.l.b16 %v5281
        %v5314 = vunpack.c.l.b16 %v5282
        %v5315 = vpack.c.b16 %v5300, %v5299
        %v5316 = vpack.c.b16 %v5302, %v5301
        %v5317 = vpack.c.b16 %v5304, %v5303
        %v5318 = vpack.c.b16 %v5306, %v5305
        %v5319 = vpack.c.b16 %v5308, %v5307
        %v5320 = vpack.c.b16 %v5310, %v5309
        %v5321 = vpack.c.b16 %v5312, %v5311
        %v5322 = vpack.c.b16 %v5314, %v5313
        %5331 = vmatprep.subr.bf16.mxu0 0
        %5332 = vmatpush1.bf16.msra.mxu0 %v5315
        %5333 = vmatprep.subr.bf16.mxu0 0
        %5334 = vmatpush1.bf16.msra.mxu0 %v5316
        %5335 = vmatprep.subr.bf16.mxu0 0
        %5336 = vmatpush1.bf16.msra.mxu0 %v5317
        %5337 = vmatprep.subr.bf16.mxu0 0
        %5338 = vmatpush1.bf16.msra.mxu0 %v5318
        %5339 = vmatprep.subr.bf16.mxu0 0
        %5340 = vmatpush1.bf16.msra.mxu0 %v5319
        %5341 = vmatprep.subr.bf16.mxu0 0
        %5342 = vmatpush1.bf16.msra.mxu0 %v5320
        %5343 = vmatprep.subr.bf16.mxu0 0
        %5344 = vmatpush1.bf16.msra.mxu0 %v5321
        %5345 = vmatprep.subr.bf16.mxu0 0
        %5346 = vmatpush1.bf16.msra.mxu0 %v5322
        %5347 = vmatprep.subr.bf16.mxu0 0
        %5348 = vmatpush1.bf16.msra.mxu0 0
        %5349 = vmatprep.subr.bf16.mxu0 0
        %5350 = vmatpush1.bf16.msra.mxu0 0
        %5351 = vmatprep.subr.bf16.mxu0 0
        %5352 = vmatpush1.bf16.msra.mxu0 0
        %5353 = vmatprep.subr.bf16.mxu0 0
        %5354 = vmatpush1.bf16.msra.mxu0 0
        %5355 = vmatprep.subr.bf16.mxu0 0
        %5356 = vmatpush1.bf16.msra.mxu0 0
        %5357 = vmatprep.subr.bf16.mxu0 0
        %5358 = vmatpush1.bf16.msra.mxu0 0
        %5359 = vmatprep.subr.bf16.mxu0 0
        %5360 = vmatpush1.bf16.msra.mxu0 0
        %5361 = vmatprep.subr.bf16.mxu0 0
        %5362 = vmatpush1.bf16.msra.mxu0 0
        %5363 = vmatprep.mubr.bf16.mxu0 0
        %5364 = vmatmul.mubr.bf16.gmra.mrb[0].mxu0 %v5250
        %v5365 = vpop.f32.mrb[0].mxu0
        %v5366 = vadd.f32 0.0, %v5365
        %v5367 = vpop.f32.mrb[0].mxu0
        %v5368 = vpop.f32.mrb[0].mxu0
        %v5369 = vadd.f32 0.0, %v5368
        %v5370 = vpop.f32.mrb[0].mxu0
        %5371 = vmatprep.mubr.bf16.mxu0 0
        %5372 = vmatmul.mubr.bf16.gmra.mrb[0].mxu0 %v5251
        %v5373 = vpop.f32.mrb[0].mxu0
        %v5374 = vadd.f32 0.0, %v5373
        %v5375 = vpop.f32.mrb[0].mxu0
        %v5376 = vpop.f32.mrb[0].mxu0
        %v5377 = vadd.f32 0.0, %v5376
        %v5378 = vpop.f32.mrb[0].mxu0
        %5379 = vmatprep.mubr.bf16.mxu0 0
        %5380 = vmatmul.mubr.bf16.gmra.mrb[0].mxu0 %v5252
        %v5381 = vpop.f32.mrb[0].mxu0
        %v5382 = vadd.f32 0.0, %v5381
        %v5383 = vpop.f32.mrb[0].mxu0
        %v5384 = vpop.f32.mrb[0].mxu0
        %v5385 = vadd.f32 0.0, %v5384
        %v5386 = vpop.f32.mrb[0].mxu0
        %5387 = vmatprep.mubr.bf16.mxu0 0
        %5388 = vmatmul.mubr.bf16.gmra.mrb[0].mxu0 %v5253
        %v5389 = vpop.f32.mrb[0].mxu0
        %v5390 = vadd.f32 0.0, %v5389
        %v5391 = vpop.f32.mrb[0].mxu0
        %v5392 = vpop.f32.mrb[0].mxu0
        %v5393 = vadd.f32 0.0, %v5392
        %v5394 = vpop.f32.mrb[0].mxu0
        %5395 = vmatprep.mubr.bf16.mxu0 0
        %5396 = vmatmul.mubr.bf16.gmra.mrb[0].mxu0 %v5254
        %v5397 = vpop.f32.mrb[0].mxu0
        %v5398 = vadd.f32 0.0, %v5397
        %v5399 = vpop.f32.mrb[0].mxu0
        %v5400 = vpop.f32.mrb[0].mxu0
        %v5401 = vadd.f32 0.0, %v5400
        %v5402 = vpop.f32.mrb[0].mxu0
        %5403 = vmatprep.mubr.bf16.mxu0 0
        %5404 = vmatmul.mubr.bf16.gmra.mrb[0].mxu0 %v5255
        %v5405 = vpop.f32.mrb[0].mxu0
        %v5406 = vadd.f32 0.0, %v5405
        %v5407 = vpop.f32.mrb[0].mxu0
        %v5408 = vpop.f32.mrb[0].mxu0
        %v5409 = vadd.f32 0.0, %v5408
        %v5410 = vpop.f32.mrb[0].mxu0
        %5411 = vmatprep.mubr.bf16.mxu0 0
        %5412 = vmatmul.mubr.bf16.gmra.mrb[0].mxu0 %v5256
        %v5413 = vpop.f32.mrb[0].mxu0
        %v5414 = vadd.f32 0.0, %v5413
        %v5415 = vpop.f32.mrb[0].mxu0
        %v5416 = vpop.f32.mrb[0].mxu0
        %v5417 = vadd.f32 0.0, %v5416
        %v5418 = vpop.f32.mrb[0].mxu0
        %5419 = vmatprep.mubr.bf16.mxu0 0
        %5420 = vmatmul.mubr.bf16.gmra.mrb[0].mxu0 %v5257
        %v5421 = vpop.f32.mrb[0].mxu0
        %v5422 = vadd.f32 0.0, %v5421
        %v5423 = vpop.f32.mrb[0].mxu0
        %v5424 = vpop.f32.mrb[0].mxu0
        %v5425 = vadd.f32 0.0, %v5424
        %v5426 = vpop.f32.mrb[0].mxu0
        %5427 = vmatprep.mubr.bf16.mxu0 0
        %5428 = vmatmul.mubr.bf16.gmra.mrb[0].mxu0 %v5258
        %v5429 = vpop.f32.mrb[0].mxu0
        %v5430 = vadd.f32 0.0, %v5429
        %v5431 = vpop.f32.mrb[0].mxu0
        %v5432 = vpop.f32.mrb[0].mxu0
        %v5433 = vadd.f32 0.0, %v5432
        %v5434 = vpop.f32.mrb[0].mxu0
        %5435 = vmatprep.mubr.bf16.mxu0 0
        %5436 = vmatmul.mubr.bf16.gmra.mrb[0].mxu0 %v5259
        %v5437 = vpop.f32.mrb[0].mxu0
        %v5438 = vadd.f32 0.0, %v5437
        %v5439 = vpop.f32.mrb[0].mxu0
        %v5440 = vpop.f32.mrb[0].mxu0
        %v5441 = vadd.f32 0.0, %v5440
        %v5442 = vpop.f32.mrb[0].mxu0
        %5443 = vmatprep.mubr.bf16.mxu0 0
        %5444 = vmatmul.mubr.bf16.gmra.mrb[0].mxu0 %v5260
        %v5445 = vpop.f32.mrb[0].mxu0
        %v5446 = vadd.f32 0.0, %v5445
        %v5447 = vpop.f32.mrb[0].mxu0
        %v5448 = vpop.f32.mrb[0].mxu0
        %v5449 = vadd.f32 0.0, %v5448
        %v5450 = vpop.f32.mrb[0].mxu0
        %5451 = vmatprep.mubr.bf16.mxu0 0
        %5452 = vmatmul.mubr.bf16.gmra.mrb[0].mxu0 %v5261
        %v5453 = vpop.f32.mrb[0].mxu0
        %v5454 = vadd.f32 0.0, %v5453
        %v5455 = vpop.f32.mrb[0].mxu0
        %v5456 = vpop.f32.mrb[0].mxu0
        %v5457 = vadd.f32 0.0, %v5456
        %v5458 = vpop.f32.mrb[0].mxu0
        %5459 = vmatprep.mubr.bf16.mxu0 0
        %5460 = vmatmul.mubr.bf16.gmra.mrb[0].mxu0 %v5262
        %v5461 = vpop.f32.mrb[0].mxu0
        %v5462 = vadd.f32 0.0, %v5461
        %v5463 = vpop.f32.mrb[0].mxu0
        %v5464 = vpop.f32.mrb[0].mxu0
        %v5465 = vadd.f32 0.0, %v5464
        %v5466 = vpop.f32.mrb[0].mxu0
        %5467 = vmatprep.mubr.bf16.mxu0 0
        %5468 = vmatmul.mubr.bf16.gmra.mrb[0].mxu0 %v5263
        %v5469 = vpop.f32.mrb[0].mxu0
        %v5470 = vadd.f32 0.0, %v5469
        %v5471 = vpop.f32.mrb[0].mxu0
        %v5472 = vpop.f32.mrb[0].mxu0
        %v5473 = vadd.f32 0.0, %v5472
        %v5474 = vpop.f32.mrb[0].mxu0
        %5475 = vmatprep.mubr.bf16.mxu0 0
        %5476 = vmatmul.mubr.bf16.gmra.mrb[0].mxu0 %v5264
        %v5477 = vpop.f32.mrb[0].mxu0
        %v5478 = vadd.f32 0.0, %v5477
        %v5479 = vpop.f32.mrb[0].mxu0
        %v5480 = vpop.f32.mrb[0].mxu0
        %v5481 = vadd.f32 0.0, %v5480
        %v5482 = vpop.f32.mrb[0].mxu0
        %5483 = vmatprep.mubr.bf16.mxu0 0
        %5484 = vmatmul.mubr.bf16.gmra.mrb[0].mxu0 %v5265
        %v5485 = vpop.f32.mrb[0].mxu0
        %v5486 = vadd.f32 0.0, %v5485
        %v5487 = vpop.f32.mrb[0].mxu0
        %v5488 = vpop.f32.mrb[0].mxu0
        %v5489 = vadd.f32 0.0, %v5488
        %v5490 = vpop.f32.mrb[0].mxu0
        %5491 = vdwg.mxu0
        %v5492 = vadd.f32 %v5186, %v5366
        %v5493 = vadd.f32 %v5187, %v5369
        %v5494 = vadd.f32 %v5188, %v5374
        %v5495 = vadd.f32 %v5189, %v5377
        %v5496 = vadd.f32 %v5190, %v5382
        %v5497 = vadd.f32 %v5191, %v5385
        %v5498 = vadd.f32 %v5192, %v5390
        %v5499 = vadd.f32 %v5193, %v5393
        %v5500 = vadd.f32 %v5194, %v5398
        %v5501 = vadd.f32 %v5195, %v5401
        %v5502 = vadd.f32 %v5196, %v5406
        %v5503 = vadd.f32 %v5197, %v5409
        %v5504 = vadd.f32 %v5198, %v5414
        %v5505 = vadd.f32 %v5199, %v5417
        %v5506 = vadd.f32 %v5200, %v5422
        %v5507 = vadd.f32 %v5201, %v5425
        %v5508 = vadd.f32 %v5202, %v5430
        %v5509 = vadd.f32 %v5203, %v5433
        %v5510 = vadd.f32 %v5204, %v5438
        %v5511 = vadd.f32 %v5205, %v5441
        %v5512 = vadd.f32 %v5206, %v5446
        %v5513 = vadd.f32 %v5207, %v5449
        %v5514 = vadd.f32 %v5208, %v5454
        %v5515 = vadd.f32 %v5209, %v5457
        %v5516 = vadd.f32 %v5210, %v5462
        %v5517 = vadd.f32 %v5211, %v5465
        %v5518 = vadd.f32 %v5212, %v5470
        %v5519 = vadd.f32 %v5213, %v5473
        %v5520 = vadd.f32 %v5214, %v5478
        %v5521 = vadd.f32 %v5215, %v5481
        %v5522 = vadd.f32 %v5216, %v5486
        %v5523 = vadd.f32 %v5217, %v5489
        %v5524 = vld [vmem:[%s4911 + $0x2] sm:$0xff]
        %v5525 = vld [vmem:[%s4911 + $0xa] sm:$0xff]
        %v5526 = vld [vmem:[%s4911 + $0x1a] sm:$0xff]
        %v5527 = vld [vmem:[%s4911 + $0x22] sm:$0xff]
        %v5528 = vld [vmem:[%s4911 + $0x32] sm:$0xff]
        %v5529 = vld [vmem:[%s4911 + $0x3a] sm:$0xff]
        %v5530 = vld [vmem:[%s4911 + $0x4a] sm:$0xff]
        %v5531 = vld [vmem:[%s4911 + $0x52] sm:$0xff]
        %v5532 = vld [vmem:[%s4911 + $0x62] sm:$0xff]
        %v5533 = vld [vmem:[%s4911 + $0x6a] sm:$0xff]
        %v5534 = vld [vmem:[%s4911 + $0x7a] sm:$0xff]
        %v5535 = vld [vmem:[%s4911 + $0x82] sm:$0xff]
        %v5536 = vld [vmem:[%s4911 + $0x92] sm:$0xff]
        %v5537 = vld [vmem:[%s4911 + $0x9a] sm:$0xff]
        %v5538 = vld [vmem:[%s4911 + $0xaa] sm:$0xff]
        %v5539 = vld [vmem:[%s4911 + $0xb2] sm:$0xff]
        %v5540 = vld [vmem:[%s4911 + $0xc2] sm:$0xff]
        %v5541 = vld [vmem:[%s4911 + $0xca] sm:$0xff]
        %v5542 = vld [vmem:[%s4911 + $0xda] sm:$0xff]
        %v5543 = vld [vmem:[%s4911 + $0xe2] sm:$0xff]
        %v5544 = vld [vmem:[%s4911 + $0xf2] sm:$0xff]
        %v5545 = vld [vmem:[%s4911 + $0xfa] sm:$0xff]
        %v5546 = vld [vmem:[%s4911 + $0x10a] sm:$0xff]
        %v5547 = vld [vmem:[%s4911 + $0x112] sm:$0xff]
        %v5548 = vld [vmem:[%s4911 + $0x122] sm:$0xff]
        %v5549 = vld [vmem:[%s4911 + $0x12a] sm:$0xff]
        %v5550 = vld [vmem:[%s4911 + $0x13a] sm:$0xff]
        %v5551 = vld [vmem:[%s4911 + $0x142] sm:$0xff]
        %v5552 = vld [vmem:[%s4911 + $0x152] sm:$0xff]
        %v5553 = vld [vmem:[%s4911 + $0x15a] sm:$0xff]
        %v5554 = vld [vmem:[%s4911 + $0x16a] sm:$0xff]
        %v5555 = vld [vmem:[%s4911 + $0x172] sm:$0xff]
        %v5556 = vpack.c.bf16 %v5525, %v5524
        %v5557 = vpack.c.bf16 %v5527, %v5526
        %v5558 = vpack.c.bf16 %v5529, %v5528
        %v5559 = vpack.c.bf16 %v5531, %v5530
        %v5560 = vpack.c.bf16 %v5533, %v5532
        %v5561 = vpack.c.bf16 %v5535, %v5534
        %v5562 = vpack.c.bf16 %v5537, %v5536
        %v5563 = vpack.c.bf16 %v5539, %v5538
        %v5564 = vpack.c.bf16 %v5541, %v5540
        %v5565 = vpack.c.bf16 %v5543, %v5542
        %v5566 = vpack.c.bf16 %v5545, %v5544
        %v5567 = vpack.c.bf16 %v5547, %v5546
        %v5568 = vpack.c.bf16 %v5549, %v5548
        %v5569 = vpack.c.bf16 %v5551, %v5550
        %v5570 = vpack.c.bf16 %v5553, %v5552
        %v5571 = vpack.c.bf16 %v5555, %v5554
        %s5572 = scalar_lea.vmem %s3, 512
        %v5573 = vld [vmem:[%s5572] sm:$0xf]
        %v5574 = vld [vmem:[%s5572 + $0x4] sm:$0xf]
        %v5575 = vld [vmem:[%s5572 + $0x8] sm:$0xf]
        %v5576 = vld [vmem:[%s5572 + $0xc] sm:$0xf]
        %v5577 = vld [vmem:[%s5572 + $0x10] sm:$0xf]
        %v5578 = vld [vmem:[%s5572 + $0x14] sm:$0xf]
        %v5579 = vld [vmem:[%s5572 + $0x18] sm:$0xf]
        %v5580 = vld [vmem:[%s5572 + $0x1c] sm:$0xf]
        %v5581 = vld [vmem:[%s5572 + $0x20] sm:$0xf]
        %v5582 = vld [vmem:[%s5572 + $0x24] sm:$0xf]
        %v5583 = vld [vmem:[%s5572 + $0x28] sm:$0xf]
        %v5584 = vld [vmem:[%s5572 + $0x2c] sm:$0xf]
        %v5585 = vld [vmem:[%s5572 + $0x30] sm:$0xf]
        %v5586 = vld [vmem:[%s5572 + $0x34] sm:$0xf]
        %v5587 = vld [vmem:[%s5572 + $0x38] sm:$0xf]
        %v5588 = vld [vmem:[%s5572 + $0x3c] sm:$0xf]
        %v5605 = vunpack.c.l.b16 %v5573
        %v5606 = vunpack.c.l.b16 %v5574
        %v5607 = vunpack.c.l.b16 %v5575
        %v5608 = vunpack.c.l.b16 %v5576
        %v5609 = vunpack.c.l.b16 %v5577
        %v5610 = vunpack.c.l.b16 %v5578
        %v5611 = vunpack.c.l.b16 %v5579
        %v5612 = vunpack.c.l.b16 %v5580
        %v5613 = vunpack.c.l.b16 %v5581
        %v5614 = vunpack.c.l.b16 %v5582
        %v5615 = vunpack.c.l.b16 %v5583
        %v5616 = vunpack.c.l.b16 %v5584
        %v5617 = vunpack.c.l.b16 %v5585
        %v5618 = vunpack.c.l.b16 %v5586
        %v5619 = vunpack.c.l.b16 %v5587
        %v5620 = vunpack.c.l.b16 %v5588
        %v5621 = vpack.c.b16 %v5606, %v5605
        %v5622 = vpack.c.b16 %v5608, %v5607
        %v5623 = vpack.c.b16 %v5610, %v5609
        %v5624 = vpack.c.b16 %v5612, %v5611
        %v5625 = vpack.c.b16 %v5614, %v5613
        %v5626 = vpack.c.b16 %v5616, %v5615
        %v5627 = vpack.c.b16 %v5618, %v5617
        %v5628 = vpack.c.b16 %v5620, %v5619
        %5637 = vmatprep.subr.bf16.mxu0 0
        %5638 = vmatpush1.bf16.msra.mxu0 %v5621
        %5639 = vmatprep.subr.bf16.mxu0 0
        %5640 = vmatpush1.bf16.msra.mxu0 %v5622
        %5641 = vmatprep.subr.bf16.mxu0 0
        %5642 = vmatpush1.bf16.msra.mxu0 %v5623
        %5643 = vmatprep.subr.bf16.mxu0 0
        %5644 = vmatpush1.bf16.msra.mxu0 %v5624
        %5645 = vmatprep.subr.bf16.mxu0 0
        %5646 = vmatpush1.bf16.msra.mxu0 %v5625
        %5647 = vmatprep.subr.bf16.mxu0 0
        %5648 = vmatpush1.bf16.msra.mxu0 %v5626
        %5649 = vmatprep.subr.bf16.mxu0 0
        %5650 = vmatpush1.bf16.msra.mxu0 %v5627
        %5651 = vmatprep.subr.bf16.mxu0 0
        %5652 = vmatpush1.bf16.msra.mxu0 %v5628
        %5653 = vmatprep.subr.bf16.mxu0 0
        %5654 = vmatpush1.bf16.msra.mxu0 0
        %5655 = vmatprep.subr.bf16.mxu0 0
        %5656 = vmatpush1.bf16.msra.mxu0 0
        %5657 = vmatprep.subr.bf16.mxu0 0
        %5658 = vmatpush1.bf16.msra.mxu0 0
        %5659 = vmatprep.subr.bf16.mxu0 0
        %5660 = vmatpush1.bf16.msra.mxu0 0
        %5661 = vmatprep.subr.bf16.mxu0 0
        %5662 = vmatpush1.bf16.msra.mxu0 0
        %5663 = vmatprep.subr.bf16.mxu0 0
        %5664 = vmatpush1.bf16.msra.mxu0 0
        %5665 = vmatprep.subr.bf16.mxu0 0
        %5666 = vmatpush1.bf16.msra.mxu0 0
        %5667 = vmatprep.subr.bf16.mxu0 0
        %5668 = vmatpush1.bf16.msra.mxu0 0
        %5669 = vmatprep.mubr.bf16.mxu0 0
        %5670 = vmatmul.mubr.bf16.gmra.mrb[0].mxu0 %v5556
        %v5671 = vpop.f32.mrb[0].mxu0
        %v5672 = vadd.f32 0.0, %v5671
        %v5673 = vpop.f32.mrb[0].mxu0
        %v5674 = vpop.f32.mrb[0].mxu0
        %v5675 = vadd.f32 0.0, %v5674
        %v5676 = vpop.f32.mrb[0].mxu0
        %5677 = vmatprep.mubr.bf16.mxu0 0
        %5678 = vmatmul.mubr.bf16.gmra.mrb[0].mxu0 %v5557
        %v5679 = vpop.f32.mrb[0].mxu0
        %v5680 = vadd.f32 0.0, %v5679
        %v5681 = vpop.f32.mrb[0].mxu0
        %v5682 = vpop.f32.mrb[0].mxu0
        %v5683 = vadd.f32 0.0, %v5682
        %v5684 = vpop.f32.mrb[0].mxu0
        %5685 = vmatprep.mubr.bf16.mxu0 0
        %5686 = vmatmul.mubr.bf16.gmra.mrb[0].mxu0 %v5558
        %v5687 = vpop.f32.mrb[0].mxu0
        %v5688 = vadd.f32 0.0, %v5687
        %v5689 = vpop.f32.mrb[0].mxu0
        %v5690 = vpop.f32.mrb[0].mxu0
        %v5691 = vadd.f32 0.0, %v5690
        %v5692 = vpop.f32.mrb[0].mxu0
        %5693 = vmatprep.mubr.bf16.mxu0 0
        %5694 = vmatmul.mubr.bf16.gmra.mrb[0].mxu0 %v5559
        %v5695 = vpop.f32.mrb[0].mxu0
        %v5696 = vadd.f32 0.0, %v5695
        %v5697 = vpop.f32.mrb[0].mxu0
        %v5698 = vpop.f32.mrb[0].mxu0
        %v5699 = vadd.f32 0.0, %v5698
        %v5700 = vpop.f32.mrb[0].mxu0
        %5701 = vmatprep.mubr.bf16.mxu0 0
        %5702 = vmatmul.mubr.bf16.gmra.mrb[0].mxu0 %v5560
        %v5703 = vpop.f32.mrb[0].mxu0
        %v5704 = vadd.f32 0.0, %v5703
        %v5705 = vpop.f32.mrb[0].mxu0
        %v5706 = vpop.f32.mrb[0].mxu0
        %v5707 = vadd.f32 0.0, %v5706
        %v5708 = vpop.f32.mrb[0].mxu0
        %5709 = vmatprep.mubr.bf16.mxu0 0
        %5710 = vmatmul.mubr.bf16.gmra.mrb[0].mxu0 %v5561
        %v5711 = vpop.f32.mrb[0].mxu0
        %v5712 = vadd.f32 0.0, %v5711
        %v5713 = vpop.f32.mrb[0].mxu0
        %v5714 = vpop.f32.mrb[0].mxu0
        %v5715 = vadd.f32 0.0, %v5714
        %v5716 = vpop.f32.mrb[0].mxu0
        %5717 = vmatprep.mubr.bf16.mxu0 0
        %5718 = vmatmul.mubr.bf16.gmra.mrb[0].mxu0 %v5562
        %v5719 = vpop.f32.mrb[0].mxu0
        %v5720 = vadd.f32 0.0, %v5719
        %v5721 = vpop.f32.mrb[0].mxu0
        %v5722 = vpop.f32.mrb[0].mxu0
        %v5723 = vadd.f32 0.0, %v5722
        %v5724 = vpop.f32.mrb[0].mxu0
        %5725 = vmatprep.mubr.bf16.mxu0 0
        %5726 = vmatmul.mubr.bf16.gmra.mrb[0].mxu0 %v5563
        %v5727 = vpop.f32.mrb[0].mxu0
        %v5728 = vadd.f32 0.0, %v5727
        %v5729 = vpop.f32.mrb[0].mxu0
        %v5730 = vpop.f32.mrb[0].mxu0
        %v5731 = vadd.f32 0.0, %v5730
        %v5732 = vpop.f32.mrb[0].mxu0
        %5733 = vmatprep.mubr.bf16.mxu0 0
        %5734 = vmatmul.mubr.bf16.gmra.mrb[0].mxu0 %v5564
        %v5735 = vpop.f32.mrb[0].mxu0
        %v5736 = vadd.f32 0.0, %v5735
        %v5737 = vpop.f32.mrb[0].mxu0
        %v5738 = vpop.f32.mrb[0].mxu0
        %v5739 = vadd.f32 0.0, %v5738
        %v5740 = vpop.f32.mrb[0].mxu0
        %5741 = vmatprep.mubr.bf16.mxu0 0
        %5742 = vmatmul.mubr.bf16.gmra.mrb[0].mxu0 %v5565
        %v5743 = vpop.f32.mrb[0].mxu0
        %v5744 = vadd.f32 0.0, %v5743
        %v5745 = vpop.f32.mrb[0].mxu0
        %v5746 = vpop.f32.mrb[0].mxu0
        %v5747 = vadd.f32 0.0, %v5746
        %v5748 = vpop.f32.mrb[0].mxu0
        %5749 = vmatprep.mubr.bf16.mxu0 0
        %5750 = vmatmul.mubr.bf16.gmra.mrb[0].mxu0 %v5566
        %v5751 = vpop.f32.mrb[0].mxu0
        %v5752 = vadd.f32 0.0, %v5751
        %v5753 = vpop.f32.mrb[0].mxu0
        %v5754 = vpop.f32.mrb[0].mxu0
        %v5755 = vadd.f32 0.0, %v5754
        %v5756 = vpop.f32.mrb[0].mxu0
        %5757 = vmatprep.mubr.bf16.mxu0 0
        %5758 = vmatmul.mubr.bf16.gmra.mrb[0].mxu0 %v5567
        %v5759 = vpop.f32.mrb[0].mxu0
        %v5760 = vadd.f32 0.0, %v5759
        %v5761 = vpop.f32.mrb[0].mxu0
        %v5762 = vpop.f32.mrb[0].mxu0
        %v5763 = vadd.f32 0.0, %v5762
        %v5764 = vpop.f32.mrb[0].mxu0
        %5765 = vmatprep.mubr.bf16.mxu0 0
        %5766 = vmatmul.mubr.bf16.gmra.mrb[0].mxu0 %v5568
        %v5767 = vpop.f32.mrb[0].mxu0
        %v5768 = vadd.f32 0.0, %v5767
        %v5769 = vpop.f32.mrb[0].mxu0
        %v5770 = vpop.f32.mrb[0].mxu0
        %v5771 = vadd.f32 0.0, %v5770
        %v5772 = vpop.f32.mrb[0].mxu0
        %5773 = vmatprep.mubr.bf16.mxu0 0
        %5774 = vmatmul.mubr.bf16.gmra.mrb[0].mxu0 %v5569
        %v5775 = vpop.f32.mrb[0].mxu0
        %v5776 = vadd.f32 0.0, %v5775
        %v5777 = vpop.f32.mrb[0].mxu0
        %v5778 = vpop.f32.mrb[0].mxu0
        %v5779 = vadd.f32 0.0, %v5778
        %v5780 = vpop.f32.mrb[0].mxu0
        %5781 = vmatprep.mubr.bf16.mxu0 0
        %5782 = vmatmul.mubr.bf16.gmra.mrb[0].mxu0 %v5570
        %v5783 = vpop.f32.mrb[0].mxu0
        %v5784 = vadd.f32 0.0, %v5783
        %v5785 = vpop.f32.mrb[0].mxu0
        %v5786 = vpop.f32.mrb[0].mxu0
        %v5787 = vadd.f32 0.0, %v5786
        %v5788 = vpop.f32.mrb[0].mxu0
        %5789 = vmatprep.mubr.bf16.mxu0 0
        %5790 = vmatmul.mubr.bf16.gmra.mrb[0].mxu0 %v5571
        %v5791 = vpop.f32.mrb[0].mxu0
        %v5792 = vadd.f32 0.0, %v5791
        %v5793 = vpop.f32.mrb[0].mxu0
        %v5794 = vpop.f32.mrb[0].mxu0
        %v5795 = vadd.f32 0.0, %v5794
        %v5796 = vpop.f32.mrb[0].mxu0
        %5797 = vdwg.mxu0
        %v5798 = vadd.f32 %v5492, %v5672
        %v5799 = vadd.f32 %v5493, %v5675
        %v5800 = vadd.f32 %v5494, %v5680
        %v5801 = vadd.f32 %v5495, %v5683
        %v5802 = vadd.f32 %v5496, %v5688
        %v5803 = vadd.f32 %v5497, %v5691
        %v5804 = vadd.f32 %v5498, %v5696
        %v5805 = vadd.f32 %v5499, %v5699
        %v5806 = vadd.f32 %v5500, %v5704
        %v5807 = vadd.f32 %v5501, %v5707
        %v5808 = vadd.f32 %v5502, %v5712
        %v5809 = vadd.f32 %v5503, %v5715
        %v5810 = vadd.f32 %v5504, %v5720
        %v5811 = vadd.f32 %v5505, %v5723
        %v5812 = vadd.f32 %v5506, %v5728
        %v5813 = vadd.f32 %v5507, %v5731
        %v5814 = vadd.f32 %v5508, %v5736
        %v5815 = vadd.f32 %v5509, %v5739
        %v5816 = vadd.f32 %v5510, %v5744
        %v5817 = vadd.f32 %v5511, %v5747
        %v5818 = vadd.f32 %v5512, %v5752
        %v5819 = vadd.f32 %v5513, %v5755
        %v5820 = vadd.f32 %v5514, %v5760
        %v5821 = vadd.f32 %v5515, %v5763
        %v5822 = vadd.f32 %v5516, %v5768
        %v5823 = vadd.f32 %v5517, %v5771
        %v5824 = vadd.f32 %v5518, %v5776
        %v5825 = vadd.f32 %v5519, %v5779
        %v5826 = vadd.f32 %v5520, %v5784
        %v5827 = vadd.f32 %v5521, %v5787
        %v5828 = vadd.f32 %v5522, %v5792
        %v5829 = vadd.f32 %v5523, %v5795
        %v5830 = vld [vmem:[%s4] sm:$0x1]
        %v5832 = vlaneseq
        %v5833 = vshrl.u32 %v5832, 7
        %v5834 = vsub.s32 0, %v5833
        %v5835 = vrot.slane %v5830, %v5834
        %v5837 = vadd.f32 %v5798, %v5835
        %v5838 = vadd.f32 %v5799, %v5835
        %v5839 = vadd.f32 %v5800, %v5835
        %v5840 = vadd.f32 %v5801, %v5835
        %v5841 = vadd.f32 %v5802, %v5835
        %v5842 = vadd.f32 %v5803, %v5835
        %v5843 = vadd.f32 %v5804, %v5835
        %v5844 = vadd.f32 %v5805, %v5835
        %v5845 = vadd.f32 %v5806, %v5835
        %v5846 = vadd.f32 %v5807, %v5835
        %v5847 = vadd.f32 %v5808, %v5835
        %v5848 = vadd.f32 %v5809, %v5835
        %v5849 = vadd.f32 %v5810, %v5835
        %v5850 = vadd.f32 %v5811, %v5835
        %v5851 = vadd.f32 %v5812, %v5835
        %v5852 = vadd.f32 %v5813, %v5835
        %v5853 = vadd.f32 %v5814, %v5835
        %v5854 = vadd.f32 %v5815, %v5835
        %v5855 = vadd.f32 %v5816, %v5835
        %v5856 = vadd.f32 %v5817, %v5835
        %v5857 = vadd.f32 %v5818, %v5835
        %v5858 = vadd.f32 %v5819, %v5835
        %v5859 = vadd.f32 %v5820, %v5835
        %v5860 = vadd.f32 %v5821, %v5835
        %v5861 = vadd.f32 %v5822, %v5835
        %v5862 = vadd.f32 %v5823, %v5835
        %v5863 = vadd.f32 %v5824, %v5835
        %v5864 = vadd.f32 %v5825, %v5835
        %v5865 = vadd.f32 %v5826, %v5835
        %v5866 = vadd.f32 %v5827, %v5835
        %v5867 = vadd.f32 %v5828, %v5835
        %v5868 = vadd.f32 %v5829, %v5835
        %v5869 = vld [vmem:[%s251] sm:$0xff]
        %v5870 = vld [vmem:[%s251 + $0x8] sm:$0xff]
        %v5871 = vld [vmem:[%s251 + $0x10] sm:$0xff]
        %v5872 = vld [vmem:[%s251 + $0x18] sm:$0xff]
        %v5873 = vld [vmem:[%s251 + $0x20] sm:$0xff]
        %v5874 = vld [vmem:[%s251 + $0x28] sm:$0xff]
        %v5875 = vld [vmem:[%s251 + $0x30] sm:$0xff]
        %v5876 = vld [vmem:[%s251 + $0x38] sm:$0xff]
        %v5877 = vld [vmem:[%s251 + $0x40] sm:$0xff]
        %v5878 = vld [vmem:[%s251 + $0x48] sm:$0xff]
        %v5879 = vld [vmem:[%s251 + $0x50] sm:$0xff]
        %v5880 = vld [vmem:[%s251 + $0x58] sm:$0xff]
        %v5881 = vld [vmem:[%s251 + $0x60] sm:$0xff]
        %v5882 = vld [vmem:[%s251 + $0x68] sm:$0xff]
        %v5883 = vld [vmem:[%s251 + $0x70] sm:$0xff]
        %v5884 = vld [vmem:[%s251 + $0x78] sm:$0xff]
        %v5885 = vld [vmem:[%s251 + $0x80] sm:$0xff]
        %v5886 = vld [vmem:[%s251 + $0x88] sm:$0xff]
        %v5887 = vld [vmem:[%s251 + $0x90] sm:$0xff]
        %v5888 = vld [vmem:[%s251 + $0x98] sm:$0xff]
        %v5889 = vld [vmem:[%s251 + $0xa0] sm:$0xff]
        %v5890 = vld [vmem:[%s251 + $0xa8] sm:$0xff]
        %v5891 = vld [vmem:[%s251 + $0xb0] sm:$0xff]
        %v5892 = vld [vmem:[%s251 + $0xb8] sm:$0xff]
        %v5893 = vld [vmem:[%s251 + $0xc0] sm:$0xff]
        %v5894 = vld [vmem:[%s251 + $0xc8] sm:$0xff]
        %v5895 = vld [vmem:[%s251 + $0xd0] sm:$0xff]
        %v5896 = vld [vmem:[%s251 + $0xd8] sm:$0xff]
        %v5897 = vld [vmem:[%s251 + $0xe0] sm:$0xff]
        %v5898 = vld [vmem:[%s251 + $0xe8] sm:$0xff]
        %v5899 = vld [vmem:[%s251 + $0xf0] sm:$0xff]
        %v5900 = vld [vmem:[%s251 + $0xf8] sm:$0xff]
        %v5901 = vadd.f32 %v5837, %v5869
        %v5902 = vadd.f32 %v5838, %v5870
        %v5903 = vadd.f32 %v5839, %v5871
        %v5904 = vadd.f32 %v5840, %v5872
        %v5905 = vadd.f32 %v5841, %v5873
        %v5906 = vadd.f32 %v5842, %v5874
        %v5907 = vadd.f32 %v5843, %v5875
        %v5908 = vadd.f32 %v5844, %v5876
        %v5909 = vadd.f32 %v5845, %v5877
        %v5910 = vadd.f32 %v5846, %v5878
        %v5911 = vadd.f32 %v5847, %v5879
        %v5912 = vadd.f32 %v5848, %v5880
        %v5913 = vadd.f32 %v5849, %v5881
        %v5914 = vadd.f32 %v5850, %v5882
        %v5915 = vadd.f32 %v5851, %v5883
        %v5916 = vadd.f32 %v5852, %v5884
        %v5917 = vadd.f32 %v5853, %v5885
        %v5918 = vadd.f32 %v5854, %v5886
        %v5919 = vadd.f32 %v5855, %v5887
        %v5920 = vadd.f32 %v5856, %v5888
        %v5921 = vadd.f32 %v5857, %v5889
        %v5922 = vadd.f32 %v5858, %v5890
        %v5923 = vadd.f32 %v5859, %v5891
        %v5924 = vadd.f32 %v5860, %v5892
        %v5925 = vadd.f32 %v5861, %v5893
        %v5926 = vadd.f32 %v5862, %v5894
        %v5927 = vadd.f32 %v5863, %v5895
        %v5928 = vadd.f32 %v5864, %v5896
        %v5929 = vadd.f32 %v5865, %v5897
        %v5930 = vadd.f32 %v5866, %v5898
        %v5931 = vadd.f32 %v5867, %v5899
        %v5932 = vadd.f32 %v5868, %v5900
        %v5933 = vmax.f32 %v5901, 0.0
        %v5934 = vmax.f32 %v5902, 0.0
        %v5935 = vmax.f32 %v5903, 0.0
        %v5936 = vmax.f32 %v5904, 0.0
        %v5937 = vmax.f32 %v5905, 0.0
        %v5938 = vmax.f32 %v5906, 0.0
        %v5939 = vmax.f32 %v5907, 0.0
        %v5940 = vmax.f32 %v5908, 0.0
        %v5941 = vmax.f32 %v5909, 0.0
        %v5942 = vmax.f32 %v5910, 0.0
        %v5943 = vmax.f32 %v5911, 0.0
        %v5944 = vmax.f32 %v5912, 0.0
        %v5945 = vmax.f32 %v5913, 0.0
        %v5946 = vmax.f32 %v5914, 0.0
        %v5947 = vmax.f32 %v5915, 0.0
        %v5948 = vmax.f32 %v5916, 0.0
        %v5949 = vmax.f32 %v5917, 0.0
        %v5950 = vmax.f32 %v5918, 0.0
        %v5951 = vmax.f32 %v5919, 0.0
        %v5952 = vmax.f32 %v5920, 0.0
        %v5953 = vmax.f32 %v5921, 0.0
        %v5954 = vmax.f32 %v5922, 0.0
        %v5955 = vmax.f32 %v5923, 0.0
        %v5956 = vmax.f32 %v5924, 0.0
        %v5957 = vmax.f32 %v5925, 0.0
        %v5958 = vmax.f32 %v5926, 0.0
        %v5959 = vmax.f32 %v5927, 0.0
        %v5960 = vmax.f32 %v5928, 0.0
        %v5961 = vmax.f32 %v5929, 0.0
        %v5962 = vmax.f32 %v5930, 0.0
        %v5963 = vmax.f32 %v5931, 0.0
        %v5964 = vmax.f32 %v5932, 0.0
        %5965 = vst [vmem:[%s284] sm:$0xff] %v5933
        %5966 = vst [vmem:[%s284 + $0x8] sm:$0xff] %v5934
        %5967 = vst [vmem:[%s284 + $0x10] sm:$0xff] %v5935
        %5968 = vst [vmem:[%s284 + $0x18] sm:$0xff] %v5936
        %5969 = vst [vmem:[%s284 + $0x20] sm:$0xff] %v5937
        %5970 = vst [vmem:[%s284 + $0x28] sm:$0xff] %v5938
        %5971 = vst [vmem:[%s284 + $0x30] sm:$0xff] %v5939
        %5972 = vst [vmem:[%s284 + $0x38] sm:$0xff] %v5940
        %5973 = vst [vmem:[%s284 + $0x40] sm:$0xff] %v5941
        %5974 = vst [vmem:[%s284 + $0x48] sm:$0xff] %v5942
        %5975 = vst [vmem:[%s284 + $0x50] sm:$0xff] %v5943
        %5976 = vst [vmem:[%s284 + $0x58] sm:$0xff] %v5944
        %5977 = vst [vmem:[%s284 + $0x60] sm:$0xff] %v5945
        %5978 = vst [vmem:[%s284 + $0x68] sm:$0xff] %v5946
        %5979 = vst [vmem:[%s284 + $0x70] sm:$0xff] %v5947
        %5980 = vst [vmem:[%s284 + $0x78] sm:$0xff] %v5948
        %5981 = vst [vmem:[%s284 + $0x80] sm:$0xff] %v5949
        %5982 = vst [vmem:[%s284 + $0x88] sm:$0xff] %v5950
        %5983 = vst [vmem:[%s284 + $0x90] sm:$0xff] %v5951
        %5984 = vst [vmem:[%s284 + $0x98] sm:$0xff] %v5952
        %5985 = vst [vmem:[%s284 + $0xa0] sm:$0xff] %v5953
        %5986 = vst [vmem:[%s284 + $0xa8] sm:$0xff] %v5954
        %5987 = vst [vmem:[%s284 + $0xb0] sm:$0xff] %v5955
        %5988 = vst [vmem:[%s284 + $0xb8] sm:$0xff] %v5956
        %5989 = vst [vmem:[%s284 + $0xc0] sm:$0xff] %v5957
        %5990 = vst [vmem:[%s284 + $0xc8] sm:$0xff] %v5958
        %5991 = vst [vmem:[%s284 + $0xd0] sm:$0xff] %v5959
        %5992 = vst [vmem:[%s284 + $0xd8] sm:$0xff] %v5960
        %5993 = vst [vmem:[%s284 + $0xe0] sm:$0xff] %v5961
        %5994 = vst [vmem:[%s284 + $0xe8] sm:$0xff] %v5962
        %5995 = vst [vmem:[%s284 + $0xf0] sm:$0xff] %v5963
        %5996 = vst [vmem:[%s284 + $0xf8] sm:$0xff] %v5964
        %s5997 = sand.u32 %s167, 1
        %s5998 = scalar_lea.sflag [#allocation5], %s5997
        %s5999 = sand.u32 %s167, 1
        %s6000 = smul.addr %s5999, 256
        %s6001 = scalar_lea.vmem [#allocation6], %s6000
        // Predicated region
        $region49: #{tpu_custom_call.1} parent=43 // pred_check
          %p6002 = pneg %p177
        $region50: #{tpu_custom_call.1} parent=43 // pred_check_branch
          %6004 = sbr.rel (%p6002) target = $region52
        $region51: #{tpu_custom_call.1} parent=43 // pred_region
          %s6006 = ssub.s32 4096, 4096
          %6007 = vsyncadd %s5998, %s6006
          %s6008 = smul.addr %s23, 32
          %s6009 = smul.addr %s6008, 128
          %s6010 = scalar_lea.hbm %s6, %s6009
          %s6011 = sshll.u32 %s6001, 4
          %s6012 = int_to_ptr.vmem [resolvable:$true] %s6011
          %6017 = dma.vmem_to_hbm [thread:$0]  %s6012, 4096, %s6010, %s5998, 128, 128, 8
        $region52: #{tpu_custom_call.1} parent=43 // pred_fallthru
          _
      $region44: #{tpu_custom_call.1} parent=5 // pred_fallthru
        _
      %p6018 = scmp.le.s32.totalorder 2, %s18
      // Predicated region
      $region53: #{tpu_custom_call.1} parent=5 // pred_check
        %p6019 = pneg %p6018
      $region54: #{tpu_custom_call.1} parent=5 // pred_check_branch
        %6021 = sbr.rel (%p6019) target = $region56
      $region55: #{tpu_custom_call.1} parent=5 // pred_region
        %s6022 = ssub.s32 %s18, 2
        // Predicated region
        $region57: #{tpu_custom_call.1} parent=55 // pred_check
          %p6023 = pneg %p183
        $region58: #{tpu_custom_call.1} parent=55 // pred_check_branch
          %6025 = sbr.rel (%p6023) target = $region60
        $region59: #{tpu_custom_call.1} parent=55 // pred_region
          %s6026 = sand.u32 %s168, 1
          %s6027 = scalar_lea.sflag [#allocation5], %s6026
          %s6028 = sand.u32 %s168, 1
          %s6029 = smul.addr %s6028, 256
          %s6030 = scalar_lea.vmem [#allocation6], %s6029
          %6031 = dma.done %s6027, 4096
        $region60: #{tpu_custom_call.1} parent=55 // pred_fallthru
          _
      $region56: #{tpu_custom_call.1} parent=5 // pred_fallthru
        _
    $region6: #{tpu_custom_call.1} parent=1 // loop_footer
      %s22 = sadd.s32 1, %s18
    $region7: #{tpu_custom_call.1} parent=1 // loop_footer_branch
      %17 = sbr.rel target = $region3
    $region8: #{tpu_custom_call.1} parent=1 // loop_exit
      _
    %6032 = vsyncpa [#allocation4], 1
    %s6033 = scalar_lea.sflag [#allocation4], 1
    %6034 = vsyncpa %s6033, 1
    %6035 = vsyncpa [#allocation5], 1
    %s6036 = scalar_lea.sflag [#allocation5], 1
    %6037 = vsyncpa %s6036, 1

</llo_original>
